<compile_context>
chip_gen: v5e
topology: v5e:2x2
jax: 0.10.0
libtpu: 0.0.40
codegen_flags: <defaults>
</compile_context>

<pallas_src>
import functools

import jax
import jax.numpy as jnp
import numpy as np
from jax import lax
from jax.experimental import pallas as pl
from jax.experimental.pallas import tpu as pltpu


def _branch_specs(kernel_size):
    """Returns [(k, dilation, padding), ...]; the lk_origin branch first."""
    if kernel_size == 17:
        ks, ds = [5, 9, 3, 3, 3], [1, 2, 4, 5, 7]
    elif kernel_size == 15:
        ks, ds = [5, 7, 3, 3, 3], [1, 2, 3, 5, 7]
    elif kernel_size == 13:
        ks, ds = [5, 7, 3, 3, 3], [1, 2, 3, 4, 5]
    elif kernel_size == 11:
        ks, ds = [5, 5, 3, 3, 3], [1, 2, 3, 4, 5]
    elif kernel_size == 9:
        ks, ds = [5, 5, 3, 3], [1, 2, 3, 4]
    elif kernel_size == 7:
        ks, ds = [5, 3, 3], [1, 2, 3]
    elif kernel_size == 5:
        ks, ds = [3, 3], [1, 2]
    else:
        raise ValueError('Dilated Reparam Block requires kernel_size >= 5')
    branches = [(kernel_size, 1, kernel_size // 2)]  # lk_origin
    branches += [(k, r, (r * (k - 1) + 1) // 2) for k, r in zip(ks, ds)]
    return branches


def make_dilated_reparam_kernel(K, P, H, W, TH_outer, TH_inner, TC, hoist_cols):
    """Kernel body: merged K x K depthwise conv over a (TH_outer, W, TC) slab."""
    n_sub = TH_outer // TH_inner

    def kernel(x_ref, w_ref, b_ref, o_ref, pad_ref):
        h = pl.program_id(2)  # innermost grid axis: H super-tiles

        # Build the zero-padded image in VMEM once per (n, c) group.
        @pl.when(h == 0)
        def _():
            pad_ref[...] = jnp.zeros_like(pad_ref)
            pad_ref[P:P + H, P:P + W, :] = x_ref[...]

        # Per-channel bias broadcast, hoisted out of all loops.
        bias_tile = jnp.broadcast_to(b_ref[0, :].astype(jnp.float32), (TH_inner, W, TC))

        base_row = h * TH_outer  # first padded row needed by this grid step

        for s in range(n_sub):  # static inner loop over accumulator tiles
            row0 = base_row + s * TH_inner
            acc = bias_tile

            for j in range(K):  # static unroll: depthwise MACs on the VPU
                if hoist_cols:
                    # One unaligned sublane (W) slice per column j, reused for all i.
                    slab = pad_ref[pl.ds(row0, TH_inner + 2 * P), j:j + W, :].astype(jnp.float32)
                    for i in range(K):
                        acc = acc + w_ref[i, j, :].astype(jnp.float32) * slab[i:i + TH_inner]
                else:
                    for i in range(K):
                        acc = acc + (w_ref[i, j, :].astype(jnp.float32) *
                                     pad_ref[pl.ds(row0 + i, TH_inner), j:j + W, :]
                                     .astype(jnp.float32))

            o_ref[s * TH_inner:(s + 1) * TH_inner] = acc.astype(o_ref.dtype)

    return kernel


@functools.partial(jax.jit, static_argnames=("kernel_size",))
def dilated_reparam_conv(x_nchw, weights, bn_params, kernel_size):
    """weights: list of (C, k, k) depthwise kernels (origin first).
       bn_params: list of (gamma, beta, running_mean, running_var), each (C,)."""
    N, C, H, W = x_nchw.shape
    K = kernel_size
    P = K // 2
    eps = 1e-5
    branches = _branch_specs(K)

    # ---- host-side reparameterization: fold eval-mode BN into each branch and
    #      merge all branches into a single equivalent K x K depthwise kernel
    #      (same math as the module's convert_to_deploy()). ----
    merged_w = jnp.zeros((K, K, C), jnp.float32)
    bias = jnp.zeros((C,), jnp.float32)
    for (k, r, _pad), w, (gamma, beta, mean, var) in zip(branches, weights, bn_params):
        scale = (gamma / jnp.sqrt(var + eps)).astype(jnp.float32)
        wf = jnp.transpose(w.astype(jnp.float32) * scale[:, None, None], (1, 2, 0))  # (k,k,C)
        eq_k = r * (k - 1) + 1
        off = K // 2 - eq_k // 2
        assert off >= 0, "branch receptive field exceeds the origin kernel"
        eq = jnp.zeros((eq_k, eq_k, C), jnp.float32).at[::r, ::r, :].set(wf)
        merged_w = merged_w + jnp.pad(eq, ((off, off), (off, off), (0, 0)))
        bias = bias + (beta - mean * scale)

    # ---- layout: NCHW -> NHWC (C on the 128-lane axis); no f32 upcast. ----
    # TODO(synk): in a full model keep activations NHWC end-to-end so this
    # transpose (and the inverse on the way out) disappears.
    x = jnp.transpose(x_nchw, (0, 2, 3, 1))
    itemsize = x.dtype.itemsize

    # ---- tiling ----
    TC = 128 if (C % 128 == 0) else C                 # lane-dense channel tile when possible

    # Inner tile: keep the f32 accumulator <= ~8 vregs.
    max_inner = max(1, 8192 // (W * TC))
    TH_inner = 1
    for t in range(1, H + 1):
        if H % t == 0 and t <= max_inner:
            TH_inner = t

    # Outer tile: pack as many inner tiles per grid step as code size / output
    # block size allow.  For small images this collapses the H grid axis to 1.
    n_tiles = H // TH_inner
    max_sub_by_code = max(1, 512 // (K * K))          # bound unrolled MAC statements
    max_sub_by_out = max(1, (2 * 1024 * 1024) // max(1, TH_inner * W * TC * itemsize))
    max_sub = min(n_tiles, max_sub_by_code, max_sub_by_out)
    SUB = 1
    for s in range(1, n_tiles + 1):
        if n_tiles % s == 0 and s <= max_sub:
            SUB = s
    TH_outer = TH_inner * SUB

    hoist_cols = (TH_inner + 2 * P) * W * TC <= 24 * 1024   # hoisted slab <= ~24 vregs

    grid = (N, C // TC, H // TH_outer)
    kernel = make_dilated_reparam_kernel(K, P, H, W, TH_outer, TH_inner, TC, hoist_cols)

    cost = pl.CostEstimate(
        flops=2 * N * H * W * C * K * K,
        transcendentals=0,
        bytes_accessed=2 * N * H * W * C * itemsize + K * K * C * 4 + C * 4,
    )

    out_nhwc = pl.pallas_call(
        kernel,
        out_shape=jax.ShapeDtypeStruct((N, H, W, C), x.dtype),
        grid=grid,
        in_specs=[
            pl.BlockSpec((None, H, W, TC), lambda n, c, h: (n, 0, 0, c)),  # image (fetched once per (n,c))
            pl.BlockSpec((K, K, TC), lambda n, c, h: (0, 0, c)),           # merged depthwise kernel
            pl.BlockSpec((1, TC), lambda n, c, h: (0, c)),                 # merged bias
        ],
        out_specs=pl.BlockSpec((None, TH_outer, W, TC), lambda n, c, h: (n, h, 0, c)),
        scratch_shapes=[pltpu.VMEM((H + 2 * P, W + 2 * P, TC), x.dtype)],  # zero-padded image
        compiler_params=pltpu.CompilerParams(
            dimension_semantics=("parallel", "parallel", "arbitrary"),
            vmem_limit_bytes=32 * 1024 * 1024,
        ),
        cost_estimate=cost,
    )(x, merged_w, bias[None, :])

    return jnp.transpose(out_nhwc, (0, 3, 1, 2))  # back to NCHW


def reference_forward(x_nchw, weights, bn_params, kernel_size):
    """Pure-JAX per-branch reference matching the PyTorch (eval-mode) forward."""
    branches = _branch_specs(kernel_size)
    C = x_nchw.shape[1]
    eps = 1e-5
    out = None
    for (k, r, pad), w, (gamma, beta, mean, var) in zip(branches, weights, bn_params):
        y = lax.conv_general_dilated(
            x_nchw, w[:, None, :, :], window_strides=(1, 1),
            padding=[(pad, pad), (pad, pad)], rhs_dilation=(r, r),
            feature_group_count=C,
            dimension_numbers=('NCHW', 'OIHW', 'NCHW'),
            precision=lax.Precision.HIGHEST)
        scale = gamma / jnp.sqrt(var + eps)
        y = y * scale[None, :, None, None] + (beta - mean * scale)[None, :, None, None]
        out = y if out is None else out + y
    return out


if __name__ == "__main__":
    # in_channels == out_channels => conv1x1 is nn.Identity in the module.
    # C=128 keeps the lane (last) block dim dense; spatial/batch stay small.
    N, C, Hs, Ws = 2, 128, 16, 16
    kernel_size = 7
    branches = _branch_specs(kernel_size)

    key = jax.random.PRNGKey(0)
    keys = jax.random.split(key, 1 + 5 * len(branches))
    x = jax.random.normal(keys[0], (N, C, Hs, Ws), jnp.float32)

    # Deterministic synthetic parameters (depthwise conv weights + BN stats).
    weights, bn_params = [], []
    for b, (k, r, pad) in enumerate(branches):
        kw, kg, kb, km, kv = keys[1 + 5 * b: 1 + 5 * b + 5]
        weights.append(0.1 * jax.random.normal(kw, (C, k, k), jnp.float32))
        gamma = 1.0 + 0.1 * jax.random.normal(kg, (C,), jnp.float32)
        beta = 0.1 * jax.random.normal(kb, (C,), jnp.float32)
        mean = 0.05 * jax.random.normal(km, (C,), jnp.float32)
        var = 0.5 + jax.random.uniform(kv, (C,), jnp.float32)
        bn_params.append((gamma, beta, mean, var))

    out = dilated_reparam_conv(x, weights, bn_params, kernel_size)
    out = jax.block_until_ready(out)

    ref = reference_forward(x, weights, bn_params, kernel_size)
    np.testing.assert_allclose(np.asarray(out), np.asarray(ref), rtol=2e-3, atol=1e-3)

    print("KERNEL_OK")
</pallas_src>

<mosaic_0001>
module attributes {stable_mosaic.version = 11 : i64} {
  func.func @kernel(%arg0: i32, %arg1: i32, %arg2: i32, %arg3: memref<1x16x16x128xf32, #tpu.memory_space<vmem>>, %arg4: memref<7x7x128xf32, #tpu.memory_space<vmem>>, %arg5: memref<1x128xf32, #tpu.memory_space<vmem>>, %arg6: memref<1x16x16x128xf32, #tpu.memory_space<vmem>>, %arg7: memref<22x22x128xf32, #tpu.memory_space<vmem>>) attributes {dimension_semantics = [#tpu.dimension_semantics<parallel>, #tpu.dimension_semantics<parallel>, #tpu.dimension_semantics<arbitrary>], iteration_bounds = array<i64: 2, 1, 1>, scalar_prefetch = 0 : i64, scratch_operands = 1 : i64, tpu.core_type = #tpu.core_type<tc>, window_params = [{transform_indices = @transform_0, window_bounds = array<i64: 1, 16, 16, 128>}, {transform_indices = @transform_1, window_bounds = array<i64: 7, 7, 128>}, {transform_indices = @transform_2, window_bounds = array<i64: 1, 128>}, {transform_indices = @transform_3, window_bounds = array<i64: 1, 16, 16, 128>}]} {
    %c0_i32 = arith.constant 0 : i32
    %0 = arith.cmpi eq, %arg2, %c0_i32 : i32
    %1 = arith.extui %0 : i1 to i32
    %c0_i32_0 = arith.constant 0 : i32
    %2 = arith.cmpi ne, %1, %c0_i32_0 : i32
    scf.if %2 {
      %cst = arith.constant 0.000000e+00 : f32
      %1452 = vector.broadcast %cst : f32 to vector<22x22x128xf32>
      %c0_655 = arith.constant 0 : index
      %c0_656 = arith.constant 0 : index
      %c0_657 = arith.constant 0 : index
      %1453 = vector.load %arg7[%c0_655, %c0_656, %c0_657] : memref<22x22x128xf32, #tpu.memory_space<vmem>>, vector<22x22x128xf32>
      tpu.vector_store %arg7[%c0_655, %c0_656, %c0_657], %1452 {strides = array<i32>} : memref<22x22x128xf32, #tpu.memory_space<vmem>>, vector<22x22x128xf32>,
      %c0_658 = arith.constant 0 : index
      %c0_659 = arith.constant 0 : index
      %c0_660 = arith.constant 0 : index
      %c0_661 = arith.constant 0 : index
      %1454 = vector.load %arg3[%c0_658, %c0_659, %c0_660, %c0_661] : memref<1x16x16x128xf32, #tpu.memory_space<vmem>>, vector<1x16x16x128xf32>
      %1455 = vector.shape_cast %1454 : vector<1x16x16x128xf32> to vector<16x16x128xf32>
      %c3_662 = arith.constant 3 : index
      %c3_663 = arith.constant 3 : index
      %c0_664 = arith.constant 0 : index
      %1456 = vector.load %arg7[%c3_662, %c3_663, %c0_664] : memref<22x22x128xf32, #tpu.memory_space<vmem>>, vector<16x16x128xf32>
      tpu.vector_store %arg7[%c3_662, %c3_663, %c0_664], %1455 {strides = array<i32>} : memref<22x22x128xf32, #tpu.memory_space<vmem>>, vector<16x16x128xf32>,
    } else {
    }
    %c0 = arith.constant 0 : index
    %c0_1 = arith.constant 0 : index
    %3 = vector.load %arg5[%c0, %c0_1] : memref<1x128xf32, #tpu.memory_space<vmem>>, vector<1x128xf32>
    %4 = vector.shape_cast %3 : vector<1x128xf32> to vector<128xf32>
    %5 = vector.shape_cast %4 : vector<128xf32> to vector<1x1x128xf32>
    %6 = vector.broadcast %5 : vector<1x1x128xf32> to vector<4x16x128xf32>
    %c16_i32 = arith.constant 16 : i32
    %7 = arith.muli %arg2, %c16_i32 : i32
    %c0_i32_2 = arith.constant 0 : i32
    %8 = arith.addi %7, %c0_i32_2 : i32
    %9 = arith.index_cast %8 : i32 to index
    %c0_3 = arith.constant 0 : index
    %c0_4 = arith.constant 0 : index
    %10 = vector.load %arg7[%9, %c0_3, %c0_4] : memref<22x22x128xf32, #tpu.memory_space<vmem>>, vector<10x16x128xf32>
    %c0_5 = arith.constant 0 : index
    %c0_6 = arith.constant 0 : index
    %c0_7 = arith.constant 0 : index
    %11 = vector.load %arg4[%c0_5, %c0_6, %c0_7] : memref<7x7x128xf32, #tpu.memory_space<vmem>>, vector<1x1x128xf32>
    %12 = vector.shape_cast %11 : vector<1x1x128xf32> to vector<128xf32>
    %13 = vector.extract_strided_slice %10 {offsets = [0, 0, 0], sizes = [4, 16, 128], strides = [1, 1, 1]} : vector<10x16x128xf32> to vector<4x16x128xf32>
    %14 = vector.shape_cast %12 : vector<128xf32> to vector<1x1x128xf32>
    %15 = vector.broadcast %14 : vector<1x1x128xf32> to vector<4x16x128xf32>
    %16 = arith.mulf %15, %13 : vector<4x16x128xf32>
    %17 = arith.addf %6, %16 : vector<4x16x128xf32>
    %c1 = arith.constant 1 : index
    %c0_8 = arith.constant 0 : index
    %c0_9 = arith.constant 0 : index
    %18 = vector.load %arg4[%c1, %c0_8, %c0_9] : memref<7x7x128xf32, #tpu.memory_space<vmem>>, vector<1x1x128xf32>
    %19 = vector.shape_cast %18 : vector<1x1x128xf32> to vector<128xf32>
    %20 = vector.extract_strided_slice %10 {offsets = [1, 0, 0], sizes = [4, 16, 128], strides = [1, 1, 1]} : vector<10x16x128xf32> to vector<4x16x128xf32>
    %21 = vector.shape_cast %19 : vector<128xf32> to vector<1x1x128xf32>
    %22 = vector.broadcast %21 : vector<1x1x128xf32> to vector<4x16x128xf32>
    %23 = arith.mulf %22, %20 : vector<4x16x128xf32>
    %24 = arith.addf %17, %23 : vector<4x16x128xf32>
    %c2 = arith.constant 2 : index
    %c0_10 = arith.constant 0 : index
    %c0_11 = arith.constant 0 : index
    %25 = vector.load %arg4[%c2, %c0_10, %c0_11] : memref<7x7x128xf32, #tpu.memory_space<vmem>>, vector<1x1x128xf32>
    %26 = vector.shape_cast %25 : vector<1x1x128xf32> to vector<128xf32>
    %27 = vector.extract_strided_slice %10 {offsets = [2, 0, 0], sizes = [4, 16, 128], strides = [1, 1, 1]} : vector<10x16x128xf32> to vector<4x16x128xf32>
    %28 = vector.shape_cast %26 : vector<128xf32> to vector<1x1x128xf32>
    %29 = vector.broadcast %28 : vector<1x1x128xf32> to vector<4x16x128xf32>
    %30 = arith.mulf %29, %27 : vector<4x16x128xf32>
    %31 = arith.addf %24, %30 : vector<4x16x128xf32>
    %c3 = arith.constant 3 : index
    %c0_12 = arith.constant 0 : index
    %c0_13 = arith.constant 0 : index
    %32 = vector.load %arg4[%c3, %c0_12, %c0_13] : memref<7x7x128xf32, #tpu.memory_space<vmem>>, vector<1x1x128xf32>
    %33 = vector.shape_cast %32 : vector<1x1x128xf32> to vector<128xf32>
    %34 = vector.extract_strided_slice %10 {offsets = [3, 0, 0], sizes = [4, 16, 128], strides = [1, 1, 1]} : vector<10x16x128xf32> to vector<4x16x128xf32>
    %35 = vector.shape_cast %33 : vector<128xf32> to vector<1x1x128xf32>
    %36 = vector.broadcast %35 : vector<1x1x128xf32> to vector<4x16x128xf32>
    %37 = arith.mulf %36, %34 : vector<4x16x128xf32>
    %38 = arith.addf %31, %37 : vector<4x16x128xf32>
    %c4 = arith.constant 4 : index
    %c0_14 = arith.constant 0 : index
    %c0_15 = arith.constant 0 : index
    %39 = vector.load %arg4[%c4, %c0_14, %c0_15] : memref<7x7x128xf32, #tpu.memory_space<vmem>>, vector<1x1x128xf32>
    %40 = vector.shape_cast %39 : vector<1x1x128xf32> to vector<128xf32>
    %41 = vector.extract_strided_slice %10 {offsets = [4, 0, 0], sizes = [4, 16, 128], strides = [1, 1, 1]} : vector<10x16x128xf32> to vector<4x16x128xf32>
    %42 = vector.shape_cast %40 : vector<128xf32> to vector<1x1x128xf32>
    %43 = vector.broadcast %42 : vector<1x1x128xf32> to vector<4x16x128xf32>
    %44 = arith.mulf %43, %41 : vector<4x16x128xf32>
    %45 = arith.addf %38, %44 : vector<4x16x128xf32>
    %c5 = arith.constant 5 : index
    %c0_16 = arith.constant 0 : index
    %c0_17 = arith.constant 0 : index
    %46 = vector.load %arg4[%c5, %c0_16, %c0_17] : memref<7x7x128xf32, #tpu.memory_space<vmem>>, vector<1x1x128xf32>
    %47 = vector.shape_cast %46 : vector<1x1x128xf32> to vector<128xf32>
    %48 = vector.extract_strided_slice %10 {offsets = [5, 0, 0], sizes = [4, 16, 128], strides = [1, 1, 1]} : vector<10x16x128xf32> to vector<4x16x128xf32>
    %49 = vector.shape_cast %47 : vector<128xf32> to vector<1x1x128xf32>
    %50 = vector.broadcast %49 : vector<1x1x128xf32> to vector<4x16x128xf32>
    %51 = arith.mulf %50, %48 : vector<4x16x128xf32>
    %52 = arith.addf %45, %51 : vector<4x16x128xf32>
    %c6 = arith.constant 6 : index
    %c0_18 = arith.constant 0 : index
    %c0_19 = arith.constant 0 : index
    %53 = vector.load %arg4[%c6, %c0_18, %c0_19] : memref<7x7x128xf32, #tpu.memory_space<vmem>>, vector<1x1x128xf32>
    %54 = vector.shape_cast %53 : vector<1x1x128xf32> to vector<128xf32>
    %55 = vector.extract_strided_slice %10 {offsets = [6, 0, 0], sizes = [4, 16, 128], strides = [1, 1, 1]} : vector<10x16x128xf32> to vector<4x16x128xf32>
    %56 = vector.shape_cast %54 : vector<128xf32> to vector<1x1x128xf32>
    %57 = vector.broadcast %56 : vector<1x1x128xf32> to vector<4x16x128xf32>
    %58 = arith.mulf %57, %55 : vector<4x16x128xf32>
    %59 = arith.addf %52, %58 : vector<4x16x128xf32>
    %60 = arith.index_cast %8 : i32 to index
    %c1_20 = arith.constant 1 : index
    %c0_21 = arith.constant 0 : index
    %61 = vector.load %arg7[%60, %c1_20, %c0_21] : memref<22x22x128xf32, #tpu.memory_space<vmem>>, vector<10x16x128xf32>
    %c0_22 = arith.constant 0 : index
    %c1_23 = arith.constant 1 : index
    %c0_24 = arith.constant 0 : index
    %62 = vector.load %arg4[%c0_22, %c1_23, %c0_24] : memref<7x7x128xf32, #tpu.memory_space<vmem>>, vector<1x1x128xf32>
    %63 = vector.shape_cast %62 : vector<1x1x128xf32> to vector<128xf32>
    %64 = vector.extract_strided_slice %61 {offsets = [0, 0, 0], sizes = [4, 16, 128], strides = [1, 1, 1]} : vector<10x16x128xf32> to vector<4x16x128xf32>
    %65 = vector.shape_cast %63 : vector<128xf32> to vector<1x1x128xf32>
    %66 = vector.broadcast %65 : vector<1x1x128xf32> to vector<4x16x128xf32>
    %67 = arith.mulf %66, %64 : vector<4x16x128xf32>
    %68 = arith.addf %59, %67 : vector<4x16x128xf32>
    %c1_25 = arith.constant 1 : index
    %c1_26 = arith.constant 1 : index
    %c0_27 = arith.constant 0 : index
    %69 = vector.load %arg4[%c1_25, %c1_26, %c0_27] : memref<7x7x128xf32, #tpu.memory_space<vmem>>, vector<1x1x128xf32>
    %70 = vector.shape_cast %69 : vector<1x1x128xf32> to vector<128xf32>
    %71 = vector.extract_strided_slice %61 {offsets = [1, 0, 0], sizes = [4, 16, 128], strides = [1, 1, 1]} : vector<10x16x128xf32> to vector<4x16x128xf32>
    %72 = vector.shape_cast %70 : vector<128xf32> to vector<1x1x128xf32>
    %73 = vector.broadcast %72 : vector<1x1x128xf32> to vector<4x16x128xf32>
    %74 = arith.mulf %73, %71 : vector<4x16x128xf32>
    %75 = arith.addf %68, %74 : vector<4x16x128xf32>
    %c2_28 = arith.constant 2 : index
    %c1_29 = arith.constant 1 : index
    %c0_30 = arith.constant 0 : index
    %76 = vector.load %arg4[%c2_28, %c1_29, %c0_30] : memref<7x7x128xf32, #tpu.memory_space<vmem>>, vector<1x1x128xf32>
    %77 = vector.shape_cast %76 : vector<1x1x128xf32> to vector<128xf32>
    %78 = vector.extract_strided_slice %61 {offsets = [2, 0, 0], sizes = [4, 16, 128], strides = [1, 1, 1]} : vector<10x16x128xf32> to vector<4x16x128xf32>
    %79 = vector.shape_cast %77 : vector<128xf32> to vector<1x1x128xf32>
    %80 = vector.broadcast %79 : vector<1x1x128xf32> to vector<4x16x128xf32>
    %81 = arith.mulf %80, %78 : vector<4x16x128xf32>
    %82 = arith.addf %75, %81 : vector<4x16x128xf32>
    %c3_31 = arith.constant 3 : index
    %c1_32 = arith.constant 1 : index
    %c0_33 = arith.constant 0 : index
    %83 = vector.load %arg4[%c3_31, %c1_32, %c0_33] : memref<7x7x128xf32, #tpu.memory_space<vmem>>, vector<1x1x128xf32>
    %84 = vector.shape_cast %83 : vector<1x1x128xf32> to vector<128xf32>
    %85 = vector.extract_strided_slice %61 {offsets = [3, 0, 0], sizes = [4, 16, 128], strides = [1, 1, 1]} : vector<10x16x128xf32> to vector<4x16x128xf32>
    %86 = vector.shape_cast %84 : vector<128xf32> to vector<1x1x128xf32>
    %87 = vector.broadcast %86 : vector<1x1x128xf32> to vector<4x16x128xf32>
    %88 = arith.mulf %87, %85 : vector<4x16x128xf32>
    %89 = arith.addf %82, %88 : vector<4x16x128xf32>
    %c4_34 = arith.constant 4 : index
    %c1_35 = arith.constant 1 : index
    %c0_36 = arith.constant 0 : index
    %90 = vector.load %arg4[%c4_34, %c1_35, %c0_36] : memref<7x7x128xf32, #tpu.memory_space<vmem>>, vector<1x1x128xf32>
    %91 = vector.shape_cast %90 : vector<1x1x128xf32> to vector<128xf32>
    %92 = vector.extract_strided_slice %61 {offsets = [4, 0, 0], sizes = [4, 16, 128], strides = [1, 1, 1]} : vector<10x16x128xf32> to vector<4x16x128xf32>
    %93 = vector.shape_cast %91 : vector<128xf32> to vector<1x1x128xf32>
    %94 = vector.broadcast %93 : vector<1x1x128xf32> to vector<4x16x128xf32>
    %95 = arith.mulf %94, %92 : vector<4x16x128xf32>
    %96 = arith.addf %89, %95 : vector<4x16x128xf32>
    %c5_37 = arith.constant 5 : index
    %c1_38 = arith.constant 1 : index
    %c0_39 = arith.constant 0 : index
    %97 = vector.load %arg4[%c5_37, %c1_38, %c0_39] : memref<7x7x128xf32, #tpu.memory_space<vmem>>, vector<1x1x128xf32>
    %98 = vector.shape_cast %97 : vector<1x1x128xf32> to vector<128xf32>
    %99 = vector.extract_strided_slice %61 {offsets = [5, 0, 0], sizes = [4, 16, 128], strides = [1, 1, 1]} : vector<10x16x128xf32> to vector<4x16x128xf32>
    %100 = vector.shape_cast %98 : vector<128xf32> to vector<1x1x128xf32>
    %101 = vector.broadcast %100 : vector<1x1x128xf32> to vector<4x16x128xf32>
    %102 = arith.mulf %101, %99 : vector<4x16x128xf32>
    %103 = arith.addf %96, %102 : vector<4x16x128xf32>
    %c6_40 = arith.constant 6 : index
    %c1_41 = arith.constant 1 : index
    %c0_42 = arith.constant 0 : index
    %104 = vector.load %arg4[%c6_40, %c1_41, %c0_42] : memref<7x7x128xf32, #tpu.memory_space<vmem>>, vector<1x1x128xf32>
    %105 = vector.shape_cast %104 : vector<1x1x128xf32> to vector<128xf32>
    %106 = vector.extract_strided_slice %61 {offsets = [6, 0, 0], sizes = [4, 16, 128], strides = [1, 1, 1]} : vector<10x16x128xf32> to vector<4x16x128xf32>
    %107 = vector.shape_cast %105 : vector<128xf32> to vector<1x1x128xf32>
    %108 = vector.broadcast %107 : vector<1x1x128xf32> to vector<4x16x128xf32>
    %109 = arith.mulf %108, %106 : vector<4x16x128xf32>
    %110 = arith.addf %103, %109 : vector<4x16x128xf32>
    %111 = arith.index_cast %8 : i32 to index
    %c2_43 = arith.constant 2 : index
    %c0_44 = arith.constant 0 : index
    %112 = vector.load %arg7[%111, %c2_43, %c0_44] : memref<22x22x128xf32, #tpu.memory_space<vmem>>, vector<10x16x128xf32>
    %c0_45 = arith.constant 0 : index
    %c2_46 = arith.constant 2 : index
    %c0_47 = arith.constant 0 : index
    %113 = vector.load %arg4[%c0_45, %c2_46, %c0_47] : memref<7x7x128xf32, #tpu.memory_space<vmem>>, vector<1x1x128xf32>
    %114 = vector.shape_cast %113 : vector<1x1x128xf32> to vector<128xf32>
    %115 = vector.extract_strided_slice %112 {offsets = [0, 0, 0], sizes = [4, 16, 128], strides = [1, 1, 1]} : vector<10x16x128xf32> to vector<4x16x128xf32>
    %116 = vector.shape_cast %114 : vector<128xf32> to vector<1x1x128xf32>
    %117 = vector.broadcast %116 : vector<1x1x128xf32> to vector<4x16x128xf32>
    %118 = arith.mulf %117, %115 : vector<4x16x128xf32>
    %119 = arith.addf %110, %118 : vector<4x16x128xf32>
    %c1_48 = arith.constant 1 : index
    %c2_49 = arith.constant 2 : index
    %c0_50 = arith.constant 0 : index
    %120 = vector.load %arg4[%c1_48, %c2_49, %c0_50] : memref<7x7x128xf32, #tpu.memory_space<vmem>>, vector<1x1x128xf32>
    %121 = vector.shape_cast %120 : vector<1x1x128xf32> to vector<128xf32>
    %122 = vector.extract_strided_slice %112 {offsets = [1, 0, 0], sizes = [4, 16, 128], strides = [1, 1, 1]} : vector<10x16x128xf32> to vector<4x16x128xf32>
    %123 = vector.shape_cast %121 : vector<128xf32> to vector<1x1x128xf32>
    %124 = vector.broadcast %123 : vector<1x1x128xf32> to vector<4x16x128xf32>
    %125 = arith.mulf %124, %122 : vector<4x16x128xf32>
    %126 = arith.addf %119, %125 : vector<4x16x128xf32>
    %c2_51 = arith.constant 2 : index
    %c2_52 = arith.constant 2 : index
    %c0_53 = arith.constant 0 : index
    %127 = vector.load %arg4[%c2_51, %c2_52, %c0_53] : memref<7x7x128xf32, #tpu.memory_space<vmem>>, vector<1x1x128xf32>
    %128 = vector.shape_cast %127 : vector<1x1x128xf32> to vector<128xf32>
    %129 = vector.extract_strided_slice %112 {offsets = [2, 0, 0], sizes = [4, 16, 128], strides = [1, 1, 1]} : vector<10x16x128xf32> to vector<4x16x128xf32>
    %130 = vector.shape_cast %128 : vector<128xf32> to vector<1x1x128xf32>
    %131 = vector.broadcast %130 : vector<1x1x128xf32> to vector<4x16x128xf32>
    %132 = arith.mulf %131, %129 : vector<4x16x128xf32>
    %133 = arith.addf %126, %132 : vector<4x16x128xf32>
    %c3_54 = arith.constant 3 : index
    %c2_55 = arith.constant 2 : index
    %c0_56 = arith.constant 0 : index
    %134 = vector.load %arg4[%c3_54, %c2_55, %c0_56] : memref<7x7x128xf32, #tpu.memory_space<vmem>>, vector<1x1x128xf32>
    %135 = vector.shape_cast %134 : vector<1x1x128xf32> to vector<128xf32>
    %136 = vector.extract_strided_slice %112 {offsets = [3, 0, 0], sizes = [4, 16, 128], strides = [1, 1, 1]} : vector<10x16x128xf32> to vector<4x16x128xf32>
    %137 = vector.shape_cast %135 : vector<128xf32> to vector<1x1x128xf32>
    %138 = vector.broadcast %137 : vector<1x1x128xf32> to vector<4x16x128xf32>
    %139 = arith.mulf %138, %136 : vector<4x16x128xf32>
    %140 = arith.addf %133, %139 : vector<4x16x128xf32>
    %c4_57 = arith.constant 4 : index
    %c2_58 = arith.constant 2 : index
    %c0_59 = arith.constant 0 : index
    %141 = vector.load %arg4[%c4_57, %c2_58, %c0_59] : memref<7x7x128xf32, #tpu.memory_space<vmem>>, vector<1x1x128xf32>
    %142 = vector.shape_cast %141 : vector<1x1x128xf32> to vector<128xf32>
    %143 = vector.extract_strided_slice %112 {offsets = [4, 0, 0], sizes = [4, 16, 128], strides = [1, 1, 1]} : vector<10x16x128xf32> to vector<4x16x128xf32>
    %144 = vector.shape_cast %142 : vector<128xf32> to vector<1x1x128xf32>
    %145 = vector.broadcast %144 : vector<1x1x128xf32> to vector<4x16x128xf32>
    %146 = arith.mulf %145, %143 : vector<4x16x128xf32>
    %147 = arith.addf %140, %146 : vector<4x16x128xf32>
    %c5_60 = arith.constant 5 : index
    %c2_61 = arith.constant 2 : index
    %c0_62 = arith.constant 0 : index
    %148 = vector.load %arg4[%c5_60, %c2_61, %c0_62] : memref<7x7x128xf32, #tpu.memory_space<vmem>>, vector<1x1x128xf32>
    %149 = vector.shape_cast %148 : vector<1x1x128xf32> to vector<128xf32>
    %150 = vector.extract_strided_slice %112 {offsets = [5, 0, 0], sizes = [4, 16, 128], strides = [1, 1, 1]} : vector<10x16x128xf32> to vector<4x16x128xf32>
    %151 = vector.shape_cast %149 : vector<128xf32> to vector<1x1x128xf32>
    %152 = vector.broadcast %151 : vector<1x1x128xf32> to vector<4x16x128xf32>
    %153 = arith.mulf %152, %150 : vector<4x16x128xf32>
    %154 = arith.addf %147, %153 : vector<4x16x128xf32>
    %c6_63 = arith.constant 6 : index
    %c2_64 = arith.constant 2 : index
    %c0_65 = arith.constant 0 : index
    %155 = vector.load %arg4[%c6_63, %c2_64, %c0_65] : memref<7x7x128xf32, #tpu.memory_space<vmem>>, vector<1x1x128xf32>
    %156 = vector.shape_cast %155 : vector<1x1x128xf32> to vector<128xf32>
    %157 = vector.extract_strided_slice %112 {offsets = [6, 0, 0], sizes = [4, 16, 128], strides = [1, 1, 1]} : vector<10x16x128xf32> to vector<4x16x128xf32>
    %158 = vector.shape_cast %156 : vector<128xf32> to vector<1x1x128xf32>
    %159 = vector.broadcast %158 : vector<1x1x128xf32> to vector<4x16x128xf32>
    %160 = arith.mulf %159, %157 : vector<4x16x128xf32>
    %161 = arith.addf %154, %160 : vector<4x16x128xf32>
    %162 = arith.index_cast %8 : i32 to index
    %c3_66 = arith.constant 3 : index
    %c0_67 = arith.constant 0 : index
    %163 = vector.load %arg7[%162, %c3_66, %c0_67] : memref<22x22x128xf32, #tpu.memory_space<vmem>>, vector<10x16x128xf32>
    %c0_68 = arith.constant 0 : index
    %c3_69 = arith.constant 3 : index
    %c0_70 = arith.constant 0 : index
    %164 = vector.load %arg4[%c0_68, %c3_69, %c0_70] : memref<7x7x128xf32, #tpu.memory_space<vmem>>, vector<1x1x128xf32>
    %165 = vector.shape_cast %164 : vector<1x1x128xf32> to vector<128xf32>
    %166 = vector.extract_strided_slice %163 {offsets = [0, 0, 0], sizes = [4, 16, 128], strides = [1, 1, 1]} : vector<10x16x128xf32> to vector<4x16x128xf32>
    %167 = vector.shape_cast %165 : vector<128xf32> to vector<1x1x128xf32>
    %168 = vector.broadcast %167 : vector<1x1x128xf32> to vector<4x16x128xf32>
    %169 = arith.mulf %168, %166 : vector<4x16x128xf32>
    %170 = arith.addf %161, %169 : vector<4x16x128xf32>
    %c1_71 = arith.constant 1 : index
    %c3_72 = arith.constant 3 : index
    %c0_73 = arith.constant 0 : index
    %171 = vector.load %arg4[%c1_71, %c3_72, %c0_73] : memref<7x7x128xf32, #tpu.memory_space<vmem>>, vector<1x1x128xf32>
    %172 = vector.shape_cast %171 : vector<1x1x128xf32> to vector<128xf32>
    %173 = vector.extract_strided_slice %163 {offsets = [1, 0, 0], sizes = [4, 16, 128], strides = [1, 1, 1]} : vector<10x16x128xf32> to vector<4x16x128xf32>
    %174 = vector.shape_cast %172 : vector<128xf32> to vector<1x1x128xf32>
    %175 = vector.broadcast %174 : vector<1x1x128xf32> to vector<4x16x128xf32>
    %176 = arith.mulf %175, %173 : vector<4x16x128xf32>
    %177 = arith.addf %170, %176 : vector<4x16x128xf32>
    %c2_74 = arith.constant 2 : index
    %c3_75 = arith.constant 3 : index
    %c0_76 = arith.constant 0 : index
    %178 = vector.load %arg4[%c2_74, %c3_75, %c0_76] : memref<7x7x128xf32, #tpu.memory_space<vmem>>, vector<1x1x128xf32>
    %179 = vector.shape_cast %178 : vector<1x1x128xf32> to vector<128xf32>
    %180 = vector.extract_strided_slice %163 {offsets = [2, 0, 0], sizes = [4, 16, 128], strides = [1, 1, 1]} : vector<10x16x128xf32> to vector<4x16x128xf32>
    %181 = vector.shape_cast %179 : vector<128xf32> to vector<1x1x128xf32>
    %182 = vector.broadcast %181 : vector<1x1x128xf32> to vector<4x16x128xf32>
    %183 = arith.mulf %182, %180 : vector<4x16x128xf32>
    %184 = arith.addf %177, %183 : vector<4x16x128xf32>
    %c3_77 = arith.constant 3 : index
    %c3_78 = arith.constant 3 : index
    %c0_79 = arith.constant 0 : index
    %185 = vector.load %arg4[%c3_77, %c3_78, %c0_79] : memref<7x7x128xf32, #tpu.memory_space<vmem>>, vector<1x1x128xf32>
    %186 = vector.shape_cast %185 : vector<1x1x128xf32> to vector<128xf32>
    %187 = vector.extract_strided_slice %163 {offsets = [3, 0, 0], sizes = [4, 16, 128], strides = [1, 1, 1]} : vector<10x16x128xf32> to vector<4x16x128xf32>
    %188 = vector.shape_cast %186 : vector<128xf32> to vector<1x1x128xf32>
    %189 = vector.broadcast %188 : vector<1x1x128xf32> to vector<4x16x128xf32>
    %190 = arith.mulf %189, %187 : vector<4x16x128xf32>
    %191 = arith.addf %184, %190 : vector<4x16x128xf32>
    %c4_80 = arith.constant 4 : index
    %c3_81 = arith.constant 3 : index
    %c0_82 = arith.constant 0 : index
    %192 = vector.load %arg4[%c4_80, %c3_81, %c0_82] : memref<7x7x128xf32, #tpu.memory_space<vmem>>, vector<1x1x128xf32>
    %193 = vector.shape_cast %192 : vector<1x1x128xf32> to vector<128xf32>
    %194 = vector.extract_strided_slice %163 {offsets = [4, 0, 0], sizes = [4, 16, 128], strides = [1, 1, 1]} : vector<10x16x128xf32> to vector<4x16x128xf32>
    %195 = vector.shape_cast %193 : vector<128xf32> to vector<1x1x128xf32>
    %196 = vector.broadcast %195 : vector<1x1x128xf32> to vector<4x16x128xf32>
    %197 = arith.mulf %196, %194 : vector<4x16x128xf32>
    %198 = arith.addf %191, %197 : vector<4x16x128xf32>
    %c5_83 = arith.constant 5 : index
    %c3_84 = arith.constant 3 : index
    %c0_85 = arith.constant 0 : index
    %199 = vector.load %arg4[%c5_83, %c3_84, %c0_85] : memref<7x7x128xf32, #tpu.memory_space<vmem>>, vector<1x1x128xf32>
    %200 = vector.shape_cast %199 : vector<1x1x128xf32> to vector<128xf32>
    %201 = vector.extract_strided_slice %163 {offsets = [5, 0, 0], sizes = [4, 16, 128], strides = [1, 1, 1]} : vector<10x16x128xf32> to vector<4x16x128xf32>
    %202 = vector.shape_cast %200 : vector<128xf32> to vector<1x1x128xf32>
    %203 = vector.broadcast %202 : vector<1x1x128xf32> to vector<4x16x128xf32>
    %204 = arith.mulf %203, %201 : vector<4x16x128xf32>
    %205 = arith.addf %198, %204 : vector<4x16x128xf32>
    %c6_86 = arith.constant 6 : index
    %c3_87 = arith.constant 3 : index
    %c0_88 = arith.constant 0 : index
    %206 = vector.load %arg4[%c6_86, %c3_87, %c0_88] : memref<7x7x128xf32, #tpu.memory_space<vmem>>, vector<1x1x128xf32>
    %207 = vector.shape_cast %206 : vector<1x1x128xf32> to vector<128xf32>
    %208 = vector.extract_strided_slice %163 {offsets = [6, 0, 0], sizes = [4, 16, 128], strides = [1, 1, 1]} : vector<10x16x128xf32> to vector<4x16x128xf32>
    %209 = vector.shape_cast %207 : vector<128xf32> to vector<1x1x128xf32>
    %210 = vector.broadcast %209 : vector<1x1x128xf32> to vector<4x16x128xf32>
    %211 = arith.mulf %210, %208 : vector<4x16x128xf32>
    %212 = arith.addf %205, %211 : vector<4x16x128xf32>
    %213 = arith.index_cast %8 : i32 to index
    %c4_89 = arith.constant 4 : index
    %c0_90 = arith.constant 0 : index
    %214 = vector.load %arg7[%213, %c4_89, %c0_90] : memref<22x22x128xf32, #tpu.memory_space<vmem>>, vector<10x16x128xf32>
    %c0_91 = arith.constant 0 : index
    %c4_92 = arith.constant 4 : index
    %c0_93 = arith.constant 0 : index
    %215 = vector.load %arg4[%c0_91, %c4_92, %c0_93] : memref<7x7x128xf32, #tpu.memory_space<vmem>>, vector<1x1x128xf32>
    %216 = vector.shape_cast %215 : vector<1x1x128xf32> to vector<128xf32>
    %217 = vector.extract_strided_slice %214 {offsets = [0, 0, 0], sizes = [4, 16, 128], strides = [1, 1, 1]} : vector<10x16x128xf32> to vector<4x16x128xf32>
    %218 = vector.shape_cast %216 : vector<128xf32> to vector<1x1x128xf32>
    %219 = vector.broadcast %218 : vector<1x1x128xf32> to vector<4x16x128xf32>
    %220 = arith.mulf %219, %217 : vector<4x16x128xf32>
    %221 = arith.addf %212, %220 : vector<4x16x128xf32>
    %c1_94 = arith.constant 1 : index
    %c4_95 = arith.constant 4 : index
    %c0_96 = arith.constant 0 : index
    %222 = vector.load %arg4[%c1_94, %c4_95, %c0_96] : memref<7x7x128xf32, #tpu.memory_space<vmem>>, vector<1x1x128xf32>
    %223 = vector.shape_cast %222 : vector<1x1x128xf32> to vector<128xf32>
    %224 = vector.extract_strided_slice %214 {offsets = [1, 0, 0], sizes = [4, 16, 128], strides = [1, 1, 1]} : vector<10x16x128xf32> to vector<4x16x128xf32>
    %225 = vector.shape_cast %223 : vector<128xf32> to vector<1x1x128xf32>
    %226 = vector.broadcast %225 : vector<1x1x128xf32> to vector<4x16x128xf32>
    %227 = arith.mulf %226, %224 : vector<4x16x128xf32>
    %228 = arith.addf %221, %227 : vector<4x16x128xf32>
    %c2_97 = arith.constant 2 : index
    %c4_98 = arith.constant 4 : index
    %c0_99 = arith.constant 0 : index
    %229 = vector.load %arg4[%c2_97, %c4_98, %c0_99] : memref<7x7x128xf32, #tpu.memory_space<vmem>>, vector<1x1x128xf32>
    %230 = vector.shape_cast %229 : vector<1x1x128xf32> to vector<128xf32>
    %231 = vector.extract_strided_slice %214 {offsets = [2, 0, 0], sizes = [4, 16, 128], strides = [1, 1, 1]} : vector<10x16x128xf32> to vector<4x16x128xf32>
    %232 = vector.shape_cast %230 : vector<128xf32> to vector<1x1x128xf32>
    %233 = vector.broadcast %232 : vector<1x1x128xf32> to vector<4x16x128xf32>
    %234 = arith.mulf %233, %231 : vector<4x16x128xf32>
    %235 = arith.addf %228, %234 : vector<4x16x128xf32>
    %c3_100 = arith.constant 3 : index
    %c4_101 = arith.constant 4 : index
    %c0_102 = arith.constant 0 : index
    %236 = vector.load %arg4[%c3_100, %c4_101, %c0_102] : memref<7x7x128xf32, #tpu.memory_space<vmem>>, vector<1x1x128xf32>
    %237 = vector.shape_cast %236 : vector<1x1x128xf32> to vector<128xf32>
    %238 = vector.extract_strided_slice %214 {offsets = [3, 0, 0], sizes = [4, 16, 128], strides = [1, 1, 1]} : vector<10x16x128xf32> to vector<4x16x128xf32>
    %239 = vector.shape_cast %237 : vector<128xf32> to vector<1x1x128xf32>
    %240 = vector.broadcast %239 : vector<1x1x128xf32> to vector<4x16x128xf32>
    %241 = arith.mulf %240, %238 : vector<4x16x128xf32>
    %242 = arith.addf %235, %241 : vector<4x16x128xf32>
    %c4_103 = arith.constant 4 : index
    %c4_104 = arith.constant 4 : index
    %c0_105 = arith.constant 0 : index
    %243 = vector.load %arg4[%c4_103, %c4_104, %c0_105] : memref<7x7x128xf32, #tpu.memory_space<vmem>>, vector<1x1x128xf32>
    %244 = vector.shape_cast %243 : vector<1x1x128xf32> to vector<128xf32>
    %245 = vector.extract_strided_slice %214 {offsets = [4, 0, 0], sizes = [4, 16, 128], strides = [1, 1, 1]} : vector<10x16x128xf32> to vector<4x16x128xf32>
    %246 = vector.shape_cast %244 : vector<128xf32> to vector<1x1x128xf32>
    %247 = vector.broadcast %246 : vector<1x1x128xf32> to vector<4x16x128xf32>
    %248 = arith.mulf %247, %245 : vector<4x16x128xf32>
    %249 = arith.addf %242, %248 : vector<4x16x128xf32>
    %c5_106 = arith.constant 5 : index
    %c4_107 = arith.constant 4 : index
    %c0_108 = arith.constant 0 : index
    %250 = vector.load %arg4[%c5_106, %c4_107, %c0_108] : memref<7x7x128xf32, #tpu.memory_space<vmem>>, vector<1x1x128xf32>
    %251 = vector.shape_cast %250 : vector<1x1x128xf32> to vector<128xf32>
    %252 = vector.extract_strided_slice %214 {offsets = [5, 0, 0], sizes = [4, 16, 128], strides = [1, 1, 1]} : vector<10x16x128xf32> to vector<4x16x128xf32>
    %253 = vector.shape_cast %251 : vector<128xf32> to vector<1x1x128xf32>
    %254 = vector.broadcast %253 : vector<1x1x128xf32> to vector<4x16x128xf32>
    %255 = arith.mulf %254, %252 : vector<4x16x128xf32>
    %256 = arith.addf %249, %255 : vector<4x16x128xf32>
    %c6_109 = arith.constant 6 : index
    %c4_110 = arith.constant 4 : index
    %c0_111 = arith.constant 0 : index
    %257 = vector.load %arg4[%c6_109, %c4_110, %c0_111] : memref<7x7x128xf32, #tpu.memory_space<vmem>>, vector<1x1x128xf32>
    %258 = vector.shape_cast %257 : vector<1x1x128xf32> to vector<128xf32>
    %259 = vector.extract_strided_slice %214 {offsets = [6, 0, 0], sizes = [4, 16, 128], strides = [1, 1, 1]} : vector<10x16x128xf32> to vector<4x16x128xf32>
    %260 = vector.shape_cast %258 : vector<128xf32> to vector<1x1x128xf32>
    %261 = vector.broadcast %260 : vector<1x1x128xf32> to vector<4x16x128xf32>
    %262 = arith.mulf %261, %259 : vector<4x16x128xf32>
    %263 = arith.addf %256, %262 : vector<4x16x128xf32>
    %264 = arith.index_cast %8 : i32 to index
    %c5_112 = arith.constant 5 : index
    %c0_113 = arith.constant 0 : index
    %265 = vector.load %arg7[%264, %c5_112, %c0_113] : memref<22x22x128xf32, #tpu.memory_space<vmem>>, vector<10x16x128xf32>
    %c0_114 = arith.constant 0 : index
    %c5_115 = arith.constant 5 : index
    %c0_116 = arith.constant 0 : index
    %266 = vector.load %arg4[%c0_114, %c5_115, %c0_116] : memref<7x7x128xf32, #tpu.memory_space<vmem>>, vector<1x1x128xf32>
    %267 = vector.shape_cast %266 : vector<1x1x128xf32> to vector<128xf32>
    %268 = vector.extract_strided_slice %265 {offsets = [0, 0, 0], sizes = [4, 16, 128], strides = [1, 1, 1]} : vector<10x16x128xf32> to vector<4x16x128xf32>
    %269 = vector.shape_cast %267 : vector<128xf32> to vector<1x1x128xf32>
    %270 = vector.broadcast %269 : vector<1x1x128xf32> to vector<4x16x128xf32>
    %271 = arith.mulf %270, %268 : vector<4x16x128xf32>
    %272 = arith.addf %263, %271 : vector<4x16x128xf32>
    %c1_117 = arith.constant 1 : index
    %c5_118 = arith.constant 5 : index
    %c0_119 = arith.constant 0 : index
    %273 = vector.load %arg4[%c1_117, %c5_118, %c0_119] : memref<7x7x128xf32, #tpu.memory_space<vmem>>, vector<1x1x128xf32>
    %274 = vector.shape_cast %273 : vector<1x1x128xf32> to vector<128xf32>
    %275 = vector.extract_strided_slice %265 {offsets = [1, 0, 0], sizes = [4, 16, 128], strides = [1, 1, 1]} : vector<10x16x128xf32> to vector<4x16x128xf32>
    %276 = vector.shape_cast %274 : vector<128xf32> to vector<1x1x128xf32>
    %277 = vector.broadcast %276 : vector<1x1x128xf32> to vector<4x16x128xf32>
    %278 = arith.mulf %277, %275 : vector<4x16x128xf32>
    %279 = arith.addf %272, %278 : vector<4x16x128xf32>
    %c2_120 = arith.constant 2 : index
    %c5_121 = arith.constant 5 : index
    %c0_122 = arith.constant 0 : index
    %280 = vector.load %arg4[%c2_120, %c5_121, %c0_122] : memref<7x7x128xf32, #tpu.memory_space<vmem>>, vector<1x1x128xf32>
    %281 = vector.shape_cast %280 : vector<1x1x128xf32> to vector<128xf32>
    %282 = vector.extract_strided_slice %265 {offsets = [2, 0, 0], sizes = [4, 16, 128], strides = [1, 1, 1]} : vector<10x16x128xf32> to vector<4x16x128xf32>
    %283 = vector.shape_cast %281 : vector<128xf32> to vector<1x1x128xf32>
    %284 = vector.broadcast %283 : vector<1x1x128xf32> to vector<4x16x128xf32>
    %285 = arith.mulf %284, %282 : vector<4x16x128xf32>
    %286 = arith.addf %279, %285 : vector<4x16x128xf32>
    %c3_123 = arith.constant 3 : index
    %c5_124 = arith.constant 5 : index
    %c0_125 = arith.constant 0 : index
    %287 = vector.load %arg4[%c3_123, %c5_124, %c0_125] : memref<7x7x128xf32, #tpu.memory_space<vmem>>, vector<1x1x128xf32>
    %288 = vector.shape_cast %287 : vector<1x1x128xf32> to vector<128xf32>
    %289 = vector.extract_strided_slice %265 {offsets = [3, 0, 0], sizes = [4, 16, 128], strides = [1, 1, 1]} : vector<10x16x128xf32> to vector<4x16x128xf32>
    %290 = vector.shape_cast %288 : vector<128xf32> to vector<1x1x128xf32>
    %291 = vector.broadcast %290 : vector<1x1x128xf32> to vector<4x16x128xf32>
    %292 = arith.mulf %291, %289 : vector<4x16x128xf32>
    %293 = arith.addf %286, %292 : vector<4x16x128xf32>
    %c4_126 = arith.constant 4 : index
    %c5_127 = arith.constant 5 : index
    %c0_128 = arith.constant 0 : index
    %294 = vector.load %arg4[%c4_126, %c5_127, %c0_128] : memref<7x7x128xf32, #tpu.memory_space<vmem>>, vector<1x1x128xf32>
    %295 = vector.shape_cast %294 : vector<1x1x128xf32> to vector<128xf32>
    %296 = vector.extract_strided_slice %265 {offsets = [4, 0, 0], sizes = [4, 16, 128], strides = [1, 1, 1]} : vector<10x16x128xf32> to vector<4x16x128xf32>
    %297 = vector.shape_cast %295 : vector<128xf32> to vector<1x1x128xf32>
    %298 = vector.broadcast %297 : vector<1x1x128xf32> to vector<4x16x128xf32>
    %299 = arith.mulf %298, %296 : vector<4x16x128xf32>
    %300 = arith.addf %293, %299 : vector<4x16x128xf32>
    %c5_129 = arith.constant 5 : index
    %c5_130 = arith.constant 5 : index
    %c0_131 = arith.constant 0 : index
    %301 = vector.load %arg4[%c5_129, %c5_130, %c0_131] : memref<7x7x128xf32, #tpu.memory_space<vmem>>, vector<1x1x128xf32>
    %302 = vector.shape_cast %301 : vector<1x1x128xf32> to vector<128xf32>
    %303 = vector.extract_strided_slice %265 {offsets = [5, 0, 0], sizes = [4, 16, 128], strides = [1, 1, 1]} : vector<10x16x128xf32> to vector<4x16x128xf32>
    %304 = vector.shape_cast %302 : vector<128xf32> to vector<1x1x128xf32>
    %305 = vector.broadcast %304 : vector<1x1x128xf32> to vector<4x16x128xf32>
    %306 = arith.mulf %305, %303 : vector<4x16x128xf32>
    %307 = arith.addf %300, %306 : vector<4x16x128xf32>
    %c6_132 = arith.constant 6 : index
    %c5_133 = arith.constant 5 : index
    %c0_134 = arith.constant 0 : index
    %308 = vector.load %arg4[%c6_132, %c5_133, %c0_134] : memref<7x7x128xf32, #tpu.memory_space<vmem>>, vector<1x1x128xf32>
    %309 = vector.shape_cast %308 : vector<1x1x128xf32> to vector<128xf32>
    %310 = vector.extract_strided_slice %265 {offsets = [6, 0, 0], sizes = [4, 16, 128], strides = [1, 1, 1]} : vector<10x16x128xf32> to vector<4x16x128xf32>
    %311 = vector.shape_cast %309 : vector<128xf32> to vector<1x1x128xf32>
    %312 = vector.broadcast %311 : vector<1x1x128xf32> to vector<4x16x128xf32>
    %313 = arith.mulf %312, %310 : vector<4x16x128xf32>
    %314 = arith.addf %307, %313 : vector<4x16x128xf32>
    %315 = arith.index_cast %8 : i32 to index
    %c6_135 = arith.constant 6 : index
    %c0_136 = arith.constant 0 : index
    %316 = vector.load %arg7[%315, %c6_135, %c0_136] : memref<22x22x128xf32, #tpu.memory_space<vmem>>, vector<10x16x128xf32>
    %c0_137 = arith.constant 0 : index
    %c6_138 = arith.constant 6 : index
    %c0_139 = arith.constant 0 : index
    %317 = vector.load %arg4[%c0_137, %c6_138, %c0_139] : memref<7x7x128xf32, #tpu.memory_space<vmem>>, vector<1x1x128xf32>
    %318 = vector.shape_cast %317 : vector<1x1x128xf32> to vector<128xf32>
    %319 = vector.extract_strided_slice %316 {offsets = [0, 0, 0], sizes = [4, 16, 128], strides = [1, 1, 1]} : vector<10x16x128xf32> to vector<4x16x128xf32>
    %320 = vector.shape_cast %318 : vector<128xf32> to vector<1x1x128xf32>
    %321 = vector.broadcast %320 : vector<1x1x128xf32> to vector<4x16x128xf32>
    %322 = arith.mulf %321, %319 : vector<4x16x128xf32>
    %323 = arith.addf %314, %322 : vector<4x16x128xf32>
    %c1_140 = arith.constant 1 : index
    %c6_141 = arith.constant 6 : index
    %c0_142 = arith.constant 0 : index
    %324 = vector.load %arg4[%c1_140, %c6_141, %c0_142] : memref<7x7x128xf32, #tpu.memory_space<vmem>>, vector<1x1x128xf32>
    %325 = vector.shape_cast %324 : vector<1x1x128xf32> to vector<128xf32>
    %326 = vector.extract_strided_slice %316 {offsets = [1, 0, 0], sizes = [4, 16, 128], strides = [1, 1, 1]} : vector<10x16x128xf32> to vector<4x16x128xf32>
    %327 = vector.shape_cast %325 : vector<128xf32> to vector<1x1x128xf32>
    %328 = vector.broadcast %327 : vector<1x1x128xf32> to vector<4x16x128xf32>
    %329 = arith.mulf %328, %326 : vector<4x16x128xf32>
    %330 = arith.addf %323, %329 : vector<4x16x128xf32>
    %c2_143 = arith.constant 2 : index
    %c6_144 = arith.constant 6 : index
    %c0_145 = arith.constant 0 : index
    %331 = vector.load %arg4[%c2_143, %c6_144, %c0_145] : memref<7x7x128xf32, #tpu.memory_space<vmem>>, vector<1x1x128xf32>
    %332 = vector.shape_cast %331 : vector<1x1x128xf32> to vector<128xf32>
    %333 = vector.extract_strided_slice %316 {offsets = [2, 0, 0], sizes = [4, 16, 128], strides = [1, 1, 1]} : vector<10x16x128xf32> to vector<4x16x128xf32>
    %334 = vector.shape_cast %332 : vector<128xf32> to vector<1x1x128xf32>
    %335 = vector.broadcast %334 : vector<1x1x128xf32> to vector<4x16x128xf32>
    %336 = arith.mulf %335, %333 : vector<4x16x128xf32>
    %337 = arith.addf %330, %336 : vector<4x16x128xf32>
    %c3_146 = arith.constant 3 : index
    %c6_147 = arith.constant 6 : index
    %c0_148 = arith.constant 0 : index
    %338 = vector.load %arg4[%c3_146, %c6_147, %c0_148] : memref<7x7x128xf32, #tpu.memory_space<vmem>>, vector<1x1x128xf32>
    %339 = vector.shape_cast %338 : vector<1x1x128xf32> to vector<128xf32>
    %340 = vector.extract_strided_slice %316 {offsets = [3, 0, 0], sizes = [4, 16, 128], strides = [1, 1, 1]} : vector<10x16x128xf32> to vector<4x16x128xf32>
    %341 = vector.shape_cast %339 : vector<128xf32> to vector<1x1x128xf32>
    %342 = vector.broadcast %341 : vector<1x1x128xf32> to vector<4x16x128xf32>
    %343 = arith.mulf %342, %340 : vector<4x16x128xf32>
    %344 = arith.addf %337, %343 : vector<4x16x128xf32>
    %c4_149 = arith.constant 4 : index
    %c6_150 = arith.constant 6 : index
    %c0_151 = arith.constant 0 : index
    %345 = vector.load %arg4[%c4_149, %c6_150, %c0_151] : memref<7x7x128xf32, #tpu.memory_space<vmem>>, vector<1x1x128xf32>
    %346 = vector.shape_cast %345 : vector<1x1x128xf32> to vector<128xf32>
    %347 = vector.extract_strided_slice %316 {offsets = [4, 0, 0], sizes = [4, 16, 128], strides = [1, 1, 1]} : vector<10x16x128xf32> to vector<4x16x128xf32>
    %348 = vector.shape_cast %346 : vector<128xf32> to vector<1x1x128xf32>
    %349 = vector.broadcast %348 : vector<1x1x128xf32> to vector<4x16x128xf32>
    %350 = arith.mulf %349, %347 : vector<4x16x128xf32>
    %351 = arith.addf %344, %350 : vector<4x16x128xf32>
    %c5_152 = arith.constant 5 : index
    %c6_153 = arith.constant 6 : index
    %c0_154 = arith.constant 0 : index
    %352 = vector.load %arg4[%c5_152, %c6_153, %c0_154] : memref<7x7x128xf32, #tpu.memory_space<vmem>>, vector<1x1x128xf32>
    %353 = vector.shape_cast %352 : vector<1x1x128xf32> to vector<128xf32>
    %354 = vector.extract_strided_slice %316 {offsets = [5, 0, 0], sizes = [4, 16, 128], strides = [1, 1, 1]} : vector<10x16x128xf32> to vector<4x16x128xf32>
    %355 = vector.shape_cast %353 : vector<128xf32> to vector<1x1x128xf32>
    %356 = vector.broadcast %355 : vector<1x1x128xf32> to vector<4x16x128xf32>
    %357 = arith.mulf %356, %354 : vector<4x16x128xf32>
    %358 = arith.addf %351, %357 : vector<4x16x128xf32>
    %c6_155 = arith.constant 6 : index
    %c6_156 = arith.constant 6 : index
    %c0_157 = arith.constant 0 : index
    %359 = vector.load %arg4[%c6_155, %c6_156, %c0_157] : memref<7x7x128xf32, #tpu.memory_space<vmem>>, vector<1x1x128xf32>
    %360 = vector.shape_cast %359 : vector<1x1x128xf32> to vector<128xf32>
    %361 = vector.extract_strided_slice %316 {offsets = [6, 0, 0], sizes = [4, 16, 128], strides = [1, 1, 1]} : vector<10x16x128xf32> to vector<4x16x128xf32>
    %362 = vector.shape_cast %360 : vector<128xf32> to vector<1x1x128xf32>
    %363 = vector.broadcast %362 : vector<1x1x128xf32> to vector<4x16x128xf32>
    %364 = arith.mulf %363, %361 : vector<4x16x128xf32>
    %365 = arith.addf %358, %364 : vector<4x16x128xf32>
    %c0_158 = arith.constant 0 : index
    %c0_159 = arith.constant 0 : index
    %c0_160 = arith.constant 0 : index
    %c0_161 = arith.constant 0 : index
    %366 = vector.load %arg6[%c0_158, %c0_159, %c0_160, %c0_161] : memref<1x16x16x128xf32, #tpu.memory_space<vmem>>, vector<1x4x16x128xf32>
    %367 = vector.shape_cast %366 : vector<1x4x16x128xf32> to vector<4x16x128xf32>
    %368 = vector.shape_cast %365 : vector<4x16x128xf32> to vector<1x4x16x128xf32>
    tpu.vector_store %arg6[%c0_158, %c0_159, %c0_160, %c0_161], %368 {strides = array<i32>} : memref<1x16x16x128xf32, #tpu.memory_space<vmem>>, vector<1x4x16x128xf32>,
    %c4_i32 = arith.constant 4 : i32
    %369 = arith.addi %7, %c4_i32 : i32
    %370 = arith.index_cast %369 : i32 to index
    %c0_162 = arith.constant 0 : index
    %c0_163 = arith.constant 0 : index
    %371 = vector.load %arg7[%370, %c0_162, %c0_163] : memref<22x22x128xf32, #tpu.memory_space<vmem>>, vector<10x16x128xf32>
    %c0_164 = arith.constant 0 : index
    %c0_165 = arith.constant 0 : index
    %c0_166 = arith.constant 0 : index
    %372 = vector.load %arg4[%c0_164, %c0_165, %c0_166] : memref<7x7x128xf32, #tpu.memory_space<vmem>>, vector<1x1x128xf32>
    %373 = vector.shape_cast %372 : vector<1x1x128xf32> to vector<128xf32>
    %374 = vector.extract_strided_slice %371 {offsets = [0, 0, 0], sizes = [4, 16, 128], strides = [1, 1, 1]} : vector<10x16x128xf32> to vector<4x16x128xf32>
    %375 = vector.shape_cast %373 : vector<128xf32> to vector<1x1x128xf32>
    %376 = vector.broadcast %375 : vector<1x1x128xf32> to vector<4x16x128xf32>
    %377 = arith.mulf %376, %374 : vector<4x16x128xf32>
    %378 = arith.addf %6, %377 : vector<4x16x128xf32>
    %c1_167 = arith.constant 1 : index
    %c0_168 = arith.constant 0 : index
    %c0_169 = arith.constant 0 : index
    %379 = vector.load %arg4[%c1_167, %c0_168, %c0_169] : memref<7x7x128xf32, #tpu.memory_space<vmem>>, vector<1x1x128xf32>
    %380 = vector.shape_cast %379 : vector<1x1x128xf32> to vector<128xf32>
    %381 = vector.extract_strided_slice %371 {offsets = [1, 0, 0], sizes = [4, 16, 128], strides = [1, 1, 1]} : vector<10x16x128xf32> to vector<4x16x128xf32>
    %382 = vector.shape_cast %380 : vector<128xf32> to vector<1x1x128xf32>
    %383 = vector.broadcast %382 : vector<1x1x128xf32> to vector<4x16x128xf32>
    %384 = arith.mulf %383, %381 : vector<4x16x128xf32>
    %385 = arith.addf %378, %384 : vector<4x16x128xf32>
    %c2_170 = arith.constant 2 : index
    %c0_171 = arith.constant 0 : index
    %c0_172 = arith.constant 0 : index
    %386 = vector.load %arg4[%c2_170, %c0_171, %c0_172] : memref<7x7x128xf32, #tpu.memory_space<vmem>>, vector<1x1x128xf32>
    %387 = vector.shape_cast %386 : vector<1x1x128xf32> to vector<128xf32>
    %388 = vector.extract_strided_slice %371 {offsets = [2, 0, 0], sizes = [4, 16, 128], strides = [1, 1, 1]} : vector<10x16x128xf32> to vector<4x16x128xf32>
    %389 = vector.shape_cast %387 : vector<128xf32> to vector<1x1x128xf32>
    %390 = vector.broadcast %389 : vector<1x1x128xf32> to vector<4x16x128xf32>
    %391 = arith.mulf %390, %388 : vector<4x16x128xf32>
    %392 = arith.addf %385, %391 : vector<4x16x128xf32>
    %c3_173 = arith.constant 3 : index
    %c0_174 = arith.constant 0 : index
    %c0_175 = arith.constant 0 : index
    %393 = vector.load %arg4[%c3_173, %c0_174, %c0_175] : memref<7x7x128xf32, #tpu.memory_space<vmem>>, vector<1x1x128xf32>
    %394 = vector.shape_cast %393 : vector<1x1x128xf32> to vector<128xf32>
    %395 = vector.extract_strided_slice %371 {offsets = [3, 0, 0], sizes = [4, 16, 128], strides = [1, 1, 1]} : vector<10x16x128xf32> to vector<4x16x128xf32>
    %396 = vector.shape_cast %394 : vector<128xf32> to vector<1x1x128xf32>
    %397 = vector.broadcast %396 : vector<1x1x128xf32> to vector<4x16x128xf32>
    %398 = arith.mulf %397, %395 : vector<4x16x128xf32>
    %399 = arith.addf %392, %398 : vector<4x16x128xf32>
    %c4_176 = arith.constant 4 : index
    %c0_177 = arith.constant 0 : index
    %c0_178 = arith.constant 0 : index
    %400 = vector.load %arg4[%c4_176, %c0_177, %c0_178] : memref<7x7x128xf32, #tpu.memory_space<vmem>>, vector<1x1x128xf32>
    %401 = vector.shape_cast %400 : vector<1x1x128xf32> to vector<128xf32>
    %402 = vector.extract_strided_slice %371 {offsets = [4, 0, 0], sizes = [4, 16, 128], strides = [1, 1, 1]} : vector<10x16x128xf32> to vector<4x16x128xf32>
    %403 = vector.shape_cast %401 : vector<128xf32> to vector<1x1x128xf32>
    %404 = vector.broadcast %403 : vector<1x1x128xf32> to vector<4x16x128xf32>
    %405 = arith.mulf %404, %402 : vector<4x16x128xf32>
    %406 = arith.addf %399, %405 : vector<4x16x128xf32>
    %c5_179 = arith.constant 5 : index
    %c0_180 = arith.constant 0 : index
    %c0_181 = arith.constant 0 : index
    %407 = vector.load %arg4[%c5_179, %c0_180, %c0_181] : memref<7x7x128xf32, #tpu.memory_space<vmem>>, vector<1x1x128xf32>
    %408 = vector.shape_cast %407 : vector<1x1x128xf32> to vector<128xf32>
    %409 = vector.extract_strided_slice %371 {offsets = [5, 0, 0], sizes = [4, 16, 128], strides = [1, 1, 1]} : vector<10x16x128xf32> to vector<4x16x128xf32>
    %410 = vector.shape_cast %408 : vector<128xf32> to vector<1x1x128xf32>
    %411 = vector.broadcast %410 : vector<1x1x128xf32> to vector<4x16x128xf32>
    %412 = arith.mulf %411, %409 : vector<4x16x128xf32>
    %413 = arith.addf %406, %412 : vector<4x16x128xf32>
    %c6_182 = arith.constant 6 : index
    %c0_183 = arith.constant 0 : index
    %c0_184 = arith.constant 0 : index
    %414 = vector.load %arg4[%c6_182, %c0_183, %c0_184] : memref<7x7x128xf32, #tpu.memory_space<vmem>>, vector<1x1x128xf32>
    %415 = vector.shape_cast %414 : vector<1x1x128xf32> to vector<128xf32>
    %416 = vector.extract_strided_slice %371 {offsets = [6, 0, 0], sizes = [4, 16, 128], strides = [1, 1, 1]} : vector<10x16x128xf32> to vector<4x16x128xf32>
    %417 = vector.shape_cast %415 : vector<128xf32> to vector<1x1x128xf32>
    %418 = vector.broadcast %417 : vector<1x1x128xf32> to vector<4x16x128xf32>
    %419 = arith.mulf %418, %416 : vector<4x16x128xf32>
    %420 = arith.addf %413, %419 : vector<4x16x128xf32>
    %421 = arith.index_cast %369 : i32 to index
    %c1_185 = arith.constant 1 : index
    %c0_186 = arith.constant 0 : index
    %422 = vector.load %arg7[%421, %c1_185, %c0_186] : memref<22x22x128xf32, #tpu.memory_space<vmem>>, vector<10x16x128xf32>
    %c0_187 = arith.constant 0 : index
    %c1_188 = arith.constant 1 : index
    %c0_189 = arith.constant 0 : index
    %423 = vector.load %arg4[%c0_187, %c1_188, %c0_189] : memref<7x7x128xf32, #tpu.memory_space<vmem>>, vector<1x1x128xf32>
    %424 = vector.shape_cast %423 : vector<1x1x128xf32> to vector<128xf32>
    %425 = vector.extract_strided_slice %422 {offsets = [0, 0, 0], sizes = [4, 16, 128], strides = [1, 1, 1]} : vector<10x16x128xf32> to vector<4x16x128xf32>
    %426 = vector.shape_cast %424 : vector<128xf32> to vector<1x1x128xf32>
    %427 = vector.broadcast %426 : vector<1x1x128xf32> to vector<4x16x128xf32>
    %428 = arith.mulf %427, %425 : vector<4x16x128xf32>
    %429 = arith.addf %420, %428 : vector<4x16x128xf32>
    %c1_190 = arith.constant 1 : index
    %c1_191 = arith.constant 1 : index
    %c0_192 = arith.constant 0 : index
    %430 = vector.load %arg4[%c1_190, %c1_191, %c0_192] : memref<7x7x128xf32, #tpu.memory_space<vmem>>, vector<1x1x128xf32>
    %431 = vector.shape_cast %430 : vector<1x1x128xf32> to vector<128xf32>
    %432 = vector.extract_strided_slice %422 {offsets = [1, 0, 0], sizes = [4, 16, 128], strides = [1, 1, 1]} : vector<10x16x128xf32> to vector<4x16x128xf32>
    %433 = vector.shape_cast %431 : vector<128xf32> to vector<1x1x128xf32>
    %434 = vector.broadcast %433 : vector<1x1x128xf32> to vector<4x16x128xf32>
    %435 = arith.mulf %434, %432 : vector<4x16x128xf32>
    %436 = arith.addf %429, %435 : vector<4x16x128xf32>
    %c2_193 = arith.constant 2 : index
    %c1_194 = arith.constant 1 : index
    %c0_195 = arith.constant 0 : index
    %437 = vector.load %arg4[%c2_193, %c1_194, %c0_195] : memref<7x7x128xf32, #tpu.memory_space<vmem>>, vector<1x1x128xf32>
    %438 = vector.shape_cast %437 : vector<1x1x128xf32> to vector<128xf32>
    %439 = vector.extract_strided_slice %422 {offsets = [2, 0, 0], sizes = [4, 16, 128], strides = [1, 1, 1]} : vector<10x16x128xf32> to vector<4x16x128xf32>
    %440 = vector.shape_cast %438 : vector<128xf32> to vector<1x1x128xf32>
    %441 = vector.broadcast %440 : vector<1x1x128xf32> to vector<4x16x128xf32>
    %442 = arith.mulf %441, %439 : vector<4x16x128xf32>
    %443 = arith.addf %436, %442 : vector<4x16x128xf32>
    %c3_196 = arith.constant 3 : index
    %c1_197 = arith.constant 1 : index
    %c0_198 = arith.constant 0 : index
    %444 = vector.load %arg4[%c3_196, %c1_197, %c0_198] : memref<7x7x128xf32, #tpu.memory_space<vmem>>, vector<1x1x128xf32>
    %445 = vector.shape_cast %444 : vector<1x1x128xf32> to vector<128xf32>
    %446 = vector.extract_strided_slice %422 {offsets = [3, 0, 0], sizes = [4, 16, 128], strides = [1, 1, 1]} : vector<10x16x128xf32> to vector<4x16x128xf32>
    %447 = vector.shape_cast %445 : vector<128xf32> to vector<1x1x128xf32>
    %448 = vector.broadcast %447 : vector<1x1x128xf32> to vector<4x16x128xf32>
    %449 = arith.mulf %448, %446 : vector<4x16x128xf32>
    %450 = arith.addf %443, %449 : vector<4x16x128xf32>
    %c4_199 = arith.constant 4 : index
    %c1_200 = arith.constant 1 : index
    %c0_201 = arith.constant 0 : index
    %451 = vector.load %arg4[%c4_199, %c1_200, %c0_201] : memref<7x7x128xf32, #tpu.memory_space<vmem>>, vector<1x1x128xf32>
    %452 = vector.shape_cast %451 : vector<1x1x128xf32> to vector<128xf32>
    %453 = vector.extract_strided_slice %422 {offsets = [4, 0, 0], sizes = [4, 16, 128], strides = [1, 1, 1]} : vector<10x16x128xf32> to vector<4x16x128xf32>
    %454 = vector.shape_cast %452 : vector<128xf32> to vector<1x1x128xf32>
    %455 = vector.broadcast %454 : vector<1x1x128xf32> to vector<4x16x128xf32>
    %456 = arith.mulf %455, %453 : vector<4x16x128xf32>
    %457 = arith.addf %450, %456 : vector<4x16x128xf32>
    %c5_202 = arith.constant 5 : index
    %c1_203 = arith.constant 1 : index
    %c0_204 = arith.constant 0 : index
    %458 = vector.load %arg4[%c5_202, %c1_203, %c0_204] : memref<7x7x128xf32, #tpu.memory_space<vmem>>, vector<1x1x128xf32>
    %459 = vector.shape_cast %458 : vector<1x1x128xf32> to vector<128xf32>
    %460 = vector.extract_strided_slice %422 {offsets = [5, 0, 0], sizes = [4, 16, 128], strides = [1, 1, 1]} : vector<10x16x128xf32> to vector<4x16x128xf32>
    %461 = vector.shape_cast %459 : vector<128xf32> to vector<1x1x128xf32>
    %462 = vector.broadcast %461 : vector<1x1x128xf32> to vector<4x16x128xf32>
    %463 = arith.mulf %462, %460 : vector<4x16x128xf32>
    %464 = arith.addf %457, %463 : vector<4x16x128xf32>
    %c6_205 = arith.constant 6 : index
    %c1_206 = arith.constant 1 : index
    %c0_207 = arith.constant 0 : index
    %465 = vector.load %arg4[%c6_205, %c1_206, %c0_207] : memref<7x7x128xf32, #tpu.memory_space<vmem>>, vector<1x1x128xf32>
    %466 = vector.shape_cast %465 : vector<1x1x128xf32> to vector<128xf32>
    %467 = vector.extract_strided_slice %422 {offsets = [6, 0, 0], sizes = [4, 16, 128], strides = [1, 1, 1]} : vector<10x16x128xf32> to vector<4x16x128xf32>
    %468 = vector.shape_cast %466 : vector<128xf32> to vector<1x1x128xf32>
    %469 = vector.broadcast %468 : vector<1x1x128xf32> to vector<4x16x128xf32>
    %470 = arith.mulf %469, %467 : vector<4x16x128xf32>
    %471 = arith.addf %464, %470 : vector<4x16x128xf32>
    %472 = arith.index_cast %369 : i32 to index
    %c2_208 = arith.constant 2 : index
    %c0_209 = arith.constant 0 : index
    %473 = vector.load %arg7[%472, %c2_208, %c0_209] : memref<22x22x128xf32, #tpu.memory_space<vmem>>, vector<10x16x128xf32>
    %c0_210 = arith.constant 0 : index
    %c2_211 = arith.constant 2 : index
    %c0_212 = arith.constant 0 : index
    %474 = vector.load %arg4[%c0_210, %c2_211, %c0_212] : memref<7x7x128xf32, #tpu.memory_space<vmem>>, vector<1x1x128xf32>
    %475 = vector.shape_cast %474 : vector<1x1x128xf32> to vector<128xf32>
    %476 = vector.extract_strided_slice %473 {offsets = [0, 0, 0], sizes = [4, 16, 128], strides = [1, 1, 1]} : vector<10x16x128xf32> to vector<4x16x128xf32>
    %477 = vector.shape_cast %475 : vector<128xf32> to vector<1x1x128xf32>
    %478 = vector.broadcast %477 : vector<1x1x128xf32> to vector<4x16x128xf32>
    %479 = arith.mulf %478, %476 : vector<4x16x128xf32>
    %480 = arith.addf %471, %479 : vector<4x16x128xf32>
    %c1_213 = arith.constant 1 : index
    %c2_214 = arith.constant 2 : index
    %c0_215 = arith.constant 0 : index
    %481 = vector.load %arg4[%c1_213, %c2_214, %c0_215] : memref<7x7x128xf32, #tpu.memory_space<vmem>>, vector<1x1x128xf32>
    %482 = vector.shape_cast %481 : vector<1x1x128xf32> to vector<128xf32>
    %483 = vector.extract_strided_slice %473 {offsets = [1, 0, 0], sizes = [4, 16, 128], strides = [1, 1, 1]} : vector<10x16x128xf32> to vector<4x16x128xf32>
    %484 = vector.shape_cast %482 : vector<128xf32> to vector<1x1x128xf32>
    %485 = vector.broadcast %484 : vector<1x1x128xf32> to vector<4x16x128xf32>
    %486 = arith.mulf %485, %483 : vector<4x16x128xf32>
    %487 = arith.addf %480, %486 : vector<4x16x128xf32>
    %c2_216 = arith.constant 2 : index
    %c2_217 = arith.constant 2 : index
    %c0_218 = arith.constant 0 : index
    %488 = vector.load %arg4[%c2_216, %c2_217, %c0_218] : memref<7x7x128xf32, #tpu.memory_space<vmem>>, vector<1x1x128xf32>
    %489 = vector.shape_cast %488 : vector<1x1x128xf32> to vector<128xf32>
    %490 = vector.extract_strided_slice %473 {offsets = [2, 0, 0], sizes = [4, 16, 128], strides = [1, 1, 1]} : vector<10x16x128xf32> to vector<4x16x128xf32>
    %491 = vector.shape_cast %489 : vector<128xf32> to vector<1x1x128xf32>
    %492 = vector.broadcast %491 : vector<1x1x128xf32> to vector<4x16x128xf32>
    %493 = arith.mulf %492, %490 : vector<4x16x128xf32>
    %494 = arith.addf %487, %493 : vector<4x16x128xf32>
    %c3_219 = arith.constant 3 : index
    %c2_220 = arith.constant 2 : index
    %c0_221 = arith.constant 0 : index
    %495 = vector.load %arg4[%c3_219, %c2_220, %c0_221] : memref<7x7x128xf32, #tpu.memory_space<vmem>>, vector<1x1x128xf32>
    %496 = vector.shape_cast %495 : vector<1x1x128xf32> to vector<128xf32>
    %497 = vector.extract_strided_slice %473 {offsets = [3, 0, 0], sizes = [4, 16, 128], strides = [1, 1, 1]} : vector<10x16x128xf32> to vector<4x16x128xf32>
    %498 = vector.shape_cast %496 : vector<128xf32> to vector<1x1x128xf32>
    %499 = vector.broadcast %498 : vector<1x1x128xf32> to vector<4x16x128xf32>
    %500 = arith.mulf %499, %497 : vector<4x16x128xf32>
    %501 = arith.addf %494, %500 : vector<4x16x128xf32>
    %c4_222 = arith.constant 4 : index
    %c2_223 = arith.constant 2 : index
    %c0_224 = arith.constant 0 : index
    %502 = vector.load %arg4[%c4_222, %c2_223, %c0_224] : memref<7x7x128xf32, #tpu.memory_space<vmem>>, vector<1x1x128xf32>
    %503 = vector.shape_cast %502 : vector<1x1x128xf32> to vector<128xf32>
    %504 = vector.extract_strided_slice %473 {offsets = [4, 0, 0], sizes = [4, 16, 128], strides = [1, 1, 1]} : vector<10x16x128xf32> to vector<4x16x128xf32>
    %505 = vector.shape_cast %503 : vector<128xf32> to vector<1x1x128xf32>
    %506 = vector.broadcast %505 : vector<1x1x128xf32> to vector<4x16x128xf32>
    %507 = arith.mulf %506, %504 : vector<4x16x128xf32>
    %508 = arith.addf %501, %507 : vector<4x16x128xf32>
    %c5_225 = arith.constant 5 : index
    %c2_226 = arith.constant 2 : index
    %c0_227 = arith.constant 0 : index
    %509 = vector.load %arg4[%c5_225, %c2_226, %c0_227] : memref<7x7x128xf32, #tpu.memory_space<vmem>>, vector<1x1x128xf32>
    %510 = vector.shape_cast %509 : vector<1x1x128xf32> to vector<128xf32>
    %511 = vector.extract_strided_slice %473 {offsets = [5, 0, 0], sizes = [4, 16, 128], strides = [1, 1, 1]} : vector<10x16x128xf32> to vector<4x16x128xf32>
    %512 = vector.shape_cast %510 : vector<128xf32> to vector<1x1x128xf32>
    %513 = vector.broadcast %512 : vector<1x1x128xf32> to vector<4x16x128xf32>
    %514 = arith.mulf %513, %511 : vector<4x16x128xf32>
    %515 = arith.addf %508, %514 : vector<4x16x128xf32>
    %c6_228 = arith.constant 6 : index
    %c2_229 = arith.constant 2 : index
    %c0_230 = arith.constant 0 : index
    %516 = vector.load %arg4[%c6_228, %c2_229, %c0_230] : memref<7x7x128xf32, #tpu.memory_space<vmem>>, vector<1x1x128xf32>
    %517 = vector.shape_cast %516 : vector<1x1x128xf32> to vector<128xf32>
    %518 = vector.extract_strided_slice %473 {offsets = [6, 0, 0], sizes = [4, 16, 128], strides = [1, 1, 1]} : vector<10x16x128xf32> to vector<4x16x128xf32>
    %519 = vector.shape_cast %517 : vector<128xf32> to vector<1x1x128xf32>
    %520 = vector.broadcast %519 : vector<1x1x128xf32> to vector<4x16x128xf32>
    %521 = arith.mulf %520, %518 : vector<4x16x128xf32>
    %522 = arith.addf %515, %521 : vector<4x16x128xf32>
    %523 = arith.index_cast %369 : i32 to index
    %c3_231 = arith.constant 3 : index
    %c0_232 = arith.constant 0 : index
    %524 = vector.load %arg7[%523, %c3_231, %c0_232] : memref<22x22x128xf32, #tpu.memory_space<vmem>>, vector<10x16x128xf32>
    %c0_233 = arith.constant 0 : index
    %c3_234 = arith.constant 3 : index
    %c0_235 = arith.constant 0 : index
    %525 = vector.load %arg4[%c0_233, %c3_234, %c0_235] : memref<7x7x128xf32, #tpu.memory_space<vmem>>, vector<1x1x128xf32>
    %526 = vector.shape_cast %525 : vector<1x1x128xf32> to vector<128xf32>
    %527 = vector.extract_strided_slice %524 {offsets = [0, 0, 0], sizes = [4, 16, 128], strides = [1, 1, 1]} : vector<10x16x128xf32> to vector<4x16x128xf32>
    %528 = vector.shape_cast %526 : vector<128xf32> to vector<1x1x128xf32>
    %529 = vector.broadcast %528 : vector<1x1x128xf32> to vector<4x16x128xf32>
    %530 = arith.mulf %529, %527 : vector<4x16x128xf32>
    %531 = arith.addf %522, %530 : vector<4x16x128xf32>
    %c1_236 = arith.constant 1 : index
    %c3_237 = arith.constant 3 : index
    %c0_238 = arith.constant 0 : index
    %532 = vector.load %arg4[%c1_236, %c3_237, %c0_238] : memref<7x7x128xf32, #tpu.memory_space<vmem>>, vector<1x1x128xf32>
    %533 = vector.shape_cast %532 : vector<1x1x128xf32> to vector<128xf32>
    %534 = vector.extract_strided_slice %524 {offsets = [1, 0, 0], sizes = [4, 16, 128], strides = [1, 1, 1]} : vector<10x16x128xf32> to vector<4x16x128xf32>
    %535 = vector.shape_cast %533 : vector<128xf32> to vector<1x1x128xf32>
    %536 = vector.broadcast %535 : vector<1x1x128xf32> to vector<4x16x128xf32>
    %537 = arith.mulf %536, %534 : vector<4x16x128xf32>
    %538 = arith.addf %531, %537 : vector<4x16x128xf32>
    %c2_239 = arith.constant 2 : index
    %c3_240 = arith.constant 3 : index
    %c0_241 = arith.constant 0 : index
    %539 = vector.load %arg4[%c2_239, %c3_240, %c0_241] : memref<7x7x128xf32, #tpu.memory_space<vmem>>, vector<1x1x128xf32>
    %540 = vector.shape_cast %539 : vector<1x1x128xf32> to vector<128xf32>
    %541 = vector.extract_strided_slice %524 {offsets = [2, 0, 0], sizes = [4, 16, 128], strides = [1, 1, 1]} : vector<10x16x128xf32> to vector<4x16x128xf32>
    %542 = vector.shape_cast %540 : vector<128xf32> to vector<1x1x128xf32>
    %543 = vector.broadcast %542 : vector<1x1x128xf32> to vector<4x16x128xf32>
    %544 = arith.mulf %543, %541 : vector<4x16x128xf32>
    %545 = arith.addf %538, %544 : vector<4x16x128xf32>
    %c3_242 = arith.constant 3 : index
    %c3_243 = arith.constant 3 : index
    %c0_244 = arith.constant 0 : index
    %546 = vector.load %arg4[%c3_242, %c3_243, %c0_244] : memref<7x7x128xf32, #tpu.memory_space<vmem>>, vector<1x1x128xf32>
    %547 = vector.shape_cast %546 : vector<1x1x128xf32> to vector<128xf32>
    %548 = vector.extract_strided_slice %524 {offsets = [3, 0, 0], sizes = [4, 16, 128], strides = [1, 1, 1]} : vector<10x16x128xf32> to vector<4x16x128xf32>
    %549 = vector.shape_cast %547 : vector<128xf32> to vector<1x1x128xf32>
    %550 = vector.broadcast %549 : vector<1x1x128xf32> to vector<4x16x128xf32>
    %551 = arith.mulf %550, %548 : vector<4x16x128xf32>
    %552 = arith.addf %545, %551 : vector<4x16x128xf32>
    %c4_245 = arith.constant 4 : index
    %c3_246 = arith.constant 3 : index
    %c0_247 = arith.constant 0 : index
    %553 = vector.load %arg4[%c4_245, %c3_246, %c0_247] : memref<7x7x128xf32, #tpu.memory_space<vmem>>, vector<1x1x128xf32>
    %554 = vector.shape_cast %553 : vector<1x1x128xf32> to vector<128xf32>
    %555 = vector.extract_strided_slice %524 {offsets = [4, 0, 0], sizes = [4, 16, 128], strides = [1, 1, 1]} : vector<10x16x128xf32> to vector<4x16x128xf32>
    %556 = vector.shape_cast %554 : vector<128xf32> to vector<1x1x128xf32>
    %557 = vector.broadcast %556 : vector<1x1x128xf32> to vector<4x16x128xf32>
    %558 = arith.mulf %557, %555 : vector<4x16x128xf32>
    %559 = arith.addf %552, %558 : vector<4x16x128xf32>
    %c5_248 = arith.constant 5 : index
    %c3_249 = arith.constant 3 : index
    %c0_250 = arith.constant 0 : index
    %560 = vector.load %arg4[%c5_248, %c3_249, %c0_250] : memref<7x7x128xf32, #tpu.memory_space<vmem>>, vector<1x1x128xf32>
    %561 = vector.shape_cast %560 : vector<1x1x128xf32> to vector<128xf32>
    %562 = vector.extract_strided_slice %524 {offsets = [5, 0, 0], sizes = [4, 16, 128], strides = [1, 1, 1]} : vector<10x16x128xf32> to vector<4x16x128xf32>
    %563 = vector.shape_cast %561 : vector<128xf32> to vector<1x1x128xf32>
    %564 = vector.broadcast %563 : vector<1x1x128xf32> to vector<4x16x128xf32>
    %565 = arith.mulf %564, %562 : vector<4x16x128xf32>
    %566 = arith.addf %559, %565 : vector<4x16x128xf32>
    %c6_251 = arith.constant 6 : index
    %c3_252 = arith.constant 3 : index
    %c0_253 = arith.constant 0 : index
    %567 = vector.load %arg4[%c6_251, %c3_252, %c0_253] : memref<7x7x128xf32, #tpu.memory_space<vmem>>, vector<1x1x128xf32>
    %568 = vector.shape_cast %567 : vector<1x1x128xf32> to vector<128xf32>
    %569 = vector.extract_strided_slice %524 {offsets = [6, 0, 0], sizes = [4, 16, 128], strides = [1, 1, 1]} : vector<10x16x128xf32> to vector<4x16x128xf32>
    %570 = vector.shape_cast %568 : vector<128xf32> to vector<1x1x128xf32>
    %571 = vector.broadcast %570 : vector<1x1x128xf32> to vector<4x16x128xf32>
    %572 = arith.mulf %571, %569 : vector<4x16x128xf32>
    %573 = arith.addf %566, %572 : vector<4x16x128xf32>
    %574 = arith.index_cast %369 : i32 to index
    %c4_254 = arith.constant 4 : index
    %c0_255 = arith.constant 0 : index
    %575 = vector.load %arg7[%574, %c4_254, %c0_255] : memref<22x22x128xf32, #tpu.memory_space<vmem>>, vector<10x16x128xf32>
    %c0_256 = arith.constant 0 : index
    %c4_257 = arith.constant 4 : index
    %c0_258 = arith.constant 0 : index
    %576 = vector.load %arg4[%c0_256, %c4_257, %c0_258] : memref<7x7x128xf32, #tpu.memory_space<vmem>>, vector<1x1x128xf32>
    %577 = vector.shape_cast %576 : vector<1x1x128xf32> to vector<128xf32>
    %578 = vector.extract_strided_slice %575 {offsets = [0, 0, 0], sizes = [4, 16, 128], strides = [1, 1, 1]} : vector<10x16x128xf32> to vector<4x16x128xf32>
    %579 = vector.shape_cast %577 : vector<128xf32> to vector<1x1x128xf32>
    %580 = vector.broadcast %579 : vector<1x1x128xf32> to vector<4x16x128xf32>
    %581 = arith.mulf %580, %578 : vector<4x16x128xf32>
    %582 = arith.addf %573, %581 : vector<4x16x128xf32>
    %c1_259 = arith.constant 1 : index
    %c4_260 = arith.constant 4 : index
    %c0_261 = arith.constant 0 : index
    %583 = vector.load %arg4[%c1_259, %c4_260, %c0_261] : memref<7x7x128xf32, #tpu.memory_space<vmem>>, vector<1x1x128xf32>
    %584 = vector.shape_cast %583 : vector<1x1x128xf32> to vector<128xf32>
    %585 = vector.extract_strided_slice %575 {offsets = [1, 0, 0], sizes = [4, 16, 128], strides = [1, 1, 1]} : vector<10x16x128xf32> to vector<4x16x128xf32>
    %586 = vector.shape_cast %584 : vector<128xf32> to vector<1x1x128xf32>
    %587 = vector.broadcast %586 : vector<1x1x128xf32> to vector<4x16x128xf32>
    %588 = arith.mulf %587, %585 : vector<4x16x128xf32>
    %589 = arith.addf %582, %588 : vector<4x16x128xf32>
    %c2_262 = arith.constant 2 : index
    %c4_263 = arith.constant 4 : index
    %c0_264 = arith.constant 0 : index
    %590 = vector.load %arg4[%c2_262, %c4_263, %c0_264] : memref<7x7x128xf32, #tpu.memory_space<vmem>>, vector<1x1x128xf32>
    %591 = vector.shape_cast %590 : vector<1x1x128xf32> to vector<128xf32>
    %592 = vector.extract_strided_slice %575 {offsets = [2, 0, 0], sizes = [4, 16, 128], strides = [1, 1, 1]} : vector<10x16x128xf32> to vector<4x16x128xf32>
    %593 = vector.shape_cast %591 : vector<128xf32> to vector<1x1x128xf32>
    %594 = vector.broadcast %593 : vector<1x1x128xf32> to vector<4x16x128xf32>
    %595 = arith.mulf %594, %592 : vector<4x16x128xf32>
    %596 = arith.addf %589, %595 : vector<4x16x128xf32>
    %c3_265 = arith.constant 3 : index
    %c4_266 = arith.constant 4 : index
    %c0_267 = arith.constant 0 : index
    %597 = vector.load %arg4[%c3_265, %c4_266, %c0_267] : memref<7x7x128xf32, #tpu.memory_space<vmem>>, vector<1x1x128xf32>
    %598 = vector.shape_cast %597 : vector<1x1x128xf32> to vector<128xf32>
    %599 = vector.extract_strided_slice %575 {offsets = [3, 0, 0], sizes = [4, 16, 128], strides = [1, 1, 1]} : vector<10x16x128xf32> to vector<4x16x128xf32>
    %600 = vector.shape_cast %598 : vector<128xf32> to vector<1x1x128xf32>
    %601 = vector.broadcast %600 : vector<1x1x128xf32> to vector<4x16x128xf32>
    %602 = arith.mulf %601, %599 : vector<4x16x128xf32>
    %603 = arith.addf %596, %602 : vector<4x16x128xf32>
    %c4_268 = arith.constant 4 : index
    %c4_269 = arith.constant 4 : index
    %c0_270 = arith.constant 0 : index
    %604 = vector.load %arg4[%c4_268, %c4_269, %c0_270] : memref<7x7x128xf32, #tpu.memory_space<vmem>>, vector<1x1x128xf32>
    %605 = vector.shape_cast %604 : vector<1x1x128xf32> to vector<128xf32>
    %606 = vector.extract_strided_slice %575 {offsets = [4, 0, 0], sizes = [4, 16, 128], strides = [1, 1, 1]} : vector<10x16x128xf32> to vector<4x16x128xf32>
    %607 = vector.shape_cast %605 : vector<128xf32> to vector<1x1x128xf32>
    %608 = vector.broadcast %607 : vector<1x1x128xf32> to vector<4x16x128xf32>
    %609 = arith.mulf %608, %606 : vector<4x16x128xf32>
    %610 = arith.addf %603, %609 : vector<4x16x128xf32>
    %c5_271 = arith.constant 5 : index
    %c4_272 = arith.constant 4 : index
    %c0_273 = arith.constant 0 : index
    %611 = vector.load %arg4[%c5_271, %c4_272, %c0_273] : memref<7x7x128xf32, #tpu.memory_space<vmem>>, vector<1x1x128xf32>
    %612 = vector.shape_cast %611 : vector<1x1x128xf32> to vector<128xf32>
    %613 = vector.extract_strided_slice %575 {offsets = [5, 0, 0], sizes = [4, 16, 128], strides = [1, 1, 1]} : vector<10x16x128xf32> to vector<4x16x128xf32>
    %614 = vector.shape_cast %612 : vector<128xf32> to vector<1x1x128xf32>
    %615 = vector.broadcast %614 : vector<1x1x128xf32> to vector<4x16x128xf32>
    %616 = arith.mulf %615, %613 : vector<4x16x128xf32>
    %617 = arith.addf %610, %616 : vector<4x16x128xf32>
    %c6_274 = arith.constant 6 : index
    %c4_275 = arith.constant 4 : index
    %c0_276 = arith.constant 0 : index
    %618 = vector.load %arg4[%c6_274, %c4_275, %c0_276] : memref<7x7x128xf32, #tpu.memory_space<vmem>>, vector<1x1x128xf32>
    %619 = vector.shape_cast %618 : vector<1x1x128xf32> to vector<128xf32>
    %620 = vector.extract_strided_slice %575 {offsets = [6, 0, 0], sizes = [4, 16, 128], strides = [1, 1, 1]} : vector<10x16x128xf32> to vector<4x16x128xf32>
    %621 = vector.shape_cast %619 : vector<128xf32> to vector<1x1x128xf32>
    %622 = vector.broadcast %621 : vector<1x1x128xf32> to vector<4x16x128xf32>
    %623 = arith.mulf %622, %620 : vector<4x16x128xf32>
    %624 = arith.addf %617, %623 : vector<4x16x128xf32>
    %625 = arith.index_cast %369 : i32 to index
    %c5_277 = arith.constant 5 : index
    %c0_278 = arith.constant 0 : index
    %626 = vector.load %arg7[%625, %c5_277, %c0_278] : memref<22x22x128xf32, #tpu.memory_space<vmem>>, vector<10x16x128xf32>
    %c0_279 = arith.constant 0 : index
    %c5_280 = arith.constant 5 : index
    %c0_281 = arith.constant 0 : index
    %627 = vector.load %arg4[%c0_279, %c5_280, %c0_281] : memref<7x7x128xf32, #tpu.memory_space<vmem>>, vector<1x1x128xf32>
    %628 = vector.shape_cast %627 : vector<1x1x128xf32> to vector<128xf32>
    %629 = vector.extract_strided_slice %626 {offsets = [0, 0, 0], sizes = [4, 16, 128], strides = [1, 1, 1]} : vector<10x16x128xf32> to vector<4x16x128xf32>
    %630 = vector.shape_cast %628 : vector<128xf32> to vector<1x1x128xf32>
    %631 = vector.broadcast %630 : vector<1x1x128xf32> to vector<4x16x128xf32>
    %632 = arith.mulf %631, %629 : vector<4x16x128xf32>
    %633 = arith.addf %624, %632 : vector<4x16x128xf32>
    %c1_282 = arith.constant 1 : index
    %c5_283 = arith.constant 5 : index
    %c0_284 = arith.constant 0 : index
    %634 = vector.load %arg4[%c1_282, %c5_283, %c0_284] : memref<7x7x128xf32, #tpu.memory_space<vmem>>, vector<1x1x128xf32>
    %635 = vector.shape_cast %634 : vector<1x1x128xf32> to vector<128xf32>
    %636 = vector.extract_strided_slice %626 {offsets = [1, 0, 0], sizes = [4, 16, 128], strides = [1, 1, 1]} : vector<10x16x128xf32> to vector<4x16x128xf32>
    %637 = vector.shape_cast %635 : vector<128xf32> to vector<1x1x128xf32>
    %638 = vector.broadcast %637 : vector<1x1x128xf32> to vector<4x16x128xf32>
    %639 = arith.mulf %638, %636 : vector<4x16x128xf32>
    %640 = arith.addf %633, %639 : vector<4x16x128xf32>
    %c2_285 = arith.constant 2 : index
    %c5_286 = arith.constant 5 : index
    %c0_287 = arith.constant 0 : index
    %641 = vector.load %arg4[%c2_285, %c5_286, %c0_287] : memref<7x7x128xf32, #tpu.memory_space<vmem>>, vector<1x1x128xf32>
    %642 = vector.shape_cast %641 : vector<1x1x128xf32> to vector<128xf32>
    %643 = vector.extract_strided_slice %626 {offsets = [2, 0, 0], sizes = [4, 16, 128], strides = [1, 1, 1]} : vector<10x16x128xf32> to vector<4x16x128xf32>
    %644 = vector.shape_cast %642 : vector<128xf32> to vector<1x1x128xf32>
    %645 = vector.broadcast %644 : vector<1x1x128xf32> to vector<4x16x128xf32>
    %646 = arith.mulf %645, %643 : vector<4x16x128xf32>
    %647 = arith.addf %640, %646 : vector<4x16x128xf32>
    %c3_288 = arith.constant 3 : index
    %c5_289 = arith.constant 5 : index
    %c0_290 = arith.constant 0 : index
    %648 = vector.load %arg4[%c3_288, %c5_289, %c0_290] : memref<7x7x128xf32, #tpu.memory_space<vmem>>, vector<1x1x128xf32>
    %649 = vector.shape_cast %648 : vector<1x1x128xf32> to vector<128xf32>
    %650 = vector.extract_strided_slice %626 {offsets = [3, 0, 0], sizes = [4, 16, 128], strides = [1, 1, 1]} : vector<10x16x128xf32> to vector<4x16x128xf32>
    %651 = vector.shape_cast %649 : vector<128xf32> to vector<1x1x128xf32>
    %652 = vector.broadcast %651 : vector<1x1x128xf32> to vector<4x16x128xf32>
    %653 = arith.mulf %652, %650 : vector<4x16x128xf32>
    %654 = arith.addf %647, %653 : vector<4x16x128xf32>
    %c4_291 = arith.constant 4 : index
    %c5_292 = arith.constant 5 : index
    %c0_293 = arith.constant 0 : index
    %655 = vector.load %arg4[%c4_291, %c5_292, %c0_293] : memref<7x7x128xf32, #tpu.memory_space<vmem>>, vector<1x1x128xf32>
    %656 = vector.shape_cast %655 : vector<1x1x128xf32> to vector<128xf32>
    %657 = vector.extract_strided_slice %626 {offsets = [4, 0, 0], sizes = [4, 16, 128], strides = [1, 1, 1]} : vector<10x16x128xf32> to vector<4x16x128xf32>
    %658 = vector.shape_cast %656 : vector<128xf32> to vector<1x1x128xf32>
    %659 = vector.broadcast %658 : vector<1x1x128xf32> to vector<4x16x128xf32>
    %660 = arith.mulf %659, %657 : vector<4x16x128xf32>
    %661 = arith.addf %654, %660 : vector<4x16x128xf32>
    %c5_294 = arith.constant 5 : index
    %c5_295 = arith.constant 5 : index
    %c0_296 = arith.constant 0 : index
    %662 = vector.load %arg4[%c5_294, %c5_295, %c0_296] : memref<7x7x128xf32, #tpu.memory_space<vmem>>, vector<1x1x128xf32>
    %663 = vector.shape_cast %662 : vector<1x1x128xf32> to vector<128xf32>
    %664 = vector.extract_strided_slice %626 {offsets = [5, 0, 0], sizes = [4, 16, 128], strides = [1, 1, 1]} : vector<10x16x128xf32> to vector<4x16x128xf32>
    %665 = vector.shape_cast %663 : vector<128xf32> to vector<1x1x128xf32>
    %666 = vector.broadcast %665 : vector<1x1x128xf32> to vector<4x16x128xf32>
    %667 = arith.mulf %666, %664 : vector<4x16x128xf32>
    %668 = arith.addf %661, %667 : vector<4x16x128xf32>
    %c6_297 = arith.constant 6 : index
    %c5_298 = arith.constant 5 : index
    %c0_299 = arith.constant 0 : index
    %669 = vector.load %arg4[%c6_297, %c5_298, %c0_299] : memref<7x7x128xf32, #tpu.memory_space<vmem>>, vector<1x1x128xf32>
    %670 = vector.shape_cast %669 : vector<1x1x128xf32> to vector<128xf32>
    %671 = vector.extract_strided_slice %626 {offsets = [6, 0, 0], sizes = [4, 16, 128], strides = [1, 1, 1]} : vector<10x16x128xf32> to vector<4x16x128xf32>
    %672 = vector.shape_cast %670 : vector<128xf32> to vector<1x1x128xf32>
    %673 = vector.broadcast %672 : vector<1x1x128xf32> to vector<4x16x128xf32>
    %674 = arith.mulf %673, %671 : vector<4x16x128xf32>
    %675 = arith.addf %668, %674 : vector<4x16x128xf32>
    %676 = arith.index_cast %369 : i32 to index
    %c6_300 = arith.constant 6 : index
    %c0_301 = arith.constant 0 : index
    %677 = vector.load %arg7[%676, %c6_300, %c0_301] : memref<22x22x128xf32, #tpu.memory_space<vmem>>, vector<10x16x128xf32>
    %c0_302 = arith.constant 0 : index
    %c6_303 = arith.constant 6 : index
    %c0_304 = arith.constant 0 : index
    %678 = vector.load %arg4[%c0_302, %c6_303, %c0_304] : memref<7x7x128xf32, #tpu.memory_space<vmem>>, vector<1x1x128xf32>
    %679 = vector.shape_cast %678 : vector<1x1x128xf32> to vector<128xf32>
    %680 = vector.extract_strided_slice %677 {offsets = [0, 0, 0], sizes = [4, 16, 128], strides = [1, 1, 1]} : vector<10x16x128xf32> to vector<4x16x128xf32>
    %681 = vector.shape_cast %679 : vector<128xf32> to vector<1x1x128xf32>
    %682 = vector.broadcast %681 : vector<1x1x128xf32> to vector<4x16x128xf32>
    %683 = arith.mulf %682, %680 : vector<4x16x128xf32>
    %684 = arith.addf %675, %683 : vector<4x16x128xf32>
    %c1_305 = arith.constant 1 : index
    %c6_306 = arith.constant 6 : index
    %c0_307 = arith.constant 0 : index
    %685 = vector.load %arg4[%c1_305, %c6_306, %c0_307] : memref<7x7x128xf32, #tpu.memory_space<vmem>>, vector<1x1x128xf32>
    %686 = vector.shape_cast %685 : vector<1x1x128xf32> to vector<128xf32>
    %687 = vector.extract_strided_slice %677 {offsets = [1, 0, 0], sizes = [4, 16, 128], strides = [1, 1, 1]} : vector<10x16x128xf32> to vector<4x16x128xf32>
    %688 = vector.shape_cast %686 : vector<128xf32> to vector<1x1x128xf32>
    %689 = vector.broadcast %688 : vector<1x1x128xf32> to vector<4x16x128xf32>
    %690 = arith.mulf %689, %687 : vector<4x16x128xf32>
    %691 = arith.addf %684, %690 : vector<4x16x128xf32>
    %c2_308 = arith.constant 2 : index
    %c6_309 = arith.constant 6 : index
    %c0_310 = arith.constant 0 : index
    %692 = vector.load %arg4[%c2_308, %c6_309, %c0_310] : memref<7x7x128xf32, #tpu.memory_space<vmem>>, vector<1x1x128xf32>
    %693 = vector.shape_cast %692 : vector<1x1x128xf32> to vector<128xf32>
    %694 = vector.extract_strided_slice %677 {offsets = [2, 0, 0], sizes = [4, 16, 128], strides = [1, 1, 1]} : vector<10x16x128xf32> to vector<4x16x128xf32>
    %695 = vector.shape_cast %693 : vector<128xf32> to vector<1x1x128xf32>
    %696 = vector.broadcast %695 : vector<1x1x128xf32> to vector<4x16x128xf32>
    %697 = arith.mulf %696, %694 : vector<4x16x128xf32>
    %698 = arith.addf %691, %697 : vector<4x16x128xf32>
    %c3_311 = arith.constant 3 : index
    %c6_312 = arith.constant 6 : index
    %c0_313 = arith.constant 0 : index
    %699 = vector.load %arg4[%c3_311, %c6_312, %c0_313] : memref<7x7x128xf32, #tpu.memory_space<vmem>>, vector<1x1x128xf32>
    %700 = vector.shape_cast %699 : vector<1x1x128xf32> to vector<128xf32>
    %701 = vector.extract_strided_slice %677 {offsets = [3, 0, 0], sizes = [4, 16, 128], strides = [1, 1, 1]} : vector<10x16x128xf32> to vector<4x16x128xf32>
    %702 = vector.shape_cast %700 : vector<128xf32> to vector<1x1x128xf32>
    %703 = vector.broadcast %702 : vector<1x1x128xf32> to vector<4x16x128xf32>
    %704 = arith.mulf %703, %701 : vector<4x16x128xf32>
    %705 = arith.addf %698, %704 : vector<4x16x128xf32>
    %c4_314 = arith.constant 4 : index
    %c6_315 = arith.constant 6 : index
    %c0_316 = arith.constant 0 : index
    %706 = vector.load %arg4[%c4_314, %c6_315, %c0_316] : memref<7x7x128xf32, #tpu.memory_space<vmem>>, vector<1x1x128xf32>
    %707 = vector.shape_cast %706 : vector<1x1x128xf32> to vector<128xf32>
    %708 = vector.extract_strided_slice %677 {offsets = [4, 0, 0], sizes = [4, 16, 128], strides = [1, 1, 1]} : vector<10x16x128xf32> to vector<4x16x128xf32>
    %709 = vector.shape_cast %707 : vector<128xf32> to vector<1x1x128xf32>
    %710 = vector.broadcast %709 : vector<1x1x128xf32> to vector<4x16x128xf32>
    %711 = arith.mulf %710, %708 : vector<4x16x128xf32>
    %712 = arith.addf %705, %711 : vector<4x16x128xf32>
    %c5_317 = arith.constant 5 : index
    %c6_318 = arith.constant 6 : index
    %c0_319 = arith.constant 0 : index
    %713 = vector.load %arg4[%c5_317, %c6_318, %c0_319] : memref<7x7x128xf32, #tpu.memory_space<vmem>>, vector<1x1x128xf32>
    %714 = vector.shape_cast %713 : vector<1x1x128xf32> to vector<128xf32>
    %715 = vector.extract_strided_slice %677 {offsets = [5, 0, 0], sizes = [4, 16, 128], strides = [1, 1, 1]} : vector<10x16x128xf32> to vector<4x16x128xf32>
    %716 = vector.shape_cast %714 : vector<128xf32> to vector<1x1x128xf32>
    %717 = vector.broadcast %716 : vector<1x1x128xf32> to vector<4x16x128xf32>
    %718 = arith.mulf %717, %715 : vector<4x16x128xf32>
    %719 = arith.addf %712, %718 : vector<4x16x128xf32>
    %c6_320 = arith.constant 6 : index
    %c6_321 = arith.constant 6 : index
    %c0_322 = arith.constant 0 : index
    %720 = vector.load %arg4[%c6_320, %c6_321, %c0_322] : memref<7x7x128xf32, #tpu.memory_space<vmem>>, vector<1x1x128xf32>
    %721 = vector.shape_cast %720 : vector<1x1x128xf32> to vector<128xf32>
    %722 = vector.extract_strided_slice %677 {offsets = [6, 0, 0], sizes = [4, 16, 128], strides = [1, 1, 1]} : vector<10x16x128xf32> to vector<4x16x128xf32>
    %723 = vector.shape_cast %721 : vector<128xf32> to vector<1x1x128xf32>
    %724 = vector.broadcast %723 : vector<1x1x128xf32> to vector<4x16x128xf32>
    %725 = arith.mulf %724, %722 : vector<4x16x128xf32>
    %726 = arith.addf %719, %725 : vector<4x16x128xf32>
    %c0_323 = arith.constant 0 : index
    %c4_324 = arith.constant 4 : index
    %c0_325 = arith.constant 0 : index
    %c0_326 = arith.constant 0 : index
    %727 = vector.load %arg6[%c0_323, %c4_324, %c0_325, %c0_326] : memref<1x16x16x128xf32, #tpu.memory_space<vmem>>, vector<1x4x16x128xf32>
    %728 = vector.shape_cast %727 : vector<1x4x16x128xf32> to vector<4x16x128xf32>
    %729 = vector.shape_cast %726 : vector<4x16x128xf32> to vector<1x4x16x128xf32>
    tpu.vector_store %arg6[%c0_323, %c4_324, %c0_325, %c0_326], %729 {strides = array<i32>} : memref<1x16x16x128xf32, #tpu.memory_space<vmem>>, vector<1x4x16x128xf32>,
    %c8_i32 = arith.constant 8 : i32
    %730 = arith.addi %7, %c8_i32 : i32
    %731 = arith.index_cast %730 : i32 to index
    %c0_327 = arith.constant 0 : index
    %c0_328 = arith.constant 0 : index
    %732 = vector.load %arg7[%731, %c0_327, %c0_328] : memref<22x22x128xf32, #tpu.memory_space<vmem>>, vector<10x16x128xf32>
    %c0_329 = arith.constant 0 : index
    %c0_330 = arith.constant 0 : index
    %c0_331 = arith.constant 0 : index
    %733 = vector.load %arg4[%c0_329, %c0_330, %c0_331] : memref<7x7x128xf32, #tpu.memory_space<vmem>>, vector<1x1x128xf32>
    %734 = vector.shape_cast %733 : vector<1x1x128xf32> to vector<128xf32>
    %735 = vector.extract_strided_slice %732 {offsets = [0, 0, 0], sizes = [4, 16, 128], strides = [1, 1, 1]} : vector<10x16x128xf32> to vector<4x16x128xf32>
    %736 = vector.shape_cast %734 : vector<128xf32> to vector<1x1x128xf32>
    %737 = vector.broadcast %736 : vector<1x1x128xf32> to vector<4x16x128xf32>
    %738 = arith.mulf %737, %735 : vector<4x16x128xf32>
    %739 = arith.addf %6, %738 : vector<4x16x128xf32>
    %c1_332 = arith.constant 1 : index
    %c0_333 = arith.constant 0 : index
    %c0_334 = arith.constant 0 : index
    %740 = vector.load %arg4[%c1_332, %c0_333, %c0_334] : memref<7x7x128xf32, #tpu.memory_space<vmem>>, vector<1x1x128xf32>
    %741 = vector.shape_cast %740 : vector<1x1x128xf32> to vector<128xf32>
    %742 = vector.extract_strided_slice %732 {offsets = [1, 0, 0], sizes = [4, 16, 128], strides = [1, 1, 1]} : vector<10x16x128xf32> to vector<4x16x128xf32>
    %743 = vector.shape_cast %741 : vector<128xf32> to vector<1x1x128xf32>
    %744 = vector.broadcast %743 : vector<1x1x128xf32> to vector<4x16x128xf32>
    %745 = arith.mulf %744, %742 : vector<4x16x128xf32>
    %746 = arith.addf %739, %745 : vector<4x16x128xf32>
    %c2_335 = arith.constant 2 : index
    %c0_336 = arith.constant 0 : index
    %c0_337 = arith.constant 0 : index
    %747 = vector.load %arg4[%c2_335, %c0_336, %c0_337] : memref<7x7x128xf32, #tpu.memory_space<vmem>>, vector<1x1x128xf32>
    %748 = vector.shape_cast %747 : vector<1x1x128xf32> to vector<128xf32>
    %749 = vector.extract_strided_slice %732 {offsets = [2, 0, 0], sizes = [4, 16, 128], strides = [1, 1, 1]} : vector<10x16x128xf32> to vector<4x16x128xf32>
    %750 = vector.shape_cast %748 : vector<128xf32> to vector<1x1x128xf32>
    %751 = vector.broadcast %750 : vector<1x1x128xf32> to vector<4x16x128xf32>
    %752 = arith.mulf %751, %749 : vector<4x16x128xf32>
    %753 = arith.addf %746, %752 : vector<4x16x128xf32>
    %c3_338 = arith.constant 3 : index
    %c0_339 = arith.constant 0 : index
    %c0_340 = arith.constant 0 : index
    %754 = vector.load %arg4[%c3_338, %c0_339, %c0_340] : memref<7x7x128xf32, #tpu.memory_space<vmem>>, vector<1x1x128xf32>
    %755 = vector.shape_cast %754 : vector<1x1x128xf32> to vector<128xf32>
    %756 = vector.extract_strided_slice %732 {offsets = [3, 0, 0], sizes = [4, 16, 128], strides = [1, 1, 1]} : vector<10x16x128xf32> to vector<4x16x128xf32>
    %757 = vector.shape_cast %755 : vector<128xf32> to vector<1x1x128xf32>
    %758 = vector.broadcast %757 : vector<1x1x128xf32> to vector<4x16x128xf32>
    %759 = arith.mulf %758, %756 : vector<4x16x128xf32>
    %760 = arith.addf %753, %759 : vector<4x16x128xf32>
    %c4_341 = arith.constant 4 : index
    %c0_342 = arith.constant 0 : index
    %c0_343 = arith.constant 0 : index
    %761 = vector.load %arg4[%c4_341, %c0_342, %c0_343] : memref<7x7x128xf32, #tpu.memory_space<vmem>>, vector<1x1x128xf32>
    %762 = vector.shape_cast %761 : vector<1x1x128xf32> to vector<128xf32>
    %763 = vector.extract_strided_slice %732 {offsets = [4, 0, 0], sizes = [4, 16, 128], strides = [1, 1, 1]} : vector<10x16x128xf32> to vector<4x16x128xf32>
    %764 = vector.shape_cast %762 : vector<128xf32> to vector<1x1x128xf32>
    %765 = vector.broadcast %764 : vector<1x1x128xf32> to vector<4x16x128xf32>
    %766 = arith.mulf %765, %763 : vector<4x16x128xf32>
    %767 = arith.addf %760, %766 : vector<4x16x128xf32>
    %c5_344 = arith.constant 5 : index
    %c0_345 = arith.constant 0 : index
    %c0_346 = arith.constant 0 : index
    %768 = vector.load %arg4[%c5_344, %c0_345, %c0_346] : memref<7x7x128xf32, #tpu.memory_space<vmem>>, vector<1x1x128xf32>
    %769 = vector.shape_cast %768 : vector<1x1x128xf32> to vector<128xf32>
    %770 = vector.extract_strided_slice %732 {offsets = [5, 0, 0], sizes = [4, 16, 128], strides = [1, 1, 1]} : vector<10x16x128xf32> to vector<4x16x128xf32>
    %771 = vector.shape_cast %769 : vector<128xf32> to vector<1x1x128xf32>
    %772 = vector.broadcast %771 : vector<1x1x128xf32> to vector<4x16x128xf32>
    %773 = arith.mulf %772, %770 : vector<4x16x128xf32>
    %774 = arith.addf %767, %773 : vector<4x16x128xf32>
    %c6_347 = arith.constant 6 : index
    %c0_348 = arith.constant 0 : index
    %c0_349 = arith.constant 0 : index
    %775 = vector.load %arg4[%c6_347, %c0_348, %c0_349] : memref<7x7x128xf32, #tpu.memory_space<vmem>>, vector<1x1x128xf32>
    %776 = vector.shape_cast %775 : vector<1x1x128xf32> to vector<128xf32>
    %777 = vector.extract_strided_slice %732 {offsets = [6, 0, 0], sizes = [4, 16, 128], strides = [1, 1, 1]} : vector<10x16x128xf32> to vector<4x16x128xf32>
    %778 = vector.shape_cast %776 : vector<128xf32> to vector<1x1x128xf32>
    %779 = vector.broadcast %778 : vector<1x1x128xf32> to vector<4x16x128xf32>
    %780 = arith.mulf %779, %777 : vector<4x16x128xf32>
    %781 = arith.addf %774, %780 : vector<4x16x128xf32>
    %782 = arith.index_cast %730 : i32 to index
    %c1_350 = arith.constant 1 : index
    %c0_351 = arith.constant 0 : index
    %783 = vector.load %arg7[%782, %c1_350, %c0_351] : memref<22x22x128xf32, #tpu.memory_space<vmem>>, vector<10x16x128xf32>
    %c0_352 = arith.constant 0 : index
    %c1_353 = arith.constant 1 : index
    %c0_354 = arith.constant 0 : index
    %784 = vector.load %arg4[%c0_352, %c1_353, %c0_354] : memref<7x7x128xf32, #tpu.memory_space<vmem>>, vector<1x1x128xf32>
    %785 = vector.shape_cast %784 : vector<1x1x128xf32> to vector<128xf32>
    %786 = vector.extract_strided_slice %783 {offsets = [0, 0, 0], sizes = [4, 16, 128], strides = [1, 1, 1]} : vector<10x16x128xf32> to vector<4x16x128xf32>
    %787 = vector.shape_cast %785 : vector<128xf32> to vector<1x1x128xf32>
    %788 = vector.broadcast %787 : vector<1x1x128xf32> to vector<4x16x128xf32>
    %789 = arith.mulf %788, %786 : vector<4x16x128xf32>
    %790 = arith.addf %781, %789 : vector<4x16x128xf32>
    %c1_355 = arith.constant 1 : index
    %c1_356 = arith.constant 1 : index
    %c0_357 = arith.constant 0 : index
    %791 = vector.load %arg4[%c1_355, %c1_356, %c0_357] : memref<7x7x128xf32, #tpu.memory_space<vmem>>, vector<1x1x128xf32>
    %792 = vector.shape_cast %791 : vector<1x1x128xf32> to vector<128xf32>
    %793 = vector.extract_strided_slice %783 {offsets = [1, 0, 0], sizes = [4, 16, 128], strides = [1, 1, 1]} : vector<10x16x128xf32> to vector<4x16x128xf32>
    %794 = vector.shape_cast %792 : vector<128xf32> to vector<1x1x128xf32>
    %795 = vector.broadcast %794 : vector<1x1x128xf32> to vector<4x16x128xf32>
    %796 = arith.mulf %795, %793 : vector<4x16x128xf32>
    %797 = arith.addf %790, %796 : vector<4x16x128xf32>
    %c2_358 = arith.constant 2 : index
    %c1_359 = arith.constant 1 : index
    %c0_360 = arith.constant 0 : index
    %798 = vector.load %arg4[%c2_358, %c1_359, %c0_360] : memref<7x7x128xf32, #tpu.memory_space<vmem>>, vector<1x1x128xf32>
    %799 = vector.shape_cast %798 : vector<1x1x128xf32> to vector<128xf32>
    %800 = vector.extract_strided_slice %783 {offsets = [2, 0, 0], sizes = [4, 16, 128], strides = [1, 1, 1]} : vector<10x16x128xf32> to vector<4x16x128xf32>
    %801 = vector.shape_cast %799 : vector<128xf32> to vector<1x1x128xf32>
    %802 = vector.broadcast %801 : vector<1x1x128xf32> to vector<4x16x128xf32>
    %803 = arith.mulf %802, %800 : vector<4x16x128xf32>
    %804 = arith.addf %797, %803 : vector<4x16x128xf32>
    %c3_361 = arith.constant 3 : index
    %c1_362 = arith.constant 1 : index
    %c0_363 = arith.constant 0 : index
    %805 = vector.load %arg4[%c3_361, %c1_362, %c0_363] : memref<7x7x128xf32, #tpu.memory_space<vmem>>, vector<1x1x128xf32>
    %806 = vector.shape_cast %805 : vector<1x1x128xf32> to vector<128xf32>
    %807 = vector.extract_strided_slice %783 {offsets = [3, 0, 0], sizes = [4, 16, 128], strides = [1, 1, 1]} : vector<10x16x128xf32> to vector<4x16x128xf32>
    %808 = vector.shape_cast %806 : vector<128xf32> to vector<1x1x128xf32>
    %809 = vector.broadcast %808 : vector<1x1x128xf32> to vector<4x16x128xf32>
    %810 = arith.mulf %809, %807 : vector<4x16x128xf32>
    %811 = arith.addf %804, %810 : vector<4x16x128xf32>
    %c4_364 = arith.constant 4 : index
    %c1_365 = arith.constant 1 : index
    %c0_366 = arith.constant 0 : index
    %812 = vector.load %arg4[%c4_364, %c1_365, %c0_366] : memref<7x7x128xf32, #tpu.memory_space<vmem>>, vector<1x1x128xf32>
    %813 = vector.shape_cast %812 : vector<1x1x128xf32> to vector<128xf32>
    %814 = vector.extract_strided_slice %783 {offsets = [4, 0, 0], sizes = [4, 16, 128], strides = [1, 1, 1]} : vector<10x16x128xf32> to vector<4x16x128xf32>
    %815 = vector.shape_cast %813 : vector<128xf32> to vector<1x1x128xf32>
    %816 = vector.broadcast %815 : vector<1x1x128xf32> to vector<4x16x128xf32>
    %817 = arith.mulf %816, %814 : vector<4x16x128xf32>
    %818 = arith.addf %811, %817 : vector<4x16x128xf32>
    %c5_367 = arith.constant 5 : index
    %c1_368 = arith.constant 1 : index
    %c0_369 = arith.constant 0 : index
    %819 = vector.load %arg4[%c5_367, %c1_368, %c0_369] : memref<7x7x128xf32, #tpu.memory_space<vmem>>, vector<1x1x128xf32>
    %820 = vector.shape_cast %819 : vector<1x1x128xf32> to vector<128xf32>
    %821 = vector.extract_strided_slice %783 {offsets = [5, 0, 0], sizes = [4, 16, 128], strides = [1, 1, 1]} : vector<10x16x128xf32> to vector<4x16x128xf32>
    %822 = vector.shape_cast %820 : vector<128xf32> to vector<1x1x128xf32>
    %823 = vector.broadcast %822 : vector<1x1x128xf32> to vector<4x16x128xf32>
    %824 = arith.mulf %823, %821 : vector<4x16x128xf32>
    %825 = arith.addf %818, %824 : vector<4x16x128xf32>
    %c6_370 = arith.constant 6 : index
    %c1_371 = arith.constant 1 : index
    %c0_372 = arith.constant 0 : index
    %826 = vector.load %arg4[%c6_370, %c1_371, %c0_372] : memref<7x7x128xf32, #tpu.memory_space<vmem>>, vector<1x1x128xf32>
    %827 = vector.shape_cast %826 : vector<1x1x128xf32> to vector<128xf32>
    %828 = vector.extract_strided_slice %783 {offsets = [6, 0, 0], sizes = [4, 16, 128], strides = [1, 1, 1]} : vector<10x16x128xf32> to vector<4x16x128xf32>
    %829 = vector.shape_cast %827 : vector<128xf32> to vector<1x1x128xf32>
    %830 = vector.broadcast %829 : vector<1x1x128xf32> to vector<4x16x128xf32>
    %831 = arith.mulf %830, %828 : vector<4x16x128xf32>
    %832 = arith.addf %825, %831 : vector<4x16x128xf32>
    %833 = arith.index_cast %730 : i32 to index
    %c2_373 = arith.constant 2 : index
    %c0_374 = arith.constant 0 : index
    %834 = vector.load %arg7[%833, %c2_373, %c0_374] : memref<22x22x128xf32, #tpu.memory_space<vmem>>, vector<10x16x128xf32>
    %c0_375 = arith.constant 0 : index
    %c2_376 = arith.constant 2 : index
    %c0_377 = arith.constant 0 : index
    %835 = vector.load %arg4[%c0_375, %c2_376, %c0_377] : memref<7x7x128xf32, #tpu.memory_space<vmem>>, vector<1x1x128xf32>
    %836 = vector.shape_cast %835 : vector<1x1x128xf32> to vector<128xf32>
    %837 = vector.extract_strided_slice %834 {offsets = [0, 0, 0], sizes = [4, 16, 128], strides = [1, 1, 1]} : vector<10x16x128xf32> to vector<4x16x128xf32>
    %838 = vector.shape_cast %836 : vector<128xf32> to vector<1x1x128xf32>
    %839 = vector.broadcast %838 : vector<1x1x128xf32> to vector<4x16x128xf32>
    %840 = arith.mulf %839, %837 : vector<4x16x128xf32>
    %841 = arith.addf %832, %840 : vector<4x16x128xf32>
    %c1_378 = arith.constant 1 : index
    %c2_379 = arith.constant 2 : index
    %c0_380 = arith.constant 0 : index
    %842 = vector.load %arg4[%c1_378, %c2_379, %c0_380] : memref<7x7x128xf32, #tpu.memory_space<vmem>>, vector<1x1x128xf32>
    %843 = vector.shape_cast %842 : vector<1x1x128xf32> to vector<128xf32>
    %844 = vector.extract_strided_slice %834 {offsets = [1, 0, 0], sizes = [4, 16, 128], strides = [1, 1, 1]} : vector<10x16x128xf32> to vector<4x16x128xf32>
    %845 = vector.shape_cast %843 : vector<128xf32> to vector<1x1x128xf32>
    %846 = vector.broadcast %845 : vector<1x1x128xf32> to vector<4x16x128xf32>
    %847 = arith.mulf %846, %844 : vector<4x16x128xf32>
    %848 = arith.addf %841, %847 : vector<4x16x128xf32>
    %c2_381 = arith.constant 2 : index
    %c2_382 = arith.constant 2 : index
    %c0_383 = arith.constant 0 : index
    %849 = vector.load %arg4[%c2_381, %c2_382, %c0_383] : memref<7x7x128xf32, #tpu.memory_space<vmem>>, vector<1x1x128xf32>
    %850 = vector.shape_cast %849 : vector<1x1x128xf32> to vector<128xf32>
    %851 = vector.extract_strided_slice %834 {offsets = [2, 0, 0], sizes = [4, 16, 128], strides = [1, 1, 1]} : vector<10x16x128xf32> to vector<4x16x128xf32>
    %852 = vector.shape_cast %850 : vector<128xf32> to vector<1x1x128xf32>
    %853 = vector.broadcast %852 : vector<1x1x128xf32> to vector<4x16x128xf32>
    %854 = arith.mulf %853, %851 : vector<4x16x128xf32>
    %855 = arith.addf %848, %854 : vector<4x16x128xf32>
    %c3_384 = arith.constant 3 : index
    %c2_385 = arith.constant 2 : index
    %c0_386 = arith.constant 0 : index
    %856 = vector.load %arg4[%c3_384, %c2_385, %c0_386] : memref<7x7x128xf32, #tpu.memory_space<vmem>>, vector<1x1x128xf32>
    %857 = vector.shape_cast %856 : vector<1x1x128xf32> to vector<128xf32>
    %858 = vector.extract_strided_slice %834 {offsets = [3, 0, 0], sizes = [4, 16, 128], strides = [1, 1, 1]} : vector<10x16x128xf32> to vector<4x16x128xf32>
    %859 = vector.shape_cast %857 : vector<128xf32> to vector<1x1x128xf32>
    %860 = vector.broadcast %859 : vector<1x1x128xf32> to vector<4x16x128xf32>
    %861 = arith.mulf %860, %858 : vector<4x16x128xf32>
    %862 = arith.addf %855, %861 : vector<4x16x128xf32>
    %c4_387 = arith.constant 4 : index
    %c2_388 = arith.constant 2 : index
    %c0_389 = arith.constant 0 : index
    %863 = vector.load %arg4[%c4_387, %c2_388, %c0_389] : memref<7x7x128xf32, #tpu.memory_space<vmem>>, vector<1x1x128xf32>
    %864 = vector.shape_cast %863 : vector<1x1x128xf32> to vector<128xf32>
    %865 = vector.extract_strided_slice %834 {offsets = [4, 0, 0], sizes = [4, 16, 128], strides = [1, 1, 1]} : vector<10x16x128xf32> to vector<4x16x128xf32>
    %866 = vector.shape_cast %864 : vector<128xf32> to vector<1x1x128xf32>
    %867 = vector.broadcast %866 : vector<1x1x128xf32> to vector<4x16x128xf32>
    %868 = arith.mulf %867, %865 : vector<4x16x128xf32>
    %869 = arith.addf %862, %868 : vector<4x16x128xf32>
    %c5_390 = arith.constant 5 : index
    %c2_391 = arith.constant 2 : index
    %c0_392 = arith.constant 0 : index
    %870 = vector.load %arg4[%c5_390, %c2_391, %c0_392] : memref<7x7x128xf32, #tpu.memory_space<vmem>>, vector<1x1x128xf32>
    %871 = vector.shape_cast %870 : vector<1x1x128xf32> to vector<128xf32>
    %872 = vector.extract_strided_slice %834 {offsets = [5, 0, 0], sizes = [4, 16, 128], strides = [1, 1, 1]} : vector<10x16x128xf32> to vector<4x16x128xf32>
    %873 = vector.shape_cast %871 : vector<128xf32> to vector<1x1x128xf32>
    %874 = vector.broadcast %873 : vector<1x1x128xf32> to vector<4x16x128xf32>
    %875 = arith.mulf %874, %872 : vector<4x16x128xf32>
    %876 = arith.addf %869, %875 : vector<4x16x128xf32>
    %c6_393 = arith.constant 6 : index
    %c2_394 = arith.constant 2 : index
    %c0_395 = arith.constant 0 : index
    %877 = vector.load %arg4[%c6_393, %c2_394, %c0_395] : memref<7x7x128xf32, #tpu.memory_space<vmem>>, vector<1x1x128xf32>
    %878 = vector.shape_cast %877 : vector<1x1x128xf32> to vector<128xf32>
    %879 = vector.extract_strided_slice %834 {offsets = [6, 0, 0], sizes = [4, 16, 128], strides = [1, 1, 1]} : vector<10x16x128xf32> to vector<4x16x128xf32>
    %880 = vector.shape_cast %878 : vector<128xf32> to vector<1x1x128xf32>
    %881 = vector.broadcast %880 : vector<1x1x128xf32> to vector<4x16x128xf32>
    %882 = arith.mulf %881, %879 : vector<4x16x128xf32>
    %883 = arith.addf %876, %882 : vector<4x16x128xf32>
    %884 = arith.index_cast %730 : i32 to index
    %c3_396 = arith.constant 3 : index
    %c0_397 = arith.constant 0 : index
    %885 = vector.load %arg7[%884, %c3_396, %c0_397] : memref<22x22x128xf32, #tpu.memory_space<vmem>>, vector<10x16x128xf32>
    %c0_398 = arith.constant 0 : index
    %c3_399 = arith.constant 3 : index
    %c0_400 = arith.constant 0 : index
    %886 = vector.load %arg4[%c0_398, %c3_399, %c0_400] : memref<7x7x128xf32, #tpu.memory_space<vmem>>, vector<1x1x128xf32>
    %887 = vector.shape_cast %886 : vector<1x1x128xf32> to vector<128xf32>
    %888 = vector.extract_strided_slice %885 {offsets = [0, 0, 0], sizes = [4, 16, 128], strides = [1, 1, 1]} : vector<10x16x128xf32> to vector<4x16x128xf32>
    %889 = vector.shape_cast %887 : vector<128xf32> to vector<1x1x128xf32>
    %890 = vector.broadcast %889 : vector<1x1x128xf32> to vector<4x16x128xf32>
    %891 = arith.mulf %890, %888 : vector<4x16x128xf32>
    %892 = arith.addf %883, %891 : vector<4x16x128xf32>
    %c1_401 = arith.constant 1 : index
    %c3_402 = arith.constant 3 : index
    %c0_403 = arith.constant 0 : index
    %893 = vector.load %arg4[%c1_401, %c3_402, %c0_403] : memref<7x7x128xf32, #tpu.memory_space<vmem>>, vector<1x1x128xf32>
    %894 = vector.shape_cast %893 : vector<1x1x128xf32> to vector<128xf32>
    %895 = vector.extract_strided_slice %885 {offsets = [1, 0, 0], sizes = [4, 16, 128], strides = [1, 1, 1]} : vector<10x16x128xf32> to vector<4x16x128xf32>
    %896 = vector.shape_cast %894 : vector<128xf32> to vector<1x1x128xf32>
    %897 = vector.broadcast %896 : vector<1x1x128xf32> to vector<4x16x128xf32>
    %898 = arith.mulf %897, %895 : vector<4x16x128xf32>
    %899 = arith.addf %892, %898 : vector<4x16x128xf32>
    %c2_404 = arith.constant 2 : index
    %c3_405 = arith.constant 3 : index
    %c0_406 = arith.constant 0 : index
    %900 = vector.load %arg4[%c2_404, %c3_405, %c0_406] : memref<7x7x128xf32, #tpu.memory_space<vmem>>, vector<1x1x128xf32>
    %901 = vector.shape_cast %900 : vector<1x1x128xf32> to vector<128xf32>
    %902 = vector.extract_strided_slice %885 {offsets = [2, 0, 0], sizes = [4, 16, 128], strides = [1, 1, 1]} : vector<10x16x128xf32> to vector<4x16x128xf32>
    %903 = vector.shape_cast %901 : vector<128xf32> to vector<1x1x128xf32>
    %904 = vector.broadcast %903 : vector<1x1x128xf32> to vector<4x16x128xf32>
    %905 = arith.mulf %904, %902 : vector<4x16x128xf32>
    %906 = arith.addf %899, %905 : vector<4x16x128xf32>
    %c3_407 = arith.constant 3 : index
    %c3_408 = arith.constant 3 : index
    %c0_409 = arith.constant 0 : index
    %907 = vector.load %arg4[%c3_407, %c3_408, %c0_409] : memref<7x7x128xf32, #tpu.memory_space<vmem>>, vector<1x1x128xf32>
    %908 = vector.shape_cast %907 : vector<1x1x128xf32> to vector<128xf32>
    %909 = vector.extract_strided_slice %885 {offsets = [3, 0, 0], sizes = [4, 16, 128], strides = [1, 1, 1]} : vector<10x16x128xf32> to vector<4x16x128xf32>
    %910 = vector.shape_cast %908 : vector<128xf32> to vector<1x1x128xf32>
    %911 = vector.broadcast %910 : vector<1x1x128xf32> to vector<4x16x128xf32>
    %912 = arith.mulf %911, %909 : vector<4x16x128xf32>
    %913 = arith.addf %906, %912 : vector<4x16x128xf32>
    %c4_410 = arith.constant 4 : index
    %c3_411 = arith.constant 3 : index
    %c0_412 = arith.constant 0 : index
    %914 = vector.load %arg4[%c4_410, %c3_411, %c0_412] : memref<7x7x128xf32, #tpu.memory_space<vmem>>, vector<1x1x128xf32>
    %915 = vector.shape_cast %914 : vector<1x1x128xf32> to vector<128xf32>
    %916 = vector.extract_strided_slice %885 {offsets = [4, 0, 0], sizes = [4, 16, 128], strides = [1, 1, 1]} : vector<10x16x128xf32> to vector<4x16x128xf32>
    %917 = vector.shape_cast %915 : vector<128xf32> to vector<1x1x128xf32>
    %918 = vector.broadcast %917 : vector<1x1x128xf32> to vector<4x16x128xf32>
    %919 = arith.mulf %918, %916 : vector<4x16x128xf32>
    %920 = arith.addf %913, %919 : vector<4x16x128xf32>
    %c5_413 = arith.constant 5 : index
    %c3_414 = arith.constant 3 : index
    %c0_415 = arith.constant 0 : index
    %921 = vector.load %arg4[%c5_413, %c3_414, %c0_415] : memref<7x7x128xf32, #tpu.memory_space<vmem>>, vector<1x1x128xf32>
    %922 = vector.shape_cast %921 : vector<1x1x128xf32> to vector<128xf32>
    %923 = vector.extract_strided_slice %885 {offsets = [5, 0, 0], sizes = [4, 16, 128], strides = [1, 1, 1]} : vector<10x16x128xf32> to vector<4x16x128xf32>
    %924 = vector.shape_cast %922 : vector<128xf32> to vector<1x1x128xf32>
    %925 = vector.broadcast %924 : vector<1x1x128xf32> to vector<4x16x128xf32>
    %926 = arith.mulf %925, %923 : vector<4x16x128xf32>
    %927 = arith.addf %920, %926 : vector<4x16x128xf32>
    %c6_416 = arith.constant 6 : index
    %c3_417 = arith.constant 3 : index
    %c0_418 = arith.constant 0 : index
    %928 = vector.load %arg4[%c6_416, %c3_417, %c0_418] : memref<7x7x128xf32, #tpu.memory_space<vmem>>, vector<1x1x128xf32>
    %929 = vector.shape_cast %928 : vector<1x1x128xf32> to vector<128xf32>
    %930 = vector.extract_strided_slice %885 {offsets = [6, 0, 0], sizes = [4, 16, 128], strides = [1, 1, 1]} : vector<10x16x128xf32> to vector<4x16x128xf32>
    %931 = vector.shape_cast %929 : vector<128xf32> to vector<1x1x128xf32>
    %932 = vector.broadcast %931 : vector<1x1x128xf32> to vector<4x16x128xf32>
    %933 = arith.mulf %932, %930 : vector<4x16x128xf32>
    %934 = arith.addf %927, %933 : vector<4x16x128xf32>
    %935 = arith.index_cast %730 : i32 to index
    %c4_419 = arith.constant 4 : index
    %c0_420 = arith.constant 0 : index
    %936 = vector.load %arg7[%935, %c4_419, %c0_420] : memref<22x22x128xf32, #tpu.memory_space<vmem>>, vector<10x16x128xf32>
    %c0_421 = arith.constant 0 : index
    %c4_422 = arith.constant 4 : index
    %c0_423 = arith.constant 0 : index
    %937 = vector.load %arg4[%c0_421, %c4_422, %c0_423] : memref<7x7x128xf32, #tpu.memory_space<vmem>>, vector<1x1x128xf32>
    %938 = vector.shape_cast %937 : vector<1x1x128xf32> to vector<128xf32>
    %939 = vector.extract_strided_slice %936 {offsets = [0, 0, 0], sizes = [4, 16, 128], strides = [1, 1, 1]} : vector<10x16x128xf32> to vector<4x16x128xf32>
    %940 = vector.shape_cast %938 : vector<128xf32> to vector<1x1x128xf32>
    %941 = vector.broadcast %940 : vector<1x1x128xf32> to vector<4x16x128xf32>
    %942 = arith.mulf %941, %939 : vector<4x16x128xf32>
    %943 = arith.addf %934, %942 : vector<4x16x128xf32>
    %c1_424 = arith.constant 1 : index
    %c4_425 = arith.constant 4 : index
    %c0_426 = arith.constant 0 : index
    %944 = vector.load %arg4[%c1_424, %c4_425, %c0_426] : memref<7x7x128xf32, #tpu.memory_space<vmem>>, vector<1x1x128xf32>
    %945 = vector.shape_cast %944 : vector<1x1x128xf32> to vector<128xf32>
    %946 = vector.extract_strided_slice %936 {offsets = [1, 0, 0], sizes = [4, 16, 128], strides = [1, 1, 1]} : vector<10x16x128xf32> to vector<4x16x128xf32>
    %947 = vector.shape_cast %945 : vector<128xf32> to vector<1x1x128xf32>
    %948 = vector.broadcast %947 : vector<1x1x128xf32> to vector<4x16x128xf32>
    %949 = arith.mulf %948, %946 : vector<4x16x128xf32>
    %950 = arith.addf %943, %949 : vector<4x16x128xf32>
    %c2_427 = arith.constant 2 : index
    %c4_428 = arith.constant 4 : index
    %c0_429 = arith.constant 0 : index
    %951 = vector.load %arg4[%c2_427, %c4_428, %c0_429] : memref<7x7x128xf32, #tpu.memory_space<vmem>>, vector<1x1x128xf32>
    %952 = vector.shape_cast %951 : vector<1x1x128xf32> to vector<128xf32>
    %953 = vector.extract_strided_slice %936 {offsets = [2, 0, 0], sizes = [4, 16, 128], strides = [1, 1, 1]} : vector<10x16x128xf32> to vector<4x16x128xf32>
    %954 = vector.shape_cast %952 : vector<128xf32> to vector<1x1x128xf32>
    %955 = vector.broadcast %954 : vector<1x1x128xf32> to vector<4x16x128xf32>
    %956 = arith.mulf %955, %953 : vector<4x16x128xf32>
    %957 = arith.addf %950, %956 : vector<4x16x128xf32>
    %c3_430 = arith.constant 3 : index
    %c4_431 = arith.constant 4 : index
    %c0_432 = arith.constant 0 : index
    %958 = vector.load %arg4[%c3_430, %c4_431, %c0_432] : memref<7x7x128xf32, #tpu.memory_space<vmem>>, vector<1x1x128xf32>
    %959 = vector.shape_cast %958 : vector<1x1x128xf32> to vector<128xf32>
    %960 = vector.extract_strided_slice %936 {offsets = [3, 0, 0], sizes = [4, 16, 128], strides = [1, 1, 1]} : vector<10x16x128xf32> to vector<4x16x128xf32>
    %961 = vector.shape_cast %959 : vector<128xf32> to vector<1x1x128xf32>
    %962 = vector.broadcast %961 : vector<1x1x128xf32> to vector<4x16x128xf32>
    %963 = arith.mulf %962, %960 : vector<4x16x128xf32>
    %964 = arith.addf %957, %963 : vector<4x16x128xf32>
    %c4_433 = arith.constant 4 : index
    %c4_434 = arith.constant 4 : index
    %c0_435 = arith.constant 0 : index
    %965 = vector.load %arg4[%c4_433, %c4_434, %c0_435] : memref<7x7x128xf32, #tpu.memory_space<vmem>>, vector<1x1x128xf32>
    %966 = vector.shape_cast %965 : vector<1x1x128xf32> to vector<128xf32>
    %967 = vector.extract_strided_slice %936 {offsets = [4, 0, 0], sizes = [4, 16, 128], strides = [1, 1, 1]} : vector<10x16x128xf32> to vector<4x16x128xf32>
    %968 = vector.shape_cast %966 : vector<128xf32> to vector<1x1x128xf32>
    %969 = vector.broadcast %968 : vector<1x1x128xf32> to vector<4x16x128xf32>
    %970 = arith.mulf %969, %967 : vector<4x16x128xf32>
    %971 = arith.addf %964, %970 : vector<4x16x128xf32>
    %c5_436 = arith.constant 5 : index
    %c4_437 = arith.constant 4 : index
    %c0_438 = arith.constant 0 : index
    %972 = vector.load %arg4[%c5_436, %c4_437, %c0_438] : memref<7x7x128xf32, #tpu.memory_space<vmem>>, vector<1x1x128xf32>
    %973 = vector.shape_cast %972 : vector<1x1x128xf32> to vector<128xf32>
    %974 = vector.extract_strided_slice %936 {offsets = [5, 0, 0], sizes = [4, 16, 128], strides = [1, 1, 1]} : vector<10x16x128xf32> to vector<4x16x128xf32>
    %975 = vector.shape_cast %973 : vector<128xf32> to vector<1x1x128xf32>
    %976 = vector.broadcast %975 : vector<1x1x128xf32> to vector<4x16x128xf32>
    %977 = arith.mulf %976, %974 : vector<4x16x128xf32>
    %978 = arith.addf %971, %977 : vector<4x16x128xf32>
    %c6_439 = arith.constant 6 : index
    %c4_440 = arith.constant 4 : index
    %c0_441 = arith.constant 0 : index
    %979 = vector.load %arg4[%c6_439, %c4_440, %c0_441] : memref<7x7x128xf32, #tpu.memory_space<vmem>>, vector<1x1x128xf32>
    %980 = vector.shape_cast %979 : vector<1x1x128xf32> to vector<128xf32>
    %981 = vector.extract_strided_slice %936 {offsets = [6, 0, 0], sizes = [4, 16, 128], strides = [1, 1, 1]} : vector<10x16x128xf32> to vector<4x16x128xf32>
    %982 = vector.shape_cast %980 : vector<128xf32> to vector<1x1x128xf32>
    %983 = vector.broadcast %982 : vector<1x1x128xf32> to vector<4x16x128xf32>
    %984 = arith.mulf %983, %981 : vector<4x16x128xf32>
    %985 = arith.addf %978, %984 : vector<4x16x128xf32>
    %986 = arith.index_cast %730 : i32 to index
    %c5_442 = arith.constant 5 : index
    %c0_443 = arith.constant 0 : index
    %987 = vector.load %arg7[%986, %c5_442, %c0_443] : memref<22x22x128xf32, #tpu.memory_space<vmem>>, vector<10x16x128xf32>
    %c0_444 = arith.constant 0 : index
    %c5_445 = arith.constant 5 : index
    %c0_446 = arith.constant 0 : index
    %988 = vector.load %arg4[%c0_444, %c5_445, %c0_446] : memref<7x7x128xf32, #tpu.memory_space<vmem>>, vector<1x1x128xf32>
    %989 = vector.shape_cast %988 : vector<1x1x128xf32> to vector<128xf32>
    %990 = vector.extract_strided_slice %987 {offsets = [0, 0, 0], sizes = [4, 16, 128], strides = [1, 1, 1]} : vector<10x16x128xf32> to vector<4x16x128xf32>
    %991 = vector.shape_cast %989 : vector<128xf32> to vector<1x1x128xf32>
    %992 = vector.broadcast %991 : vector<1x1x128xf32> to vector<4x16x128xf32>
    %993 = arith.mulf %992, %990 : vector<4x16x128xf32>
    %994 = arith.addf %985, %993 : vector<4x16x128xf32>
    %c1_447 = arith.constant 1 : index
    %c5_448 = arith.constant 5 : index
    %c0_449 = arith.constant 0 : index
    %995 = vector.load %arg4[%c1_447, %c5_448, %c0_449] : memref<7x7x128xf32, #tpu.memory_space<vmem>>, vector<1x1x128xf32>
    %996 = vector.shape_cast %995 : vector<1x1x128xf32> to vector<128xf32>
    %997 = vector.extract_strided_slice %987 {offsets = [1, 0, 0], sizes = [4, 16, 128], strides = [1, 1, 1]} : vector<10x16x128xf32> to vector<4x16x128xf32>
    %998 = vector.shape_cast %996 : vector<128xf32> to vector<1x1x128xf32>
    %999 = vector.broadcast %998 : vector<1x1x128xf32> to vector<4x16x128xf32>
    %1000 = arith.mulf %999, %997 : vector<4x16x128xf32>
    %1001 = arith.addf %994, %1000 : vector<4x16x128xf32>
    %c2_450 = arith.constant 2 : index
    %c5_451 = arith.constant 5 : index
    %c0_452 = arith.constant 0 : index
    %1002 = vector.load %arg4[%c2_450, %c5_451, %c0_452] : memref<7x7x128xf32, #tpu.memory_space<vmem>>, vector<1x1x128xf32>
    %1003 = vector.shape_cast %1002 : vector<1x1x128xf32> to vector<128xf32>
    %1004 = vector.extract_strided_slice %987 {offsets = [2, 0, 0], sizes = [4, 16, 128], strides = [1, 1, 1]} : vector<10x16x128xf32> to vector<4x16x128xf32>
    %1005 = vector.shape_cast %1003 : vector<128xf32> to vector<1x1x128xf32>
    %1006 = vector.broadcast %1005 : vector<1x1x128xf32> to vector<4x16x128xf32>
    %1007 = arith.mulf %1006, %1004 : vector<4x16x128xf32>
    %1008 = arith.addf %1001, %1007 : vector<4x16x128xf32>
    %c3_453 = arith.constant 3 : index
    %c5_454 = arith.constant 5 : index
    %c0_455 = arith.constant 0 : index
    %1009 = vector.load %arg4[%c3_453, %c5_454, %c0_455] : memref<7x7x128xf32, #tpu.memory_space<vmem>>, vector<1x1x128xf32>
    %1010 = vector.shape_cast %1009 : vector<1x1x128xf32> to vector<128xf32>
    %1011 = vector.extract_strided_slice %987 {offsets = [3, 0, 0], sizes = [4, 16, 128], strides = [1, 1, 1]} : vector<10x16x128xf32> to vector<4x16x128xf32>
    %1012 = vector.shape_cast %1010 : vector<128xf32> to vector<1x1x128xf32>
    %1013 = vector.broadcast %1012 : vector<1x1x128xf32> to vector<4x16x128xf32>
    %1014 = arith.mulf %1013, %1011 : vector<4x16x128xf32>
    %1015 = arith.addf %1008, %1014 : vector<4x16x128xf32>
    %c4_456 = arith.constant 4 : index
    %c5_457 = arith.constant 5 : index
    %c0_458 = arith.constant 0 : index
    %1016 = vector.load %arg4[%c4_456, %c5_457, %c0_458] : memref<7x7x128xf32, #tpu.memory_space<vmem>>, vector<1x1x128xf32>
    %1017 = vector.shape_cast %1016 : vector<1x1x128xf32> to vector<128xf32>
    %1018 = vector.extract_strided_slice %987 {offsets = [4, 0, 0], sizes = [4, 16, 128], strides = [1, 1, 1]} : vector<10x16x128xf32> to vector<4x16x128xf32>
    %1019 = vector.shape_cast %1017 : vector<128xf32> to vector<1x1x128xf32>
    %1020 = vector.broadcast %1019 : vector<1x1x128xf32> to vector<4x16x128xf32>
    %1021 = arith.mulf %1020, %1018 : vector<4x16x128xf32>
    %1022 = arith.addf %1015, %1021 : vector<4x16x128xf32>
    %c5_459 = arith.constant 5 : index
    %c5_460 = arith.constant 5 : index
    %c0_461 = arith.constant 0 : index
    %1023 = vector.load %arg4[%c5_459, %c5_460, %c0_461] : memref<7x7x128xf32, #tpu.memory_space<vmem>>, vector<1x1x128xf32>
    %1024 = vector.shape_cast %1023 : vector<1x1x128xf32> to vector<128xf32>
    %1025 = vector.extract_strided_slice %987 {offsets = [5, 0, 0], sizes = [4, 16, 128], strides = [1, 1, 1]} : vector<10x16x128xf32> to vector<4x16x128xf32>
    %1026 = vector.shape_cast %1024 : vector<128xf32> to vector<1x1x128xf32>
    %1027 = vector.broadcast %1026 : vector<1x1x128xf32> to vector<4x16x128xf32>
    %1028 = arith.mulf %1027, %1025 : vector<4x16x128xf32>
    %1029 = arith.addf %1022, %1028 : vector<4x16x128xf32>
    %c6_462 = arith.constant 6 : index
    %c5_463 = arith.constant 5 : index
    %c0_464 = arith.constant 0 : index
    %1030 = vector.load %arg4[%c6_462, %c5_463, %c0_464] : memref<7x7x128xf32, #tpu.memory_space<vmem>>, vector<1x1x128xf32>
    %1031 = vector.shape_cast %1030 : vector<1x1x128xf32> to vector<128xf32>
    %1032 = vector.extract_strided_slice %987 {offsets = [6, 0, 0], sizes = [4, 16, 128], strides = [1, 1, 1]} : vector<10x16x128xf32> to vector<4x16x128xf32>
    %1033 = vector.shape_cast %1031 : vector<128xf32> to vector<1x1x128xf32>
    %1034 = vector.broadcast %1033 : vector<1x1x128xf32> to vector<4x16x128xf32>
    %1035 = arith.mulf %1034, %1032 : vector<4x16x128xf32>
    %1036 = arith.addf %1029, %1035 : vector<4x16x128xf32>
    %1037 = arith.index_cast %730 : i32 to index
    %c6_465 = arith.constant 6 : index
    %c0_466 = arith.constant 0 : index
    %1038 = vector.load %arg7[%1037, %c6_465, %c0_466] : memref<22x22x128xf32, #tpu.memory_space<vmem>>, vector<10x16x128xf32>
    %c0_467 = arith.constant 0 : index
    %c6_468 = arith.constant 6 : index
    %c0_469 = arith.constant 0 : index
    %1039 = vector.load %arg4[%c0_467, %c6_468, %c0_469] : memref<7x7x128xf32, #tpu.memory_space<vmem>>, vector<1x1x128xf32>
    %1040 = vector.shape_cast %1039 : vector<1x1x128xf32> to vector<128xf32>
    %1041 = vector.extract_strided_slice %1038 {offsets = [0, 0, 0], sizes = [4, 16, 128], strides = [1, 1, 1]} : vector<10x16x128xf32> to vector<4x16x128xf32>
    %1042 = vector.shape_cast %1040 : vector<128xf32> to vector<1x1x128xf32>
    %1043 = vector.broadcast %1042 : vector<1x1x128xf32> to vector<4x16x128xf32>
    %1044 = arith.mulf %1043, %1041 : vector<4x16x128xf32>
    %1045 = arith.addf %1036, %1044 : vector<4x16x128xf32>
    %c1_470 = arith.constant 1 : index
    %c6_471 = arith.constant 6 : index
    %c0_472 = arith.constant 0 : index
    %1046 = vector.load %arg4[%c1_470, %c6_471, %c0_472] : memref<7x7x128xf32, #tpu.memory_space<vmem>>, vector<1x1x128xf32>
    %1047 = vector.shape_cast %1046 : vector<1x1x128xf32> to vector<128xf32>
    %1048 = vector.extract_strided_slice %1038 {offsets = [1, 0, 0], sizes = [4, 16, 128], strides = [1, 1, 1]} : vector<10x16x128xf32> to vector<4x16x128xf32>
    %1049 = vector.shape_cast %1047 : vector<128xf32> to vector<1x1x128xf32>
    %1050 = vector.broadcast %1049 : vector<1x1x128xf32> to vector<4x16x128xf32>
    %1051 = arith.mulf %1050, %1048 : vector<4x16x128xf32>
    %1052 = arith.addf %1045, %1051 : vector<4x16x128xf32>
    %c2_473 = arith.constant 2 : index
    %c6_474 = arith.constant 6 : index
    %c0_475 = arith.constant 0 : index
    %1053 = vector.load %arg4[%c2_473, %c6_474, %c0_475] : memref<7x7x128xf32, #tpu.memory_space<vmem>>, vector<1x1x128xf32>
    %1054 = vector.shape_cast %1053 : vector<1x1x128xf32> to vector<128xf32>
    %1055 = vector.extract_strided_slice %1038 {offsets = [2, 0, 0], sizes = [4, 16, 128], strides = [1, 1, 1]} : vector<10x16x128xf32> to vector<4x16x128xf32>
    %1056 = vector.shape_cast %1054 : vector<128xf32> to vector<1x1x128xf32>
    %1057 = vector.broadcast %1056 : vector<1x1x128xf32> to vector<4x16x128xf32>
    %1058 = arith.mulf %1057, %1055 : vector<4x16x128xf32>
    %1059 = arith.addf %1052, %1058 : vector<4x16x128xf32>
    %c3_476 = arith.constant 3 : index
    %c6_477 = arith.constant 6 : index
    %c0_478 = arith.constant 0 : index
    %1060 = vector.load %arg4[%c3_476, %c6_477, %c0_478] : memref<7x7x128xf32, #tpu.memory_space<vmem>>, vector<1x1x128xf32>
    %1061 = vector.shape_cast %1060 : vector<1x1x128xf32> to vector<128xf32>
    %1062 = vector.extract_strided_slice %1038 {offsets = [3, 0, 0], sizes = [4, 16, 128], strides = [1, 1, 1]} : vector<10x16x128xf32> to vector<4x16x128xf32>
    %1063 = vector.shape_cast %1061 : vector<128xf32> to vector<1x1x128xf32>
    %1064 = vector.broadcast %1063 : vector<1x1x128xf32> to vector<4x16x128xf32>
    %1065 = arith.mulf %1064, %1062 : vector<4x16x128xf32>
    %1066 = arith.addf %1059, %1065 : vector<4x16x128xf32>
    %c4_479 = arith.constant 4 : index
    %c6_480 = arith.constant 6 : index
    %c0_481 = arith.constant 0 : index
    %1067 = vector.load %arg4[%c4_479, %c6_480, %c0_481] : memref<7x7x128xf32, #tpu.memory_space<vmem>>, vector<1x1x128xf32>
    %1068 = vector.shape_cast %1067 : vector<1x1x128xf32> to vector<128xf32>
    %1069 = vector.extract_strided_slice %1038 {offsets = [4, 0, 0], sizes = [4, 16, 128], strides = [1, 1, 1]} : vector<10x16x128xf32> to vector<4x16x128xf32>
    %1070 = vector.shape_cast %1068 : vector<128xf32> to vector<1x1x128xf32>
    %1071 = vector.broadcast %1070 : vector<1x1x128xf32> to vector<4x16x128xf32>
    %1072 = arith.mulf %1071, %1069 : vector<4x16x128xf32>
    %1073 = arith.addf %1066, %1072 : vector<4x16x128xf32>
    %c5_482 = arith.constant 5 : index
    %c6_483 = arith.constant 6 : index
    %c0_484 = arith.constant 0 : index
    %1074 = vector.load %arg4[%c5_482, %c6_483, %c0_484] : memref<7x7x128xf32, #tpu.memory_space<vmem>>, vector<1x1x128xf32>
    %1075 = vector.shape_cast %1074 : vector<1x1x128xf32> to vector<128xf32>
    %1076 = vector.extract_strided_slice %1038 {offsets = [5, 0, 0], sizes = [4, 16, 128], strides = [1, 1, 1]} : vector<10x16x128xf32> to vector<4x16x128xf32>
    %1077 = vector.shape_cast %1075 : vector<128xf32> to vector<1x1x128xf32>
    %1078 = vector.broadcast %1077 : vector<1x1x128xf32> to vector<4x16x128xf32>
    %1079 = arith.mulf %1078, %1076 : vector<4x16x128xf32>
    %1080 = arith.addf %1073, %1079 : vector<4x16x128xf32>
    %c6_485 = arith.constant 6 : index
    %c6_486 = arith.constant 6 : index
    %c0_487 = arith.constant 0 : index
    %1081 = vector.load %arg4[%c6_485, %c6_486, %c0_487] : memref<7x7x128xf32, #tpu.memory_space<vmem>>, vector<1x1x128xf32>
    %1082 = vector.shape_cast %1081 : vector<1x1x128xf32> to vector<128xf32>
    %1083 = vector.extract_strided_slice %1038 {offsets = [6, 0, 0], sizes = [4, 16, 128], strides = [1, 1, 1]} : vector<10x16x128xf32> to vector<4x16x128xf32>
    %1084 = vector.shape_cast %1082 : vector<128xf32> to vector<1x1x128xf32>
    %1085 = vector.broadcast %1084 : vector<1x1x128xf32> to vector<4x16x128xf32>
    %1086 = arith.mulf %1085, %1083 : vector<4x16x128xf32>
    %1087 = arith.addf %1080, %1086 : vector<4x16x128xf32>
    %c0_488 = arith.constant 0 : index
    %c8 = arith.constant 8 : index
    %c0_489 = arith.constant 0 : index
    %c0_490 = arith.constant 0 : index
    %1088 = vector.load %arg6[%c0_488, %c8, %c0_489, %c0_490] : memref<1x16x16x128xf32, #tpu.memory_space<vmem>>, vector<1x4x16x128xf32>
    %1089 = vector.shape_cast %1088 : vector<1x4x16x128xf32> to vector<4x16x128xf32>
    %1090 = vector.shape_cast %1087 : vector<4x16x128xf32> to vector<1x4x16x128xf32>
    tpu.vector_store %arg6[%c0_488, %c8, %c0_489, %c0_490], %1090 {strides = array<i32>} : memref<1x16x16x128xf32, #tpu.memory_space<vmem>>, vector<1x4x16x128xf32>,
    %c12_i32 = arith.constant 12 : i32
    %1091 = arith.addi %7, %c12_i32 : i32
    %1092 = arith.index_cast %1091 : i32 to index
    %c0_491 = arith.constant 0 : index
    %c0_492 = arith.constant 0 : index
    %1093 = vector.load %arg7[%1092, %c0_491, %c0_492] : memref<22x22x128xf32, #tpu.memory_space<vmem>>, vector<10x16x128xf32>
    %c0_493 = arith.constant 0 : index
    %c0_494 = arith.constant 0 : index
    %c0_495 = arith.constant 0 : index
    %1094 = vector.load %arg4[%c0_493, %c0_494, %c0_495] : memref<7x7x128xf32, #tpu.memory_space<vmem>>, vector<1x1x128xf32>
    %1095 = vector.shape_cast %1094 : vector<1x1x128xf32> to vector<128xf32>
    %1096 = vector.extract_strided_slice %1093 {offsets = [0, 0, 0], sizes = [4, 16, 128], strides = [1, 1, 1]} : vector<10x16x128xf32> to vector<4x16x128xf32>
    %1097 = vector.shape_cast %1095 : vector<128xf32> to vector<1x1x128xf32>
    %1098 = vector.broadcast %1097 : vector<1x1x128xf32> to vector<4x16x128xf32>
    %1099 = arith.mulf %1098, %1096 : vector<4x16x128xf32>
    %1100 = arith.addf %6, %1099 : vector<4x16x128xf32>
    %c1_496 = arith.constant 1 : index
    %c0_497 = arith.constant 0 : index
    %c0_498 = arith.constant 0 : index
    %1101 = vector.load %arg4[%c1_496, %c0_497, %c0_498] : memref<7x7x128xf32, #tpu.memory_space<vmem>>, vector<1x1x128xf32>
    %1102 = vector.shape_cast %1101 : vector<1x1x128xf32> to vector<128xf32>
    %1103 = vector.extract_strided_slice %1093 {offsets = [1, 0, 0], sizes = [4, 16, 128], strides = [1, 1, 1]} : vector<10x16x128xf32> to vector<4x16x128xf32>
    %1104 = vector.shape_cast %1102 : vector<128xf32> to vector<1x1x128xf32>
    %1105 = vector.broadcast %1104 : vector<1x1x128xf32> to vector<4x16x128xf32>
    %1106 = arith.mulf %1105, %1103 : vector<4x16x128xf32>
    %1107 = arith.addf %1100, %1106 : vector<4x16x128xf32>
    %c2_499 = arith.constant 2 : index
    %c0_500 = arith.constant 0 : index
    %c0_501 = arith.constant 0 : index
    %1108 = vector.load %arg4[%c2_499, %c0_500, %c0_501] : memref<7x7x128xf32, #tpu.memory_space<vmem>>, vector<1x1x128xf32>
    %1109 = vector.shape_cast %1108 : vector<1x1x128xf32> to vector<128xf32>
    %1110 = vector.extract_strided_slice %1093 {offsets = [2, 0, 0], sizes = [4, 16, 128], strides = [1, 1, 1]} : vector<10x16x128xf32> to vector<4x16x128xf32>
    %1111 = vector.shape_cast %1109 : vector<128xf32> to vector<1x1x128xf32>
    %1112 = vector.broadcast %1111 : vector<1x1x128xf32> to vector<4x16x128xf32>
    %1113 = arith.mulf %1112, %1110 : vector<4x16x128xf32>
    %1114 = arith.addf %1107, %1113 : vector<4x16x128xf32>
    %c3_502 = arith.constant 3 : index
    %c0_503 = arith.constant 0 : index
    %c0_504 = arith.constant 0 : index
    %1115 = vector.load %arg4[%c3_502, %c0_503, %c0_504] : memref<7x7x128xf32, #tpu.memory_space<vmem>>, vector<1x1x128xf32>
    %1116 = vector.shape_cast %1115 : vector<1x1x128xf32> to vector<128xf32>
    %1117 = vector.extract_strided_slice %1093 {offsets = [3, 0, 0], sizes = [4, 16, 128], strides = [1, 1, 1]} : vector<10x16x128xf32> to vector<4x16x128xf32>
    %1118 = vector.shape_cast %1116 : vector<128xf32> to vector<1x1x128xf32>
    %1119 = vector.broadcast %1118 : vector<1x1x128xf32> to vector<4x16x128xf32>
    %1120 = arith.mulf %1119, %1117 : vector<4x16x128xf32>
    %1121 = arith.addf %1114, %1120 : vector<4x16x128xf32>
    %c4_505 = arith.constant 4 : index
    %c0_506 = arith.constant 0 : index
    %c0_507 = arith.constant 0 : index
    %1122 = vector.load %arg4[%c4_505, %c0_506, %c0_507] : memref<7x7x128xf32, #tpu.memory_space<vmem>>, vector<1x1x128xf32>
    %1123 = vector.shape_cast %1122 : vector<1x1x128xf32> to vector<128xf32>
    %1124 = vector.extract_strided_slice %1093 {offsets = [4, 0, 0], sizes = [4, 16, 128], strides = [1, 1, 1]} : vector<10x16x128xf32> to vector<4x16x128xf32>
    %1125 = vector.shape_cast %1123 : vector<128xf32> to vector<1x1x128xf32>
    %1126 = vector.broadcast %1125 : vector<1x1x128xf32> to vector<4x16x128xf32>
    %1127 = arith.mulf %1126, %1124 : vector<4x16x128xf32>
    %1128 = arith.addf %1121, %1127 : vector<4x16x128xf32>
    %c5_508 = arith.constant 5 : index
    %c0_509 = arith.constant 0 : index
    %c0_510 = arith.constant 0 : index
    %1129 = vector.load %arg4[%c5_508, %c0_509, %c0_510] : memref<7x7x128xf32, #tpu.memory_space<vmem>>, vector<1x1x128xf32>
    %1130 = vector.shape_cast %1129 : vector<1x1x128xf32> to vector<128xf32>
    %1131 = vector.extract_strided_slice %1093 {offsets = [5, 0, 0], sizes = [4, 16, 128], strides = [1, 1, 1]} : vector<10x16x128xf32> to vector<4x16x128xf32>
    %1132 = vector.shape_cast %1130 : vector<128xf32> to vector<1x1x128xf32>
    %1133 = vector.broadcast %1132 : vector<1x1x128xf32> to vector<4x16x128xf32>
    %1134 = arith.mulf %1133, %1131 : vector<4x16x128xf32>
    %1135 = arith.addf %1128, %1134 : vector<4x16x128xf32>
    %c6_511 = arith.constant 6 : index
    %c0_512 = arith.constant 0 : index
    %c0_513 = arith.constant 0 : index
    %1136 = vector.load %arg4[%c6_511, %c0_512, %c0_513] : memref<7x7x128xf32, #tpu.memory_space<vmem>>, vector<1x1x128xf32>
    %1137 = vector.shape_cast %1136 : vector<1x1x128xf32> to vector<128xf32>
    %1138 = vector.extract_strided_slice %1093 {offsets = [6, 0, 0], sizes = [4, 16, 128], strides = [1, 1, 1]} : vector<10x16x128xf32> to vector<4x16x128xf32>
    %1139 = vector.shape_cast %1137 : vector<128xf32> to vector<1x1x128xf32>
    %1140 = vector.broadcast %1139 : vector<1x1x128xf32> to vector<4x16x128xf32>
    %1141 = arith.mulf %1140, %1138 : vector<4x16x128xf32>
    %1142 = arith.addf %1135, %1141 : vector<4x16x128xf32>
    %1143 = arith.index_cast %1091 : i32 to index
    %c1_514 = arith.constant 1 : index
    %c0_515 = arith.constant 0 : index
    %1144 = vector.load %arg7[%1143, %c1_514, %c0_515] : memref<22x22x128xf32, #tpu.memory_space<vmem>>, vector<10x16x128xf32>
    %c0_516 = arith.constant 0 : index
    %c1_517 = arith.constant 1 : index
    %c0_518 = arith.constant 0 : index
    %1145 = vector.load %arg4[%c0_516, %c1_517, %c0_518] : memref<7x7x128xf32, #tpu.memory_space<vmem>>, vector<1x1x128xf32>
    %1146 = vector.shape_cast %1145 : vector<1x1x128xf32> to vector<128xf32>
    %1147 = vector.extract_strided_slice %1144 {offsets = [0, 0, 0], sizes = [4, 16, 128], strides = [1, 1, 1]} : vector<10x16x128xf32> to vector<4x16x128xf32>
    %1148 = vector.shape_cast %1146 : vector<128xf32> to vector<1x1x128xf32>
    %1149 = vector.broadcast %1148 : vector<1x1x128xf32> to vector<4x16x128xf32>
    %1150 = arith.mulf %1149, %1147 : vector<4x16x128xf32>
    %1151 = arith.addf %1142, %1150 : vector<4x16x128xf32>
    %c1_519 = arith.constant 1 : index
    %c1_520 = arith.constant 1 : index
    %c0_521 = arith.constant 0 : index
    %1152 = vector.load %arg4[%c1_519, %c1_520, %c0_521] : memref<7x7x128xf32, #tpu.memory_space<vmem>>, vector<1x1x128xf32>
    %1153 = vector.shape_cast %1152 : vector<1x1x128xf32> to vector<128xf32>
    %1154 = vector.extract_strided_slice %1144 {offsets = [1, 0, 0], sizes = [4, 16, 128], strides = [1, 1, 1]} : vector<10x16x128xf32> to vector<4x16x128xf32>
    %1155 = vector.shape_cast %1153 : vector<128xf32> to vector<1x1x128xf32>
    %1156 = vector.broadcast %1155 : vector<1x1x128xf32> to vector<4x16x128xf32>
    %1157 = arith.mulf %1156, %1154 : vector<4x16x128xf32>
    %1158 = arith.addf %1151, %1157 : vector<4x16x128xf32>
    %c2_522 = arith.constant 2 : index
    %c1_523 = arith.constant 1 : index
    %c0_524 = arith.constant 0 : index
    %1159 = vector.load %arg4[%c2_522, %c1_523, %c0_524] : memref<7x7x128xf32, #tpu.memory_space<vmem>>, vector<1x1x128xf32>
    %1160 = vector.shape_cast %1159 : vector<1x1x128xf32> to vector<128xf32>
    %1161 = vector.extract_strided_slice %1144 {offsets = [2, 0, 0], sizes = [4, 16, 128], strides = [1, 1, 1]} : vector<10x16x128xf32> to vector<4x16x128xf32>
    %1162 = vector.shape_cast %1160 : vector<128xf32> to vector<1x1x128xf32>
    %1163 = vector.broadcast %1162 : vector<1x1x128xf32> to vector<4x16x128xf32>
    %1164 = arith.mulf %1163, %1161 : vector<4x16x128xf32>
    %1165 = arith.addf %1158, %1164 : vector<4x16x128xf32>
    %c3_525 = arith.constant 3 : index
    %c1_526 = arith.constant 1 : index
    %c0_527 = arith.constant 0 : index
    %1166 = vector.load %arg4[%c3_525, %c1_526, %c0_527] : memref<7x7x128xf32, #tpu.memory_space<vmem>>, vector<1x1x128xf32>
    %1167 = vector.shape_cast %1166 : vector<1x1x128xf32> to vector<128xf32>
    %1168 = vector.extract_strided_slice %1144 {offsets = [3, 0, 0], sizes = [4, 16, 128], strides = [1, 1, 1]} : vector<10x16x128xf32> to vector<4x16x128xf32>
    %1169 = vector.shape_cast %1167 : vector<128xf32> to vector<1x1x128xf32>
    %1170 = vector.broadcast %1169 : vector<1x1x128xf32> to vector<4x16x128xf32>
    %1171 = arith.mulf %1170, %1168 : vector<4x16x128xf32>
    %1172 = arith.addf %1165, %1171 : vector<4x16x128xf32>
    %c4_528 = arith.constant 4 : index
    %c1_529 = arith.constant 1 : index
    %c0_530 = arith.constant 0 : index
    %1173 = vector.load %arg4[%c4_528, %c1_529, %c0_530] : memref<7x7x128xf32, #tpu.memory_space<vmem>>, vector<1x1x128xf32>
    %1174 = vector.shape_cast %1173 : vector<1x1x128xf32> to vector<128xf32>
    %1175 = vector.extract_strided_slice %1144 {offsets = [4, 0, 0], sizes = [4, 16, 128], strides = [1, 1, 1]} : vector<10x16x128xf32> to vector<4x16x128xf32>
    %1176 = vector.shape_cast %1174 : vector<128xf32> to vector<1x1x128xf32>
    %1177 = vector.broadcast %1176 : vector<1x1x128xf32> to vector<4x16x128xf32>
    %1178 = arith.mulf %1177, %1175 : vector<4x16x128xf32>
    %1179 = arith.addf %1172, %1178 : vector<4x16x128xf32>
    %c5_531 = arith.constant 5 : index
    %c1_532 = arith.constant 1 : index
    %c0_533 = arith.constant 0 : index
    %1180 = vector.load %arg4[%c5_531, %c1_532, %c0_533] : memref<7x7x128xf32, #tpu.memory_space<vmem>>, vector<1x1x128xf32>
    %1181 = vector.shape_cast %1180 : vector<1x1x128xf32> to vector<128xf32>
    %1182 = vector.extract_strided_slice %1144 {offsets = [5, 0, 0], sizes = [4, 16, 128], strides = [1, 1, 1]} : vector<10x16x128xf32> to vector<4x16x128xf32>
    %1183 = vector.shape_cast %1181 : vector<128xf32> to vector<1x1x128xf32>
    %1184 = vector.broadcast %1183 : vector<1x1x128xf32> to vector<4x16x128xf32>
    %1185 = arith.mulf %1184, %1182 : vector<4x16x128xf32>
    %1186 = arith.addf %1179, %1185 : vector<4x16x128xf32>
    %c6_534 = arith.constant 6 : index
    %c1_535 = arith.constant 1 : index
    %c0_536 = arith.constant 0 : index
    %1187 = vector.load %arg4[%c6_534, %c1_535, %c0_536] : memref<7x7x128xf32, #tpu.memory_space<vmem>>, vector<1x1x128xf32>
    %1188 = vector.shape_cast %1187 : vector<1x1x128xf32> to vector<128xf32>
    %1189 = vector.extract_strided_slice %1144 {offsets = [6, 0, 0], sizes = [4, 16, 128], strides = [1, 1, 1]} : vector<10x16x128xf32> to vector<4x16x128xf32>
    %1190 = vector.shape_cast %1188 : vector<128xf32> to vector<1x1x128xf32>
    %1191 = vector.broadcast %1190 : vector<1x1x128xf32> to vector<4x16x128xf32>
    %1192 = arith.mulf %1191, %1189 : vector<4x16x128xf32>
    %1193 = arith.addf %1186, %1192 : vector<4x16x128xf32>
    %1194 = arith.index_cast %1091 : i32 to index
    %c2_537 = arith.constant 2 : index
    %c0_538 = arith.constant 0 : index
    %1195 = vector.load %arg7[%1194, %c2_537, %c0_538] : memref<22x22x128xf32, #tpu.memory_space<vmem>>, vector<10x16x128xf32>
    %c0_539 = arith.constant 0 : index
    %c2_540 = arith.constant 2 : index
    %c0_541 = arith.constant 0 : index
    %1196 = vector.load %arg4[%c0_539, %c2_540, %c0_541] : memref<7x7x128xf32, #tpu.memory_space<vmem>>, vector<1x1x128xf32>
    %1197 = vector.shape_cast %1196 : vector<1x1x128xf32> to vector<128xf32>
    %1198 = vector.extract_strided_slice %1195 {offsets = [0, 0, 0], sizes = [4, 16, 128], strides = [1, 1, 1]} : vector<10x16x128xf32> to vector<4x16x128xf32>
    %1199 = vector.shape_cast %1197 : vector<128xf32> to vector<1x1x128xf32>
    %1200 = vector.broadcast %1199 : vector<1x1x128xf32> to vector<4x16x128xf32>
    %1201 = arith.mulf %1200, %1198 : vector<4x16x128xf32>
    %1202 = arith.addf %1193, %1201 : vector<4x16x128xf32>
    %c1_542 = arith.constant 1 : index
    %c2_543 = arith.constant 2 : index
    %c0_544 = arith.constant 0 : index
    %1203 = vector.load %arg4[%c1_542, %c2_543, %c0_544] : memref<7x7x128xf32, #tpu.memory_space<vmem>>, vector<1x1x128xf32>
    %1204 = vector.shape_cast %1203 : vector<1x1x128xf32> to vector<128xf32>
    %1205 = vector.extract_strided_slice %1195 {offsets = [1, 0, 0], sizes = [4, 16, 128], strides = [1, 1, 1]} : vector<10x16x128xf32> to vector<4x16x128xf32>
    %1206 = vector.shape_cast %1204 : vector<128xf32> to vector<1x1x128xf32>
    %1207 = vector.broadcast %1206 : vector<1x1x128xf32> to vector<4x16x128xf32>
    %1208 = arith.mulf %1207, %1205 : vector<4x16x128xf32>
    %1209 = arith.addf %1202, %1208 : vector<4x16x128xf32>
    %c2_545 = arith.constant 2 : index
    %c2_546 = arith.constant 2 : index
    %c0_547 = arith.constant 0 : index
    %1210 = vector.load %arg4[%c2_545, %c2_546, %c0_547] : memref<7x7x128xf32, #tpu.memory_space<vmem>>, vector<1x1x128xf32>
    %1211 = vector.shape_cast %1210 : vector<1x1x128xf32> to vector<128xf32>
    %1212 = vector.extract_strided_slice %1195 {offsets = [2, 0, 0], sizes = [4, 16, 128], strides = [1, 1, 1]} : vector<10x16x128xf32> to vector<4x16x128xf32>
    %1213 = vector.shape_cast %1211 : vector<128xf32> to vector<1x1x128xf32>
    %1214 = vector.broadcast %1213 : vector<1x1x128xf32> to vector<4x16x128xf32>
    %1215 = arith.mulf %1214, %1212 : vector<4x16x128xf32>
    %1216 = arith.addf %1209, %1215 : vector<4x16x128xf32>
    %c3_548 = arith.constant 3 : index
    %c2_549 = arith.constant 2 : index
    %c0_550 = arith.constant 0 : index
    %1217 = vector.load %arg4[%c3_548, %c2_549, %c0_550] : memref<7x7x128xf32, #tpu.memory_space<vmem>>, vector<1x1x128xf32>
    %1218 = vector.shape_cast %1217 : vector<1x1x128xf32> to vector<128xf32>
    %1219 = vector.extract_strided_slice %1195 {offsets = [3, 0, 0], sizes = [4, 16, 128], strides = [1, 1, 1]} : vector<10x16x128xf32> to vector<4x16x128xf32>
    %1220 = vector.shape_cast %1218 : vector<128xf32> to vector<1x1x128xf32>
    %1221 = vector.broadcast %1220 : vector<1x1x128xf32> to vector<4x16x128xf32>
    %1222 = arith.mulf %1221, %1219 : vector<4x16x128xf32>
    %1223 = arith.addf %1216, %1222 : vector<4x16x128xf32>
    %c4_551 = arith.constant 4 : index
    %c2_552 = arith.constant 2 : index
    %c0_553 = arith.constant 0 : index
    %1224 = vector.load %arg4[%c4_551, %c2_552, %c0_553] : memref<7x7x128xf32, #tpu.memory_space<vmem>>, vector<1x1x128xf32>
    %1225 = vector.shape_cast %1224 : vector<1x1x128xf32> to vector<128xf32>
    %1226 = vector.extract_strided_slice %1195 {offsets = [4, 0, 0], sizes = [4, 16, 128], strides = [1, 1, 1]} : vector<10x16x128xf32> to vector<4x16x128xf32>
    %1227 = vector.shape_cast %1225 : vector<128xf32> to vector<1x1x128xf32>
    %1228 = vector.broadcast %1227 : vector<1x1x128xf32> to vector<4x16x128xf32>
    %1229 = arith.mulf %1228, %1226 : vector<4x16x128xf32>
    %1230 = arith.addf %1223, %1229 : vector<4x16x128xf32>
    %c5_554 = arith.constant 5 : index
    %c2_555 = arith.constant 2 : index
    %c0_556 = arith.constant 0 : index
    %1231 = vector.load %arg4[%c5_554, %c2_555, %c0_556] : memref<7x7x128xf32, #tpu.memory_space<vmem>>, vector<1x1x128xf32>
    %1232 = vector.shape_cast %1231 : vector<1x1x128xf32> to vector<128xf32>
    %1233 = vector.extract_strided_slice %1195 {offsets = [5, 0, 0], sizes = [4, 16, 128], strides = [1, 1, 1]} : vector<10x16x128xf32> to vector<4x16x128xf32>
    %1234 = vector.shape_cast %1232 : vector<128xf32> to vector<1x1x128xf32>
    %1235 = vector.broadcast %1234 : vector<1x1x128xf32> to vector<4x16x128xf32>
    %1236 = arith.mulf %1235, %1233 : vector<4x16x128xf32>
    %1237 = arith.addf %1230, %1236 : vector<4x16x128xf32>
    %c6_557 = arith.constant 6 : index
    %c2_558 = arith.constant 2 : index
    %c0_559 = arith.constant 0 : index
    %1238 = vector.load %arg4[%c6_557, %c2_558, %c0_559] : memref<7x7x128xf32, #tpu.memory_space<vmem>>, vector<1x1x128xf32>
    %1239 = vector.shape_cast %1238 : vector<1x1x128xf32> to vector<128xf32>
    %1240 = vector.extract_strided_slice %1195 {offsets = [6, 0, 0], sizes = [4, 16, 128], strides = [1, 1, 1]} : vector<10x16x128xf32> to vector<4x16x128xf32>
    %1241 = vector.shape_cast %1239 : vector<128xf32> to vector<1x1x128xf32>
    %1242 = vector.broadcast %1241 : vector<1x1x128xf32> to vector<4x16x128xf32>
    %1243 = arith.mulf %1242, %1240 : vector<4x16x128xf32>
    %1244 = arith.addf %1237, %1243 : vector<4x16x128xf32>
    %1245 = arith.index_cast %1091 : i32 to index
    %c3_560 = arith.constant 3 : index
    %c0_561 = arith.constant 0 : index
    %1246 = vector.load %arg7[%1245, %c3_560, %c0_561] : memref<22x22x128xf32, #tpu.memory_space<vmem>>, vector<10x16x128xf32>
    %c0_562 = arith.constant 0 : index
    %c3_563 = arith.constant 3 : index
    %c0_564 = arith.constant 0 : index
    %1247 = vector.load %arg4[%c0_562, %c3_563, %c0_564] : memref<7x7x128xf32, #tpu.memory_space<vmem>>, vector<1x1x128xf32>
    %1248 = vector.shape_cast %1247 : vector<1x1x128xf32> to vector<128xf32>
    %1249 = vector.extract_strided_slice %1246 {offsets = [0, 0, 0], sizes = [4, 16, 128], strides = [1, 1, 1]} : vector<10x16x128xf32> to vector<4x16x128xf32>
    %1250 = vector.shape_cast %1248 : vector<128xf32> to vector<1x1x128xf32>
    %1251 = vector.broadcast %1250 : vector<1x1x128xf32> to vector<4x16x128xf32>
    %1252 = arith.mulf %1251, %1249 : vector<4x16x128xf32>
    %1253 = arith.addf %1244, %1252 : vector<4x16x128xf32>
    %c1_565 = arith.constant 1 : index
    %c3_566 = arith.constant 3 : index
    %c0_567 = arith.constant 0 : index
    %1254 = vector.load %arg4[%c1_565, %c3_566, %c0_567] : memref<7x7x128xf32, #tpu.memory_space<vmem>>, vector<1x1x128xf32>
    %1255 = vector.shape_cast %1254 : vector<1x1x128xf32> to vector<128xf32>
    %1256 = vector.extract_strided_slice %1246 {offsets = [1, 0, 0], sizes = [4, 16, 128], strides = [1, 1, 1]} : vector<10x16x128xf32> to vector<4x16x128xf32>
    %1257 = vector.shape_cast %1255 : vector<128xf32> to vector<1x1x128xf32>
    %1258 = vector.broadcast %1257 : vector<1x1x128xf32> to vector<4x16x128xf32>
    %1259 = arith.mulf %1258, %1256 : vector<4x16x128xf32>
    %1260 = arith.addf %1253, %1259 : vector<4x16x128xf32>
    %c2_568 = arith.constant 2 : index
    %c3_569 = arith.constant 3 : index
    %c0_570 = arith.constant 0 : index
    %1261 = vector.load %arg4[%c2_568, %c3_569, %c0_570] : memref<7x7x128xf32, #tpu.memory_space<vmem>>, vector<1x1x128xf32>
    %1262 = vector.shape_cast %1261 : vector<1x1x128xf32> to vector<128xf32>
    %1263 = vector.extract_strided_slice %1246 {offsets = [2, 0, 0], sizes = [4, 16, 128], strides = [1, 1, 1]} : vector<10x16x128xf32> to vector<4x16x128xf32>
    %1264 = vector.shape_cast %1262 : vector<128xf32> to vector<1x1x128xf32>
    %1265 = vector.broadcast %1264 : vector<1x1x128xf32> to vector<4x16x128xf32>
    %1266 = arith.mulf %1265, %1263 : vector<4x16x128xf32>
    %1267 = arith.addf %1260, %1266 : vector<4x16x128xf32>
    %c3_571 = arith.constant 3 : index
    %c3_572 = arith.constant 3 : index
    %c0_573 = arith.constant 0 : index
    %1268 = vector.load %arg4[%c3_571, %c3_572, %c0_573] : memref<7x7x128xf32, #tpu.memory_space<vmem>>, vector<1x1x128xf32>
    %1269 = vector.shape_cast %1268 : vector<1x1x128xf32> to vector<128xf32>
    %1270 = vector.extract_strided_slice %1246 {offsets = [3, 0, 0], sizes = [4, 16, 128], strides = [1, 1, 1]} : vector<10x16x128xf32> to vector<4x16x128xf32>
    %1271 = vector.shape_cast %1269 : vector<128xf32> to vector<1x1x128xf32>
    %1272 = vector.broadcast %1271 : vector<1x1x128xf32> to vector<4x16x128xf32>
    %1273 = arith.mulf %1272, %1270 : vector<4x16x128xf32>
    %1274 = arith.addf %1267, %1273 : vector<4x16x128xf32>
    %c4_574 = arith.constant 4 : index
    %c3_575 = arith.constant 3 : index
    %c0_576 = arith.constant 0 : index
    %1275 = vector.load %arg4[%c4_574, %c3_575, %c0_576] : memref<7x7x128xf32, #tpu.memory_space<vmem>>, vector<1x1x128xf32>
    %1276 = vector.shape_cast %1275 : vector<1x1x128xf32> to vector<128xf32>
    %1277 = vector.extract_strided_slice %1246 {offsets = [4, 0, 0], sizes = [4, 16, 128], strides = [1, 1, 1]} : vector<10x16x128xf32> to vector<4x16x128xf32>
    %1278 = vector.shape_cast %1276 : vector<128xf32> to vector<1x1x128xf32>
    %1279 = vector.broadcast %1278 : vector<1x1x128xf32> to vector<4x16x128xf32>
    %1280 = arith.mulf %1279, %1277 : vector<4x16x128xf32>
    %1281 = arith.addf %1274, %1280 : vector<4x16x128xf32>
    %c5_577 = arith.constant 5 : index
    %c3_578 = arith.constant 3 : index
    %c0_579 = arith.constant 0 : index
    %1282 = vector.load %arg4[%c5_577, %c3_578, %c0_579] : memref<7x7x128xf32, #tpu.memory_space<vmem>>, vector<1x1x128xf32>
    %1283 = vector.shape_cast %1282 : vector<1x1x128xf32> to vector<128xf32>
    %1284 = vector.extract_strided_slice %1246 {offsets = [5, 0, 0], sizes = [4, 16, 128], strides = [1, 1, 1]} : vector<10x16x128xf32> to vector<4x16x128xf32>
    %1285 = vector.shape_cast %1283 : vector<128xf32> to vector<1x1x128xf32>
    %1286 = vector.broadcast %1285 : vector<1x1x128xf32> to vector<4x16x128xf32>
    %1287 = arith.mulf %1286, %1284 : vector<4x16x128xf32>
    %1288 = arith.addf %1281, %1287 : vector<4x16x128xf32>
    %c6_580 = arith.constant 6 : index
    %c3_581 = arith.constant 3 : index
    %c0_582 = arith.constant 0 : index
    %1289 = vector.load %arg4[%c6_580, %c3_581, %c0_582] : memref<7x7x128xf32, #tpu.memory_space<vmem>>, vector<1x1x128xf32>
    %1290 = vector.shape_cast %1289 : vector<1x1x128xf32> to vector<128xf32>
    %1291 = vector.extract_strided_slice %1246 {offsets = [6, 0, 0], sizes = [4, 16, 128], strides = [1, 1, 1]} : vector<10x16x128xf32> to vector<4x16x128xf32>
    %1292 = vector.shape_cast %1290 : vector<128xf32> to vector<1x1x128xf32>
    %1293 = vector.broadcast %1292 : vector<1x1x128xf32> to vector<4x16x128xf32>
    %1294 = arith.mulf %1293, %1291 : vector<4x16x128xf32>
    %1295 = arith.addf %1288, %1294 : vector<4x16x128xf32>
    %1296 = arith.index_cast %1091 : i32 to index
    %c4_583 = arith.constant 4 : index
    %c0_584 = arith.constant 0 : index
    %1297 = vector.load %arg7[%1296, %c4_583, %c0_584] : memref<22x22x128xf32, #tpu.memory_space<vmem>>, vector<10x16x128xf32>
    %c0_585 = arith.constant 0 : index
    %c4_586 = arith.constant 4 : index
    %c0_587 = arith.constant 0 : index
    %1298 = vector.load %arg4[%c0_585, %c4_586, %c0_587] : memref<7x7x128xf32, #tpu.memory_space<vmem>>, vector<1x1x128xf32>
    %1299 = vector.shape_cast %1298 : vector<1x1x128xf32> to vector<128xf32>
    %1300 = vector.extract_strided_slice %1297 {offsets = [0, 0, 0], sizes = [4, 16, 128], strides = [1, 1, 1]} : vector<10x16x128xf32> to vector<4x16x128xf32>
    %1301 = vector.shape_cast %1299 : vector<128xf32> to vector<1x1x128xf32>
    %1302 = vector.broadcast %1301 : vector<1x1x128xf32> to vector<4x16x128xf32>
    %1303 = arith.mulf %1302, %1300 : vector<4x16x128xf32>
    %1304 = arith.addf %1295, %1303 : vector<4x16x128xf32>
    %c1_588 = arith.constant 1 : index
    %c4_589 = arith.constant 4 : index
    %c0_590 = arith.constant 0 : index
    %1305 = vector.load %arg4[%c1_588, %c4_589, %c0_590] : memref<7x7x128xf32, #tpu.memory_space<vmem>>, vector<1x1x128xf32>
    %1306 = vector.shape_cast %1305 : vector<1x1x128xf32> to vector<128xf32>
    %1307 = vector.extract_strided_slice %1297 {offsets = [1, 0, 0], sizes = [4, 16, 128], strides = [1, 1, 1]} : vector<10x16x128xf32> to vector<4x16x128xf32>
    %1308 = vector.shape_cast %1306 : vector<128xf32> to vector<1x1x128xf32>
    %1309 = vector.broadcast %1308 : vector<1x1x128xf32> to vector<4x16x128xf32>
    %1310 = arith.mulf %1309, %1307 : vector<4x16x128xf32>
    %1311 = arith.addf %1304, %1310 : vector<4x16x128xf32>
    %c2_591 = arith.constant 2 : index
    %c4_592 = arith.constant 4 : index
    %c0_593 = arith.constant 0 : index
    %1312 = vector.load %arg4[%c2_591, %c4_592, %c0_593] : memref<7x7x128xf32, #tpu.memory_space<vmem>>, vector<1x1x128xf32>
    %1313 = vector.shape_cast %1312 : vector<1x1x128xf32> to vector<128xf32>
    %1314 = vector.extract_strided_slice %1297 {offsets = [2, 0, 0], sizes = [4, 16, 128], strides = [1, 1, 1]} : vector<10x16x128xf32> to vector<4x16x128xf32>
    %1315 = vector.shape_cast %1313 : vector<128xf32> to vector<1x1x128xf32>
    %1316 = vector.broadcast %1315 : vector<1x1x128xf32> to vector<4x16x128xf32>
    %1317 = arith.mulf %1316, %1314 : vector<4x16x128xf32>
    %1318 = arith.addf %1311, %1317 : vector<4x16x128xf32>
    %c3_594 = arith.constant 3 : index
    %c4_595 = arith.constant 4 : index
    %c0_596 = arith.constant 0 : index
    %1319 = vector.load %arg4[%c3_594, %c4_595, %c0_596] : memref<7x7x128xf32, #tpu.memory_space<vmem>>, vector<1x1x128xf32>
    %1320 = vector.shape_cast %1319 : vector<1x1x128xf32> to vector<128xf32>
    %1321 = vector.extract_strided_slice %1297 {offsets = [3, 0, 0], sizes = [4, 16, 128], strides = [1, 1, 1]} : vector<10x16x128xf32> to vector<4x16x128xf32>
    %1322 = vector.shape_cast %1320 : vector<128xf32> to vector<1x1x128xf32>
    %1323 = vector.broadcast %1322 : vector<1x1x128xf32> to vector<4x16x128xf32>
    %1324 = arith.mulf %1323, %1321 : vector<4x16x128xf32>
    %1325 = arith.addf %1318, %1324 : vector<4x16x128xf32>
    %c4_597 = arith.constant 4 : index
    %c4_598 = arith.constant 4 : index
    %c0_599 = arith.constant 0 : index
    %1326 = vector.load %arg4[%c4_597, %c4_598, %c0_599] : memref<7x7x128xf32, #tpu.memory_space<vmem>>, vector<1x1x128xf32>
    %1327 = vector.shape_cast %1326 : vector<1x1x128xf32> to vector<128xf32>
    %1328 = vector.extract_strided_slice %1297 {offsets = [4, 0, 0], sizes = [4, 16, 128], strides = [1, 1, 1]} : vector<10x16x128xf32> to vector<4x16x128xf32>
    %1329 = vector.shape_cast %1327 : vector<128xf32> to vector<1x1x128xf32>
    %1330 = vector.broadcast %1329 : vector<1x1x128xf32> to vector<4x16x128xf32>
    %1331 = arith.mulf %1330, %1328 : vector<4x16x128xf32>
    %1332 = arith.addf %1325, %1331 : vector<4x16x128xf32>
    %c5_600 = arith.constant 5 : index
    %c4_601 = arith.constant 4 : index
    %c0_602 = arith.constant 0 : index
    %1333 = vector.load %arg4[%c5_600, %c4_601, %c0_602] : memref<7x7x128xf32, #tpu.memory_space<vmem>>, vector<1x1x128xf32>
    %1334 = vector.shape_cast %1333 : vector<1x1x128xf32> to vector<128xf32>
    %1335 = vector.extract_strided_slice %1297 {offsets = [5, 0, 0], sizes = [4, 16, 128], strides = [1, 1, 1]} : vector<10x16x128xf32> to vector<4x16x128xf32>
    %1336 = vector.shape_cast %1334 : vector<128xf32> to vector<1x1x128xf32>
    %1337 = vector.broadcast %1336 : vector<1x1x128xf32> to vector<4x16x128xf32>
    %1338 = arith.mulf %1337, %1335 : vector<4x16x128xf32>
    %1339 = arith.addf %1332, %1338 : vector<4x16x128xf32>
    %c6_603 = arith.constant 6 : index
    %c4_604 = arith.constant 4 : index
    %c0_605 = arith.constant 0 : index
    %1340 = vector.load %arg4[%c6_603, %c4_604, %c0_605] : memref<7x7x128xf32, #tpu.memory_space<vmem>>, vector<1x1x128xf32>
    %1341 = vector.shape_cast %1340 : vector<1x1x128xf32> to vector<128xf32>
    %1342 = vector.extract_strided_slice %1297 {offsets = [6, 0, 0], sizes = [4, 16, 128], strides = [1, 1, 1]} : vector<10x16x128xf32> to vector<4x16x128xf32>
    %1343 = vector.shape_cast %1341 : vector<128xf32> to vector<1x1x128xf32>
    %1344 = vector.broadcast %1343 : vector<1x1x128xf32> to vector<4x16x128xf32>
    %1345 = arith.mulf %1344, %1342 : vector<4x16x128xf32>
    %1346 = arith.addf %1339, %1345 : vector<4x16x128xf32>
    %1347 = arith.index_cast %1091 : i32 to index
    %c5_606 = arith.constant 5 : index
    %c0_607 = arith.constant 0 : index
    %1348 = vector.load %arg7[%1347, %c5_606, %c0_607] : memref<22x22x128xf32, #tpu.memory_space<vmem>>, vector<10x16x128xf32>
    %c0_608 = arith.constant 0 : index
    %c5_609 = arith.constant 5 : index
    %c0_610 = arith.constant 0 : index
    %1349 = vector.load %arg4[%c0_608, %c5_609, %c0_610] : memref<7x7x128xf32, #tpu.memory_space<vmem>>, vector<1x1x128xf32>
    %1350 = vector.shape_cast %1349 : vector<1x1x128xf32> to vector<128xf32>
    %1351 = vector.extract_strided_slice %1348 {offsets = [0, 0, 0], sizes = [4, 16, 128], strides = [1, 1, 1]} : vector<10x16x128xf32> to vector<4x16x128xf32>
    %1352 = vector.shape_cast %1350 : vector<128xf32> to vector<1x1x128xf32>
    %1353 = vector.broadcast %1352 : vector<1x1x128xf32> to vector<4x16x128xf32>
    %1354 = arith.mulf %1353, %1351 : vector<4x16x128xf32>
    %1355 = arith.addf %1346, %1354 : vector<4x16x128xf32>
    %c1_611 = arith.constant 1 : index
    %c5_612 = arith.constant 5 : index
    %c0_613 = arith.constant 0 : index
    %1356 = vector.load %arg4[%c1_611, %c5_612, %c0_613] : memref<7x7x128xf32, #tpu.memory_space<vmem>>, vector<1x1x128xf32>
    %1357 = vector.shape_cast %1356 : vector<1x1x128xf32> to vector<128xf32>
    %1358 = vector.extract_strided_slice %1348 {offsets = [1, 0, 0], sizes = [4, 16, 128], strides = [1, 1, 1]} : vector<10x16x128xf32> to vector<4x16x128xf32>
    %1359 = vector.shape_cast %1357 : vector<128xf32> to vector<1x1x128xf32>
    %1360 = vector.broadcast %1359 : vector<1x1x128xf32> to vector<4x16x128xf32>
    %1361 = arith.mulf %1360, %1358 : vector<4x16x128xf32>
    %1362 = arith.addf %1355, %1361 : vector<4x16x128xf32>
    %c2_614 = arith.constant 2 : index
    %c5_615 = arith.constant 5 : index
    %c0_616 = arith.constant 0 : index
    %1363 = vector.load %arg4[%c2_614, %c5_615, %c0_616] : memref<7x7x128xf32, #tpu.memory_space<vmem>>, vector<1x1x128xf32>
    %1364 = vector.shape_cast %1363 : vector<1x1x128xf32> to vector<128xf32>
    %1365 = vector.extract_strided_slice %1348 {offsets = [2, 0, 0], sizes = [4, 16, 128], strides = [1, 1, 1]} : vector<10x16x128xf32> to vector<4x16x128xf32>
    %1366 = vector.shape_cast %1364 : vector<128xf32> to vector<1x1x128xf32>
    %1367 = vector.broadcast %1366 : vector<1x1x128xf32> to vector<4x16x128xf32>
    %1368 = arith.mulf %1367, %1365 : vector<4x16x128xf32>
    %1369 = arith.addf %1362, %1368 : vector<4x16x128xf32>
    %c3_617 = arith.constant 3 : index
    %c5_618 = arith.constant 5 : index
    %c0_619 = arith.constant 0 : index
    %1370 = vector.load %arg4[%c3_617, %c5_618, %c0_619] : memref<7x7x128xf32, #tpu.memory_space<vmem>>, vector<1x1x128xf32>
    %1371 = vector.shape_cast %1370 : vector<1x1x128xf32> to vector<128xf32>
    %1372 = vector.extract_strided_slice %1348 {offsets = [3, 0, 0], sizes = [4, 16, 128], strides = [1, 1, 1]} : vector<10x16x128xf32> to vector<4x16x128xf32>
    %1373 = vector.shape_cast %1371 : vector<128xf32> to vector<1x1x128xf32>
    %1374 = vector.broadcast %1373 : vector<1x1x128xf32> to vector<4x16x128xf32>
    %1375 = arith.mulf %1374, %1372 : vector<4x16x128xf32>
    %1376 = arith.addf %1369, %1375 : vector<4x16x128xf32>
    %c4_620 = arith.constant 4 : index
    %c5_621 = arith.constant 5 : index
    %c0_622 = arith.constant 0 : index
    %1377 = vector.load %arg4[%c4_620, %c5_621, %c0_622] : memref<7x7x128xf32, #tpu.memory_space<vmem>>, vector<1x1x128xf32>
    %1378 = vector.shape_cast %1377 : vector<1x1x128xf32> to vector<128xf32>
    %1379 = vector.extract_strided_slice %1348 {offsets = [4, 0, 0], sizes = [4, 16, 128], strides = [1, 1, 1]} : vector<10x16x128xf32> to vector<4x16x128xf32>
    %1380 = vector.shape_cast %1378 : vector<128xf32> to vector<1x1x128xf32>
    %1381 = vector.broadcast %1380 : vector<1x1x128xf32> to vector<4x16x128xf32>
    %1382 = arith.mulf %1381, %1379 : vector<4x16x128xf32>
    %1383 = arith.addf %1376, %1382 : vector<4x16x128xf32>
    %c5_623 = arith.constant 5 : index
    %c5_624 = arith.constant 5 : index
    %c0_625 = arith.constant 0 : index
    %1384 = vector.load %arg4[%c5_623, %c5_624, %c0_625] : memref<7x7x128xf32, #tpu.memory_space<vmem>>, vector<1x1x128xf32>
    %1385 = vector.shape_cast %1384 : vector<1x1x128xf32> to vector<128xf32>
    %1386 = vector.extract_strided_slice %1348 {offsets = [5, 0, 0], sizes = [4, 16, 128], strides = [1, 1, 1]} : vector<10x16x128xf32> to vector<4x16x128xf32>
    %1387 = vector.shape_cast %1385 : vector<128xf32> to vector<1x1x128xf32>
    %1388 = vector.broadcast %1387 : vector<1x1x128xf32> to vector<4x16x128xf32>
    %1389 = arith.mulf %1388, %1386 : vector<4x16x128xf32>
    %1390 = arith.addf %1383, %1389 : vector<4x16x128xf32>
    %c6_626 = arith.constant 6 : index
    %c5_627 = arith.constant 5 : index
    %c0_628 = arith.constant 0 : index
    %1391 = vector.load %arg4[%c6_626, %c5_627, %c0_628] : memref<7x7x128xf32, #tpu.memory_space<vmem>>, vector<1x1x128xf32>
    %1392 = vector.shape_cast %1391 : vector<1x1x128xf32> to vector<128xf32>
    %1393 = vector.extract_strided_slice %1348 {offsets = [6, 0, 0], sizes = [4, 16, 128], strides = [1, 1, 1]} : vector<10x16x128xf32> to vector<4x16x128xf32>
    %1394 = vector.shape_cast %1392 : vector<128xf32> to vector<1x1x128xf32>
    %1395 = vector.broadcast %1394 : vector<1x1x128xf32> to vector<4x16x128xf32>
    %1396 = arith.mulf %1395, %1393 : vector<4x16x128xf32>
    %1397 = arith.addf %1390, %1396 : vector<4x16x128xf32>
    %1398 = arith.index_cast %1091 : i32 to index
    %c6_629 = arith.constant 6 : index
    %c0_630 = arith.constant 0 : index
    %1399 = vector.load %arg7[%1398, %c6_629, %c0_630] : memref<22x22x128xf32, #tpu.memory_space<vmem>>, vector<10x16x128xf32>
    %c0_631 = arith.constant 0 : index
    %c6_632 = arith.constant 6 : index
    %c0_633 = arith.constant 0 : index
    %1400 = vector.load %arg4[%c0_631, %c6_632, %c0_633] : memref<7x7x128xf32, #tpu.memory_space<vmem>>, vector<1x1x128xf32>
    %1401 = vector.shape_cast %1400 : vector<1x1x128xf32> to vector<128xf32>
    %1402 = vector.extract_strided_slice %1399 {offsets = [0, 0, 0], sizes = [4, 16, 128], strides = [1, 1, 1]} : vector<10x16x128xf32> to vector<4x16x128xf32>
    %1403 = vector.shape_cast %1401 : vector<128xf32> to vector<1x1x128xf32>
    %1404 = vector.broadcast %1403 : vector<1x1x128xf32> to vector<4x16x128xf32>
    %1405 = arith.mulf %1404, %1402 : vector<4x16x128xf32>
    %1406 = arith.addf %1397, %1405 : vector<4x16x128xf32>
    %c1_634 = arith.constant 1 : index
    %c6_635 = arith.constant 6 : index
    %c0_636 = arith.constant 0 : index
    %1407 = vector.load %arg4[%c1_634, %c6_635, %c0_636] : memref<7x7x128xf32, #tpu.memory_space<vmem>>, vector<1x1x128xf32>
    %1408 = vector.shape_cast %1407 : vector<1x1x128xf32> to vector<128xf32>
    %1409 = vector.extract_strided_slice %1399 {offsets = [1, 0, 0], sizes = [4, 16, 128], strides = [1, 1, 1]} : vector<10x16x128xf32> to vector<4x16x128xf32>
    %1410 = vector.shape_cast %1408 : vector<128xf32> to vector<1x1x128xf32>
    %1411 = vector.broadcast %1410 : vector<1x1x128xf32> to vector<4x16x128xf32>
    %1412 = arith.mulf %1411, %1409 : vector<4x16x128xf32>
    %1413 = arith.addf %1406, %1412 : vector<4x16x128xf32>
    %c2_637 = arith.constant 2 : index
    %c6_638 = arith.constant 6 : index
    %c0_639 = arith.constant 0 : index
    %1414 = vector.load %arg4[%c2_637, %c6_638, %c0_639] : memref<7x7x128xf32, #tpu.memory_space<vmem>>, vector<1x1x128xf32>
    %1415 = vector.shape_cast %1414 : vector<1x1x128xf32> to vector<128xf32>
    %1416 = vector.extract_strided_slice %1399 {offsets = [2, 0, 0], sizes = [4, 16, 128], strides = [1, 1, 1]} : vector<10x16x128xf32> to vector<4x16x128xf32>
    %1417 = vector.shape_cast %1415 : vector<128xf32> to vector<1x1x128xf32>
    %1418 = vector.broadcast %1417 : vector<1x1x128xf32> to vector<4x16x128xf32>
    %1419 = arith.mulf %1418, %1416 : vector<4x16x128xf32>
    %1420 = arith.addf %1413, %1419 : vector<4x16x128xf32>
    %c3_640 = arith.constant 3 : index
    %c6_641 = arith.constant 6 : index
    %c0_642 = arith.constant 0 : index
    %1421 = vector.load %arg4[%c3_640, %c6_641, %c0_642] : memref<7x7x128xf32, #tpu.memory_space<vmem>>, vector<1x1x128xf32>
    %1422 = vector.shape_cast %1421 : vector<1x1x128xf32> to vector<128xf32>
    %1423 = vector.extract_strided_slice %1399 {offsets = [3, 0, 0], sizes = [4, 16, 128], strides = [1, 1, 1]} : vector<10x16x128xf32> to vector<4x16x128xf32>
    %1424 = vector.shape_cast %1422 : vector<128xf32> to vector<1x1x128xf32>
    %1425 = vector.broadcast %1424 : vector<1x1x128xf32> to vector<4x16x128xf32>
    %1426 = arith.mulf %1425, %1423 : vector<4x16x128xf32>
    %1427 = arith.addf %1420, %1426 : vector<4x16x128xf32>
    %c4_643 = arith.constant 4 : index
    %c6_644 = arith.constant 6 : index
    %c0_645 = arith.constant 0 : index
    %1428 = vector.load %arg4[%c4_643, %c6_644, %c0_645] : memref<7x7x128xf32, #tpu.memory_space<vmem>>, vector<1x1x128xf32>
    %1429 = vector.shape_cast %1428 : vector<1x1x128xf32> to vector<128xf32>
    %1430 = vector.extract_strided_slice %1399 {offsets = [4, 0, 0], sizes = [4, 16, 128], strides = [1, 1, 1]} : vector<10x16x128xf32> to vector<4x16x128xf32>
    %1431 = vector.shape_cast %1429 : vector<128xf32> to vector<1x1x128xf32>
    %1432 = vector.broadcast %1431 : vector<1x1x128xf32> to vector<4x16x128xf32>
    %1433 = arith.mulf %1432, %1430 : vector<4x16x128xf32>
    %1434 = arith.addf %1427, %1433 : vector<4x16x128xf32>
    %c5_646 = arith.constant 5 : index
    %c6_647 = arith.constant 6 : index
    %c0_648 = arith.constant 0 : index
    %1435 = vector.load %arg4[%c5_646, %c6_647, %c0_648] : memref<7x7x128xf32, #tpu.memory_space<vmem>>, vector<1x1x128xf32>
    %1436 = vector.shape_cast %1435 : vector<1x1x128xf32> to vector<128xf32>
    %1437 = vector.extract_strided_slice %1399 {offsets = [5, 0, 0], sizes = [4, 16, 128], strides = [1, 1, 1]} : vector<10x16x128xf32> to vector<4x16x128xf32>
    %1438 = vector.shape_cast %1436 : vector<128xf32> to vector<1x1x128xf32>
    %1439 = vector.broadcast %1438 : vector<1x1x128xf32> to vector<4x16x128xf32>
    %1440 = arith.mulf %1439, %1437 : vector<4x16x128xf32>
    %1441 = arith.addf %1434, %1440 : vector<4x16x128xf32>
    %c6_649 = arith.constant 6 : index
    %c6_650 = arith.constant 6 : index
    %c0_651 = arith.constant 0 : index
    %1442 = vector.load %arg4[%c6_649, %c6_650, %c0_651] : memref<7x7x128xf32, #tpu.memory_space<vmem>>, vector<1x1x128xf32>
    %1443 = vector.shape_cast %1442 : vector<1x1x128xf32> to vector<128xf32>
    %1444 = vector.extract_strided_slice %1399 {offsets = [6, 0, 0], sizes = [4, 16, 128], strides = [1, 1, 1]} : vector<10x16x128xf32> to vector<4x16x128xf32>
    %1445 = vector.shape_cast %1443 : vector<128xf32> to vector<1x1x128xf32>
    %1446 = vector.broadcast %1445 : vector<1x1x128xf32> to vector<4x16x128xf32>
    %1447 = arith.mulf %1446, %1444 : vector<4x16x128xf32>
    %1448 = arith.addf %1441, %1447 : vector<4x16x128xf32>
    %c0_652 = arith.constant 0 : index
    %c12 = arith.constant 12 : index
    %c0_653 = arith.constant 0 : index
    %c0_654 = arith.constant 0 : index
    %1449 = vector.load %arg6[%c0_652, %c12, %c0_653, %c0_654] : memref<1x16x16x128xf32, #tpu.memory_space<vmem>>, vector<1x4x16x128xf32>
    %1450 = vector.shape_cast %1449 : vector<1x4x16x128xf32> to vector<4x16x128xf32>
    %1451 = vector.shape_cast %1448 : vector<4x16x128xf32> to vector<1x4x16x128xf32>
    tpu.vector_store %arg6[%c0_652, %c12, %c0_653, %c0_654], %1451 {strides = array<i32>} : memref<1x16x16x128xf32, #tpu.memory_space<vmem>>, vector<1x4x16x128xf32>,
    return
  }
  func.func @transform_0(%arg0: i32, %arg1: i32, %arg2: i32) -> (i32, i32, i32, i32) {
    %c0_i32 = arith.constant 0 : i32
    %c0_i32_0 = arith.constant 0 : i32
    %c0_i32_1 = arith.constant 0 : i32
    return %arg0, %c0_i32, %c0_i32_0, %arg1 : i32, i32, i32, i32
  }
  func.func @transform_1(%arg0: i32, %arg1: i32, %arg2: i32) -> (i32, i32, i32) {
    %c0_i32 = arith.constant 0 : i32
    %c0_i32_0 = arith.constant 0 : i32
    %c0_i32_1 = arith.constant 0 : i32
    return %c0_i32, %c0_i32_0, %arg1 : i32, i32, i32
  }
  func.func @transform_2(%arg0: i32, %arg1: i32, %arg2: i32) -> (i32, i32) {
    %c0_i32 = arith.constant 0 : i32
    %c0_i32_0 = arith.constant 0 : i32
    return %c0_i32, %arg1 : i32, i32
  }
  func.func @transform_3(%arg0: i32, %arg1: i32, %arg2: i32) -> (i32, i32, i32, i32) {
    %c0_i32 = arith.constant 0 : i32
    %c0_i32_0 = arith.constant 0 : i32
    return %arg0, %arg2, %c0_i32, %arg1 : i32, i32, i32, i32
  }
}

</mosaic_0001>

<llo_original>
// kernel: dilated_reparam_conv.1
$region0: #{dilated_reparam_conv.1}
  #allocation0 [shape = 'u32[]', space=smem, size = 0x4, offset = 0x4, fixed_abs, tag = 'smem constant byte address 0x4 - core index']
  #allocation1 [shape = 'u32[72,128]{1,0:T(1,128)}', space=vmem, size = 0x9000, scoped, tag = 'internal scratch']
  #allocation2 [shape = 'f32[22,22,128]{2,1,0:T(8,128)}', space=vmem, size = 0x42000, scoped, tag = 'scratch operand']
  %s0 = inlined_call_operand.vmem [shape: f32[2,16,16,128], index: 0, kind: input, shape index: {}]
  %s1 = inlined_call_operand.vmem [shape: f32[7,7,128], index: 1, kind: input, shape index: {}]
  %s2 = inlined_call_operand.vmem [shape: f32[1,128], index: 2, kind: input, shape index: {}]
  %s3 = inlined_call_operand.hbm [shape: f32[2,16,16,128], index: 3, kind: output, shape index: {}]
  %s4 = sld [smem:[#allocation0]]
  $region49: #{dilated_reparam_conv.1} parent=0
    _
  %s6 = ssub.s32 1, %s4
  %s7 = scalar_select 0, %s6, %s4
  $region1: #{dilated_reparam_conv.1} parent=0
    #allocation3 [shape = 'u8[262144]{0}', space=vmem, size = 0x40000, scoped, tag = 'output window, operand 0']
    #allocation4 [shape = 's32[2]{0}', space=sflag, size = 0x8, scoped, tag = 'scoped memory for dilated_reparam_conv.1']
    %8 = vsyncpa [#allocation4], 0
    %s9 = scalar_lea.sflag [#allocation4], 1
    %10 = vsyncpa %s9, 0
    loop: start=0, step=1, limit=4
    $region2: #{dilated_reparam_conv.1} parent=1 // loop_pre_header
      _
    $region3: #{dilated_reparam_conv.1} parent=1 // loop_header
      %s12 = sphi 0, %s16
      %p13 = scmp.ge.s32.totalorder %s12, 4
      %s19 = sphi 0, %s38
      %s20 = sphi 0, %s34
      %s21 = sphi 0, %s30
      %s22 = sphi 0, %s19
      %s23 = sphi 0, %s20
      %s24 = sphi 0, %s21
      %s25 = sphi 0, %s22
      %s26 = sphi 0, %s23
      %s27 = sphi 0, %s24
      %s43 = sphi 0, %s45
      %s46 = sphi 0, %s43
      %s47 = sphi 0, %s46
      %s63 = sphi 0, %s47
      %s69 = sphi 0, %s71
      %s72 = sphi 0, %s69
      %s73 = sphi 0, %s72
      %s89 = sphi 0, %s73
      %s95 = sphi 0, %s97
      %s98 = sphi 0, %s95
      %s99 = sphi 0, %s98
      %s115 = sphi 0, %s99
      %s125 = sphi 0, %s127
      %s128 = sphi 0, %s125
      %s129 = sphi 0, %s128
      %s145 = sphi 0, %s129
    $region4: #{dilated_reparam_conv.1} parent=1 // loop_header_branch
      %15 = sbr.rel (%p13) target = $region8
    $region5: #{dilated_reparam_conv.1} parent=1 // loop_body
      %s17 = ssub.s32 %s12, 1
      %s18 = ssub.s32 %s12, 2
      %s28 = sadd.s32 1, %s21
      %p29 = scmp.ge.s32.totalorder %s28, 1
      %s30 = scalar_select %p29, 0, %s28
      %s31 = sadd.s32 1, %s20
      %s32 = scalar_select %p29, %s31, %s20
      %p33 = scmp.ge.s32.totalorder %s32, 1
      %s34 = scalar_select %p33, 0, %s32
      %s35 = sadd.s32 1, %s19
      %s36 = scalar_select %p33, %s35, %s19
      %p37 = scmp.ge.s32.totalorder %s36, 2
      %s38 = scalar_select %p37, 0, %s36
      %s39 = ssub.s32 %s19, %s38
      %s40 = ssub.s32 %s20, %s34
      %s41 = sor.u32 %s39, %s40
      %p42 = scmp.eq.s32.totalorder %s41, 0
      %s44 = sadd.s32 %s43, 1
      %s45 = scalar_select %p42, %s43, %s44
      %p48 = pneg %p42
      %p49 = scmp.eq.s32.totalorder %s12, 1
      %p50 = por %p48, %p49
      %p51 = scmp.ne.s32.totalorder %s43, %s46
      %p52 = scmp.eq.s32.totalorder %s12, 0
      %p53 = por %p51, %p52
      %p54 = scmp.ne.s32.totalorder %s43, %s46
      %p55 = scmp.eq.s32.totalorder %s17, 1
      %p56 = por %p54, %p55
      %p57 = scmp.ne.s32.totalorder %s46, %s47
      %p58 = scmp.eq.s32.totalorder %s17, 0
      %p59 = por %p57, %p58
      %p60 = scmp.ne.s32.totalorder %s46, %s47
      %p61 = scmp.eq.s32.totalorder %s18, 1
      %p62 = por %p60, %p61
      %p64 = scmp.ne.s32.totalorder %s47, %s63
      %p65 = scmp.eq.s32.totalorder %s18, 0
      %p66 = por %p64, %p65
      %s67 = ssub.s32 %s20, %s34
      %p68 = scmp.eq.s32.totalorder %s67, 0
      %s70 = sadd.s32 %s69, 1
      %s71 = scalar_select %p68, %s69, %s70
      %p74 = pneg %p68
      %p75 = scmp.eq.s32.totalorder %s12, 1
      %p76 = por %p74, %p75
      %p77 = scmp.ne.s32.totalorder %s69, %s72
      %p78 = scmp.eq.s32.totalorder %s12, 0
      %p79 = por %p77, %p78
      %p80 = scmp.ne.s32.totalorder %s69, %s72
      %p81 = scmp.eq.s32.totalorder %s17, 1
      %p82 = por %p80, %p81
      %p83 = scmp.ne.s32.totalorder %s72, %s73
      %p84 = scmp.eq.s32.totalorder %s17, 0
      %p85 = por %p83, %p84
      %p86 = scmp.ne.s32.totalorder %s72, %s73
      %p87 = scmp.eq.s32.totalorder %s18, 1
      %p88 = por %p86, %p87
      %p90 = scmp.ne.s32.totalorder %s73, %s89
      %p91 = scmp.eq.s32.totalorder %s18, 0
      %p92 = por %p90, %p91
      %s93 = ssub.s32 %s20, %s34
      %p94 = scmp.eq.s32.totalorder %s93, 0
      %s96 = sadd.s32 %s95, 1
      %s97 = scalar_select %p94, %s95, %s96
      %p100 = pneg %p94
      %p101 = scmp.eq.s32.totalorder %s12, 1
      %p102 = por %p100, %p101
      %p103 = scmp.ne.s32.totalorder %s95, %s98
      %p104 = scmp.eq.s32.totalorder %s12, 0
      %p105 = por %p103, %p104
      %p106 = scmp.ne.s32.totalorder %s95, %s98
      %p107 = scmp.eq.s32.totalorder %s17, 1
      %p108 = por %p106, %p107
      %p109 = scmp.ne.s32.totalorder %s98, %s99
      %p110 = scmp.eq.s32.totalorder %s17, 0
      %p111 = por %p109, %p110
      %p112 = scmp.ne.s32.totalorder %s98, %s99
      %p113 = scmp.eq.s32.totalorder %s18, 1
      %p114 = por %p112, %p113
      %p116 = scmp.ne.s32.totalorder %s99, %s115
      %p117 = scmp.eq.s32.totalorder %s18, 0
      %p118 = por %p116, %p117
      %s119 = ssub.s32 %s19, %s38
      %s120 = ssub.s32 %s21, %s30
      %s121 = sor.u32 %s119, %s120
      %s122 = ssub.s32 %s20, %s34
      %s123 = sor.u32 %s121, %s122
      %p124 = scmp.eq.s32.totalorder %s123, 0
      %s126 = sadd.s32 %s125, 1
      %s127 = scalar_select %p124, %s125, %s126
      %p130 = pneg %p124
      %p131 = scmp.eq.s32.totalorder %s12, 1
      %p132 = por %p130, %p131
      %p133 = scmp.ne.s32.totalorder %s125, %s128
      %p134 = scmp.eq.s32.totalorder %s12, 0
      %p135 = por %p133, %p134
      %p136 = scmp.ne.s32.totalorder %s125, %s128
      %p137 = scmp.eq.s32.totalorder %s17, 1
      %p138 = por %p136, %p137
      %p139 = scmp.ne.s32.totalorder %s128, %s129
      %p140 = scmp.eq.s32.totalorder %s17, 0
      %p141 = por %p139, %p140
      %p142 = scmp.ne.s32.totalorder %s128, %s129
      %p143 = scmp.eq.s32.totalorder %s18, 1
      %p144 = por %p142, %p143
      %p146 = scmp.ne.s32.totalorder %s129, %s145
      %p147 = scmp.eq.s32.totalorder %s18, 0
      %p148 = por %p146, %p147
      %p149 = scmp.le.s32.totalorder 1, %s12
      %p150 = scmp.lt.s32.totalorder %s12, 3
      %p151 = pnand %p149, %p150
      %p152 = pneg %p151
      // Predicated region
      $region9: #{dilated_reparam_conv.1} parent=5 // pred_check
        _
      $region10: #{dilated_reparam_conv.1} parent=5 // pred_check_branch
        %154 = sbr.rel (%p151) target = $region12
      $region11: #{dilated_reparam_conv.1} parent=5 // pred_region
        %s155 = ssub.s32 %s12, 1
        // Predicated region
        $region13: #{dilated_reparam_conv.1} parent=11 // pred_check
          %p156 = pneg %p85
        $region14: #{dilated_reparam_conv.1} parent=11 // pred_check_branch
          %158 = sbr.rel (%p156) target = $region16
        $region15: #{dilated_reparam_conv.1} parent=11 // pred_region
          %p159 = scmp.lt.s32.totalorder %s23, 0
          %s160 = scalar_select %p159, %s23, 0
          %s161 = smul.addr %s160, 8
          %s162 = scalar_lea.vmem %s1, %s161
        $region16: #{dilated_reparam_conv.1} parent=11 // pred_fallthru
          _
        // Predicated region
        $region17: #{dilated_reparam_conv.1} parent=11 // pred_check
          %p163 = pneg %p111
        $region18: #{dilated_reparam_conv.1} parent=11 // pred_check_branch
          %165 = sbr.rel (%p163) target = $region20
        $region19: #{dilated_reparam_conv.1} parent=11 // pred_region
          %p166 = scmp.lt.s32.totalorder %s23, 0
          %s167 = scalar_select %p166, %s23, 0
          %s168 = scalar_lea.vmem %s2, %s167
        $region20: #{dilated_reparam_conv.1} parent=11 // pred_fallthru
          _
      $region12: #{dilated_reparam_conv.1} parent=5 // pred_fallthru
        _
      %p169 = scmp.lt.s32.totalorder %s12, 2
      // Predicated region
      $region21: #{dilated_reparam_conv.1} parent=5 // pred_check
        %p170 = pneg %p169
      $region22: #{dilated_reparam_conv.1} parent=5 // pred_check_branch
        %172 = sbr.rel (%p170) target = $region24
      $region23: #{dilated_reparam_conv.1} parent=5 // pred_region
        // Predicated region
        $region25: #{dilated_reparam_conv.1} parent=23 // pred_check
          %p173 = pneg %p53
        $region26: #{dilated_reparam_conv.1} parent=23 // pred_check_branch
          %175 = sbr.rel (%p173) target = $region28
        $region27: #{dilated_reparam_conv.1} parent=23 // pred_region
          %p176 = scmp.lt.s32.totalorder %s19, 1
          %s177 = scalar_select %p176, %s19, 1
          %p178 = scmp.lt.s32.totalorder %s20, 0
          %s179 = scalar_select %p178, %s20, 0
          %s180 = smul.addr %s177, 32
          %s181 = sadd.s32 %s179, %s180
          %s182 = smul.addr %s181, 8
          %s183 = scalar_lea.vmem %s0, %s182
        $region28: #{dilated_reparam_conv.1} parent=23 // pred_fallthru
          _
      $region24: #{dilated_reparam_conv.1} parent=5 // pred_fallthru
        _
      %p184 = scmp.le.s32.totalorder 1, %s12
      %p185 = scmp.lt.s32.totalorder %s12, 3
      %p186 = pnand %p184, %p185
      %p187 = pneg %p186
      // Predicated region
      $region29: #{dilated_reparam_conv.1} parent=5 // pred_check
        _
      $region30: #{dilated_reparam_conv.1} parent=5 // pred_check_branch
        %189 = sbr.rel (%p186) target = $region32
      $region31: #{dilated_reparam_conv.1} parent=5 // pred_region
        %s190 = ssub.s32 %s12, 1
        %p191 = scmp.lt.s32.totalorder %s22, 1
        %s192 = scalar_select %p191, %s22, 1
        %p193 = scmp.lt.s32.totalorder %s23, 0
        %s194 = scalar_select %p193, %s23, 0
        %s195 = smul.addr %s192, 32
        %s196 = sadd.s32 %s194, %s195
        %s197 = smul.addr %s196, 8
        %s198 = scalar_lea.vmem %s0, %s197
        %p199 = pneg %p59
        %p200 = pneg %p56
        %p201 = scmp.lt.s32.totalorder %s23, 0
        %s202 = scalar_select %p201, %s23, 0
        %s203 = smul.addr %s202, 8
        %s204 = scalar_lea.vmem %s1, %s203
        %p205 = pneg %p85
        %p206 = pneg %p82
        %p207 = scmp.lt.s32.totalorder %s23, 0
        %s208 = scalar_select %p207, %s23, 0
        %s209 = scalar_lea.vmem %s2, %s208
        %p210 = pneg %p111
        %p211 = pneg %p108
        %p212 = pneg %p141
        %p213 = pneg %p138
        %s214 = sand.u32 %s128, 1
        %s215 = scalar_lea.sflag [#allocation4], %s214
        %s216 = sand.u32 %s128, 1
        %s217 = smul.addr %s216, 256
        %s218 = scalar_lea.vmem [#allocation3], %s217
        %p219 = scmp.lt.s32.totalorder %s22, 1
        %s220 = scalar_select %p219, %s22, 1
        %p221 = scmp.lt.s32.totalorder %s23, 0
        %s222 = scalar_select %p221, %s23, 0
        %s223 = smul.addr %s220, 32
        %s224 = sadd.s32 %s222, %s223
        %s225 = smul.addr %s224, 8
        %s226 = scalar_lea.vmem %s0, %s225
        %p227 = scmp.lt.s32.totalorder %s23, 0
        %s228 = scalar_select %p227, %s23, 0
        %s229 = smul.addr %s228, 8
        %s230 = scalar_lea.vmem %s1, %s229
        %p231 = scmp.lt.s32.totalorder %s23, 0
        %s232 = scalar_select %p231, %s23, 0
        %s233 = scalar_lea.vmem %s2, %s232
        %s234 = smul.u32 16, %s24
        %p235 = scmp.eq.s32.totalorder %s24, 0
        // Predicated region
        $region33: #{dilated_reparam_conv.1} parent=31 // pred_check
          %p236 = pneg %p235
        $region34: #{dilated_reparam_conv.1} parent=31 // pred_check_branch
          %238 = sbr.rel (%p236) target = $region36
        $region35: #{dilated_reparam_conv.1} parent=31 // pred_region
          %239 = vst [vmem:[#allocation2] sm:$0xff] 0.0
          %240 = vst [vmem:[#allocation2 + $0x8] sm:$0xff] 0.0
          %241 = vst [vmem:[#allocation2 + $0x10] sm:$0x3f] 0.0
          %242 = vst [vmem:[#allocation2 + $0x18] sm:$0xff] 0.0
          %243 = vst [vmem:[#allocation2 + $0x20] sm:$0xff] 0.0
          %244 = vst [vmem:[#allocation2 + $0x28] sm:$0x3f] 0.0
          %245 = vst [vmem:[#allocation2 + $0x30] sm:$0xff] 0.0
          %246 = vst [vmem:[#allocation2 + $0x38] sm:$0xff] 0.0
          %247 = vst [vmem:[#allocation2 + $0x40] sm:$0x3f] 0.0
          %248 = vst [vmem:[#allocation2 + $0x48] sm:$0xff] 0.0
          %249 = vst [vmem:[#allocation2 + $0x50] sm:$0xff] 0.0
          %250 = vst [vmem:[#allocation2 + $0x58] sm:$0x3f] 0.0
          %251 = vst [vmem:[#allocation2 + $0x60] sm:$0xff] 0.0
          %252 = vst [vmem:[#allocation2 + $0x68] sm:$0xff] 0.0
          %253 = vst [vmem:[#allocation2 + $0x70] sm:$0x3f] 0.0
          %254 = vst [vmem:[#allocation2 + $0x78] sm:$0xff] 0.0
          %255 = vst [vmem:[#allocation2 + $0x80] sm:$0xff] 0.0
          %256 = vst [vmem:[#allocation2 + $0x88] sm:$0x3f] 0.0
          %257 = vst [vmem:[#allocation2 + $0x90] sm:$0xff] 0.0
          %258 = vst [vmem:[#allocation2 + $0x98] sm:$0xff] 0.0
          %259 = vst [vmem:[#allocation2 + $0xa0] sm:$0x3f] 0.0
          %260 = vst [vmem:[#allocation2 + $0xa8] sm:$0xff] 0.0
          %261 = vst [vmem:[#allocation2 + $0xb0] sm:$0xff] 0.0
          %262 = vst [vmem:[#allocation2 + $0xb8] sm:$0x3f] 0.0
          %263 = vst [vmem:[#allocation2 + $0xc0] sm:$0xff] 0.0
          %264 = vst [vmem:[#allocation2 + $0xc8] sm:$0xff] 0.0
          %265 = vst [vmem:[#allocation2 + $0xd0] sm:$0x3f] 0.0
          %266 = vst [vmem:[#allocation2 + $0xd8] sm:$0xff] 0.0
          %267 = vst [vmem:[#allocation2 + $0xe0] sm:$0xff] 0.0
          %268 = vst [vmem:[#allocation2 + $0xe8] sm:$0x3f] 0.0
          %269 = vst [vmem:[#allocation2 + $0xf0] sm:$0xff] 0.0
          %270 = vst [vmem:[#allocation2 + $0xf8] sm:$0xff] 0.0
          %271 = vst [vmem:[#allocation2 + $0x100] sm:$0x3f] 0.0
          %272 = vst [vmem:[#allocation2 + $0x108] sm:$0xff] 0.0
          %273 = vst [vmem:[#allocation2 + $0x110] sm:$0xff] 0.0
          %274 = vst [vmem:[#allocation2 + $0x118] sm:$0x3f] 0.0
          %275 = vst [vmem:[#allocation2 + $0x120] sm:$0xff] 0.0
          %276 = vst [vmem:[#allocation2 + $0x128] sm:$0xff] 0.0
          %277 = vst [vmem:[#allocation2 + $0x130] sm:$0x3f] 0.0
          %278 = vst [vmem:[#allocation2 + $0x138] sm:$0xff] 0.0
          %279 = vst [vmem:[#allocation2 + $0x140] sm:$0xff] 0.0
          %280 = vst [vmem:[#allocation2 + $0x148] sm:$0x3f] 0.0
          %281 = vst [vmem:[#allocation2 + $0x150] sm:$0xff] 0.0
          %282 = vst [vmem:[#allocation2 + $0x158] sm:$0xff] 0.0
          %283 = vst [vmem:[#allocation2 + $0x160] sm:$0x3f] 0.0
          %284 = vst [vmem:[#allocation2 + $0x168] sm:$0xff] 0.0
          %285 = vst [vmem:[#allocation2 + $0x170] sm:$0xff] 0.0
          %286 = vst [vmem:[#allocation2 + $0x178] sm:$0x3f] 0.0
          %287 = vst [vmem:[#allocation2 + $0x180] sm:$0xff] 0.0
          %288 = vst [vmem:[#allocation2 + $0x188] sm:$0xff] 0.0
          %289 = vst [vmem:[#allocation2 + $0x190] sm:$0x3f] 0.0
          %290 = vst [vmem:[#allocation2 + $0x198] sm:$0xff] 0.0
          %291 = vst [vmem:[#allocation2 + $0x1a0] sm:$0xff] 0.0
          %292 = vst [vmem:[#allocation2 + $0x1a8] sm:$0x3f] 0.0
          %293 = vst [vmem:[#allocation2 + $0x1b0] sm:$0xff] 0.0
          %294 = vst [vmem:[#allocation2 + $0x1b8] sm:$0xff] 0.0
          %295 = vst [vmem:[#allocation2 + $0x1c0] sm:$0x3f] 0.0
          %296 = vst [vmem:[#allocation2 + $0x1c8] sm:$0xff] 0.0
          %297 = vst [vmem:[#allocation2 + $0x1d0] sm:$0xff] 0.0
          %298 = vst [vmem:[#allocation2 + $0x1d8] sm:$0x3f] 0.0
          %299 = vst [vmem:[#allocation2 + $0x1e0] sm:$0xff] 0.0
          %300 = vst [vmem:[#allocation2 + $0x1e8] sm:$0xff] 0.0
          %301 = vst [vmem:[#allocation2 + $0x1f0] sm:$0x3f] 0.0
          %302 = vst [vmem:[#allocation2 + $0x1f8] sm:$0xff] 0.0
          %303 = vst [vmem:[#allocation2 + $0x200] sm:$0xff] 0.0
          %304 = vst [vmem:[#allocation2 + $0x208] sm:$0x3f] 0.0
          %v305 = vld [vmem:[%s226] sm:$0xff]
          %v306 = vld [vmem:[%s226 + $0x8] sm:$0xff]
          %v307 = vld [vmem:[%s226 + $0x10] sm:$0xff]
          %v308 = vld [vmem:[%s226 + $0x18] sm:$0xff]
          %v309 = vld [vmem:[%s226 + $0x20] sm:$0xff]
          %v310 = vld [vmem:[%s226 + $0x28] sm:$0xff]
          %v311 = vld [vmem:[%s226 + $0x30] sm:$0xff]
          %v312 = vld [vmem:[%s226 + $0x38] sm:$0xff]
          %v313 = vld [vmem:[%s226 + $0x40] sm:$0xff]
          %v314 = vld [vmem:[%s226 + $0x48] sm:$0xff]
          %v315 = vld [vmem:[%s226 + $0x50] sm:$0xff]
          %v316 = vld [vmem:[%s226 + $0x58] sm:$0xff]
          %v317 = vld [vmem:[%s226 + $0x60] sm:$0xff]
          %v318 = vld [vmem:[%s226 + $0x68] sm:$0xff]
          %v319 = vld [vmem:[%s226 + $0x70] sm:$0xff]
          %v320 = vld [vmem:[%s226 + $0x78] sm:$0xff]
          %v321 = vld [vmem:[%s226 + $0x80] sm:$0xff]
          %v322 = vld [vmem:[%s226 + $0x88] sm:$0xff]
          %v323 = vld [vmem:[%s226 + $0x90] sm:$0xff]
          %v324 = vld [vmem:[%s226 + $0x98] sm:$0xff]
          %v325 = vld [vmem:[%s226 + $0xa0] sm:$0xff]
          %v326 = vld [vmem:[%s226 + $0xa8] sm:$0xff]
          %v327 = vld [vmem:[%s226 + $0xb0] sm:$0xff]
          %v328 = vld [vmem:[%s226 + $0xb8] sm:$0xff]
          %v329 = vld [vmem:[%s226 + $0xc0] sm:$0xff]
          %v330 = vld [vmem:[%s226 + $0xc8] sm:$0xff]
          %v331 = vld [vmem:[%s226 + $0xd0] sm:$0xff]
          %v332 = vld [vmem:[%s226 + $0xd8] sm:$0xff]
          %v333 = vld [vmem:[%s226 + $0xe0] sm:$0xff]
          %v334 = vld [vmem:[%s226 + $0xe8] sm:$0xff]
          %v335 = vld [vmem:[%s226 + $0xf0] sm:$0xff]
          %v336 = vld [vmem:[%s226 + $0xf8] sm:$0xff]
          %s337 = scalar_lea.vmem [#allocation2], 72
          %338 = vst [vmem:[%s337 + $0x3] sm:$0xff] %v305
          %339 = vst [vmem:[%s337 + $0xb] sm:$0xff] %v306
          %340 = vst [vmem:[%s337 + $0x1b] sm:$0xff] %v307
          %341 = vst [vmem:[%s337 + $0x23] sm:$0xff] %v308
          %342 = vst [vmem:[%s337 + $0x33] sm:$0xff] %v309
          %343 = vst [vmem:[%s337 + $0x3b] sm:$0xff] %v310
          %344 = vst [vmem:[%s337 + $0x4b] sm:$0xff] %v311
          %345 = vst [vmem:[%s337 + $0x53] sm:$0xff] %v312
          %346 = vst [vmem:[%s337 + $0x63] sm:$0xff] %v313
          %347 = vst [vmem:[%s337 + $0x6b] sm:$0xff] %v314
          %348 = vst [vmem:[%s337 + $0x7b] sm:$0xff] %v315
          %349 = vst [vmem:[%s337 + $0x83] sm:$0xff] %v316
          %350 = vst [vmem:[%s337 + $0x93] sm:$0xff] %v317
          %351 = vst [vmem:[%s337 + $0x9b] sm:$0xff] %v318
          %352 = vst [vmem:[%s337 + $0xab] sm:$0xff] %v319
          %353 = vst [vmem:[%s337 + $0xb3] sm:$0xff] %v320
          %354 = vst [vmem:[%s337 + $0xc3] sm:$0xff] %v321
          %355 = vst [vmem:[%s337 + $0xcb] sm:$0xff] %v322
          %356 = vst [vmem:[%s337 + $0xdb] sm:$0xff] %v323
          %357 = vst [vmem:[%s337 + $0xe3] sm:$0xff] %v324
          %358 = vst [vmem:[%s337 + $0xf3] sm:$0xff] %v325
          %359 = vst [vmem:[%s337 + $0xfb] sm:$0xff] %v326
          %360 = vst [vmem:[%s337 + $0x10b] sm:$0xff] %v327
          %361 = vst [vmem:[%s337 + $0x113] sm:$0xff] %v328
          %362 = vst [vmem:[%s337 + $0x123] sm:$0xff] %v329
          %363 = vst [vmem:[%s337 + $0x12b] sm:$0xff] %v330
          %364 = vst [vmem:[%s337 + $0x13b] sm:$0xff] %v331
          %365 = vst [vmem:[%s337 + $0x143] sm:$0xff] %v332
          %366 = vst [vmem:[%s337 + $0x153] sm:$0xff] %v333
          %367 = vst [vmem:[%s337 + $0x15b] sm:$0xff] %v334
          %368 = vst [vmem:[%s337 + $0x16b] sm:$0xff] %v335
          %369 = vst [vmem:[%s337 + $0x173] sm:$0xff] %v336
        $region36: #{dilated_reparam_conv.1} parent=31 // pred_fallthru
          _
        %v370 = vld [vmem:[%s233] sm:$0x1]
        %v372 = vperm.slane %v370, 0
        %s374 = smul.u32 %s24, 16
        %s375 = smul.u32 %s374, 24
        %s376 = scalar_lea.vmem [#allocation2], %s375
        %v377 = vld [vmem:[%s376] sm:$0xff]
        %v378 = vld [vmem:[%s376 + $0x8] sm:$0xff]
        %v379 = vld [vmem:[%s376 + $0x18] sm:$0xff]
        %v380 = vld [vmem:[%s376 + $0x20] sm:$0xff]
        %v381 = vld [vmem:[%s376 + $0x30] sm:$0xff]
        %v382 = vld [vmem:[%s376 + $0x38] sm:$0xff]
        %v383 = vld [vmem:[%s376 + $0x48] sm:$0xff]
        %v384 = vld [vmem:[%s376 + $0x50] sm:$0xff]
        %v385 = vld [vmem:[%s376 + $0x60] sm:$0xff]
        %v386 = vld [vmem:[%s376 + $0x68] sm:$0xff]
        %v387 = vld [vmem:[%s376 + $0x78] sm:$0xff]
        %v388 = vld [vmem:[%s376 + $0x80] sm:$0xff]
        %v389 = vld [vmem:[%s376 + $0x90] sm:$0xff]
        %v390 = vld [vmem:[%s376 + $0x98] sm:$0xff]
        %v391 = vld [vmem:[%s376 + $0xa8] sm:$0xff]
        %v392 = vld [vmem:[%s376 + $0xb0] sm:$0xff]
        %v393 = vld [vmem:[%s376 + $0xc0] sm:$0xff]
        %v394 = vld [vmem:[%s376 + $0xc8] sm:$0xff]
        %v395 = vld [vmem:[%s376 + $0xd8] sm:$0xff]
        %v396 = vld [vmem:[%s376 + $0xe0] sm:$0xff]
        %v397 = vld [vmem:[%s230] sm:$0x1]
        %v398 = vperm.slane %v397, 0
        %v399 = vmul.f32 %v398, %v377
        %v400 = vmul.f32 %v398, %v378
        %v401 = vmul.f32 %v398, %v379
        %v402 = vmul.f32 %v398, %v380
        %v403 = vmul.f32 %v398, %v381
        %v404 = vmul.f32 %v398, %v382
        %v405 = vmul.f32 %v398, %v383
        %v406 = vmul.f32 %v398, %v384
        %v407 = vadd.f32 %v372, %v399
        %v408 = vadd.f32 %v372, %v400
        %v409 = vadd.f32 %v372, %v401
        %v410 = vadd.f32 %v372, %v402
        %v411 = vadd.f32 %v372, %v403
        %v412 = vadd.f32 %v372, %v404
        %v413 = vadd.f32 %v372, %v405
        %v414 = vadd.f32 %v372, %v406
        %s415 = scalar_lea.vmem %s230, 8
        %v416 = vld [vmem:[%s415] sm:$0x1]
        %v417 = vperm.slane %v416, 0
        %v418 = vmul.f32 %v417, %v379
        %v419 = vmul.f32 %v417, %v380
        %v420 = vmul.f32 %v417, %v381
        %v421 = vmul.f32 %v417, %v382
        %v422 = vmul.f32 %v417, %v383
        %v423 = vmul.f32 %v417, %v384
        %v424 = vmul.f32 %v417, %v385
        %v425 = vmul.f32 %v417, %v386
        %v426 = vadd.f32 %v407, %v418
        %v427 = vadd.f32 %v408, %v419
        %v428 = vadd.f32 %v409, %v420
        %v429 = vadd.f32 %v410, %v421
        %v430 = vadd.f32 %v411, %v422
        %v431 = vadd.f32 %v412, %v423
        %v432 = vadd.f32 %v413, %v424
        %v433 = vadd.f32 %v414, %v425
        %s434 = scalar_lea.vmem %s230, 16
        %v435 = vld [vmem:[%s434] sm:$0x1]
        %v436 = vperm.slane %v435, 0
        %v437 = vmul.f32 %v436, %v381
        %v438 = vmul.f32 %v436, %v382
        %v439 = vmul.f32 %v436, %v383
        %v440 = vmul.f32 %v436, %v384
        %v441 = vmul.f32 %v436, %v385
        %v442 = vmul.f32 %v436, %v386
        %v443 = vmul.f32 %v436, %v387
        %v444 = vmul.f32 %v436, %v388
        %v445 = vadd.f32 %v426, %v437
        %v446 = vadd.f32 %v427, %v438
        %v447 = vadd.f32 %v428, %v439
        %v448 = vadd.f32 %v429, %v440
        %v449 = vadd.f32 %v430, %v441
        %v450 = vadd.f32 %v431, %v442
        %v451 = vadd.f32 %v432, %v443
        %v452 = vadd.f32 %v433, %v444
        %s453 = scalar_lea.vmem %s230, 24
        %v454 = vld [vmem:[%s453] sm:$0x1]
        %v455 = vperm.slane %v454, 0
        %v456 = vmul.f32 %v455, %v383
        %v457 = vmul.f32 %v455, %v384
        %v458 = vmul.f32 %v455, %v385
        %v459 = vmul.f32 %v455, %v386
        %v460 = vmul.f32 %v455, %v387
        %v461 = vmul.f32 %v455, %v388
        %v462 = vmul.f32 %v455, %v389
        %v463 = vmul.f32 %v455, %v390
        %v464 = vadd.f32 %v445, %v456
        %v465 = vadd.f32 %v446, %v457
        %v466 = vadd.f32 %v447, %v458
        %v467 = vadd.f32 %v448, %v459
        %v468 = vadd.f32 %v449, %v460
        %v469 = vadd.f32 %v450, %v461
        %v470 = vadd.f32 %v451, %v462
        %v471 = vadd.f32 %v452, %v463
        %s472 = scalar_lea.vmem %s230, 32
        %v473 = vld [vmem:[%s472] sm:$0x1]
        %v474 = vperm.slane %v473, 0
        %v475 = vmul.f32 %v474, %v385
        %v476 = vmul.f32 %v474, %v386
        %v477 = vmul.f32 %v474, %v387
        %v478 = vmul.f32 %v474, %v388
        %v479 = vmul.f32 %v474, %v389
        %v480 = vmul.f32 %v474, %v390
        %v481 = vmul.f32 %v474, %v391
        %v482 = vmul.f32 %v474, %v392
        %v483 = vadd.f32 %v464, %v475
        %v484 = vadd.f32 %v465, %v476
        %v485 = vadd.f32 %v466, %v477
        %v486 = vadd.f32 %v467, %v478
        %v487 = vadd.f32 %v468, %v479
        %v488 = vadd.f32 %v469, %v480
        %v489 = vadd.f32 %v470, %v481
        %v490 = vadd.f32 %v471, %v482
        %s491 = scalar_lea.vmem %s230, 40
        %v492 = vld [vmem:[%s491] sm:$0x1]
        %v493 = vperm.slane %v492, 0
        %v494 = vmul.f32 %v493, %v387
        %v495 = vmul.f32 %v493, %v388
        %v496 = vmul.f32 %v493, %v389
        %v497 = vmul.f32 %v493, %v390
        %v498 = vmul.f32 %v493, %v391
        %v499 = vmul.f32 %v493, %v392
        %v500 = vmul.f32 %v493, %v393
        %v501 = vmul.f32 %v493, %v394
        %v502 = vadd.f32 %v483, %v494
        %v503 = vadd.f32 %v484, %v495
        %v504 = vadd.f32 %v485, %v496
        %v505 = vadd.f32 %v486, %v497
        %v506 = vadd.f32 %v487, %v498
        %v507 = vadd.f32 %v488, %v499
        %v508 = vadd.f32 %v489, %v500
        %v509 = vadd.f32 %v490, %v501
        %s510 = scalar_lea.vmem %s230, 48
        %v511 = vld [vmem:[%s510] sm:$0x1]
        %v512 = vperm.slane %v511, 0
        %v513 = vmul.f32 %v512, %v389
        %v514 = vmul.f32 %v512, %v390
        %v515 = vmul.f32 %v512, %v391
        %v516 = vmul.f32 %v512, %v392
        %v517 = vmul.f32 %v512, %v393
        %v518 = vmul.f32 %v512, %v394
        %v519 = vmul.f32 %v512, %v395
        %v520 = vmul.f32 %v512, %v396
        %v521 = vadd.f32 %v502, %v513
        %v522 = vadd.f32 %v503, %v514
        %v523 = vadd.f32 %v504, %v515
        %v524 = vadd.f32 %v505, %v516
        %v525 = vadd.f32 %v506, %v517
        %v526 = vadd.f32 %v507, %v518
        %v527 = vadd.f32 %v508, %v519
        %v528 = vadd.f32 %v509, %v520
        %v529 = vld [vmem:[%s376 + $0x1] sm:$0xff]
        %v530 = vld [vmem:[%s376 + $0x9] sm:$0xff]
        %v531 = vld [vmem:[%s376 + $0x19] sm:$0xff]
        %v532 = vld [vmem:[%s376 + $0x21] sm:$0xff]
        %v533 = vld [vmem:[%s376 + $0x31] sm:$0xff]
        %v534 = vld [vmem:[%s376 + $0x39] sm:$0xff]
        %v535 = vld [vmem:[%s376 + $0x49] sm:$0xff]
        %v536 = vld [vmem:[%s376 + $0x51] sm:$0xff]
        %v537 = vld [vmem:[%s376 + $0x61] sm:$0xff]
        %v538 = vld [vmem:[%s376 + $0x69] sm:$0xff]
        %v539 = vld [vmem:[%s376 + $0x79] sm:$0xff]
        %v540 = vld [vmem:[%s376 + $0x81] sm:$0xff]
        %v541 = vld [vmem:[%s376 + $0x91] sm:$0xff]
        %v542 = vld [vmem:[%s376 + $0x99] sm:$0xff]
        %v543 = vld [vmem:[%s376 + $0xa9] sm:$0xff]
        %v544 = vld [vmem:[%s376 + $0xb1] sm:$0xff]
        %v545 = vld [vmem:[%s376 + $0xc1] sm:$0xff]
        %v546 = vld [vmem:[%s376 + $0xc9] sm:$0xff]
        %v547 = vld [vmem:[%s376 + $0xd9] sm:$0xff]
        %v548 = vld [vmem:[%s376 + $0xe1] sm:$0xff]
        %v549 = vld [vmem:[%s230 + $0x1] sm:$0x1]
        %v550 = vperm.slane %v549, 0
        %v551 = vmul.f32 %v550, %v529
        %v552 = vmul.f32 %v550, %v530
        %v553 = vmul.f32 %v550, %v531
        %v554 = vmul.f32 %v550, %v532
        %v555 = vmul.f32 %v550, %v533
        %v556 = vmul.f32 %v550, %v534
        %v557 = vmul.f32 %v550, %v535
        %v558 = vmul.f32 %v550, %v536
        %v559 = vadd.f32 %v521, %v551
        %v560 = vadd.f32 %v522, %v552
        %v561 = vadd.f32 %v523, %v553
        %v562 = vadd.f32 %v524, %v554
        %v563 = vadd.f32 %v525, %v555
        %v564 = vadd.f32 %v526, %v556
        %v565 = vadd.f32 %v527, %v557
        %v566 = vadd.f32 %v528, %v558
        %v567 = vld [vmem:[%s415 + $0x1] sm:$0x1]
        %v568 = vperm.slane %v567, 0
        %v569 = vmul.f32 %v568, %v531
        %v570 = vmul.f32 %v568, %v532
        %v571 = vmul.f32 %v568, %v533
        %v572 = vmul.f32 %v568, %v534
        %v573 = vmul.f32 %v568, %v535
        %v574 = vmul.f32 %v568, %v536
        %v575 = vmul.f32 %v568, %v537
        %v576 = vmul.f32 %v568, %v538
        %v577 = vadd.f32 %v559, %v569
        %v578 = vadd.f32 %v560, %v570
        %v579 = vadd.f32 %v561, %v571
        %v580 = vadd.f32 %v562, %v572
        %v581 = vadd.f32 %v563, %v573
        %v582 = vadd.f32 %v564, %v574
        %v583 = vadd.f32 %v565, %v575
        %v584 = vadd.f32 %v566, %v576
        %v585 = vld [vmem:[%s434 + $0x1] sm:$0x1]
        %v586 = vperm.slane %v585, 0
        %v587 = vmul.f32 %v586, %v533
        %v588 = vmul.f32 %v586, %v534
        %v589 = vmul.f32 %v586, %v535
        %v590 = vmul.f32 %v586, %v536
        %v591 = vmul.f32 %v586, %v537
        %v592 = vmul.f32 %v586, %v538
        %v593 = vmul.f32 %v586, %v539
        %v594 = vmul.f32 %v586, %v540
        %v595 = vadd.f32 %v577, %v587
        %v596 = vadd.f32 %v578, %v588
        %v597 = vadd.f32 %v579, %v589
        %v598 = vadd.f32 %v580, %v590
        %v599 = vadd.f32 %v581, %v591
        %v600 = vadd.f32 %v582, %v592
        %v601 = vadd.f32 %v583, %v593
        %v602 = vadd.f32 %v584, %v594
        %v603 = vld [vmem:[%s453 + $0x1] sm:$0x1]
        %v604 = vperm.slane %v603, 0
        %v605 = vmul.f32 %v604, %v535
        %v606 = vmul.f32 %v604, %v536
        %v607 = vmul.f32 %v604, %v537
        %v608 = vmul.f32 %v604, %v538
        %v609 = vmul.f32 %v604, %v539
        %v610 = vmul.f32 %v604, %v540
        %v611 = vmul.f32 %v604, %v541
        %v612 = vmul.f32 %v604, %v542
        %v613 = vadd.f32 %v595, %v605
        %v614 = vadd.f32 %v596, %v606
        %v615 = vadd.f32 %v597, %v607
        %v616 = vadd.f32 %v598, %v608
        %v617 = vadd.f32 %v599, %v609
        %v618 = vadd.f32 %v600, %v610
        %v619 = vadd.f32 %v601, %v611
        %v620 = vadd.f32 %v602, %v612
        %v621 = vld [vmem:[%s472 + $0x1] sm:$0x1]
        %v622 = vperm.slane %v621, 0
        %v623 = vmul.f32 %v622, %v537
        %v624 = vmul.f32 %v622, %v538
        %v625 = vmul.f32 %v622, %v539
        %v626 = vmul.f32 %v622, %v540
        %v627 = vmul.f32 %v622, %v541
        %v628 = vmul.f32 %v622, %v542
        %v629 = vmul.f32 %v622, %v543
        %v630 = vmul.f32 %v622, %v544
        %v631 = vadd.f32 %v613, %v623
        %v632 = vadd.f32 %v614, %v624
        %v633 = vadd.f32 %v615, %v625
        %v634 = vadd.f32 %v616, %v626
        %v635 = vadd.f32 %v617, %v627
        %v636 = vadd.f32 %v618, %v628
        %v637 = vadd.f32 %v619, %v629
        %v638 = vadd.f32 %v620, %v630
        %v639 = vld [vmem:[%s491 + $0x1] sm:$0x1]
        %v640 = vperm.slane %v639, 0
        %v641 = vmul.f32 %v640, %v539
        %v642 = vmul.f32 %v640, %v540
        %v643 = vmul.f32 %v640, %v541
        %v644 = vmul.f32 %v640, %v542
        %v645 = vmul.f32 %v640, %v543
        %v646 = vmul.f32 %v640, %v544
        %v647 = vmul.f32 %v640, %v545
        %v648 = vmul.f32 %v640, %v546
        %v649 = vadd.f32 %v631, %v641
        %v650 = vadd.f32 %v632, %v642
        %v651 = vadd.f32 %v633, %v643
        %v652 = vadd.f32 %v634, %v644
        %v653 = vadd.f32 %v635, %v645
        %v654 = vadd.f32 %v636, %v646
        %v655 = vadd.f32 %v637, %v647
        %v656 = vadd.f32 %v638, %v648
        %v657 = vld [vmem:[%s510 + $0x1] sm:$0x1]
        %v658 = vperm.slane %v657, 0
        %v659 = vmul.f32 %v658, %v541
        %v660 = vmul.f32 %v658, %v542
        %v661 = vmul.f32 %v658, %v543
        %v662 = vmul.f32 %v658, %v544
        %v663 = vmul.f32 %v658, %v545
        %v664 = vmul.f32 %v658, %v546
        %v665 = vmul.f32 %v658, %v547
        %v666 = vmul.f32 %v658, %v548
        %v667 = vadd.f32 %v649, %v659
        %v668 = vadd.f32 %v650, %v660
        %v669 = vadd.f32 %v651, %v661
        %v670 = vadd.f32 %v652, %v662
        %v671 = vadd.f32 %v653, %v663
        %v672 = vadd.f32 %v654, %v664
        %v673 = vadd.f32 %v655, %v665
        %v674 = vadd.f32 %v656, %v666
        %v675 = vld [vmem:[%s376 + $0x2] sm:$0xff]
        %v676 = vld [vmem:[%s376 + $0xa] sm:$0xff]
        %v677 = vld [vmem:[%s376 + $0x1a] sm:$0xff]
        %v678 = vld [vmem:[%s376 + $0x22] sm:$0xff]
        %v679 = vld [vmem:[%s376 + $0x32] sm:$0xff]
        %v680 = vld [vmem:[%s376 + $0x3a] sm:$0xff]
        %v681 = vld [vmem:[%s376 + $0x4a] sm:$0xff]
        %v682 = vld [vmem:[%s376 + $0x52] sm:$0xff]
        %v683 = vld [vmem:[%s376 + $0x62] sm:$0xff]
        %v684 = vld [vmem:[%s376 + $0x6a] sm:$0xff]
        %v685 = vld [vmem:[%s376 + $0x7a] sm:$0xff]
        %v686 = vld [vmem:[%s376 + $0x82] sm:$0xff]
        %v687 = vld [vmem:[%s376 + $0x92] sm:$0xff]
        %v688 = vld [vmem:[%s376 + $0x9a] sm:$0xff]
        %v689 = vld [vmem:[%s376 + $0xaa] sm:$0xff]
        %v690 = vld [vmem:[%s376 + $0xb2] sm:$0xff]
        %v691 = vld [vmem:[%s376 + $0xc2] sm:$0xff]
        %v692 = vld [vmem:[%s376 + $0xca] sm:$0xff]
        %v693 = vld [vmem:[%s376 + $0xda] sm:$0xff]
        %v694 = vld [vmem:[%s376 + $0xe2] sm:$0xff]
        %v695 = vld [vmem:[%s230 + $0x2] sm:$0x1]
        %v696 = vperm.slane %v695, 0
        %v697 = vmul.f32 %v696, %v675
        %v698 = vmul.f32 %v696, %v676
        %v699 = vmul.f32 %v696, %v677
        %v700 = vmul.f32 %v696, %v678
        %v701 = vmul.f32 %v696, %v679
        %v702 = vmul.f32 %v696, %v680
        %v703 = vmul.f32 %v696, %v681
        %v704 = vmul.f32 %v696, %v682
        %v705 = vadd.f32 %v667, %v697
        %v706 = vadd.f32 %v668, %v698
        %v707 = vadd.f32 %v669, %v699
        %v708 = vadd.f32 %v670, %v700
        %v709 = vadd.f32 %v671, %v701
        %v710 = vadd.f32 %v672, %v702
        %v711 = vadd.f32 %v673, %v703
        %v712 = vadd.f32 %v674, %v704
        %v713 = vld [vmem:[%s415 + $0x2] sm:$0x1]
        %v714 = vperm.slane %v713, 0
        %v715 = vmul.f32 %v714, %v677
        %v716 = vmul.f32 %v714, %v678
        %v717 = vmul.f32 %v714, %v679
        %v718 = vmul.f32 %v714, %v680
        %v719 = vmul.f32 %v714, %v681
        %v720 = vmul.f32 %v714, %v682
        %v721 = vmul.f32 %v714, %v683
        %v722 = vmul.f32 %v714, %v684
        %v723 = vadd.f32 %v705, %v715
        %v724 = vadd.f32 %v706, %v716
        %v725 = vadd.f32 %v707, %v717
        %v726 = vadd.f32 %v708, %v718
        %v727 = vadd.f32 %v709, %v719
        %v728 = vadd.f32 %v710, %v720
        %v729 = vadd.f32 %v711, %v721
        %v730 = vadd.f32 %v712, %v722
        %v731 = vld [vmem:[%s434 + $0x2] sm:$0x1]
        %v732 = vperm.slane %v731, 0
        %v733 = vmul.f32 %v732, %v679
        %v734 = vmul.f32 %v732, %v680
        %v735 = vmul.f32 %v732, %v681
        %v736 = vmul.f32 %v732, %v682
        %v737 = vmul.f32 %v732, %v683
        %v738 = vmul.f32 %v732, %v684
        %v739 = vmul.f32 %v732, %v685
        %v740 = vmul.f32 %v732, %v686
        %v741 = vadd.f32 %v723, %v733
        %v742 = vadd.f32 %v724, %v734
        %v743 = vadd.f32 %v725, %v735
        %v744 = vadd.f32 %v726, %v736
        %v745 = vadd.f32 %v727, %v737
        %v746 = vadd.f32 %v728, %v738
        %v747 = vadd.f32 %v729, %v739
        %v748 = vadd.f32 %v730, %v740
        %v749 = vld [vmem:[%s453 + $0x2] sm:$0x1]
        %v750 = vperm.slane %v749, 0
        %v751 = vmul.f32 %v750, %v681
        %v752 = vmul.f32 %v750, %v682
        %v753 = vmul.f32 %v750, %v683
        %v754 = vmul.f32 %v750, %v684
        %v755 = vmul.f32 %v750, %v685
        %v756 = vmul.f32 %v750, %v686
        %v757 = vmul.f32 %v750, %v687
        %v758 = vmul.f32 %v750, %v688
        %v759 = vadd.f32 %v741, %v751
        %v760 = vadd.f32 %v742, %v752
        %v761 = vadd.f32 %v743, %v753
        %v762 = vadd.f32 %v744, %v754
        %v763 = vadd.f32 %v745, %v755
        %v764 = vadd.f32 %v746, %v756
        %v765 = vadd.f32 %v747, %v757
        %v766 = vadd.f32 %v748, %v758
        %v767 = vld [vmem:[%s472 + $0x2] sm:$0x1]
        %v768 = vperm.slane %v767, 0
        %v769 = vmul.f32 %v768, %v683
        %v770 = vmul.f32 %v768, %v684
        %v771 = vmul.f32 %v768, %v685
        %v772 = vmul.f32 %v768, %v686
        %v773 = vmul.f32 %v768, %v687
        %v774 = vmul.f32 %v768, %v688
        %v775 = vmul.f32 %v768, %v689
        %v776 = vmul.f32 %v768, %v690
        %v777 = vadd.f32 %v759, %v769
        %v778 = vadd.f32 %v760, %v770
        %v779 = vadd.f32 %v761, %v771
        %v780 = vadd.f32 %v762, %v772
        %v781 = vadd.f32 %v763, %v773
        %v782 = vadd.f32 %v764, %v774
        %v783 = vadd.f32 %v765, %v775
        %v784 = vadd.f32 %v766, %v776
        %v785 = vld [vmem:[%s491 + $0x2] sm:$0x1]
        %v786 = vperm.slane %v785, 0
        %v787 = vmul.f32 %v786, %v685
        %v788 = vmul.f32 %v786, %v686
        %v789 = vmul.f32 %v786, %v687
        %v790 = vmul.f32 %v786, %v688
        %v791 = vmul.f32 %v786, %v689
        %v792 = vmul.f32 %v786, %v690
        %v793 = vmul.f32 %v786, %v691
        %v794 = vmul.f32 %v786, %v692
        %v795 = vadd.f32 %v777, %v787
        %v796 = vadd.f32 %v778, %v788
        %v797 = vadd.f32 %v779, %v789
        %v798 = vadd.f32 %v780, %v790
        %v799 = vadd.f32 %v781, %v791
        %v800 = vadd.f32 %v782, %v792
        %v801 = vadd.f32 %v783, %v793
        %v802 = vadd.f32 %v784, %v794
        %v803 = vld [vmem:[%s510 + $0x2] sm:$0x1]
        %v804 = vperm.slane %v803, 0
        %v805 = vmul.f32 %v804, %v687
        %v806 = vmul.f32 %v804, %v688
        %v807 = vmul.f32 %v804, %v689
        %v808 = vmul.f32 %v804, %v690
        %v809 = vmul.f32 %v804, %v691
        %v810 = vmul.f32 %v804, %v692
        %v811 = vmul.f32 %v804, %v693
        %v812 = vmul.f32 %v804, %v694
        %v813 = vadd.f32 %v795, %v805
        %v814 = vadd.f32 %v796, %v806
        %v815 = vadd.f32 %v797, %v807
        %v816 = vadd.f32 %v798, %v808
        %v817 = vadd.f32 %v799, %v809
        %v818 = vadd.f32 %v800, %v810
        %v819 = vadd.f32 %v801, %v811
        %v820 = vadd.f32 %v802, %v812
        %v821 = vld [vmem:[%s376 + $0x3] sm:$0xff]
        %v822 = vld [vmem:[%s376 + $0xb] sm:$0xff]
        %v823 = vld [vmem:[%s376 + $0x1b] sm:$0xff]
        %v824 = vld [vmem:[%s376 + $0x23] sm:$0xff]
        %v825 = vld [vmem:[%s376 + $0x33] sm:$0xff]
        %v826 = vld [vmem:[%s376 + $0x3b] sm:$0xff]
        %v827 = vld [vmem:[%s376 + $0x4b] sm:$0xff]
        %v828 = vld [vmem:[%s376 + $0x53] sm:$0xff]
        %v829 = vld [vmem:[%s376 + $0x63] sm:$0xff]
        %v830 = vld [vmem:[%s376 + $0x6b] sm:$0xff]
        %v831 = vld [vmem:[%s376 + $0x7b] sm:$0xff]
        %v832 = vld [vmem:[%s376 + $0x83] sm:$0xff]
        %v833 = vld [vmem:[%s376 + $0x93] sm:$0xff]
        %v834 = vld [vmem:[%s376 + $0x9b] sm:$0xff]
        %v835 = vld [vmem:[%s376 + $0xab] sm:$0xff]
        %v836 = vld [vmem:[%s376 + $0xb3] sm:$0xff]
        %v837 = vld [vmem:[%s376 + $0xc3] sm:$0xff]
        %v838 = vld [vmem:[%s376 + $0xcb] sm:$0xff]
        %v839 = vld [vmem:[%s376 + $0xdb] sm:$0xff]
        %v840 = vld [vmem:[%s376 + $0xe3] sm:$0xff]
        %v841 = vld [vmem:[%s230 + $0x3] sm:$0x1]
        %v842 = vperm.slane %v841, 0
        %v843 = vmul.f32 %v842, %v821
        %v844 = vmul.f32 %v842, %v822
        %v845 = vmul.f32 %v842, %v823
        %v846 = vmul.f32 %v842, %v824
        %v847 = vmul.f32 %v842, %v825
        %v848 = vmul.f32 %v842, %v826
        %v849 = vmul.f32 %v842, %v827
        %v850 = vmul.f32 %v842, %v828
        %v851 = vadd.f32 %v813, %v843
        %v852 = vadd.f32 %v814, %v844
        %v853 = vadd.f32 %v815, %v845
        %v854 = vadd.f32 %v816, %v846
        %v855 = vadd.f32 %v817, %v847
        %v856 = vadd.f32 %v818, %v848
        %v857 = vadd.f32 %v819, %v849
        %v858 = vadd.f32 %v820, %v850
        %v859 = vld [vmem:[%s415 + $0x3] sm:$0x1]
        %v860 = vperm.slane %v859, 0
        %v861 = vmul.f32 %v860, %v823
        %v862 = vmul.f32 %v860, %v824
        %v863 = vmul.f32 %v860, %v825
        %v864 = vmul.f32 %v860, %v826
        %v865 = vmul.f32 %v860, %v827
        %v866 = vmul.f32 %v860, %v828
        %v867 = vmul.f32 %v860, %v829
        %v868 = vmul.f32 %v860, %v830
        %v869 = vadd.f32 %v851, %v861
        %v870 = vadd.f32 %v852, %v862
        %v871 = vadd.f32 %v853, %v863
        %v872 = vadd.f32 %v854, %v864
        %v873 = vadd.f32 %v855, %v865
        %v874 = vadd.f32 %v856, %v866
        %v875 = vadd.f32 %v857, %v867
        %v876 = vadd.f32 %v858, %v868
        %v877 = vld [vmem:[%s434 + $0x3] sm:$0x1]
        %v878 = vperm.slane %v877, 0
        %v879 = vmul.f32 %v878, %v825
        %v880 = vmul.f32 %v878, %v826
        %v881 = vmul.f32 %v878, %v827
        %v882 = vmul.f32 %v878, %v828
        %v883 = vmul.f32 %v878, %v829
        %v884 = vmul.f32 %v878, %v830
        %v885 = vmul.f32 %v878, %v831
        %v886 = vmul.f32 %v878, %v832
        %v887 = vadd.f32 %v869, %v879
        %v888 = vadd.f32 %v870, %v880
        %v889 = vadd.f32 %v871, %v881
        %v890 = vadd.f32 %v872, %v882
        %v891 = vadd.f32 %v873, %v883
        %v892 = vadd.f32 %v874, %v884
        %v893 = vadd.f32 %v875, %v885
        %v894 = vadd.f32 %v876, %v886
        %v895 = vld [vmem:[%s453 + $0x3] sm:$0x1]
        %v896 = vperm.slane %v895, 0
        %v897 = vmul.f32 %v896, %v827
        %v898 = vmul.f32 %v896, %v828
        %v899 = vmul.f32 %v896, %v829
        %v900 = vmul.f32 %v896, %v830
        %v901 = vmul.f32 %v896, %v831
        %v902 = vmul.f32 %v896, %v832
        %v903 = vmul.f32 %v896, %v833
        %v904 = vmul.f32 %v896, %v834
        %v905 = vadd.f32 %v887, %v897
        %v906 = vadd.f32 %v888, %v898
        %v907 = vadd.f32 %v889, %v899
        %v908 = vadd.f32 %v890, %v900
        %v909 = vadd.f32 %v891, %v901
        %v910 = vadd.f32 %v892, %v902
        %v911 = vadd.f32 %v893, %v903
        %v912 = vadd.f32 %v894, %v904
        %v913 = vld [vmem:[%s472 + $0x3] sm:$0x1]
        %v914 = vperm.slane %v913, 0
        %v915 = vmul.f32 %v914, %v829
        %v916 = vmul.f32 %v914, %v830
        %v917 = vmul.f32 %v914, %v831
        %v918 = vmul.f32 %v914, %v832
        %v919 = vmul.f32 %v914, %v833
        %v920 = vmul.f32 %v914, %v834
        %v921 = vmul.f32 %v914, %v835
        %v922 = vmul.f32 %v914, %v836
        %v923 = vadd.f32 %v905, %v915
        %v924 = vadd.f32 %v906, %v916
        %v925 = vadd.f32 %v907, %v917
        %v926 = vadd.f32 %v908, %v918
        %v927 = vadd.f32 %v909, %v919
        %v928 = vadd.f32 %v910, %v920
        %v929 = vadd.f32 %v911, %v921
        %v930 = vadd.f32 %v912, %v922
        %v931 = vld [vmem:[%s491 + $0x3] sm:$0x1]
        %v932 = vperm.slane %v931, 0
        %v933 = vmul.f32 %v932, %v831
        %v934 = vmul.f32 %v932, %v832
        %v935 = vmul.f32 %v932, %v833
        %v936 = vmul.f32 %v932, %v834
        %v937 = vmul.f32 %v932, %v835
        %v938 = vmul.f32 %v932, %v836
        %v939 = vmul.f32 %v932, %v837
        %v940 = vmul.f32 %v932, %v838
        %v941 = vadd.f32 %v923, %v933
        %v942 = vadd.f32 %v924, %v934
        %v943 = vadd.f32 %v925, %v935
        %v944 = vadd.f32 %v926, %v936
        %v945 = vadd.f32 %v927, %v937
        %v946 = vadd.f32 %v928, %v938
        %v947 = vadd.f32 %v929, %v939
        %v948 = vadd.f32 %v930, %v940
        %v949 = vld [vmem:[%s510 + $0x3] sm:$0x1]
        %v950 = vperm.slane %v949, 0
        %v951 = vmul.f32 %v950, %v833
        %v952 = vmul.f32 %v950, %v834
        %v953 = vmul.f32 %v950, %v835
        %v954 = vmul.f32 %v950, %v836
        %v955 = vmul.f32 %v950, %v837
        %v956 = vmul.f32 %v950, %v838
        %v957 = vmul.f32 %v950, %v839
        %v958 = vmul.f32 %v950, %v840
        %v959 = vadd.f32 %v941, %v951
        %v960 = vadd.f32 %v942, %v952
        %v961 = vadd.f32 %v943, %v953
        %v962 = vadd.f32 %v944, %v954
        %v963 = vadd.f32 %v945, %v955
        %v964 = vadd.f32 %v946, %v956
        %v965 = vadd.f32 %v947, %v957
        %v966 = vadd.f32 %v948, %v958
        %v967 = vld [vmem:[%s376 + $0x4] sm:$0xff]
        %v968 = vld [vmem:[%s376 + $0xc] sm:$0xff]
        %v969 = vld [vmem:[%s376 + $0x1c] sm:$0xff]
        %v970 = vld [vmem:[%s376 + $0x24] sm:$0xff]
        %v971 = vld [vmem:[%s376 + $0x34] sm:$0xff]
        %v972 = vld [vmem:[%s376 + $0x3c] sm:$0xff]
        %v973 = vld [vmem:[%s376 + $0x4c] sm:$0xff]
        %v974 = vld [vmem:[%s376 + $0x54] sm:$0xff]
        %v975 = vld [vmem:[%s376 + $0x64] sm:$0xff]
        %v976 = vld [vmem:[%s376 + $0x6c] sm:$0xff]
        %v977 = vld [vmem:[%s376 + $0x7c] sm:$0xff]
        %v978 = vld [vmem:[%s376 + $0x84] sm:$0xff]
        %v979 = vld [vmem:[%s376 + $0x94] sm:$0xff]
        %v980 = vld [vmem:[%s376 + $0x9c] sm:$0xff]
        %v981 = vld [vmem:[%s376 + $0xac] sm:$0xff]
        %v982 = vld [vmem:[%s376 + $0xb4] sm:$0xff]
        %v983 = vld [vmem:[%s376 + $0xc4] sm:$0xff]
        %v984 = vld [vmem:[%s376 + $0xcc] sm:$0xff]
        %v985 = vld [vmem:[%s376 + $0xdc] sm:$0xff]
        %v986 = vld [vmem:[%s376 + $0xe4] sm:$0xff]
        %v987 = vld [vmem:[%s230 + $0x4] sm:$0x1]
        %v988 = vperm.slane %v987, 0
        %v989 = vmul.f32 %v988, %v967
        %v990 = vmul.f32 %v988, %v968
        %v991 = vmul.f32 %v988, %v969
        %v992 = vmul.f32 %v988, %v970
        %v993 = vmul.f32 %v988, %v971
        %v994 = vmul.f32 %v988, %v972
        %v995 = vmul.f32 %v988, %v973
        %v996 = vmul.f32 %v988, %v974
        %v997 = vadd.f32 %v959, %v989
        %v998 = vadd.f32 %v960, %v990
        %v999 = vadd.f32 %v961, %v991
        %v1000 = vadd.f32 %v962, %v992
        %v1001 = vadd.f32 %v963, %v993
        %v1002 = vadd.f32 %v964, %v994
        %v1003 = vadd.f32 %v965, %v995
        %v1004 = vadd.f32 %v966, %v996
        %v1005 = vld [vmem:[%s415 + $0x4] sm:$0x1]
        %v1006 = vperm.slane %v1005, 0
        %v1007 = vmul.f32 %v1006, %v969
        %v1008 = vmul.f32 %v1006, %v970
        %v1009 = vmul.f32 %v1006, %v971
        %v1010 = vmul.f32 %v1006, %v972
        %v1011 = vmul.f32 %v1006, %v973
        %v1012 = vmul.f32 %v1006, %v974
        %v1013 = vmul.f32 %v1006, %v975
        %v1014 = vmul.f32 %v1006, %v976
        %v1015 = vadd.f32 %v997, %v1007
        %v1016 = vadd.f32 %v998, %v1008
        %v1017 = vadd.f32 %v999, %v1009
        %v1018 = vadd.f32 %v1000, %v1010
        %v1019 = vadd.f32 %v1001, %v1011
        %v1020 = vadd.f32 %v1002, %v1012
        %v1021 = vadd.f32 %v1003, %v1013
        %v1022 = vadd.f32 %v1004, %v1014
        %v1023 = vld [vmem:[%s434 + $0x4] sm:$0x1]
        %v1024 = vperm.slane %v1023, 0
        %v1025 = vmul.f32 %v1024, %v971
        %v1026 = vmul.f32 %v1024, %v972
        %v1027 = vmul.f32 %v1024, %v973
        %v1028 = vmul.f32 %v1024, %v974
        %v1029 = vmul.f32 %v1024, %v975
        %v1030 = vmul.f32 %v1024, %v976
        %v1031 = vmul.f32 %v1024, %v977
        %v1032 = vmul.f32 %v1024, %v978
        %v1033 = vadd.f32 %v1015, %v1025
        %v1034 = vadd.f32 %v1016, %v1026
        %v1035 = vadd.f32 %v1017, %v1027
        %v1036 = vadd.f32 %v1018, %v1028
        %v1037 = vadd.f32 %v1019, %v1029
        %v1038 = vadd.f32 %v1020, %v1030
        %v1039 = vadd.f32 %v1021, %v1031
        %v1040 = vadd.f32 %v1022, %v1032
        %v1041 = vld [vmem:[%s453 + $0x4] sm:$0x1]
        %v1042 = vperm.slane %v1041, 0
        %v1043 = vmul.f32 %v1042, %v973
        %v1044 = vmul.f32 %v1042, %v974
        %v1045 = vmul.f32 %v1042, %v975
        %v1046 = vmul.f32 %v1042, %v976
        %v1047 = vmul.f32 %v1042, %v977
        %v1048 = vmul.f32 %v1042, %v978
        %v1049 = vmul.f32 %v1042, %v979
        %v1050 = vmul.f32 %v1042, %v980
        %v1051 = vadd.f32 %v1033, %v1043
        %v1052 = vadd.f32 %v1034, %v1044
        %v1053 = vadd.f32 %v1035, %v1045
        %v1054 = vadd.f32 %v1036, %v1046
        %v1055 = vadd.f32 %v1037, %v1047
        %v1056 = vadd.f32 %v1038, %v1048
        %v1057 = vadd.f32 %v1039, %v1049
        %v1058 = vadd.f32 %v1040, %v1050
        %v1059 = vld [vmem:[%s472 + $0x4] sm:$0x1]
        %v1060 = vperm.slane %v1059, 0
        %v1061 = vmul.f32 %v1060, %v975
        %v1062 = vmul.f32 %v1060, %v976
        %v1063 = vmul.f32 %v1060, %v977
        %v1064 = vmul.f32 %v1060, %v978
        %v1065 = vmul.f32 %v1060, %v979
        %v1066 = vmul.f32 %v1060, %v980
        %v1067 = vmul.f32 %v1060, %v981
        %v1068 = vmul.f32 %v1060, %v982
        %v1069 = vadd.f32 %v1051, %v1061
        %v1070 = vadd.f32 %v1052, %v1062
        %v1071 = vadd.f32 %v1053, %v1063
        %v1072 = vadd.f32 %v1054, %v1064
        %v1073 = vadd.f32 %v1055, %v1065
        %v1074 = vadd.f32 %v1056, %v1066
        %v1075 = vadd.f32 %v1057, %v1067
        %v1076 = vadd.f32 %v1058, %v1068
        %v1077 = vld [vmem:[%s491 + $0x4] sm:$0x1]
        %v1078 = vperm.slane %v1077, 0
        %v1079 = vmul.f32 %v1078, %v977
        %v1080 = vmul.f32 %v1078, %v978
        %v1081 = vmul.f32 %v1078, %v979
        %v1082 = vmul.f32 %v1078, %v980
        %v1083 = vmul.f32 %v1078, %v981
        %v1084 = vmul.f32 %v1078, %v982
        %v1085 = vmul.f32 %v1078, %v983
        %v1086 = vmul.f32 %v1078, %v984
        %v1087 = vadd.f32 %v1069, %v1079
        %v1088 = vadd.f32 %v1070, %v1080
        %v1089 = vadd.f32 %v1071, %v1081
        %v1090 = vadd.f32 %v1072, %v1082
        %v1091 = vadd.f32 %v1073, %v1083
        %v1092 = vadd.f32 %v1074, %v1084
        %v1093 = vadd.f32 %v1075, %v1085
        %v1094 = vadd.f32 %v1076, %v1086
        %v1095 = vld [vmem:[%s510 + $0x4] sm:$0x1]
        %v1096 = vperm.slane %v1095, 0
        %v1097 = vmul.f32 %v1096, %v979
        %v1098 = vmul.f32 %v1096, %v980
        %v1099 = vmul.f32 %v1096, %v981
        %v1100 = vmul.f32 %v1096, %v982
        %v1101 = vmul.f32 %v1096, %v983
        %v1102 = vmul.f32 %v1096, %v984
        %v1103 = vmul.f32 %v1096, %v985
        %v1104 = vmul.f32 %v1096, %v986
        %v1105 = vadd.f32 %v1087, %v1097
        %v1106 = vadd.f32 %v1088, %v1098
        %v1107 = vadd.f32 %v1089, %v1099
        %v1108 = vadd.f32 %v1090, %v1100
        %v1109 = vadd.f32 %v1091, %v1101
        %v1110 = vadd.f32 %v1092, %v1102
        %v1111 = vadd.f32 %v1093, %v1103
        %v1112 = vadd.f32 %v1094, %v1104
        %v1113 = vld [vmem:[%s376 + $0x5] sm:$0xff]
        %v1114 = vld [vmem:[%s376 + $0xd] sm:$0xff]
        %v1115 = vld [vmem:[%s376 + $0x1d] sm:$0xff]
        %v1116 = vld [vmem:[%s376 + $0x25] sm:$0xff]
        %v1117 = vld [vmem:[%s376 + $0x35] sm:$0xff]
        %v1118 = vld [vmem:[%s376 + $0x3d] sm:$0xff]
        %v1119 = vld [vmem:[%s376 + $0x4d] sm:$0xff]
        %v1120 = vld [vmem:[%s376 + $0x55] sm:$0xff]
        %v1121 = vld [vmem:[%s376 + $0x65] sm:$0xff]
        %v1122 = vld [vmem:[%s376 + $0x6d] sm:$0xff]
        %v1123 = vld [vmem:[%s376 + $0x7d] sm:$0xff]
        %v1124 = vld [vmem:[%s376 + $0x85] sm:$0xff]
        %v1125 = vld [vmem:[%s376 + $0x95] sm:$0xff]
        %v1126 = vld [vmem:[%s376 + $0x9d] sm:$0xff]
        %v1127 = vld [vmem:[%s376 + $0xad] sm:$0xff]
        %v1128 = vld [vmem:[%s376 + $0xb5] sm:$0xff]
        %v1129 = vld [vmem:[%s376 + $0xc5] sm:$0xff]
        %v1130 = vld [vmem:[%s376 + $0xcd] sm:$0xff]
        %v1131 = vld [vmem:[%s376 + $0xdd] sm:$0xff]
        %v1132 = vld [vmem:[%s376 + $0xe5] sm:$0xff]
        %v1133 = vld [vmem:[%s230 + $0x5] sm:$0x1]
        %v1134 = vperm.slane %v1133, 0
        %v1135 = vmul.f32 %v1134, %v1113
        %v1136 = vmul.f32 %v1134, %v1114
        %v1137 = vmul.f32 %v1134, %v1115
        %v1138 = vmul.f32 %v1134, %v1116
        %v1139 = vmul.f32 %v1134, %v1117
        %v1140 = vmul.f32 %v1134, %v1118
        %v1141 = vmul.f32 %v1134, %v1119
        %v1142 = vmul.f32 %v1134, %v1120
        %v1143 = vadd.f32 %v1105, %v1135
        %v1144 = vadd.f32 %v1106, %v1136
        %v1145 = vadd.f32 %v1107, %v1137
        %v1146 = vadd.f32 %v1108, %v1138
        %v1147 = vadd.f32 %v1109, %v1139
        %v1148 = vadd.f32 %v1110, %v1140
        %v1149 = vadd.f32 %v1111, %v1141
        %v1150 = vadd.f32 %v1112, %v1142
        %v1151 = vld [vmem:[%s415 + $0x5] sm:$0x1]
        %v1152 = vperm.slane %v1151, 0
        %v1153 = vmul.f32 %v1152, %v1115
        %v1154 = vmul.f32 %v1152, %v1116
        %v1155 = vmul.f32 %v1152, %v1117
        %v1156 = vmul.f32 %v1152, %v1118
        %v1157 = vmul.f32 %v1152, %v1119
        %v1158 = vmul.f32 %v1152, %v1120
        %v1159 = vmul.f32 %v1152, %v1121
        %v1160 = vmul.f32 %v1152, %v1122
        %v1161 = vadd.f32 %v1143, %v1153
        %v1162 = vadd.f32 %v1144, %v1154
        %v1163 = vadd.f32 %v1145, %v1155
        %v1164 = vadd.f32 %v1146, %v1156
        %v1165 = vadd.f32 %v1147, %v1157
        %v1166 = vadd.f32 %v1148, %v1158
        %v1167 = vadd.f32 %v1149, %v1159
        %v1168 = vadd.f32 %v1150, %v1160
        %v1169 = vld [vmem:[%s434 + $0x5] sm:$0x1]
        %v1170 = vperm.slane %v1169, 0
        %v1171 = vmul.f32 %v1170, %v1117
        %v1172 = vmul.f32 %v1170, %v1118
        %v1173 = vmul.f32 %v1170, %v1119
        %v1174 = vmul.f32 %v1170, %v1120
        %v1175 = vmul.f32 %v1170, %v1121
        %v1176 = vmul.f32 %v1170, %v1122
        %v1177 = vmul.f32 %v1170, %v1123
        %v1178 = vmul.f32 %v1170, %v1124
        %v1179 = vadd.f32 %v1161, %v1171
        %v1180 = vadd.f32 %v1162, %v1172
        %v1181 = vadd.f32 %v1163, %v1173
        %v1182 = vadd.f32 %v1164, %v1174
        %v1183 = vadd.f32 %v1165, %v1175
        %v1184 = vadd.f32 %v1166, %v1176
        %v1185 = vadd.f32 %v1167, %v1177
        %v1186 = vadd.f32 %v1168, %v1178
        %v1187 = vld [vmem:[%s453 + $0x5] sm:$0x1]
        %v1188 = vperm.slane %v1187, 0
        %v1189 = vmul.f32 %v1188, %v1119
        %v1190 = vmul.f32 %v1188, %v1120
        %v1191 = vmul.f32 %v1188, %v1121
        %v1192 = vmul.f32 %v1188, %v1122
        %v1193 = vmul.f32 %v1188, %v1123
        %v1194 = vmul.f32 %v1188, %v1124
        %v1195 = vmul.f32 %v1188, %v1125
        %v1196 = vmul.f32 %v1188, %v1126
        %v1197 = vadd.f32 %v1179, %v1189
        %v1198 = vadd.f32 %v1180, %v1190
        %v1199 = vadd.f32 %v1181, %v1191
        %v1200 = vadd.f32 %v1182, %v1192
        %v1201 = vadd.f32 %v1183, %v1193
        %v1202 = vadd.f32 %v1184, %v1194
        %v1203 = vadd.f32 %v1185, %v1195
        %v1204 = vadd.f32 %v1186, %v1196
        %v1205 = vld [vmem:[%s472 + $0x5] sm:$0x1]
        %v1206 = vperm.slane %v1205, 0
        %v1207 = vmul.f32 %v1206, %v1121
        %v1208 = vmul.f32 %v1206, %v1122
        %v1209 = vmul.f32 %v1206, %v1123
        %v1210 = vmul.f32 %v1206, %v1124
        %v1211 = vmul.f32 %v1206, %v1125
        %v1212 = vmul.f32 %v1206, %v1126
        %v1213 = vmul.f32 %v1206, %v1127
        %v1214 = vmul.f32 %v1206, %v1128
        %v1215 = vadd.f32 %v1197, %v1207
        %v1216 = vadd.f32 %v1198, %v1208
        %v1217 = vadd.f32 %v1199, %v1209
        %v1218 = vadd.f32 %v1200, %v1210
        %v1219 = vadd.f32 %v1201, %v1211
        %v1220 = vadd.f32 %v1202, %v1212
        %v1221 = vadd.f32 %v1203, %v1213
        %v1222 = vadd.f32 %v1204, %v1214
        %v1223 = vld [vmem:[%s491 + $0x5] sm:$0x1]
        %v1224 = vperm.slane %v1223, 0
        %v1225 = vmul.f32 %v1224, %v1123
        %v1226 = vmul.f32 %v1224, %v1124
        %v1227 = vmul.f32 %v1224, %v1125
        %v1228 = vmul.f32 %v1224, %v1126
        %v1229 = vmul.f32 %v1224, %v1127
        %v1230 = vmul.f32 %v1224, %v1128
        %v1231 = vmul.f32 %v1224, %v1129
        %v1232 = vmul.f32 %v1224, %v1130
        %v1233 = vadd.f32 %v1215, %v1225
        %v1234 = vadd.f32 %v1216, %v1226
        %v1235 = vadd.f32 %v1217, %v1227
        %v1236 = vadd.f32 %v1218, %v1228
        %v1237 = vadd.f32 %v1219, %v1229
        %v1238 = vadd.f32 %v1220, %v1230
        %v1239 = vadd.f32 %v1221, %v1231
        %v1240 = vadd.f32 %v1222, %v1232
        %v1241 = vld [vmem:[%s510 + $0x5] sm:$0x1]
        %v1242 = vperm.slane %v1241, 0
        %v1243 = vmul.f32 %v1242, %v1125
        %v1244 = vmul.f32 %v1242, %v1126
        %v1245 = vmul.f32 %v1242, %v1127
        %v1246 = vmul.f32 %v1242, %v1128
        %v1247 = vmul.f32 %v1242, %v1129
        %v1248 = vmul.f32 %v1242, %v1130
        %v1249 = vmul.f32 %v1242, %v1131
        %v1250 = vmul.f32 %v1242, %v1132
        %v1251 = vadd.f32 %v1233, %v1243
        %v1252 = vadd.f32 %v1234, %v1244
        %v1253 = vadd.f32 %v1235, %v1245
        %v1254 = vadd.f32 %v1236, %v1246
        %v1255 = vadd.f32 %v1237, %v1247
        %v1256 = vadd.f32 %v1238, %v1248
        %v1257 = vadd.f32 %v1239, %v1249
        %v1258 = vadd.f32 %v1240, %v1250
        %v1259 = vld [vmem:[%s376 + $0x6] sm:$0xff]
        %v1260 = vld [vmem:[%s376 + $0xe] sm:$0xff]
        %v1261 = vld [vmem:[%s376 + $0x1e] sm:$0xff]
        %v1262 = vld [vmem:[%s376 + $0x26] sm:$0xff]
        %v1263 = vld [vmem:[%s376 + $0x36] sm:$0xff]
        %v1264 = vld [vmem:[%s376 + $0x3e] sm:$0xff]
        %v1265 = vld [vmem:[%s376 + $0x4e] sm:$0xff]
        %v1266 = vld [vmem:[%s376 + $0x56] sm:$0xff]
        %v1267 = vld [vmem:[%s376 + $0x66] sm:$0xff]
        %v1268 = vld [vmem:[%s376 + $0x6e] sm:$0xff]
        %v1269 = vld [vmem:[%s376 + $0x7e] sm:$0xff]
        %v1270 = vld [vmem:[%s376 + $0x86] sm:$0xff]
        %v1271 = vld [vmem:[%s376 + $0x96] sm:$0xff]
        %v1272 = vld [vmem:[%s376 + $0x9e] sm:$0xff]
        %v1273 = vld [vmem:[%s376 + $0xae] sm:$0xff]
        %v1274 = vld [vmem:[%s376 + $0xb6] sm:$0xff]
        %v1275 = vld [vmem:[%s376 + $0xc6] sm:$0xff]
        %v1276 = vld [vmem:[%s376 + $0xce] sm:$0xff]
        %v1277 = vld [vmem:[%s376 + $0xde] sm:$0xff]
        %v1278 = vld [vmem:[%s376 + $0xe6] sm:$0xff]
        %v1279 = vld [vmem:[%s230 + $0x6] sm:$0x1]
        %v1280 = vperm.slane %v1279, 0
        %v1281 = vmul.f32 %v1280, %v1259
        %v1282 = vmul.f32 %v1280, %v1260
        %v1283 = vmul.f32 %v1280, %v1261
        %v1284 = vmul.f32 %v1280, %v1262
        %v1285 = vmul.f32 %v1280, %v1263
        %v1286 = vmul.f32 %v1280, %v1264
        %v1287 = vmul.f32 %v1280, %v1265
        %v1288 = vmul.f32 %v1280, %v1266
        %v1289 = vadd.f32 %v1251, %v1281
        %v1290 = vadd.f32 %v1252, %v1282
        %v1291 = vadd.f32 %v1253, %v1283
        %v1292 = vadd.f32 %v1254, %v1284
        %v1293 = vadd.f32 %v1255, %v1285
        %v1294 = vadd.f32 %v1256, %v1286
        %v1295 = vadd.f32 %v1257, %v1287
        %v1296 = vadd.f32 %v1258, %v1288
        %v1297 = vld [vmem:[%s415 + $0x6] sm:$0x1]
        %v1298 = vperm.slane %v1297, 0
        %v1299 = vmul.f32 %v1298, %v1261
        %v1300 = vmul.f32 %v1298, %v1262
        %v1301 = vmul.f32 %v1298, %v1263
        %v1302 = vmul.f32 %v1298, %v1264
        %v1303 = vmul.f32 %v1298, %v1265
        %v1304 = vmul.f32 %v1298, %v1266
        %v1305 = vmul.f32 %v1298, %v1267
        %v1306 = vmul.f32 %v1298, %v1268
        %v1307 = vadd.f32 %v1289, %v1299
        %v1308 = vadd.f32 %v1290, %v1300
        %v1309 = vadd.f32 %v1291, %v1301
        %v1310 = vadd.f32 %v1292, %v1302
        %v1311 = vadd.f32 %v1293, %v1303
        %v1312 = vadd.f32 %v1294, %v1304
        %v1313 = vadd.f32 %v1295, %v1305
        %v1314 = vadd.f32 %v1296, %v1306
        %v1315 = vld [vmem:[%s434 + $0x6] sm:$0x1]
        %v1316 = vperm.slane %v1315, 0
        %v1317 = vmul.f32 %v1316, %v1263
        %v1318 = vmul.f32 %v1316, %v1264
        %v1319 = vmul.f32 %v1316, %v1265
        %v1320 = vmul.f32 %v1316, %v1266
        %v1321 = vmul.f32 %v1316, %v1267
        %v1322 = vmul.f32 %v1316, %v1268
        %v1323 = vmul.f32 %v1316, %v1269
        %v1324 = vmul.f32 %v1316, %v1270
        %v1325 = vadd.f32 %v1307, %v1317
        %v1326 = vadd.f32 %v1308, %v1318
        %v1327 = vadd.f32 %v1309, %v1319
        %v1328 = vadd.f32 %v1310, %v1320
        %v1329 = vadd.f32 %v1311, %v1321
        %v1330 = vadd.f32 %v1312, %v1322
        %v1331 = vadd.f32 %v1313, %v1323
        %v1332 = vadd.f32 %v1314, %v1324
        %v1333 = vld [vmem:[%s453 + $0x6] sm:$0x1]
        %v1334 = vperm.slane %v1333, 0
        %v1335 = vmul.f32 %v1334, %v1265
        %v1336 = vmul.f32 %v1334, %v1266
        %v1337 = vmul.f32 %v1334, %v1267
        %v1338 = vmul.f32 %v1334, %v1268
        %v1339 = vmul.f32 %v1334, %v1269
        %v1340 = vmul.f32 %v1334, %v1270
        %v1341 = vmul.f32 %v1334, %v1271
        %v1342 = vmul.f32 %v1334, %v1272
        %v1343 = vadd.f32 %v1325, %v1335
        %v1344 = vadd.f32 %v1326, %v1336
        %v1345 = vadd.f32 %v1327, %v1337
        %v1346 = vadd.f32 %v1328, %v1338
        %v1347 = vadd.f32 %v1329, %v1339
        %v1348 = vadd.f32 %v1330, %v1340
        %v1349 = vadd.f32 %v1331, %v1341
        %v1350 = vadd.f32 %v1332, %v1342
        %v1351 = vld [vmem:[%s472 + $0x6] sm:$0x1]
        %v1352 = vperm.slane %v1351, 0
        %v1353 = vmul.f32 %v1352, %v1267
        %v1354 = vmul.f32 %v1352, %v1268
        %v1355 = vmul.f32 %v1352, %v1269
        %v1356 = vmul.f32 %v1352, %v1270
        %v1357 = vmul.f32 %v1352, %v1271
        %v1358 = vmul.f32 %v1352, %v1272
        %v1359 = vmul.f32 %v1352, %v1273
        %v1360 = vmul.f32 %v1352, %v1274
        %v1361 = vadd.f32 %v1343, %v1353
        %v1362 = vadd.f32 %v1344, %v1354
        %v1363 = vadd.f32 %v1345, %v1355
        %v1364 = vadd.f32 %v1346, %v1356
        %v1365 = vadd.f32 %v1347, %v1357
        %v1366 = vadd.f32 %v1348, %v1358
        %v1367 = vadd.f32 %v1349, %v1359
        %v1368 = vadd.f32 %v1350, %v1360
        %v1369 = vld [vmem:[%s491 + $0x6] sm:$0x1]
        %v1370 = vperm.slane %v1369, 0
        %v1371 = vmul.f32 %v1370, %v1269
        %v1372 = vmul.f32 %v1370, %v1270
        %v1373 = vmul.f32 %v1370, %v1271
        %v1374 = vmul.f32 %v1370, %v1272
        %v1375 = vmul.f32 %v1370, %v1273
        %v1376 = vmul.f32 %v1370, %v1274
        %v1377 = vmul.f32 %v1370, %v1275
        %v1378 = vmul.f32 %v1370, %v1276
        %v1379 = vadd.f32 %v1361, %v1371
        %v1380 = vadd.f32 %v1362, %v1372
        %v1381 = vadd.f32 %v1363, %v1373
        %v1382 = vadd.f32 %v1364, %v1374
        %v1383 = vadd.f32 %v1365, %v1375
        %v1384 = vadd.f32 %v1366, %v1376
        %v1385 = vadd.f32 %v1367, %v1377
        %v1386 = vadd.f32 %v1368, %v1378
        %v1387 = vld [vmem:[%s510 + $0x6] sm:$0x1]
        %v1388 = vperm.slane %v1387, 0
        %v1389 = vmul.f32 %v1388, %v1271
        %v1390 = vmul.f32 %v1388, %v1272
        %v1391 = vmul.f32 %v1388, %v1273
        %v1392 = vmul.f32 %v1388, %v1274
        %v1393 = vmul.f32 %v1388, %v1275
        %v1394 = vmul.f32 %v1388, %v1276
        %v1395 = vmul.f32 %v1388, %v1277
        %v1396 = vmul.f32 %v1388, %v1278
        %v1397 = vadd.f32 %v1379, %v1389
        %v1398 = vadd.f32 %v1380, %v1390
        %v1399 = vadd.f32 %v1381, %v1391
        %v1400 = vadd.f32 %v1382, %v1392
        %v1401 = vadd.f32 %v1383, %v1393
        %v1402 = vadd.f32 %v1384, %v1394
        %v1403 = vadd.f32 %v1385, %v1395
        %v1404 = vadd.f32 %v1386, %v1396
        %1405 = vst [vmem:[%s218] sm:$0xff] %v1397
        %1406 = vst [vmem:[%s218 + $0x8] sm:$0xff] %v1398
        %1407 = vst [vmem:[%s218 + $0x10] sm:$0xff] %v1399
        %1408 = vst [vmem:[%s218 + $0x18] sm:$0xff] %v1400
        %1409 = vst [vmem:[%s218 + $0x20] sm:$0xff] %v1401
        %1410 = vst [vmem:[%s218 + $0x28] sm:$0xff] %v1402
        %1411 = vst [vmem:[%s218 + $0x30] sm:$0xff] %v1403
        %1412 = vst [vmem:[%s218 + $0x38] sm:$0xff] %v1404
        %s1413 = sadd.s32 %s374, 4
        %s1414 = smul.u32 %s1413, 24
        %s1415 = scalar_lea.vmem [#allocation2], %s1414
        %v1416 = vld [vmem:[%s1415] sm:$0xff]
        %v1417 = vld [vmem:[%s1415 + $0x8] sm:$0xff]
        %v1418 = vld [vmem:[%s1415 + $0x18] sm:$0xff]
        %v1419 = vld [vmem:[%s1415 + $0x20] sm:$0xff]
        %v1420 = vld [vmem:[%s1415 + $0x30] sm:$0xff]
        %v1421 = vld [vmem:[%s1415 + $0x38] sm:$0xff]
        %v1422 = vld [vmem:[%s1415 + $0x48] sm:$0xff]
        %v1423 = vld [vmem:[%s1415 + $0x50] sm:$0xff]
        %v1424 = vld [vmem:[%s1415 + $0x60] sm:$0xff]
        %v1425 = vld [vmem:[%s1415 + $0x68] sm:$0xff]
        %v1426 = vld [vmem:[%s1415 + $0x78] sm:$0xff]
        %v1427 = vld [vmem:[%s1415 + $0x80] sm:$0xff]
        %v1428 = vld [vmem:[%s1415 + $0x90] sm:$0xff]
        %v1429 = vld [vmem:[%s1415 + $0x98] sm:$0xff]
        %v1430 = vld [vmem:[%s1415 + $0xa8] sm:$0xff]
        %v1431 = vld [vmem:[%s1415 + $0xb0] sm:$0xff]
        %v1432 = vld [vmem:[%s1415 + $0xc0] sm:$0xff]
        %v1433 = vld [vmem:[%s1415 + $0xc8] sm:$0xff]
        %v1434 = vld [vmem:[%s1415 + $0xd8] sm:$0xff]
        %v1435 = vld [vmem:[%s1415 + $0xe0] sm:$0xff]
        %v1436 = vld [vmem:[%s230] sm:$0x1]
        %v1437 = vperm.slane %v1436, 0
        %v1438 = vmul.f32 %v1437, %v1416
        %v1439 = vmul.f32 %v1437, %v1417
        %v1440 = vmul.f32 %v1437, %v1418
        %v1441 = vmul.f32 %v1437, %v1419
        %v1442 = vmul.f32 %v1437, %v1420
        %v1443 = vmul.f32 %v1437, %v1421
        %v1444 = vmul.f32 %v1437, %v1422
        %v1445 = vmul.f32 %v1437, %v1423
        %v1446 = vadd.f32 %v372, %v1438
        %v1447 = vadd.f32 %v372, %v1439
        %v1448 = vadd.f32 %v372, %v1440
        %v1449 = vadd.f32 %v372, %v1441
        %v1450 = vadd.f32 %v372, %v1442
        %v1451 = vadd.f32 %v372, %v1443
        %v1452 = vadd.f32 %v372, %v1444
        %v1453 = vadd.f32 %v372, %v1445
        %v1454 = vld [vmem:[%s415] sm:$0x1]
        %v1455 = vperm.slane %v1454, 0
        %v1456 = vmul.f32 %v1455, %v1418
        %v1457 = vmul.f32 %v1455, %v1419
        %v1458 = vmul.f32 %v1455, %v1420
        %v1459 = vmul.f32 %v1455, %v1421
        %v1460 = vmul.f32 %v1455, %v1422
        %v1461 = vmul.f32 %v1455, %v1423
        %v1462 = vmul.f32 %v1455, %v1424
        %v1463 = vmul.f32 %v1455, %v1425
        %v1464 = vadd.f32 %v1446, %v1456
        %v1465 = vadd.f32 %v1447, %v1457
        %v1466 = vadd.f32 %v1448, %v1458
        %v1467 = vadd.f32 %v1449, %v1459
        %v1468 = vadd.f32 %v1450, %v1460
        %v1469 = vadd.f32 %v1451, %v1461
        %v1470 = vadd.f32 %v1452, %v1462
        %v1471 = vadd.f32 %v1453, %v1463
        %v1472 = vld [vmem:[%s434] sm:$0x1]
        %v1473 = vperm.slane %v1472, 0
        %v1474 = vmul.f32 %v1473, %v1420
        %v1475 = vmul.f32 %v1473, %v1421
        %v1476 = vmul.f32 %v1473, %v1422
        %v1477 = vmul.f32 %v1473, %v1423
        %v1478 = vmul.f32 %v1473, %v1424
        %v1479 = vmul.f32 %v1473, %v1425
        %v1480 = vmul.f32 %v1473, %v1426
        %v1481 = vmul.f32 %v1473, %v1427
        %v1482 = vadd.f32 %v1464, %v1474
        %v1483 = vadd.f32 %v1465, %v1475
        %v1484 = vadd.f32 %v1466, %v1476
        %v1485 = vadd.f32 %v1467, %v1477
        %v1486 = vadd.f32 %v1468, %v1478
        %v1487 = vadd.f32 %v1469, %v1479
        %v1488 = vadd.f32 %v1470, %v1480
        %v1489 = vadd.f32 %v1471, %v1481
        %v1490 = vld [vmem:[%s453] sm:$0x1]
        %v1491 = vperm.slane %v1490, 0
        %v1492 = vmul.f32 %v1491, %v1422
        %v1493 = vmul.f32 %v1491, %v1423
        %v1494 = vmul.f32 %v1491, %v1424
        %v1495 = vmul.f32 %v1491, %v1425
        %v1496 = vmul.f32 %v1491, %v1426
        %v1497 = vmul.f32 %v1491, %v1427
        %v1498 = vmul.f32 %v1491, %v1428
        %v1499 = vmul.f32 %v1491, %v1429
        %v1500 = vadd.f32 %v1482, %v1492
        %v1501 = vadd.f32 %v1483, %v1493
        %v1502 = vadd.f32 %v1484, %v1494
        %v1503 = vadd.f32 %v1485, %v1495
        %v1504 = vadd.f32 %v1486, %v1496
        %v1505 = vadd.f32 %v1487, %v1497
        %v1506 = vadd.f32 %v1488, %v1498
        %v1507 = vadd.f32 %v1489, %v1499
        %v1508 = vld [vmem:[%s472] sm:$0x1]
        %v1509 = vperm.slane %v1508, 0
        %v1510 = vmul.f32 %v1509, %v1424
        %v1511 = vmul.f32 %v1509, %v1425
        %v1512 = vmul.f32 %v1509, %v1426
        %v1513 = vmul.f32 %v1509, %v1427
        %v1514 = vmul.f32 %v1509, %v1428
        %v1515 = vmul.f32 %v1509, %v1429
        %v1516 = vmul.f32 %v1509, %v1430
        %v1517 = vmul.f32 %v1509, %v1431
        %v1518 = vadd.f32 %v1500, %v1510
        %v1519 = vadd.f32 %v1501, %v1511
        %v1520 = vadd.f32 %v1502, %v1512
        %v1521 = vadd.f32 %v1503, %v1513
        %v1522 = vadd.f32 %v1504, %v1514
        %v1523 = vadd.f32 %v1505, %v1515
        %v1524 = vadd.f32 %v1506, %v1516
        %v1525 = vadd.f32 %v1507, %v1517
        %v1526 = vld [vmem:[%s491] sm:$0x1]
        %v1527 = vperm.slane %v1526, 0
        %v1528 = vmul.f32 %v1527, %v1426
        %v1529 = vmul.f32 %v1527, %v1427
        %v1530 = vmul.f32 %v1527, %v1428
        %v1531 = vmul.f32 %v1527, %v1429
        %v1532 = vmul.f32 %v1527, %v1430
        %v1533 = vmul.f32 %v1527, %v1431
        %v1534 = vmul.f32 %v1527, %v1432
        %v1535 = vmul.f32 %v1527, %v1433
        %v1536 = vadd.f32 %v1518, %v1528
        %v1537 = vadd.f32 %v1519, %v1529
        %v1538 = vadd.f32 %v1520, %v1530
        %v1539 = vadd.f32 %v1521, %v1531
        %v1540 = vadd.f32 %v1522, %v1532
        %v1541 = vadd.f32 %v1523, %v1533
        %v1542 = vadd.f32 %v1524, %v1534
        %v1543 = vadd.f32 %v1525, %v1535
        %v1544 = vld [vmem:[%s510] sm:$0x1]
        %v1545 = vperm.slane %v1544, 0
        %v1546 = vmul.f32 %v1545, %v1428
        %v1547 = vmul.f32 %v1545, %v1429
        %v1548 = vmul.f32 %v1545, %v1430
        %v1549 = vmul.f32 %v1545, %v1431
        %v1550 = vmul.f32 %v1545, %v1432
        %v1551 = vmul.f32 %v1545, %v1433
        %v1552 = vmul.f32 %v1545, %v1434
        %v1553 = vmul.f32 %v1545, %v1435
        %v1554 = vadd.f32 %v1536, %v1546
        %v1555 = vadd.f32 %v1537, %v1547
        %v1556 = vadd.f32 %v1538, %v1548
        %v1557 = vadd.f32 %v1539, %v1549
        %v1558 = vadd.f32 %v1540, %v1550
        %v1559 = vadd.f32 %v1541, %v1551
        %v1560 = vadd.f32 %v1542, %v1552
        %v1561 = vadd.f32 %v1543, %v1553
        %v1562 = vld [vmem:[%s1415 + $0x1] sm:$0xff]
        %v1563 = vld [vmem:[%s1415 + $0x9] sm:$0xff]
        %v1564 = vld [vmem:[%s1415 + $0x19] sm:$0xff]
        %v1565 = vld [vmem:[%s1415 + $0x21] sm:$0xff]
        %v1566 = vld [vmem:[%s1415 + $0x31] sm:$0xff]
        %v1567 = vld [vmem:[%s1415 + $0x39] sm:$0xff]
        %v1568 = vld [vmem:[%s1415 + $0x49] sm:$0xff]
        %v1569 = vld [vmem:[%s1415 + $0x51] sm:$0xff]
        %v1570 = vld [vmem:[%s1415 + $0x61] sm:$0xff]
        %v1571 = vld [vmem:[%s1415 + $0x69] sm:$0xff]
        %v1572 = vld [vmem:[%s1415 + $0x79] sm:$0xff]
        %v1573 = vld [vmem:[%s1415 + $0x81] sm:$0xff]
        %v1574 = vld [vmem:[%s1415 + $0x91] sm:$0xff]
        %v1575 = vld [vmem:[%s1415 + $0x99] sm:$0xff]
        %v1576 = vld [vmem:[%s1415 + $0xa9] sm:$0xff]
        %v1577 = vld [vmem:[%s1415 + $0xb1] sm:$0xff]
        %v1578 = vld [vmem:[%s1415 + $0xc1] sm:$0xff]
        %v1579 = vld [vmem:[%s1415 + $0xc9] sm:$0xff]
        %v1580 = vld [vmem:[%s1415 + $0xd9] sm:$0xff]
        %v1581 = vld [vmem:[%s1415 + $0xe1] sm:$0xff]
        %v1582 = vld [vmem:[%s230 + $0x1] sm:$0x1]
        %v1583 = vperm.slane %v1582, 0
        %v1584 = vmul.f32 %v1583, %v1562
        %v1585 = vmul.f32 %v1583, %v1563
        %v1586 = vmul.f32 %v1583, %v1564
        %v1587 = vmul.f32 %v1583, %v1565
        %v1588 = vmul.f32 %v1583, %v1566
        %v1589 = vmul.f32 %v1583, %v1567
        %v1590 = vmul.f32 %v1583, %v1568
        %v1591 = vmul.f32 %v1583, %v1569
        %v1592 = vadd.f32 %v1554, %v1584
        %v1593 = vadd.f32 %v1555, %v1585
        %v1594 = vadd.f32 %v1556, %v1586
        %v1595 = vadd.f32 %v1557, %v1587
        %v1596 = vadd.f32 %v1558, %v1588
        %v1597 = vadd.f32 %v1559, %v1589
        %v1598 = vadd.f32 %v1560, %v1590
        %v1599 = vadd.f32 %v1561, %v1591
        %v1600 = vld [vmem:[%s415 + $0x1] sm:$0x1]
        %v1601 = vperm.slane %v1600, 0
        %v1602 = vmul.f32 %v1601, %v1564
        %v1603 = vmul.f32 %v1601, %v1565
        %v1604 = vmul.f32 %v1601, %v1566
        %v1605 = vmul.f32 %v1601, %v1567
        %v1606 = vmul.f32 %v1601, %v1568
        %v1607 = vmul.f32 %v1601, %v1569
        %v1608 = vmul.f32 %v1601, %v1570
        %v1609 = vmul.f32 %v1601, %v1571
        %v1610 = vadd.f32 %v1592, %v1602
        %v1611 = vadd.f32 %v1593, %v1603
        %v1612 = vadd.f32 %v1594, %v1604
        %v1613 = vadd.f32 %v1595, %v1605
        %v1614 = vadd.f32 %v1596, %v1606
        %v1615 = vadd.f32 %v1597, %v1607
        %v1616 = vadd.f32 %v1598, %v1608
        %v1617 = vadd.f32 %v1599, %v1609
        %v1618 = vld [vmem:[%s434 + $0x1] sm:$0x1]
        %v1619 = vperm.slane %v1618, 0
        %v1620 = vmul.f32 %v1619, %v1566
        %v1621 = vmul.f32 %v1619, %v1567
        %v1622 = vmul.f32 %v1619, %v1568
        %v1623 = vmul.f32 %v1619, %v1569
        %v1624 = vmul.f32 %v1619, %v1570
        %v1625 = vmul.f32 %v1619, %v1571
        %v1626 = vmul.f32 %v1619, %v1572
        %v1627 = vmul.f32 %v1619, %v1573
        %v1628 = vadd.f32 %v1610, %v1620
        %v1629 = vadd.f32 %v1611, %v1621
        %v1630 = vadd.f32 %v1612, %v1622
        %v1631 = vadd.f32 %v1613, %v1623
        %v1632 = vadd.f32 %v1614, %v1624
        %v1633 = vadd.f32 %v1615, %v1625
        %v1634 = vadd.f32 %v1616, %v1626
        %v1635 = vadd.f32 %v1617, %v1627
        %v1636 = vld [vmem:[%s453 + $0x1] sm:$0x1]
        %v1637 = vperm.slane %v1636, 0
        %v1638 = vmul.f32 %v1637, %v1568
        %v1639 = vmul.f32 %v1637, %v1569
        %v1640 = vmul.f32 %v1637, %v1570
        %v1641 = vmul.f32 %v1637, %v1571
        %v1642 = vmul.f32 %v1637, %v1572
        %v1643 = vmul.f32 %v1637, %v1573
        %v1644 = vmul.f32 %v1637, %v1574
        %v1645 = vmul.f32 %v1637, %v1575
        %v1646 = vadd.f32 %v1628, %v1638
        %v1647 = vadd.f32 %v1629, %v1639
        %v1648 = vadd.f32 %v1630, %v1640
        %v1649 = vadd.f32 %v1631, %v1641
        %v1650 = vadd.f32 %v1632, %v1642
        %v1651 = vadd.f32 %v1633, %v1643
        %v1652 = vadd.f32 %v1634, %v1644
        %v1653 = vadd.f32 %v1635, %v1645
        %v1654 = vld [vmem:[%s472 + $0x1] sm:$0x1]
        %v1655 = vperm.slane %v1654, 0
        %v1656 = vmul.f32 %v1655, %v1570
        %v1657 = vmul.f32 %v1655, %v1571
        %v1658 = vmul.f32 %v1655, %v1572
        %v1659 = vmul.f32 %v1655, %v1573
        %v1660 = vmul.f32 %v1655, %v1574
        %v1661 = vmul.f32 %v1655, %v1575
        %v1662 = vmul.f32 %v1655, %v1576
        %v1663 = vmul.f32 %v1655, %v1577
        %v1664 = vadd.f32 %v1646, %v1656
        %v1665 = vadd.f32 %v1647, %v1657
        %v1666 = vadd.f32 %v1648, %v1658
        %v1667 = vadd.f32 %v1649, %v1659
        %v1668 = vadd.f32 %v1650, %v1660
        %v1669 = vadd.f32 %v1651, %v1661
        %v1670 = vadd.f32 %v1652, %v1662
        %v1671 = vadd.f32 %v1653, %v1663
        %v1672 = vld [vmem:[%s491 + $0x1] sm:$0x1]
        %v1673 = vperm.slane %v1672, 0
        %v1674 = vmul.f32 %v1673, %v1572
        %v1675 = vmul.f32 %v1673, %v1573
        %v1676 = vmul.f32 %v1673, %v1574
        %v1677 = vmul.f32 %v1673, %v1575
        %v1678 = vmul.f32 %v1673, %v1576
        %v1679 = vmul.f32 %v1673, %v1577
        %v1680 = vmul.f32 %v1673, %v1578
        %v1681 = vmul.f32 %v1673, %v1579
        %v1682 = vadd.f32 %v1664, %v1674
        %v1683 = vadd.f32 %v1665, %v1675
        %v1684 = vadd.f32 %v1666, %v1676
        %v1685 = vadd.f32 %v1667, %v1677
        %v1686 = vadd.f32 %v1668, %v1678
        %v1687 = vadd.f32 %v1669, %v1679
        %v1688 = vadd.f32 %v1670, %v1680
        %v1689 = vadd.f32 %v1671, %v1681
        %v1690 = vld [vmem:[%s510 + $0x1] sm:$0x1]
        %v1691 = vperm.slane %v1690, 0
        %v1692 = vmul.f32 %v1691, %v1574
        %v1693 = vmul.f32 %v1691, %v1575
        %v1694 = vmul.f32 %v1691, %v1576
        %v1695 = vmul.f32 %v1691, %v1577
        %v1696 = vmul.f32 %v1691, %v1578
        %v1697 = vmul.f32 %v1691, %v1579
        %v1698 = vmul.f32 %v1691, %v1580
        %v1699 = vmul.f32 %v1691, %v1581
        %v1700 = vadd.f32 %v1682, %v1692
        %v1701 = vadd.f32 %v1683, %v1693
        %v1702 = vadd.f32 %v1684, %v1694
        %v1703 = vadd.f32 %v1685, %v1695
        %v1704 = vadd.f32 %v1686, %v1696
        %v1705 = vadd.f32 %v1687, %v1697
        %v1706 = vadd.f32 %v1688, %v1698
        %v1707 = vadd.f32 %v1689, %v1699
        %v1708 = vld [vmem:[%s1415 + $0x2] sm:$0xff]
        %v1709 = vld [vmem:[%s1415 + $0xa] sm:$0xff]
        %v1710 = vld [vmem:[%s1415 + $0x1a] sm:$0xff]
        %v1711 = vld [vmem:[%s1415 + $0x22] sm:$0xff]
        %v1712 = vld [vmem:[%s1415 + $0x32] sm:$0xff]
        %v1713 = vld [vmem:[%s1415 + $0x3a] sm:$0xff]
        %v1714 = vld [vmem:[%s1415 + $0x4a] sm:$0xff]
        %v1715 = vld [vmem:[%s1415 + $0x52] sm:$0xff]
        %v1716 = vld [vmem:[%s1415 + $0x62] sm:$0xff]
        %v1717 = vld [vmem:[%s1415 + $0x6a] sm:$0xff]
        %v1718 = vld [vmem:[%s1415 + $0x7a] sm:$0xff]
        %v1719 = vld [vmem:[%s1415 + $0x82] sm:$0xff]
        %v1720 = vld [vmem:[%s1415 + $0x92] sm:$0xff]
        %v1721 = vld [vmem:[%s1415 + $0x9a] sm:$0xff]
        %v1722 = vld [vmem:[%s1415 + $0xaa] sm:$0xff]
        %v1723 = vld [vmem:[%s1415 + $0xb2] sm:$0xff]
        %v1724 = vld [vmem:[%s1415 + $0xc2] sm:$0xff]
        %v1725 = vld [vmem:[%s1415 + $0xca] sm:$0xff]
        %v1726 = vld [vmem:[%s1415 + $0xda] sm:$0xff]
        %v1727 = vld [vmem:[%s1415 + $0xe2] sm:$0xff]
        %v1728 = vld [vmem:[%s230 + $0x2] sm:$0x1]
        %v1729 = vperm.slane %v1728, 0
        %v1730 = vmul.f32 %v1729, %v1708
        %v1731 = vmul.f32 %v1729, %v1709
        %v1732 = vmul.f32 %v1729, %v1710
        %v1733 = vmul.f32 %v1729, %v1711
        %v1734 = vmul.f32 %v1729, %v1712
        %v1735 = vmul.f32 %v1729, %v1713
        %v1736 = vmul.f32 %v1729, %v1714
        %v1737 = vmul.f32 %v1729, %v1715
        %v1738 = vadd.f32 %v1700, %v1730
        %v1739 = vadd.f32 %v1701, %v1731
        %v1740 = vadd.f32 %v1702, %v1732
        %v1741 = vadd.f32 %v1703, %v1733
        %v1742 = vadd.f32 %v1704, %v1734
        %v1743 = vadd.f32 %v1705, %v1735
        %v1744 = vadd.f32 %v1706, %v1736
        %v1745 = vadd.f32 %v1707, %v1737
        %v1746 = vld [vmem:[%s415 + $0x2] sm:$0x1]
        %v1747 = vperm.slane %v1746, 0
        %v1748 = vmul.f32 %v1747, %v1710
        %v1749 = vmul.f32 %v1747, %v1711
        %v1750 = vmul.f32 %v1747, %v1712
        %v1751 = vmul.f32 %v1747, %v1713
        %v1752 = vmul.f32 %v1747, %v1714
        %v1753 = vmul.f32 %v1747, %v1715
        %v1754 = vmul.f32 %v1747, %v1716
        %v1755 = vmul.f32 %v1747, %v1717
        %v1756 = vadd.f32 %v1738, %v1748
        %v1757 = vadd.f32 %v1739, %v1749
        %v1758 = vadd.f32 %v1740, %v1750
        %v1759 = vadd.f32 %v1741, %v1751
        %v1760 = vadd.f32 %v1742, %v1752
        %v1761 = vadd.f32 %v1743, %v1753
        %v1762 = vadd.f32 %v1744, %v1754
        %v1763 = vadd.f32 %v1745, %v1755
        %v1764 = vld [vmem:[%s434 + $0x2] sm:$0x1]
        %v1765 = vperm.slane %v1764, 0
        %v1766 = vmul.f32 %v1765, %v1712
        %v1767 = vmul.f32 %v1765, %v1713
        %v1768 = vmul.f32 %v1765, %v1714
        %v1769 = vmul.f32 %v1765, %v1715
        %v1770 = vmul.f32 %v1765, %v1716
        %v1771 = vmul.f32 %v1765, %v1717
        %v1772 = vmul.f32 %v1765, %v1718
        %v1773 = vmul.f32 %v1765, %v1719
        %v1774 = vadd.f32 %v1756, %v1766
        %v1775 = vadd.f32 %v1757, %v1767
        %v1776 = vadd.f32 %v1758, %v1768
        %v1777 = vadd.f32 %v1759, %v1769
        %v1778 = vadd.f32 %v1760, %v1770
        %v1779 = vadd.f32 %v1761, %v1771
        %v1780 = vadd.f32 %v1762, %v1772
        %v1781 = vadd.f32 %v1763, %v1773
        %v1782 = vld [vmem:[%s453 + $0x2] sm:$0x1]
        %v1783 = vperm.slane %v1782, 0
        %v1784 = vmul.f32 %v1783, %v1714
        %v1785 = vmul.f32 %v1783, %v1715
        %v1786 = vmul.f32 %v1783, %v1716
        %v1787 = vmul.f32 %v1783, %v1717
        %v1788 = vmul.f32 %v1783, %v1718
        %v1789 = vmul.f32 %v1783, %v1719
        %v1790 = vmul.f32 %v1783, %v1720
        %v1791 = vmul.f32 %v1783, %v1721
        %v1792 = vadd.f32 %v1774, %v1784
        %v1793 = vadd.f32 %v1775, %v1785
        %v1794 = vadd.f32 %v1776, %v1786
        %v1795 = vadd.f32 %v1777, %v1787
        %v1796 = vadd.f32 %v1778, %v1788
        %v1797 = vadd.f32 %v1779, %v1789
        %v1798 = vadd.f32 %v1780, %v1790
        %v1799 = vadd.f32 %v1781, %v1791
        %v1800 = vld [vmem:[%s472 + $0x2] sm:$0x1]
        %v1801 = vperm.slane %v1800, 0
        %v1802 = vmul.f32 %v1801, %v1716
        %v1803 = vmul.f32 %v1801, %v1717
        %v1804 = vmul.f32 %v1801, %v1718
        %v1805 = vmul.f32 %v1801, %v1719
        %v1806 = vmul.f32 %v1801, %v1720
        %v1807 = vmul.f32 %v1801, %v1721
        %v1808 = vmul.f32 %v1801, %v1722
        %v1809 = vmul.f32 %v1801, %v1723
        %v1810 = vadd.f32 %v1792, %v1802
        %v1811 = vadd.f32 %v1793, %v1803
        %v1812 = vadd.f32 %v1794, %v1804
        %v1813 = vadd.f32 %v1795, %v1805
        %v1814 = vadd.f32 %v1796, %v1806
        %v1815 = vadd.f32 %v1797, %v1807
        %v1816 = vadd.f32 %v1798, %v1808
        %v1817 = vadd.f32 %v1799, %v1809
        %v1818 = vld [vmem:[%s491 + $0x2] sm:$0x1]
        %v1819 = vperm.slane %v1818, 0
        %v1820 = vmul.f32 %v1819, %v1718
        %v1821 = vmul.f32 %v1819, %v1719
        %v1822 = vmul.f32 %v1819, %v1720
        %v1823 = vmul.f32 %v1819, %v1721
        %v1824 = vmul.f32 %v1819, %v1722
        %v1825 = vmul.f32 %v1819, %v1723
        %v1826 = vmul.f32 %v1819, %v1724
        %v1827 = vmul.f32 %v1819, %v1725
        %v1828 = vadd.f32 %v1810, %v1820
        %v1829 = vadd.f32 %v1811, %v1821
        %v1830 = vadd.f32 %v1812, %v1822
        %v1831 = vadd.f32 %v1813, %v1823
        %v1832 = vadd.f32 %v1814, %v1824
        %v1833 = vadd.f32 %v1815, %v1825
        %v1834 = vadd.f32 %v1816, %v1826
        %v1835 = vadd.f32 %v1817, %v1827
        %v1836 = vld [vmem:[%s510 + $0x2] sm:$0x1]
        %v1837 = vperm.slane %v1836, 0
        %v1838 = vmul.f32 %v1837, %v1720
        %v1839 = vmul.f32 %v1837, %v1721
        %v1840 = vmul.f32 %v1837, %v1722
        %v1841 = vmul.f32 %v1837, %v1723
        %v1842 = vmul.f32 %v1837, %v1724
        %v1843 = vmul.f32 %v1837, %v1725
        %v1844 = vmul.f32 %v1837, %v1726
        %v1845 = vmul.f32 %v1837, %v1727
        %v1846 = vadd.f32 %v1828, %v1838
        %v1847 = vadd.f32 %v1829, %v1839
        %v1848 = vadd.f32 %v1830, %v1840
        %v1849 = vadd.f32 %v1831, %v1841
        %v1850 = vadd.f32 %v1832, %v1842
        %v1851 = vadd.f32 %v1833, %v1843
        %v1852 = vadd.f32 %v1834, %v1844
        %v1853 = vadd.f32 %v1835, %v1845
        %v1854 = vld [vmem:[%s1415 + $0x3] sm:$0xff]
        %v1855 = vld [vmem:[%s1415 + $0xb] sm:$0xff]
        %v1856 = vld [vmem:[%s1415 + $0x1b] sm:$0xff]
        %v1857 = vld [vmem:[%s1415 + $0x23] sm:$0xff]
        %v1858 = vld [vmem:[%s1415 + $0x33] sm:$0xff]
        %v1859 = vld [vmem:[%s1415 + $0x3b] sm:$0xff]
        %v1860 = vld [vmem:[%s1415 + $0x4b] sm:$0xff]
        %v1861 = vld [vmem:[%s1415 + $0x53] sm:$0xff]
        %v1862 = vld [vmem:[%s1415 + $0x63] sm:$0xff]
        %v1863 = vld [vmem:[%s1415 + $0x6b] sm:$0xff]
        %v1864 = vld [vmem:[%s1415 + $0x7b] sm:$0xff]
        %v1865 = vld [vmem:[%s1415 + $0x83] sm:$0xff]
        %v1866 = vld [vmem:[%s1415 + $0x93] sm:$0xff]
        %v1867 = vld [vmem:[%s1415 + $0x9b] sm:$0xff]
        %v1868 = vld [vmem:[%s1415 + $0xab] sm:$0xff]
        %v1869 = vld [vmem:[%s1415 + $0xb3] sm:$0xff]
        %v1870 = vld [vmem:[%s1415 + $0xc3] sm:$0xff]
        %v1871 = vld [vmem:[%s1415 + $0xcb] sm:$0xff]
        %v1872 = vld [vmem:[%s1415 + $0xdb] sm:$0xff]
        %v1873 = vld [vmem:[%s1415 + $0xe3] sm:$0xff]
        %v1874 = vld [vmem:[%s230 + $0x3] sm:$0x1]
        %v1875 = vperm.slane %v1874, 0
        %v1876 = vmul.f32 %v1875, %v1854
        %v1877 = vmul.f32 %v1875, %v1855
        %v1878 = vmul.f32 %v1875, %v1856
        %v1879 = vmul.f32 %v1875, %v1857
        %v1880 = vmul.f32 %v1875, %v1858
        %v1881 = vmul.f32 %v1875, %v1859
        %v1882 = vmul.f32 %v1875, %v1860
        %v1883 = vmul.f32 %v1875, %v1861
        %v1884 = vadd.f32 %v1846, %v1876
        %v1885 = vadd.f32 %v1847, %v1877
        %v1886 = vadd.f32 %v1848, %v1878
        %v1887 = vadd.f32 %v1849, %v1879
        %v1888 = vadd.f32 %v1850, %v1880
        %v1889 = vadd.f32 %v1851, %v1881
        %v1890 = vadd.f32 %v1852, %v1882
        %v1891 = vadd.f32 %v1853, %v1883
        %v1892 = vld [vmem:[%s415 + $0x3] sm:$0x1]
        %v1893 = vperm.slane %v1892, 0
        %v1894 = vmul.f32 %v1893, %v1856
        %v1895 = vmul.f32 %v1893, %v1857
        %v1896 = vmul.f32 %v1893, %v1858
        %v1897 = vmul.f32 %v1893, %v1859
        %v1898 = vmul.f32 %v1893, %v1860
        %v1899 = vmul.f32 %v1893, %v1861
        %v1900 = vmul.f32 %v1893, %v1862
        %v1901 = vmul.f32 %v1893, %v1863
        %v1902 = vadd.f32 %v1884, %v1894
        %v1903 = vadd.f32 %v1885, %v1895
        %v1904 = vadd.f32 %v1886, %v1896
        %v1905 = vadd.f32 %v1887, %v1897
        %v1906 = vadd.f32 %v1888, %v1898
        %v1907 = vadd.f32 %v1889, %v1899
        %v1908 = vadd.f32 %v1890, %v1900
        %v1909 = vadd.f32 %v1891, %v1901
        %v1910 = vld [vmem:[%s434 + $0x3] sm:$0x1]
        %v1911 = vperm.slane %v1910, 0
        %v1912 = vmul.f32 %v1911, %v1858
        %v1913 = vmul.f32 %v1911, %v1859
        %v1914 = vmul.f32 %v1911, %v1860
        %v1915 = vmul.f32 %v1911, %v1861
        %v1916 = vmul.f32 %v1911, %v1862
        %v1917 = vmul.f32 %v1911, %v1863
        %v1918 = vmul.f32 %v1911, %v1864
        %v1919 = vmul.f32 %v1911, %v1865
        %v1920 = vadd.f32 %v1902, %v1912
        %v1921 = vadd.f32 %v1903, %v1913
        %v1922 = vadd.f32 %v1904, %v1914
        %v1923 = vadd.f32 %v1905, %v1915
        %v1924 = vadd.f32 %v1906, %v1916
        %v1925 = vadd.f32 %v1907, %v1917
        %v1926 = vadd.f32 %v1908, %v1918
        %v1927 = vadd.f32 %v1909, %v1919
        %v1928 = vld [vmem:[%s453 + $0x3] sm:$0x1]
        %v1929 = vperm.slane %v1928, 0
        %v1930 = vmul.f32 %v1929, %v1860
        %v1931 = vmul.f32 %v1929, %v1861
        %v1932 = vmul.f32 %v1929, %v1862
        %v1933 = vmul.f32 %v1929, %v1863
        %v1934 = vmul.f32 %v1929, %v1864
        %v1935 = vmul.f32 %v1929, %v1865
        %v1936 = vmul.f32 %v1929, %v1866
        %v1937 = vmul.f32 %v1929, %v1867
        %v1938 = vadd.f32 %v1920, %v1930
        %v1939 = vadd.f32 %v1921, %v1931
        %v1940 = vadd.f32 %v1922, %v1932
        %v1941 = vadd.f32 %v1923, %v1933
        %v1942 = vadd.f32 %v1924, %v1934
        %v1943 = vadd.f32 %v1925, %v1935
        %v1944 = vadd.f32 %v1926, %v1936
        %v1945 = vadd.f32 %v1927, %v1937
        %v1946 = vld [vmem:[%s472 + $0x3] sm:$0x1]
        %v1947 = vperm.slane %v1946, 0
        %v1948 = vmul.f32 %v1947, %v1862
        %v1949 = vmul.f32 %v1947, %v1863
        %v1950 = vmul.f32 %v1947, %v1864
        %v1951 = vmul.f32 %v1947, %v1865
        %v1952 = vmul.f32 %v1947, %v1866
        %v1953 = vmul.f32 %v1947, %v1867
        %v1954 = vmul.f32 %v1947, %v1868
        %v1955 = vmul.f32 %v1947, %v1869
        %v1956 = vadd.f32 %v1938, %v1948
        %v1957 = vadd.f32 %v1939, %v1949
        %v1958 = vadd.f32 %v1940, %v1950
        %v1959 = vadd.f32 %v1941, %v1951
        %v1960 = vadd.f32 %v1942, %v1952
        %v1961 = vadd.f32 %v1943, %v1953
        %v1962 = vadd.f32 %v1944, %v1954
        %v1963 = vadd.f32 %v1945, %v1955
        %v1964 = vld [vmem:[%s491 + $0x3] sm:$0x1]
        %v1965 = vperm.slane %v1964, 0
        %v1966 = vmul.f32 %v1965, %v1864
        %v1967 = vmul.f32 %v1965, %v1865
        %v1968 = vmul.f32 %v1965, %v1866
        %v1969 = vmul.f32 %v1965, %v1867
        %v1970 = vmul.f32 %v1965, %v1868
        %v1971 = vmul.f32 %v1965, %v1869
        %v1972 = vmul.f32 %v1965, %v1870
        %v1973 = vmul.f32 %v1965, %v1871
        %v1974 = vadd.f32 %v1956, %v1966
        %v1975 = vadd.f32 %v1957, %v1967
        %v1976 = vadd.f32 %v1958, %v1968
        %v1977 = vadd.f32 %v1959, %v1969
        %v1978 = vadd.f32 %v1960, %v1970
        %v1979 = vadd.f32 %v1961, %v1971
        %v1980 = vadd.f32 %v1962, %v1972
        %v1981 = vadd.f32 %v1963, %v1973
        %v1982 = vld [vmem:[%s510 + $0x3] sm:$0x1]
        %v1983 = vperm.slane %v1982, 0
        %v1984 = vmul.f32 %v1983, %v1866
        %v1985 = vmul.f32 %v1983, %v1867
        %v1986 = vmul.f32 %v1983, %v1868
        %v1987 = vmul.f32 %v1983, %v1869
        %v1988 = vmul.f32 %v1983, %v1870
        %v1989 = vmul.f32 %v1983, %v1871
        %v1990 = vmul.f32 %v1983, %v1872
        %v1991 = vmul.f32 %v1983, %v1873
        %v1992 = vadd.f32 %v1974, %v1984
        %v1993 = vadd.f32 %v1975, %v1985
        %v1994 = vadd.f32 %v1976, %v1986
        %v1995 = vadd.f32 %v1977, %v1987
        %v1996 = vadd.f32 %v1978, %v1988
        %v1997 = vadd.f32 %v1979, %v1989
        %v1998 = vadd.f32 %v1980, %v1990
        %v1999 = vadd.f32 %v1981, %v1991
        %v2000 = vld [vmem:[%s1415 + $0x4] sm:$0xff]
        %v2001 = vld [vmem:[%s1415 + $0xc] sm:$0xff]
        %v2002 = vld [vmem:[%s1415 + $0x1c] sm:$0xff]
        %v2003 = vld [vmem:[%s1415 + $0x24] sm:$0xff]
        %v2004 = vld [vmem:[%s1415 + $0x34] sm:$0xff]
        %v2005 = vld [vmem:[%s1415 + $0x3c] sm:$0xff]
        %v2006 = vld [vmem:[%s1415 + $0x4c] sm:$0xff]
        %v2007 = vld [vmem:[%s1415 + $0x54] sm:$0xff]
        %v2008 = vld [vmem:[%s1415 + $0x64] sm:$0xff]
        %v2009 = vld [vmem:[%s1415 + $0x6c] sm:$0xff]
        %v2010 = vld [vmem:[%s1415 + $0x7c] sm:$0xff]
        %v2011 = vld [vmem:[%s1415 + $0x84] sm:$0xff]
        %v2012 = vld [vmem:[%s1415 + $0x94] sm:$0xff]
        %v2013 = vld [vmem:[%s1415 + $0x9c] sm:$0xff]
        %v2014 = vld [vmem:[%s1415 + $0xac] sm:$0xff]
        %v2015 = vld [vmem:[%s1415 + $0xb4] sm:$0xff]
        %v2016 = vld [vmem:[%s1415 + $0xc4] sm:$0xff]
        %v2017 = vld [vmem:[%s1415 + $0xcc] sm:$0xff]
        %v2018 = vld [vmem:[%s1415 + $0xdc] sm:$0xff]
        %v2019 = vld [vmem:[%s1415 + $0xe4] sm:$0xff]
        %v2020 = vld [vmem:[%s230 + $0x4] sm:$0x1]
        %v2021 = vperm.slane %v2020, 0
        %v2022 = vmul.f32 %v2021, %v2000
        %v2023 = vmul.f32 %v2021, %v2001
        %v2024 = vmul.f32 %v2021, %v2002
        %v2025 = vmul.f32 %v2021, %v2003
        %v2026 = vmul.f32 %v2021, %v2004
        %v2027 = vmul.f32 %v2021, %v2005
        %v2028 = vmul.f32 %v2021, %v2006
        %v2029 = vmul.f32 %v2021, %v2007
        %v2030 = vadd.f32 %v1992, %v2022
        %v2031 = vadd.f32 %v1993, %v2023
        %v2032 = vadd.f32 %v1994, %v2024
        %v2033 = vadd.f32 %v1995, %v2025
        %v2034 = vadd.f32 %v1996, %v2026
        %v2035 = vadd.f32 %v1997, %v2027
        %v2036 = vadd.f32 %v1998, %v2028
        %v2037 = vadd.f32 %v1999, %v2029
        %v2038 = vld [vmem:[%s415 + $0x4] sm:$0x1]
        %v2039 = vperm.slane %v2038, 0
        %v2040 = vmul.f32 %v2039, %v2002
        %v2041 = vmul.f32 %v2039, %v2003
        %v2042 = vmul.f32 %v2039, %v2004
        %v2043 = vmul.f32 %v2039, %v2005
        %v2044 = vmul.f32 %v2039, %v2006
        %v2045 = vmul.f32 %v2039, %v2007
        %v2046 = vmul.f32 %v2039, %v2008
        %v2047 = vmul.f32 %v2039, %v2009
        %v2048 = vadd.f32 %v2030, %v2040
        %v2049 = vadd.f32 %v2031, %v2041
        %v2050 = vadd.f32 %v2032, %v2042
        %v2051 = vadd.f32 %v2033, %v2043
        %v2052 = vadd.f32 %v2034, %v2044
        %v2053 = vadd.f32 %v2035, %v2045
        %v2054 = vadd.f32 %v2036, %v2046
        %v2055 = vadd.f32 %v2037, %v2047
        %v2056 = vld [vmem:[%s434 + $0x4] sm:$0x1]
        %v2057 = vperm.slane %v2056, 0
        %v2058 = vmul.f32 %v2057, %v2004
        %v2059 = vmul.f32 %v2057, %v2005
        %v2060 = vmul.f32 %v2057, %v2006
        %v2061 = vmul.f32 %v2057, %v2007
        %v2062 = vmul.f32 %v2057, %v2008
        %v2063 = vmul.f32 %v2057, %v2009
        %v2064 = vmul.f32 %v2057, %v2010
        %v2065 = vmul.f32 %v2057, %v2011
        %v2066 = vadd.f32 %v2048, %v2058
        %v2067 = vadd.f32 %v2049, %v2059
        %v2068 = vadd.f32 %v2050, %v2060
        %v2069 = vadd.f32 %v2051, %v2061
        %v2070 = vadd.f32 %v2052, %v2062
        %v2071 = vadd.f32 %v2053, %v2063
        %v2072 = vadd.f32 %v2054, %v2064
        %v2073 = vadd.f32 %v2055, %v2065
        %v2074 = vld [vmem:[%s453 + $0x4] sm:$0x1]
        %v2075 = vperm.slane %v2074, 0
        %v2076 = vmul.f32 %v2075, %v2006
        %v2077 = vmul.f32 %v2075, %v2007
        %v2078 = vmul.f32 %v2075, %v2008
        %v2079 = vmul.f32 %v2075, %v2009
        %v2080 = vmul.f32 %v2075, %v2010
        %v2081 = vmul.f32 %v2075, %v2011
        %v2082 = vmul.f32 %v2075, %v2012
        %v2083 = vmul.f32 %v2075, %v2013
        %v2084 = vadd.f32 %v2066, %v2076
        %v2085 = vadd.f32 %v2067, %v2077
        %v2086 = vadd.f32 %v2068, %v2078
        %v2087 = vadd.f32 %v2069, %v2079
        %v2088 = vadd.f32 %v2070, %v2080
        %v2089 = vadd.f32 %v2071, %v2081
        %v2090 = vadd.f32 %v2072, %v2082
        %v2091 = vadd.f32 %v2073, %v2083
        %v2092 = vld [vmem:[%s472 + $0x4] sm:$0x1]
        %v2093 = vperm.slane %v2092, 0
        %v2094 = vmul.f32 %v2093, %v2008
        %v2095 = vmul.f32 %v2093, %v2009
        %v2096 = vmul.f32 %v2093, %v2010
        %v2097 = vmul.f32 %v2093, %v2011
        %v2098 = vmul.f32 %v2093, %v2012
        %v2099 = vmul.f32 %v2093, %v2013
        %v2100 = vmul.f32 %v2093, %v2014
        %v2101 = vmul.f32 %v2093, %v2015
        %v2102 = vadd.f32 %v2084, %v2094
        %v2103 = vadd.f32 %v2085, %v2095
        %v2104 = vadd.f32 %v2086, %v2096
        %v2105 = vadd.f32 %v2087, %v2097
        %v2106 = vadd.f32 %v2088, %v2098
        %v2107 = vadd.f32 %v2089, %v2099
        %v2108 = vadd.f32 %v2090, %v2100
        %v2109 = vadd.f32 %v2091, %v2101
        %v2110 = vld [vmem:[%s491 + $0x4] sm:$0x1]
        %v2111 = vperm.slane %v2110, 0
        %v2112 = vmul.f32 %v2111, %v2010
        %v2113 = vmul.f32 %v2111, %v2011
        %v2114 = vmul.f32 %v2111, %v2012
        %v2115 = vmul.f32 %v2111, %v2013
        %v2116 = vmul.f32 %v2111, %v2014
        %v2117 = vmul.f32 %v2111, %v2015
        %v2118 = vmul.f32 %v2111, %v2016
        %v2119 = vmul.f32 %v2111, %v2017
        %v2120 = vadd.f32 %v2102, %v2112
        %v2121 = vadd.f32 %v2103, %v2113
        %v2122 = vadd.f32 %v2104, %v2114
        %v2123 = vadd.f32 %v2105, %v2115
        %v2124 = vadd.f32 %v2106, %v2116
        %v2125 = vadd.f32 %v2107, %v2117
        %v2126 = vadd.f32 %v2108, %v2118
        %v2127 = vadd.f32 %v2109, %v2119
        %v2128 = vld [vmem:[%s510 + $0x4] sm:$0x1]
        %v2129 = vperm.slane %v2128, 0
        %v2130 = vmul.f32 %v2129, %v2012
        %v2131 = vmul.f32 %v2129, %v2013
        %v2132 = vmul.f32 %v2129, %v2014
        %v2133 = vmul.f32 %v2129, %v2015
        %v2134 = vmul.f32 %v2129, %v2016
        %v2135 = vmul.f32 %v2129, %v2017
        %v2136 = vmul.f32 %v2129, %v2018
        %v2137 = vmul.f32 %v2129, %v2019
        %v2138 = vadd.f32 %v2120, %v2130
        %v2139 = vadd.f32 %v2121, %v2131
        %v2140 = vadd.f32 %v2122, %v2132
        %v2141 = vadd.f32 %v2123, %v2133
        %v2142 = vadd.f32 %v2124, %v2134
        %v2143 = vadd.f32 %v2125, %v2135
        %v2144 = vadd.f32 %v2126, %v2136
        %v2145 = vadd.f32 %v2127, %v2137
        %v2146 = vld [vmem:[%s1415 + $0x5] sm:$0xff]
        %v2147 = vld [vmem:[%s1415 + $0xd] sm:$0xff]
        %v2148 = vld [vmem:[%s1415 + $0x1d] sm:$0xff]
        %v2149 = vld [vmem:[%s1415 + $0x25] sm:$0xff]
        %v2150 = vld [vmem:[%s1415 + $0x35] sm:$0xff]
        %v2151 = vld [vmem:[%s1415 + $0x3d] sm:$0xff]
        %v2152 = vld [vmem:[%s1415 + $0x4d] sm:$0xff]
        %v2153 = vld [vmem:[%s1415 + $0x55] sm:$0xff]
        %v2154 = vld [vmem:[%s1415 + $0x65] sm:$0xff]
        %v2155 = vld [vmem:[%s1415 + $0x6d] sm:$0xff]
        %v2156 = vld [vmem:[%s1415 + $0x7d] sm:$0xff]
        %v2157 = vld [vmem:[%s1415 + $0x85] sm:$0xff]
        %v2158 = vld [vmem:[%s1415 + $0x95] sm:$0xff]
        %v2159 = vld [vmem:[%s1415 + $0x9d] sm:$0xff]
        %v2160 = vld [vmem:[%s1415 + $0xad] sm:$0xff]
        %v2161 = vld [vmem:[%s1415 + $0xb5] sm:$0xff]
        %v2162 = vld [vmem:[%s1415 + $0xc5] sm:$0xff]
        %v2163 = vld [vmem:[%s1415 + $0xcd] sm:$0xff]
        %v2164 = vld [vmem:[%s1415 + $0xdd] sm:$0xff]
        %v2165 = vld [vmem:[%s1415 + $0xe5] sm:$0xff]
        %v2166 = vld [vmem:[%s230 + $0x5] sm:$0x1]
        %v2167 = vperm.slane %v2166, 0
        %v2168 = vmul.f32 %v2167, %v2146
        %v2169 = vmul.f32 %v2167, %v2147
        %v2170 = vmul.f32 %v2167, %v2148
        %v2171 = vmul.f32 %v2167, %v2149
        %v2172 = vmul.f32 %v2167, %v2150
        %v2173 = vmul.f32 %v2167, %v2151
        %v2174 = vmul.f32 %v2167, %v2152
        %v2175 = vmul.f32 %v2167, %v2153
        %v2176 = vadd.f32 %v2138, %v2168
        %v2177 = vadd.f32 %v2139, %v2169
        %v2178 = vadd.f32 %v2140, %v2170
        %v2179 = vadd.f32 %v2141, %v2171
        %v2180 = vadd.f32 %v2142, %v2172
        %v2181 = vadd.f32 %v2143, %v2173
        %v2182 = vadd.f32 %v2144, %v2174
        %v2183 = vadd.f32 %v2145, %v2175
        %v2184 = vld [vmem:[%s415 + $0x5] sm:$0x1]
        %v2185 = vperm.slane %v2184, 0
        %v2186 = vmul.f32 %v2185, %v2148
        %v2187 = vmul.f32 %v2185, %v2149
        %v2188 = vmul.f32 %v2185, %v2150
        %v2189 = vmul.f32 %v2185, %v2151
        %v2190 = vmul.f32 %v2185, %v2152
        %v2191 = vmul.f32 %v2185, %v2153
        %v2192 = vmul.f32 %v2185, %v2154
        %v2193 = vmul.f32 %v2185, %v2155
        %v2194 = vadd.f32 %v2176, %v2186
        %v2195 = vadd.f32 %v2177, %v2187
        %v2196 = vadd.f32 %v2178, %v2188
        %v2197 = vadd.f32 %v2179, %v2189
        %v2198 = vadd.f32 %v2180, %v2190
        %v2199 = vadd.f32 %v2181, %v2191
        %v2200 = vadd.f32 %v2182, %v2192
        %v2201 = vadd.f32 %v2183, %v2193
        %v2202 = vld [vmem:[%s434 + $0x5] sm:$0x1]
        %v2203 = vperm.slane %v2202, 0
        %v2204 = vmul.f32 %v2203, %v2150
        %v2205 = vmul.f32 %v2203, %v2151
        %v2206 = vmul.f32 %v2203, %v2152
        %v2207 = vmul.f32 %v2203, %v2153
        %v2208 = vmul.f32 %v2203, %v2154
        %v2209 = vmul.f32 %v2203, %v2155
        %v2210 = vmul.f32 %v2203, %v2156
        %v2211 = vmul.f32 %v2203, %v2157
        %v2212 = vadd.f32 %v2194, %v2204
        %v2213 = vadd.f32 %v2195, %v2205
        %v2214 = vadd.f32 %v2196, %v2206
        %v2215 = vadd.f32 %v2197, %v2207
        %v2216 = vadd.f32 %v2198, %v2208
        %v2217 = vadd.f32 %v2199, %v2209
        %v2218 = vadd.f32 %v2200, %v2210
        %v2219 = vadd.f32 %v2201, %v2211
        %v2220 = vld [vmem:[%s453 + $0x5] sm:$0x1]
        %v2221 = vperm.slane %v2220, 0
        %v2222 = vmul.f32 %v2221, %v2152
        %v2223 = vmul.f32 %v2221, %v2153
        %v2224 = vmul.f32 %v2221, %v2154
        %v2225 = vmul.f32 %v2221, %v2155
        %v2226 = vmul.f32 %v2221, %v2156
        %v2227 = vmul.f32 %v2221, %v2157
        %v2228 = vmul.f32 %v2221, %v2158
        %v2229 = vmul.f32 %v2221, %v2159
        %v2230 = vadd.f32 %v2212, %v2222
        %v2231 = vadd.f32 %v2213, %v2223
        %v2232 = vadd.f32 %v2214, %v2224
        %v2233 = vadd.f32 %v2215, %v2225
        %v2234 = vadd.f32 %v2216, %v2226
        %v2235 = vadd.f32 %v2217, %v2227
        %v2236 = vadd.f32 %v2218, %v2228
        %v2237 = vadd.f32 %v2219, %v2229
        %v2238 = vld [vmem:[%s472 + $0x5] sm:$0x1]
        %v2239 = vperm.slane %v2238, 0
        %v2240 = vmul.f32 %v2239, %v2154
        %v2241 = vmul.f32 %v2239, %v2155
        %v2242 = vmul.f32 %v2239, %v2156
        %v2243 = vmul.f32 %v2239, %v2157
        %v2244 = vmul.f32 %v2239, %v2158
        %v2245 = vmul.f32 %v2239, %v2159
        %v2246 = vmul.f32 %v2239, %v2160
        %v2247 = vmul.f32 %v2239, %v2161
        %v2248 = vadd.f32 %v2230, %v2240
        %v2249 = vadd.f32 %v2231, %v2241
        %v2250 = vadd.f32 %v2232, %v2242
        %v2251 = vadd.f32 %v2233, %v2243
        %v2252 = vadd.f32 %v2234, %v2244
        %v2253 = vadd.f32 %v2235, %v2245
        %v2254 = vadd.f32 %v2236, %v2246
        %v2255 = vadd.f32 %v2237, %v2247
        %v2256 = vld [vmem:[%s491 + $0x5] sm:$0x1]
        %v2257 = vperm.slane %v2256, 0
        %v2258 = vmul.f32 %v2257, %v2156
        %v2259 = vmul.f32 %v2257, %v2157
        %v2260 = vmul.f32 %v2257, %v2158
        %v2261 = vmul.f32 %v2257, %v2159
        %v2262 = vmul.f32 %v2257, %v2160
        %v2263 = vmul.f32 %v2257, %v2161
        %v2264 = vmul.f32 %v2257, %v2162
        %v2265 = vmul.f32 %v2257, %v2163
        %v2266 = vadd.f32 %v2248, %v2258
        %v2267 = vadd.f32 %v2249, %v2259
        %v2268 = vadd.f32 %v2250, %v2260
        %v2269 = vadd.f32 %v2251, %v2261
        %v2270 = vadd.f32 %v2252, %v2262
        %v2271 = vadd.f32 %v2253, %v2263
        %v2272 = vadd.f32 %v2254, %v2264
        %v2273 = vadd.f32 %v2255, %v2265
        %v2274 = vld [vmem:[%s510 + $0x5] sm:$0x1]
        %v2275 = vperm.slane %v2274, 0
        %v2276 = vmul.f32 %v2275, %v2158
        %v2277 = vmul.f32 %v2275, %v2159
        %v2278 = vmul.f32 %v2275, %v2160
        %v2279 = vmul.f32 %v2275, %v2161
        %v2280 = vmul.f32 %v2275, %v2162
        %v2281 = vmul.f32 %v2275, %v2163
        %v2282 = vmul.f32 %v2275, %v2164
        %v2283 = vmul.f32 %v2275, %v2165
        %v2284 = vadd.f32 %v2266, %v2276
        %v2285 = vadd.f32 %v2267, %v2277
        %v2286 = vadd.f32 %v2268, %v2278
        %v2287 = vadd.f32 %v2269, %v2279
        %v2288 = vadd.f32 %v2270, %v2280
        %v2289 = vadd.f32 %v2271, %v2281
        %v2290 = vadd.f32 %v2272, %v2282
        %v2291 = vadd.f32 %v2273, %v2283
        %v2292 = vld [vmem:[%s1415 + $0x6] sm:$0xff]
        %v2293 = vld [vmem:[%s1415 + $0xe] sm:$0xff]
        %v2294 = vld [vmem:[%s1415 + $0x1e] sm:$0xff]
        %v2295 = vld [vmem:[%s1415 + $0x26] sm:$0xff]
        %v2296 = vld [vmem:[%s1415 + $0x36] sm:$0xff]
        %v2297 = vld [vmem:[%s1415 + $0x3e] sm:$0xff]
        %v2298 = vld [vmem:[%s1415 + $0x4e] sm:$0xff]
        %v2299 = vld [vmem:[%s1415 + $0x56] sm:$0xff]
        %v2300 = vld [vmem:[%s1415 + $0x66] sm:$0xff]
        %v2301 = vld [vmem:[%s1415 + $0x6e] sm:$0xff]
        %v2302 = vld [vmem:[%s1415 + $0x7e] sm:$0xff]
        %v2303 = vld [vmem:[%s1415 + $0x86] sm:$0xff]
        %v2304 = vld [vmem:[%s1415 + $0x96] sm:$0xff]
        %v2305 = vld [vmem:[%s1415 + $0x9e] sm:$0xff]
        %v2306 = vld [vmem:[%s1415 + $0xae] sm:$0xff]
        %v2307 = vld [vmem:[%s1415 + $0xb6] sm:$0xff]
        %v2308 = vld [vmem:[%s1415 + $0xc6] sm:$0xff]
        %v2309 = vld [vmem:[%s1415 + $0xce] sm:$0xff]
        %v2310 = vld [vmem:[%s1415 + $0xde] sm:$0xff]
        %v2311 = vld [vmem:[%s1415 + $0xe6] sm:$0xff]
        %v2312 = vld [vmem:[%s230 + $0x6] sm:$0x1]
        %v2313 = vperm.slane %v2312, 0
        %v2314 = vmul.f32 %v2313, %v2292
        %v2315 = vmul.f32 %v2313, %v2293
        %v2316 = vmul.f32 %v2313, %v2294
        %v2317 = vmul.f32 %v2313, %v2295
        %v2318 = vmul.f32 %v2313, %v2296
        %v2319 = vmul.f32 %v2313, %v2297
        %v2320 = vmul.f32 %v2313, %v2298
        %v2321 = vmul.f32 %v2313, %v2299
        %v2322 = vadd.f32 %v2284, %v2314
        %v2323 = vadd.f32 %v2285, %v2315
        %v2324 = vadd.f32 %v2286, %v2316
        %v2325 = vadd.f32 %v2287, %v2317
        %v2326 = vadd.f32 %v2288, %v2318
        %v2327 = vadd.f32 %v2289, %v2319
        %v2328 = vadd.f32 %v2290, %v2320
        %v2329 = vadd.f32 %v2291, %v2321
        %v2330 = vld [vmem:[%s415 + $0x6] sm:$0x1]
        %v2331 = vperm.slane %v2330, 0
        %v2332 = vmul.f32 %v2331, %v2294
        %v2333 = vmul.f32 %v2331, %v2295
        %v2334 = vmul.f32 %v2331, %v2296
        %v2335 = vmul.f32 %v2331, %v2297
        %v2336 = vmul.f32 %v2331, %v2298
        %v2337 = vmul.f32 %v2331, %v2299
        %v2338 = vmul.f32 %v2331, %v2300
        %v2339 = vmul.f32 %v2331, %v2301
        %v2340 = vadd.f32 %v2322, %v2332
        %v2341 = vadd.f32 %v2323, %v2333
        %v2342 = vadd.f32 %v2324, %v2334
        %v2343 = vadd.f32 %v2325, %v2335
        %v2344 = vadd.f32 %v2326, %v2336
        %v2345 = vadd.f32 %v2327, %v2337
        %v2346 = vadd.f32 %v2328, %v2338
        %v2347 = vadd.f32 %v2329, %v2339
        %v2348 = vld [vmem:[%s434 + $0x6] sm:$0x1]
        %v2349 = vperm.slane %v2348, 0
        %v2350 = vmul.f32 %v2349, %v2296
        %v2351 = vmul.f32 %v2349, %v2297
        %v2352 = vmul.f32 %v2349, %v2298
        %v2353 = vmul.f32 %v2349, %v2299
        %v2354 = vmul.f32 %v2349, %v2300
        %v2355 = vmul.f32 %v2349, %v2301
        %v2356 = vmul.f32 %v2349, %v2302
        %v2357 = vmul.f32 %v2349, %v2303
        %v2358 = vadd.f32 %v2340, %v2350
        %v2359 = vadd.f32 %v2341, %v2351
        %v2360 = vadd.f32 %v2342, %v2352
        %v2361 = vadd.f32 %v2343, %v2353
        %v2362 = vadd.f32 %v2344, %v2354
        %v2363 = vadd.f32 %v2345, %v2355
        %v2364 = vadd.f32 %v2346, %v2356
        %v2365 = vadd.f32 %v2347, %v2357
        %v2366 = vld [vmem:[%s453 + $0x6] sm:$0x1]
        %v2367 = vperm.slane %v2366, 0
        %v2368 = vmul.f32 %v2367, %v2298
        %v2369 = vmul.f32 %v2367, %v2299
        %v2370 = vmul.f32 %v2367, %v2300
        %v2371 = vmul.f32 %v2367, %v2301
        %v2372 = vmul.f32 %v2367, %v2302
        %v2373 = vmul.f32 %v2367, %v2303
        %v2374 = vmul.f32 %v2367, %v2304
        %v2375 = vmul.f32 %v2367, %v2305
        %v2376 = vadd.f32 %v2358, %v2368
        %v2377 = vadd.f32 %v2359, %v2369
        %v2378 = vadd.f32 %v2360, %v2370
        %v2379 = vadd.f32 %v2361, %v2371
        %v2380 = vadd.f32 %v2362, %v2372
        %v2381 = vadd.f32 %v2363, %v2373
        %v2382 = vadd.f32 %v2364, %v2374
        %v2383 = vadd.f32 %v2365, %v2375
        %v2384 = vld [vmem:[%s472 + $0x6] sm:$0x1]
        %v2385 = vperm.slane %v2384, 0
        %v2386 = vmul.f32 %v2385, %v2300
        %v2387 = vmul.f32 %v2385, %v2301
        %v2388 = vmul.f32 %v2385, %v2302
        %v2389 = vmul.f32 %v2385, %v2303
        %v2390 = vmul.f32 %v2385, %v2304
        %v2391 = vmul.f32 %v2385, %v2305
        %v2392 = vmul.f32 %v2385, %v2306
        %v2393 = vmul.f32 %v2385, %v2307
        %v2394 = vadd.f32 %v2376, %v2386
        %v2395 = vadd.f32 %v2377, %v2387
        %v2396 = vadd.f32 %v2378, %v2388
        %v2397 = vadd.f32 %v2379, %v2389
        %v2398 = vadd.f32 %v2380, %v2390
        %v2399 = vadd.f32 %v2381, %v2391
        %v2400 = vadd.f32 %v2382, %v2392
        %v2401 = vadd.f32 %v2383, %v2393
        %v2402 = vld [vmem:[%s491 + $0x6] sm:$0x1]
        %v2403 = vperm.slane %v2402, 0
        %v2404 = vmul.f32 %v2403, %v2302
        %v2405 = vmul.f32 %v2403, %v2303
        %v2406 = vmul.f32 %v2403, %v2304
        %v2407 = vmul.f32 %v2403, %v2305
        %v2408 = vmul.f32 %v2403, %v2306
        %v2409 = vmul.f32 %v2403, %v2307
        %v2410 = vmul.f32 %v2403, %v2308
        %v2411 = vmul.f32 %v2403, %v2309
        %v2412 = vadd.f32 %v2394, %v2404
        %v2413 = vadd.f32 %v2395, %v2405
        %v2414 = vadd.f32 %v2396, %v2406
        %v2415 = vadd.f32 %v2397, %v2407
        %v2416 = vadd.f32 %v2398, %v2408
        %v2417 = vadd.f32 %v2399, %v2409
        %v2418 = vadd.f32 %v2400, %v2410
        %v2419 = vadd.f32 %v2401, %v2411
        %v2420 = vld [vmem:[%s510 + $0x6] sm:$0x1]
        %v2421 = vperm.slane %v2420, 0
        %v2422 = vmul.f32 %v2421, %v2304
        %v2423 = vmul.f32 %v2421, %v2305
        %v2424 = vmul.f32 %v2421, %v2306
        %v2425 = vmul.f32 %v2421, %v2307
        %v2426 = vmul.f32 %v2421, %v2308
        %v2427 = vmul.f32 %v2421, %v2309
        %v2428 = vmul.f32 %v2421, %v2310
        %v2429 = vmul.f32 %v2421, %v2311
        %v2430 = vadd.f32 %v2412, %v2422
        %v2431 = vadd.f32 %v2413, %v2423
        %v2432 = vadd.f32 %v2414, %v2424
        %v2433 = vadd.f32 %v2415, %v2425
        %v2434 = vadd.f32 %v2416, %v2426
        %v2435 = vadd.f32 %v2417, %v2427
        %v2436 = vadd.f32 %v2418, %v2428
        %v2437 = vadd.f32 %v2419, %v2429
        %s2438 = scalar_lea.vmem %s218, 64 [#allocation3]
        %2439 = vst [vmem:[%s2438] sm:$0xff] %v2430
        %2440 = vst [vmem:[%s2438 + $0x8] sm:$0xff] %v2431
        %2441 = vst [vmem:[%s2438 + $0x10] sm:$0xff] %v2432
        %2442 = vst [vmem:[%s2438 + $0x18] sm:$0xff] %v2433
        %2443 = vst [vmem:[%s2438 + $0x20] sm:$0xff] %v2434
        %2444 = vst [vmem:[%s2438 + $0x28] sm:$0xff] %v2435
        %2445 = vst [vmem:[%s2438 + $0x30] sm:$0xff] %v2436
        %2446 = vst [vmem:[%s2438 + $0x38] sm:$0xff] %v2437
        %s2447 = sadd.s32 %s374, 8
        %s2448 = smul.u32 %s2447, 24
        %s2449 = scalar_lea.vmem [#allocation2], %s2448
        %v2450 = vld [vmem:[%s2449] sm:$0xff]
        %v2451 = vld [vmem:[%s2449 + $0x8] sm:$0xff]
        %v2452 = vld [vmem:[%s2449 + $0x18] sm:$0xff]
        %v2453 = vld [vmem:[%s2449 + $0x20] sm:$0xff]
        %v2454 = vld [vmem:[%s2449 + $0x30] sm:$0xff]
        %v2455 = vld [vmem:[%s2449 + $0x38] sm:$0xff]
        %v2456 = vld [vmem:[%s2449 + $0x48] sm:$0xff]
        %v2457 = vld [vmem:[%s2449 + $0x50] sm:$0xff]
        %v2458 = vld [vmem:[%s2449 + $0x60] sm:$0xff]
        %v2459 = vld [vmem:[%s2449 + $0x68] sm:$0xff]
        %v2460 = vld [vmem:[%s2449 + $0x78] sm:$0xff]
        %v2461 = vld [vmem:[%s2449 + $0x80] sm:$0xff]
        %v2462 = vld [vmem:[%s2449 + $0x90] sm:$0xff]
        %v2463 = vld [vmem:[%s2449 + $0x98] sm:$0xff]
        %v2464 = vld [vmem:[%s2449 + $0xa8] sm:$0xff]
        %v2465 = vld [vmem:[%s2449 + $0xb0] sm:$0xff]
        %v2466 = vld [vmem:[%s2449 + $0xc0] sm:$0xff]
        %v2467 = vld [vmem:[%s2449 + $0xc8] sm:$0xff]
        %v2468 = vld [vmem:[%s2449 + $0xd8] sm:$0xff]
        %v2469 = vld [vmem:[%s2449 + $0xe0] sm:$0xff]
        %v2470 = vld [vmem:[%s230] sm:$0x1]
        %v2471 = vperm.slane %v2470, 0
        %v2472 = vmul.f32 %v2471, %v2450
        %v2473 = vmul.f32 %v2471, %v2451
        %v2474 = vmul.f32 %v2471, %v2452
        %v2475 = vmul.f32 %v2471, %v2453
        %v2476 = vmul.f32 %v2471, %v2454
        %v2477 = vmul.f32 %v2471, %v2455
        %v2478 = vmul.f32 %v2471, %v2456
        %v2479 = vmul.f32 %v2471, %v2457
        %v2480 = vadd.f32 %v372, %v2472
        %v2481 = vadd.f32 %v372, %v2473
        %v2482 = vadd.f32 %v372, %v2474
        %v2483 = vadd.f32 %v372, %v2475
        %v2484 = vadd.f32 %v372, %v2476
        %v2485 = vadd.f32 %v372, %v2477
        %v2486 = vadd.f32 %v372, %v2478
        %v2487 = vadd.f32 %v372, %v2479
        %v2488 = vld [vmem:[%s415] sm:$0x1]
        %v2489 = vperm.slane %v2488, 0
        %v2490 = vmul.f32 %v2489, %v2452
        %v2491 = vmul.f32 %v2489, %v2453
        %v2492 = vmul.f32 %v2489, %v2454
        %v2493 = vmul.f32 %v2489, %v2455
        %v2494 = vmul.f32 %v2489, %v2456
        %v2495 = vmul.f32 %v2489, %v2457
        %v2496 = vmul.f32 %v2489, %v2458
        %v2497 = vmul.f32 %v2489, %v2459
        %v2498 = vadd.f32 %v2480, %v2490
        %v2499 = vadd.f32 %v2481, %v2491
        %v2500 = vadd.f32 %v2482, %v2492
        %v2501 = vadd.f32 %v2483, %v2493
        %v2502 = vadd.f32 %v2484, %v2494
        %v2503 = vadd.f32 %v2485, %v2495
        %v2504 = vadd.f32 %v2486, %v2496
        %v2505 = vadd.f32 %v2487, %v2497
        %v2506 = vld [vmem:[%s434] sm:$0x1]
        %v2507 = vperm.slane %v2506, 0
        %v2508 = vmul.f32 %v2507, %v2454
        %v2509 = vmul.f32 %v2507, %v2455
        %v2510 = vmul.f32 %v2507, %v2456
        %v2511 = vmul.f32 %v2507, %v2457
        %v2512 = vmul.f32 %v2507, %v2458
        %v2513 = vmul.f32 %v2507, %v2459
        %v2514 = vmul.f32 %v2507, %v2460
        %v2515 = vmul.f32 %v2507, %v2461
        %v2516 = vadd.f32 %v2498, %v2508
        %v2517 = vadd.f32 %v2499, %v2509
        %v2518 = vadd.f32 %v2500, %v2510
        %v2519 = vadd.f32 %v2501, %v2511
        %v2520 = vadd.f32 %v2502, %v2512
        %v2521 = vadd.f32 %v2503, %v2513
        %v2522 = vadd.f32 %v2504, %v2514
        %v2523 = vadd.f32 %v2505, %v2515
        %v2524 = vld [vmem:[%s453] sm:$0x1]
        %v2525 = vperm.slane %v2524, 0
        %v2526 = vmul.f32 %v2525, %v2456
        %v2527 = vmul.f32 %v2525, %v2457
        %v2528 = vmul.f32 %v2525, %v2458
        %v2529 = vmul.f32 %v2525, %v2459
        %v2530 = vmul.f32 %v2525, %v2460
        %v2531 = vmul.f32 %v2525, %v2461
        %v2532 = vmul.f32 %v2525, %v2462
        %v2533 = vmul.f32 %v2525, %v2463
        %v2534 = vadd.f32 %v2516, %v2526
        %v2535 = vadd.f32 %v2517, %v2527
        %v2536 = vadd.f32 %v2518, %v2528
        %v2537 = vadd.f32 %v2519, %v2529
        %v2538 = vadd.f32 %v2520, %v2530
        %v2539 = vadd.f32 %v2521, %v2531
        %v2540 = vadd.f32 %v2522, %v2532
        %v2541 = vadd.f32 %v2523, %v2533
        %v2542 = vld [vmem:[%s472] sm:$0x1]
        %v2543 = vperm.slane %v2542, 0
        %v2544 = vmul.f32 %v2543, %v2458
        %v2545 = vmul.f32 %v2543, %v2459
        %v2546 = vmul.f32 %v2543, %v2460
        %v2547 = vmul.f32 %v2543, %v2461
        %v2548 = vmul.f32 %v2543, %v2462
        %v2549 = vmul.f32 %v2543, %v2463
        %v2550 = vmul.f32 %v2543, %v2464
        %v2551 = vmul.f32 %v2543, %v2465
        %v2552 = vadd.f32 %v2534, %v2544
        %v2553 = vadd.f32 %v2535, %v2545
        %v2554 = vadd.f32 %v2536, %v2546
        %v2555 = vadd.f32 %v2537, %v2547
        %v2556 = vadd.f32 %v2538, %v2548
        %v2557 = vadd.f32 %v2539, %v2549
        %v2558 = vadd.f32 %v2540, %v2550
        %v2559 = vadd.f32 %v2541, %v2551
        %v2560 = vld [vmem:[%s491] sm:$0x1]
        %v2561 = vperm.slane %v2560, 0
        %v2562 = vmul.f32 %v2561, %v2460
        %v2563 = vmul.f32 %v2561, %v2461
        %v2564 = vmul.f32 %v2561, %v2462
        %v2565 = vmul.f32 %v2561, %v2463
        %v2566 = vmul.f32 %v2561, %v2464
        %v2567 = vmul.f32 %v2561, %v2465
        %v2568 = vmul.f32 %v2561, %v2466
        %v2569 = vmul.f32 %v2561, %v2467
        %v2570 = vadd.f32 %v2552, %v2562
        %v2571 = vadd.f32 %v2553, %v2563
        %v2572 = vadd.f32 %v2554, %v2564
        %v2573 = vadd.f32 %v2555, %v2565
        %v2574 = vadd.f32 %v2556, %v2566
        %v2575 = vadd.f32 %v2557, %v2567
        %v2576 = vadd.f32 %v2558, %v2568
        %v2577 = vadd.f32 %v2559, %v2569
        %v2578 = vld [vmem:[%s510] sm:$0x1]
        %v2579 = vperm.slane %v2578, 0
        %v2580 = vmul.f32 %v2579, %v2462
        %v2581 = vmul.f32 %v2579, %v2463
        %v2582 = vmul.f32 %v2579, %v2464
        %v2583 = vmul.f32 %v2579, %v2465
        %v2584 = vmul.f32 %v2579, %v2466
        %v2585 = vmul.f32 %v2579, %v2467
        %v2586 = vmul.f32 %v2579, %v2468
        %v2587 = vmul.f32 %v2579, %v2469
        %v2588 = vadd.f32 %v2570, %v2580
        %v2589 = vadd.f32 %v2571, %v2581
        %v2590 = vadd.f32 %v2572, %v2582
        %v2591 = vadd.f32 %v2573, %v2583
        %v2592 = vadd.f32 %v2574, %v2584
        %v2593 = vadd.f32 %v2575, %v2585
        %v2594 = vadd.f32 %v2576, %v2586
        %v2595 = vadd.f32 %v2577, %v2587
        %v2596 = vld [vmem:[%s2449 + $0x1] sm:$0xff]
        %v2597 = vld [vmem:[%s2449 + $0x9] sm:$0xff]
        %v2598 = vld [vmem:[%s2449 + $0x19] sm:$0xff]
        %v2599 = vld [vmem:[%s2449 + $0x21] sm:$0xff]
        %v2600 = vld [vmem:[%s2449 + $0x31] sm:$0xff]
        %v2601 = vld [vmem:[%s2449 + $0x39] sm:$0xff]
        %v2602 = vld [vmem:[%s2449 + $0x49] sm:$0xff]
        %v2603 = vld [vmem:[%s2449 + $0x51] sm:$0xff]
        %v2604 = vld [vmem:[%s2449 + $0x61] sm:$0xff]
        %v2605 = vld [vmem:[%s2449 + $0x69] sm:$0xff]
        %v2606 = vld [vmem:[%s2449 + $0x79] sm:$0xff]
        %v2607 = vld [vmem:[%s2449 + $0x81] sm:$0xff]
        %v2608 = vld [vmem:[%s2449 + $0x91] sm:$0xff]
        %v2609 = vld [vmem:[%s2449 + $0x99] sm:$0xff]
        %v2610 = vld [vmem:[%s2449 + $0xa9] sm:$0xff]
        %v2611 = vld [vmem:[%s2449 + $0xb1] sm:$0xff]
        %v2612 = vld [vmem:[%s2449 + $0xc1] sm:$0xff]
        %v2613 = vld [vmem:[%s2449 + $0xc9] sm:$0xff]
        %v2614 = vld [vmem:[%s2449 + $0xd9] sm:$0xff]
        %v2615 = vld [vmem:[%s2449 + $0xe1] sm:$0xff]
        %v2616 = vld [vmem:[%s230 + $0x1] sm:$0x1]
        %v2617 = vperm.slane %v2616, 0
        %v2618 = vmul.f32 %v2617, %v2596
        %v2619 = vmul.f32 %v2617, %v2597
        %v2620 = vmul.f32 %v2617, %v2598
        %v2621 = vmul.f32 %v2617, %v2599
        %v2622 = vmul.f32 %v2617, %v2600
        %v2623 = vmul.f32 %v2617, %v2601
        %v2624 = vmul.f32 %v2617, %v2602
        %v2625 = vmul.f32 %v2617, %v2603
        %v2626 = vadd.f32 %v2588, %v2618
        %v2627 = vadd.f32 %v2589, %v2619
        %v2628 = vadd.f32 %v2590, %v2620
        %v2629 = vadd.f32 %v2591, %v2621
        %v2630 = vadd.f32 %v2592, %v2622
        %v2631 = vadd.f32 %v2593, %v2623
        %v2632 = vadd.f32 %v2594, %v2624
        %v2633 = vadd.f32 %v2595, %v2625
        %v2634 = vld [vmem:[%s415 + $0x1] sm:$0x1]
        %v2635 = vperm.slane %v2634, 0
        %v2636 = vmul.f32 %v2635, %v2598
        %v2637 = vmul.f32 %v2635, %v2599
        %v2638 = vmul.f32 %v2635, %v2600
        %v2639 = vmul.f32 %v2635, %v2601
        %v2640 = vmul.f32 %v2635, %v2602
        %v2641 = vmul.f32 %v2635, %v2603
        %v2642 = vmul.f32 %v2635, %v2604
        %v2643 = vmul.f32 %v2635, %v2605
        %v2644 = vadd.f32 %v2626, %v2636
        %v2645 = vadd.f32 %v2627, %v2637
        %v2646 = vadd.f32 %v2628, %v2638
        %v2647 = vadd.f32 %v2629, %v2639
        %v2648 = vadd.f32 %v2630, %v2640
        %v2649 = vadd.f32 %v2631, %v2641
        %v2650 = vadd.f32 %v2632, %v2642
        %v2651 = vadd.f32 %v2633, %v2643
        %v2652 = vld [vmem:[%s434 + $0x1] sm:$0x1]
        %v2653 = vperm.slane %v2652, 0
        %v2654 = vmul.f32 %v2653, %v2600
        %v2655 = vmul.f32 %v2653, %v2601
        %v2656 = vmul.f32 %v2653, %v2602
        %v2657 = vmul.f32 %v2653, %v2603
        %v2658 = vmul.f32 %v2653, %v2604
        %v2659 = vmul.f32 %v2653, %v2605
        %v2660 = vmul.f32 %v2653, %v2606
        %v2661 = vmul.f32 %v2653, %v2607
        %v2662 = vadd.f32 %v2644, %v2654
        %v2663 = vadd.f32 %v2645, %v2655
        %v2664 = vadd.f32 %v2646, %v2656
        %v2665 = vadd.f32 %v2647, %v2657
        %v2666 = vadd.f32 %v2648, %v2658
        %v2667 = vadd.f32 %v2649, %v2659
        %v2668 = vadd.f32 %v2650, %v2660
        %v2669 = vadd.f32 %v2651, %v2661
        %v2670 = vld [vmem:[%s453 + $0x1] sm:$0x1]
        %v2671 = vperm.slane %v2670, 0
        %v2672 = vmul.f32 %v2671, %v2602
        %v2673 = vmul.f32 %v2671, %v2603
        %v2674 = vmul.f32 %v2671, %v2604
        %v2675 = vmul.f32 %v2671, %v2605
        %v2676 = vmul.f32 %v2671, %v2606
        %v2677 = vmul.f32 %v2671, %v2607
        %v2678 = vmul.f32 %v2671, %v2608
        %v2679 = vmul.f32 %v2671, %v2609
        %v2680 = vadd.f32 %v2662, %v2672
        %v2681 = vadd.f32 %v2663, %v2673
        %v2682 = vadd.f32 %v2664, %v2674
        %v2683 = vadd.f32 %v2665, %v2675
        %v2684 = vadd.f32 %v2666, %v2676
        %v2685 = vadd.f32 %v2667, %v2677
        %v2686 = vadd.f32 %v2668, %v2678
        %v2687 = vadd.f32 %v2669, %v2679
        %v2688 = vld [vmem:[%s472 + $0x1] sm:$0x1]
        %v2689 = vperm.slane %v2688, 0
        %v2690 = vmul.f32 %v2689, %v2604
        %v2691 = vmul.f32 %v2689, %v2605
        %v2692 = vmul.f32 %v2689, %v2606
        %v2693 = vmul.f32 %v2689, %v2607
        %v2694 = vmul.f32 %v2689, %v2608
        %v2695 = vmul.f32 %v2689, %v2609
        %v2696 = vmul.f32 %v2689, %v2610
        %v2697 = vmul.f32 %v2689, %v2611
        %v2698 = vadd.f32 %v2680, %v2690
        %v2699 = vadd.f32 %v2681, %v2691
        %v2700 = vadd.f32 %v2682, %v2692
        %v2701 = vadd.f32 %v2683, %v2693
        %v2702 = vadd.f32 %v2684, %v2694
        %v2703 = vadd.f32 %v2685, %v2695
        %v2704 = vadd.f32 %v2686, %v2696
        %v2705 = vadd.f32 %v2687, %v2697
        %v2706 = vld [vmem:[%s491 + $0x1] sm:$0x1]
        %v2707 = vperm.slane %v2706, 0
        %v2708 = vmul.f32 %v2707, %v2606
        %v2709 = vmul.f32 %v2707, %v2607
        %v2710 = vmul.f32 %v2707, %v2608
        %v2711 = vmul.f32 %v2707, %v2609
        %v2712 = vmul.f32 %v2707, %v2610
        %v2713 = vmul.f32 %v2707, %v2611
        %v2714 = vmul.f32 %v2707, %v2612
        %v2715 = vmul.f32 %v2707, %v2613
        %v2716 = vadd.f32 %v2698, %v2708
        %v2717 = vadd.f32 %v2699, %v2709
        %v2718 = vadd.f32 %v2700, %v2710
        %v2719 = vadd.f32 %v2701, %v2711
        %v2720 = vadd.f32 %v2702, %v2712
        %v2721 = vadd.f32 %v2703, %v2713
        %v2722 = vadd.f32 %v2704, %v2714
        %v2723 = vadd.f32 %v2705, %v2715
        %v2724 = vld [vmem:[%s510 + $0x1] sm:$0x1]
        %v2725 = vperm.slane %v2724, 0
        %v2726 = vmul.f32 %v2725, %v2608
        %v2727 = vmul.f32 %v2725, %v2609
        %v2728 = vmul.f32 %v2725, %v2610
        %v2729 = vmul.f32 %v2725, %v2611
        %v2730 = vmul.f32 %v2725, %v2612
        %v2731 = vmul.f32 %v2725, %v2613
        %v2732 = vmul.f32 %v2725, %v2614
        %v2733 = vmul.f32 %v2725, %v2615
        %v2734 = vadd.f32 %v2716, %v2726
        %v2735 = vadd.f32 %v2717, %v2727
        %v2736 = vadd.f32 %v2718, %v2728
        %v2737 = vadd.f32 %v2719, %v2729
        %v2738 = vadd.f32 %v2720, %v2730
        %v2739 = vadd.f32 %v2721, %v2731
        %v2740 = vadd.f32 %v2722, %v2732
        %v2741 = vadd.f32 %v2723, %v2733
        %v2742 = vld [vmem:[%s2449 + $0x2] sm:$0xff]
        %v2743 = vld [vmem:[%s2449 + $0xa] sm:$0xff]
        %v2744 = vld [vmem:[%s2449 + $0x1a] sm:$0xff]
        %v2745 = vld [vmem:[%s2449 + $0x22] sm:$0xff]
        %v2746 = vld [vmem:[%s2449 + $0x32] sm:$0xff]
        %v2747 = vld [vmem:[%s2449 + $0x3a] sm:$0xff]
        %v2748 = vld [vmem:[%s2449 + $0x4a] sm:$0xff]
        %v2749 = vld [vmem:[%s2449 + $0x52] sm:$0xff]
        %v2750 = vld [vmem:[%s2449 + $0x62] sm:$0xff]
        %v2751 = vld [vmem:[%s2449 + $0x6a] sm:$0xff]
        %v2752 = vld [vmem:[%s2449 + $0x7a] sm:$0xff]
        %v2753 = vld [vmem:[%s2449 + $0x82] sm:$0xff]
        %v2754 = vld [vmem:[%s2449 + $0x92] sm:$0xff]
        %v2755 = vld [vmem:[%s2449 + $0x9a] sm:$0xff]
        %v2756 = vld [vmem:[%s2449 + $0xaa] sm:$0xff]
        %v2757 = vld [vmem:[%s2449 + $0xb2] sm:$0xff]
        %v2758 = vld [vmem:[%s2449 + $0xc2] sm:$0xff]
        %v2759 = vld [vmem:[%s2449 + $0xca] sm:$0xff]
        %v2760 = vld [vmem:[%s2449 + $0xda] sm:$0xff]
        %v2761 = vld [vmem:[%s2449 + $0xe2] sm:$0xff]
        %v2762 = vld [vmem:[%s230 + $0x2] sm:$0x1]
        %v2763 = vperm.slane %v2762, 0
        %v2764 = vmul.f32 %v2763, %v2742
        %v2765 = vmul.f32 %v2763, %v2743
        %v2766 = vmul.f32 %v2763, %v2744
        %v2767 = vmul.f32 %v2763, %v2745
        %v2768 = vmul.f32 %v2763, %v2746
        %v2769 = vmul.f32 %v2763, %v2747
        %v2770 = vmul.f32 %v2763, %v2748
        %v2771 = vmul.f32 %v2763, %v2749
        %v2772 = vadd.f32 %v2734, %v2764
        %v2773 = vadd.f32 %v2735, %v2765
        %v2774 = vadd.f32 %v2736, %v2766
        %v2775 = vadd.f32 %v2737, %v2767
        %v2776 = vadd.f32 %v2738, %v2768
        %v2777 = vadd.f32 %v2739, %v2769
        %v2778 = vadd.f32 %v2740, %v2770
        %v2779 = vadd.f32 %v2741, %v2771
        %v2780 = vld [vmem:[%s415 + $0x2] sm:$0x1]
        %v2781 = vperm.slane %v2780, 0
        %v2782 = vmul.f32 %v2781, %v2744
        %v2783 = vmul.f32 %v2781, %v2745
        %v2784 = vmul.f32 %v2781, %v2746
        %v2785 = vmul.f32 %v2781, %v2747
        %v2786 = vmul.f32 %v2781, %v2748
        %v2787 = vmul.f32 %v2781, %v2749
        %v2788 = vmul.f32 %v2781, %v2750
        %v2789 = vmul.f32 %v2781, %v2751
        %v2790 = vadd.f32 %v2772, %v2782
        %v2791 = vadd.f32 %v2773, %v2783
        %v2792 = vadd.f32 %v2774, %v2784
        %v2793 = vadd.f32 %v2775, %v2785
        %v2794 = vadd.f32 %v2776, %v2786
        %v2795 = vadd.f32 %v2777, %v2787
        %v2796 = vadd.f32 %v2778, %v2788
        %v2797 = vadd.f32 %v2779, %v2789
        %v2798 = vld [vmem:[%s434 + $0x2] sm:$0x1]
        %v2799 = vperm.slane %v2798, 0
        %v2800 = vmul.f32 %v2799, %v2746
        %v2801 = vmul.f32 %v2799, %v2747
        %v2802 = vmul.f32 %v2799, %v2748
        %v2803 = vmul.f32 %v2799, %v2749
        %v2804 = vmul.f32 %v2799, %v2750
        %v2805 = vmul.f32 %v2799, %v2751
        %v2806 = vmul.f32 %v2799, %v2752
        %v2807 = vmul.f32 %v2799, %v2753
        %v2808 = vadd.f32 %v2790, %v2800
        %v2809 = vadd.f32 %v2791, %v2801
        %v2810 = vadd.f32 %v2792, %v2802
        %v2811 = vadd.f32 %v2793, %v2803
        %v2812 = vadd.f32 %v2794, %v2804
        %v2813 = vadd.f32 %v2795, %v2805
        %v2814 = vadd.f32 %v2796, %v2806
        %v2815 = vadd.f32 %v2797, %v2807
        %v2816 = vld [vmem:[%s453 + $0x2] sm:$0x1]
        %v2817 = vperm.slane %v2816, 0
        %v2818 = vmul.f32 %v2817, %v2748
        %v2819 = vmul.f32 %v2817, %v2749
        %v2820 = vmul.f32 %v2817, %v2750
        %v2821 = vmul.f32 %v2817, %v2751
        %v2822 = vmul.f32 %v2817, %v2752
        %v2823 = vmul.f32 %v2817, %v2753
        %v2824 = vmul.f32 %v2817, %v2754
        %v2825 = vmul.f32 %v2817, %v2755
        %v2826 = vadd.f32 %v2808, %v2818
        %v2827 = vadd.f32 %v2809, %v2819
        %v2828 = vadd.f32 %v2810, %v2820
        %v2829 = vadd.f32 %v2811, %v2821
        %v2830 = vadd.f32 %v2812, %v2822
        %v2831 = vadd.f32 %v2813, %v2823
        %v2832 = vadd.f32 %v2814, %v2824
        %v2833 = vadd.f32 %v2815, %v2825
        %v2834 = vld [vmem:[%s472 + $0x2] sm:$0x1]
        %v2835 = vperm.slane %v2834, 0
        %v2836 = vmul.f32 %v2835, %v2750
        %v2837 = vmul.f32 %v2835, %v2751
        %v2838 = vmul.f32 %v2835, %v2752
        %v2839 = vmul.f32 %v2835, %v2753
        %v2840 = vmul.f32 %v2835, %v2754
        %v2841 = vmul.f32 %v2835, %v2755
        %v2842 = vmul.f32 %v2835, %v2756
        %v2843 = vmul.f32 %v2835, %v2757
        %v2844 = vadd.f32 %v2826, %v2836
        %v2845 = vadd.f32 %v2827, %v2837
        %v2846 = vadd.f32 %v2828, %v2838
        %v2847 = vadd.f32 %v2829, %v2839
        %v2848 = vadd.f32 %v2830, %v2840
        %v2849 = vadd.f32 %v2831, %v2841
        %v2850 = vadd.f32 %v2832, %v2842
        %v2851 = vadd.f32 %v2833, %v2843
        %v2852 = vld [vmem:[%s491 + $0x2] sm:$0x1]
        %v2853 = vperm.slane %v2852, 0
        %v2854 = vmul.f32 %v2853, %v2752
        %v2855 = vmul.f32 %v2853, %v2753
        %v2856 = vmul.f32 %v2853, %v2754
        %v2857 = vmul.f32 %v2853, %v2755
        %v2858 = vmul.f32 %v2853, %v2756
        %v2859 = vmul.f32 %v2853, %v2757
        %v2860 = vmul.f32 %v2853, %v2758
        %v2861 = vmul.f32 %v2853, %v2759
        %v2862 = vadd.f32 %v2844, %v2854
        %v2863 = vadd.f32 %v2845, %v2855
        %v2864 = vadd.f32 %v2846, %v2856
        %v2865 = vadd.f32 %v2847, %v2857
        %v2866 = vadd.f32 %v2848, %v2858
        %v2867 = vadd.f32 %v2849, %v2859
        %v2868 = vadd.f32 %v2850, %v2860
        %v2869 = vadd.f32 %v2851, %v2861
        %v2870 = vld [vmem:[%s510 + $0x2] sm:$0x1]
        %v2871 = vperm.slane %v2870, 0
        %v2872 = vmul.f32 %v2871, %v2754
        %v2873 = vmul.f32 %v2871, %v2755
        %v2874 = vmul.f32 %v2871, %v2756
        %v2875 = vmul.f32 %v2871, %v2757
        %v2876 = vmul.f32 %v2871, %v2758
        %v2877 = vmul.f32 %v2871, %v2759
        %v2878 = vmul.f32 %v2871, %v2760
        %v2879 = vmul.f32 %v2871, %v2761
        %v2880 = vadd.f32 %v2862, %v2872
        %v2881 = vadd.f32 %v2863, %v2873
        %v2882 = vadd.f32 %v2864, %v2874
        %v2883 = vadd.f32 %v2865, %v2875
        %v2884 = vadd.f32 %v2866, %v2876
        %v2885 = vadd.f32 %v2867, %v2877
        %v2886 = vadd.f32 %v2868, %v2878
        %v2887 = vadd.f32 %v2869, %v2879
        %v2888 = vld [vmem:[%s2449 + $0x3] sm:$0xff]
        %v2889 = vld [vmem:[%s2449 + $0xb] sm:$0xff]
        %v2890 = vld [vmem:[%s2449 + $0x1b] sm:$0xff]
        %v2891 = vld [vmem:[%s2449 + $0x23] sm:$0xff]
        %v2892 = vld [vmem:[%s2449 + $0x33] sm:$0xff]
        %v2893 = vld [vmem:[%s2449 + $0x3b] sm:$0xff]
        %v2894 = vld [vmem:[%s2449 + $0x4b] sm:$0xff]
        %v2895 = vld [vmem:[%s2449 + $0x53] sm:$0xff]
        %v2896 = vld [vmem:[%s2449 + $0x63] sm:$0xff]
        %v2897 = vld [vmem:[%s2449 + $0x6b] sm:$0xff]
        %v2898 = vld [vmem:[%s2449 + $0x7b] sm:$0xff]
        %v2899 = vld [vmem:[%s2449 + $0x83] sm:$0xff]
        %v2900 = vld [vmem:[%s2449 + $0x93] sm:$0xff]
        %v2901 = vld [vmem:[%s2449 + $0x9b] sm:$0xff]
        %v2902 = vld [vmem:[%s2449 + $0xab] sm:$0xff]
        %v2903 = vld [vmem:[%s2449 + $0xb3] sm:$0xff]
        %v2904 = vld [vmem:[%s2449 + $0xc3] sm:$0xff]
        %v2905 = vld [vmem:[%s2449 + $0xcb] sm:$0xff]
        %v2906 = vld [vmem:[%s2449 + $0xdb] sm:$0xff]
        %v2907 = vld [vmem:[%s2449 + $0xe3] sm:$0xff]
        %v2908 = vld [vmem:[%s230 + $0x3] sm:$0x1]
        %v2909 = vperm.slane %v2908, 0
        %v2910 = vmul.f32 %v2909, %v2888
        %v2911 = vmul.f32 %v2909, %v2889
        %v2912 = vmul.f32 %v2909, %v2890
        %v2913 = vmul.f32 %v2909, %v2891
        %v2914 = vmul.f32 %v2909, %v2892
        %v2915 = vmul.f32 %v2909, %v2893
        %v2916 = vmul.f32 %v2909, %v2894
        %v2917 = vmul.f32 %v2909, %v2895
        %v2918 = vadd.f32 %v2880, %v2910
        %v2919 = vadd.f32 %v2881, %v2911
        %v2920 = vadd.f32 %v2882, %v2912
        %v2921 = vadd.f32 %v2883, %v2913
        %v2922 = vadd.f32 %v2884, %v2914
        %v2923 = vadd.f32 %v2885, %v2915
        %v2924 = vadd.f32 %v2886, %v2916
        %v2925 = vadd.f32 %v2887, %v2917
        %v2926 = vld [vmem:[%s415 + $0x3] sm:$0x1]
        %v2927 = vperm.slane %v2926, 0
        %v2928 = vmul.f32 %v2927, %v2890
        %v2929 = vmul.f32 %v2927, %v2891
        %v2930 = vmul.f32 %v2927, %v2892
        %v2931 = vmul.f32 %v2927, %v2893
        %v2932 = vmul.f32 %v2927, %v2894
        %v2933 = vmul.f32 %v2927, %v2895
        %v2934 = vmul.f32 %v2927, %v2896
        %v2935 = vmul.f32 %v2927, %v2897
        %v2936 = vadd.f32 %v2918, %v2928
        %v2937 = vadd.f32 %v2919, %v2929
        %v2938 = vadd.f32 %v2920, %v2930
        %v2939 = vadd.f32 %v2921, %v2931
        %v2940 = vadd.f32 %v2922, %v2932
        %v2941 = vadd.f32 %v2923, %v2933
        %v2942 = vadd.f32 %v2924, %v2934
        %v2943 = vadd.f32 %v2925, %v2935
        %v2944 = vld [vmem:[%s434 + $0x3] sm:$0x1]
        %v2945 = vperm.slane %v2944, 0
        %v2946 = vmul.f32 %v2945, %v2892
        %v2947 = vmul.f32 %v2945, %v2893
        %v2948 = vmul.f32 %v2945, %v2894
        %v2949 = vmul.f32 %v2945, %v2895
        %v2950 = vmul.f32 %v2945, %v2896
        %v2951 = vmul.f32 %v2945, %v2897
        %v2952 = vmul.f32 %v2945, %v2898
        %v2953 = vmul.f32 %v2945, %v2899
        %v2954 = vadd.f32 %v2936, %v2946
        %v2955 = vadd.f32 %v2937, %v2947
        %v2956 = vadd.f32 %v2938, %v2948
        %v2957 = vadd.f32 %v2939, %v2949
        %v2958 = vadd.f32 %v2940, %v2950
        %v2959 = vadd.f32 %v2941, %v2951
        %v2960 = vadd.f32 %v2942, %v2952
        %v2961 = vadd.f32 %v2943, %v2953
        %v2962 = vld [vmem:[%s453 + $0x3] sm:$0x1]
        %v2963 = vperm.slane %v2962, 0
        %v2964 = vmul.f32 %v2963, %v2894
        %v2965 = vmul.f32 %v2963, %v2895
        %v2966 = vmul.f32 %v2963, %v2896
        %v2967 = vmul.f32 %v2963, %v2897
        %v2968 = vmul.f32 %v2963, %v2898
        %v2969 = vmul.f32 %v2963, %v2899
        %v2970 = vmul.f32 %v2963, %v2900
        %v2971 = vmul.f32 %v2963, %v2901
        %v2972 = vadd.f32 %v2954, %v2964
        %v2973 = vadd.f32 %v2955, %v2965
        %v2974 = vadd.f32 %v2956, %v2966
        %v2975 = vadd.f32 %v2957, %v2967
        %v2976 = vadd.f32 %v2958, %v2968
        %v2977 = vadd.f32 %v2959, %v2969
        %v2978 = vadd.f32 %v2960, %v2970
        %v2979 = vadd.f32 %v2961, %v2971
        %v2980 = vld [vmem:[%s472 + $0x3] sm:$0x1]
        %v2981 = vperm.slane %v2980, 0
        %v2982 = vmul.f32 %v2981, %v2896
        %v2983 = vmul.f32 %v2981, %v2897
        %v2984 = vmul.f32 %v2981, %v2898
        %v2985 = vmul.f32 %v2981, %v2899
        %v2986 = vmul.f32 %v2981, %v2900
        %v2987 = vmul.f32 %v2981, %v2901
        %v2988 = vmul.f32 %v2981, %v2902
        %v2989 = vmul.f32 %v2981, %v2903
        %v2990 = vadd.f32 %v2972, %v2982
        %v2991 = vadd.f32 %v2973, %v2983
        %v2992 = vadd.f32 %v2974, %v2984
        %v2993 = vadd.f32 %v2975, %v2985
        %v2994 = vadd.f32 %v2976, %v2986
        %v2995 = vadd.f32 %v2977, %v2987
        %v2996 = vadd.f32 %v2978, %v2988
        %v2997 = vadd.f32 %v2979, %v2989
        %v2998 = vld [vmem:[%s491 + $0x3] sm:$0x1]
        %v2999 = vperm.slane %v2998, 0
        %v3000 = vmul.f32 %v2999, %v2898
        %v3001 = vmul.f32 %v2999, %v2899
        %v3002 = vmul.f32 %v2999, %v2900
        %v3003 = vmul.f32 %v2999, %v2901
        %v3004 = vmul.f32 %v2999, %v2902
        %v3005 = vmul.f32 %v2999, %v2903
        %v3006 = vmul.f32 %v2999, %v2904
        %v3007 = vmul.f32 %v2999, %v2905
        %v3008 = vadd.f32 %v2990, %v3000
        %v3009 = vadd.f32 %v2991, %v3001
        %v3010 = vadd.f32 %v2992, %v3002
        %v3011 = vadd.f32 %v2993, %v3003
        %v3012 = vadd.f32 %v2994, %v3004
        %v3013 = vadd.f32 %v2995, %v3005
        %v3014 = vadd.f32 %v2996, %v3006
        %v3015 = vadd.f32 %v2997, %v3007
        %v3016 = vld [vmem:[%s510 + $0x3] sm:$0x1]
        %v3017 = vperm.slane %v3016, 0
        %v3018 = vmul.f32 %v3017, %v2900
        %v3019 = vmul.f32 %v3017, %v2901
        %v3020 = vmul.f32 %v3017, %v2902
        %v3021 = vmul.f32 %v3017, %v2903
        %v3022 = vmul.f32 %v3017, %v2904
        %v3023 = vmul.f32 %v3017, %v2905
        %v3024 = vmul.f32 %v3017, %v2906
        %v3025 = vmul.f32 %v3017, %v2907
        %v3026 = vadd.f32 %v3008, %v3018
        %v3027 = vadd.f32 %v3009, %v3019
        %v3028 = vadd.f32 %v3010, %v3020
        %v3029 = vadd.f32 %v3011, %v3021
        %v3030 = vadd.f32 %v3012, %v3022
        %v3031 = vadd.f32 %v3013, %v3023
        %v3032 = vadd.f32 %v3014, %v3024
        %v3033 = vadd.f32 %v3015, %v3025
        %v3034 = vld [vmem:[%s2449 + $0x4] sm:$0xff]
        %v3035 = vld [vmem:[%s2449 + $0xc] sm:$0xff]
        %v3036 = vld [vmem:[%s2449 + $0x1c] sm:$0xff]
        %v3037 = vld [vmem:[%s2449 + $0x24] sm:$0xff]
        %v3038 = vld [vmem:[%s2449 + $0x34] sm:$0xff]
        %v3039 = vld [vmem:[%s2449 + $0x3c] sm:$0xff]
        %v3040 = vld [vmem:[%s2449 + $0x4c] sm:$0xff]
        %v3041 = vld [vmem:[%s2449 + $0x54] sm:$0xff]
        %v3042 = vld [vmem:[%s2449 + $0x64] sm:$0xff]
        %v3043 = vld [vmem:[%s2449 + $0x6c] sm:$0xff]
        %v3044 = vld [vmem:[%s2449 + $0x7c] sm:$0xff]
        %v3045 = vld [vmem:[%s2449 + $0x84] sm:$0xff]
        %v3046 = vld [vmem:[%s2449 + $0x94] sm:$0xff]
        %v3047 = vld [vmem:[%s2449 + $0x9c] sm:$0xff]
        %v3048 = vld [vmem:[%s2449 + $0xac] sm:$0xff]
        %v3049 = vld [vmem:[%s2449 + $0xb4] sm:$0xff]
        %v3050 = vld [vmem:[%s2449 + $0xc4] sm:$0xff]
        %v3051 = vld [vmem:[%s2449 + $0xcc] sm:$0xff]
        %v3052 = vld [vmem:[%s2449 + $0xdc] sm:$0xff]
        %v3053 = vld [vmem:[%s2449 + $0xe4] sm:$0xff]
        %v3054 = vld [vmem:[%s230 + $0x4] sm:$0x1]
        %v3055 = vperm.slane %v3054, 0
        %v3056 = vmul.f32 %v3055, %v3034
        %v3057 = vmul.f32 %v3055, %v3035
        %v3058 = vmul.f32 %v3055, %v3036
        %v3059 = vmul.f32 %v3055, %v3037
        %v3060 = vmul.f32 %v3055, %v3038
        %v3061 = vmul.f32 %v3055, %v3039
        %v3062 = vmul.f32 %v3055, %v3040
        %v3063 = vmul.f32 %v3055, %v3041
        %v3064 = vadd.f32 %v3026, %v3056
        %v3065 = vadd.f32 %v3027, %v3057
        %v3066 = vadd.f32 %v3028, %v3058
        %v3067 = vadd.f32 %v3029, %v3059
        %v3068 = vadd.f32 %v3030, %v3060
        %v3069 = vadd.f32 %v3031, %v3061
        %v3070 = vadd.f32 %v3032, %v3062
        %v3071 = vadd.f32 %v3033, %v3063
        %v3072 = vld [vmem:[%s415 + $0x4] sm:$0x1]
        %v3073 = vperm.slane %v3072, 0
        %v3074 = vmul.f32 %v3073, %v3036
        %v3075 = vmul.f32 %v3073, %v3037
        %v3076 = vmul.f32 %v3073, %v3038
        %v3077 = vmul.f32 %v3073, %v3039
        %v3078 = vmul.f32 %v3073, %v3040
        %v3079 = vmul.f32 %v3073, %v3041
        %v3080 = vmul.f32 %v3073, %v3042
        %v3081 = vmul.f32 %v3073, %v3043
        %v3082 = vadd.f32 %v3064, %v3074
        %v3083 = vadd.f32 %v3065, %v3075
        %v3084 = vadd.f32 %v3066, %v3076
        %v3085 = vadd.f32 %v3067, %v3077
        %v3086 = vadd.f32 %v3068, %v3078
        %v3087 = vadd.f32 %v3069, %v3079
        %v3088 = vadd.f32 %v3070, %v3080
        %v3089 = vadd.f32 %v3071, %v3081
        %v3090 = vld [vmem:[%s434 + $0x4] sm:$0x1]
        %v3091 = vperm.slane %v3090, 0
        %v3092 = vmul.f32 %v3091, %v3038
        %v3093 = vmul.f32 %v3091, %v3039
        %v3094 = vmul.f32 %v3091, %v3040
        %v3095 = vmul.f32 %v3091, %v3041
        %v3096 = vmul.f32 %v3091, %v3042
        %v3097 = vmul.f32 %v3091, %v3043
        %v3098 = vmul.f32 %v3091, %v3044
        %v3099 = vmul.f32 %v3091, %v3045
        %v3100 = vadd.f32 %v3082, %v3092
        %v3101 = vadd.f32 %v3083, %v3093
        %v3102 = vadd.f32 %v3084, %v3094
        %v3103 = vadd.f32 %v3085, %v3095
        %v3104 = vadd.f32 %v3086, %v3096
        %v3105 = vadd.f32 %v3087, %v3097
        %v3106 = vadd.f32 %v3088, %v3098
        %v3107 = vadd.f32 %v3089, %v3099
        %v3108 = vld [vmem:[%s453 + $0x4] sm:$0x1]
        %v3109 = vperm.slane %v3108, 0
        %v3110 = vmul.f32 %v3109, %v3040
        %v3111 = vmul.f32 %v3109, %v3041
        %v3112 = vmul.f32 %v3109, %v3042
        %v3113 = vmul.f32 %v3109, %v3043
        %v3114 = vmul.f32 %v3109, %v3044
        %v3115 = vmul.f32 %v3109, %v3045
        %v3116 = vmul.f32 %v3109, %v3046
        %v3117 = vmul.f32 %v3109, %v3047
        %v3118 = vadd.f32 %v3100, %v3110
        %v3119 = vadd.f32 %v3101, %v3111
        %v3120 = vadd.f32 %v3102, %v3112
        %v3121 = vadd.f32 %v3103, %v3113
        %v3122 = vadd.f32 %v3104, %v3114
        %v3123 = vadd.f32 %v3105, %v3115
        %v3124 = vadd.f32 %v3106, %v3116
        %v3125 = vadd.f32 %v3107, %v3117
        %v3126 = vld [vmem:[%s472 + $0x4] sm:$0x1]
        %v3127 = vperm.slane %v3126, 0
        %v3128 = vmul.f32 %v3127, %v3042
        %v3129 = vmul.f32 %v3127, %v3043
        %v3130 = vmul.f32 %v3127, %v3044
        %v3131 = vmul.f32 %v3127, %v3045
        %v3132 = vmul.f32 %v3127, %v3046
        %v3133 = vmul.f32 %v3127, %v3047
        %v3134 = vmul.f32 %v3127, %v3048
        %v3135 = vmul.f32 %v3127, %v3049
        %v3136 = vadd.f32 %v3118, %v3128
        %v3137 = vadd.f32 %v3119, %v3129
        %v3138 = vadd.f32 %v3120, %v3130
        %v3139 = vadd.f32 %v3121, %v3131
        %v3140 = vadd.f32 %v3122, %v3132
        %v3141 = vadd.f32 %v3123, %v3133
        %v3142 = vadd.f32 %v3124, %v3134
        %v3143 = vadd.f32 %v3125, %v3135
        %v3144 = vld [vmem:[%s491 + $0x4] sm:$0x1]
        %v3145 = vperm.slane %v3144, 0
        %v3146 = vmul.f32 %v3145, %v3044
        %v3147 = vmul.f32 %v3145, %v3045
        %v3148 = vmul.f32 %v3145, %v3046
        %v3149 = vmul.f32 %v3145, %v3047
        %v3150 = vmul.f32 %v3145, %v3048
        %v3151 = vmul.f32 %v3145, %v3049
        %v3152 = vmul.f32 %v3145, %v3050
        %v3153 = vmul.f32 %v3145, %v3051
        %v3154 = vadd.f32 %v3136, %v3146
        %v3155 = vadd.f32 %v3137, %v3147
        %v3156 = vadd.f32 %v3138, %v3148
        %v3157 = vadd.f32 %v3139, %v3149
        %v3158 = vadd.f32 %v3140, %v3150
        %v3159 = vadd.f32 %v3141, %v3151
        %v3160 = vadd.f32 %v3142, %v3152
        %v3161 = vadd.f32 %v3143, %v3153
        %v3162 = vld [vmem:[%s510 + $0x4] sm:$0x1]
        %v3163 = vperm.slane %v3162, 0
        %v3164 = vmul.f32 %v3163, %v3046
        %v3165 = vmul.f32 %v3163, %v3047
        %v3166 = vmul.f32 %v3163, %v3048
        %v3167 = vmul.f32 %v3163, %v3049
        %v3168 = vmul.f32 %v3163, %v3050
        %v3169 = vmul.f32 %v3163, %v3051
        %v3170 = vmul.f32 %v3163, %v3052
        %v3171 = vmul.f32 %v3163, %v3053
        %v3172 = vadd.f32 %v3154, %v3164
        %v3173 = vadd.f32 %v3155, %v3165
        %v3174 = vadd.f32 %v3156, %v3166
        %v3175 = vadd.f32 %v3157, %v3167
        %v3176 = vadd.f32 %v3158, %v3168
        %v3177 = vadd.f32 %v3159, %v3169
        %v3178 = vadd.f32 %v3160, %v3170
        %v3179 = vadd.f32 %v3161, %v3171
        %v3180 = vld [vmem:[%s2449 + $0x5] sm:$0xff]
        %v3181 = vld [vmem:[%s2449 + $0xd] sm:$0xff]
        %v3182 = vld [vmem:[%s2449 + $0x1d] sm:$0xff]
        %v3183 = vld [vmem:[%s2449 + $0x25] sm:$0xff]
        %v3184 = vld [vmem:[%s2449 + $0x35] sm:$0xff]
        %v3185 = vld [vmem:[%s2449 + $0x3d] sm:$0xff]
        %v3186 = vld [vmem:[%s2449 + $0x4d] sm:$0xff]
        %v3187 = vld [vmem:[%s2449 + $0x55] sm:$0xff]
        %v3188 = vld [vmem:[%s2449 + $0x65] sm:$0xff]
        %v3189 = vld [vmem:[%s2449 + $0x6d] sm:$0xff]
        %v3190 = vld [vmem:[%s2449 + $0x7d] sm:$0xff]
        %v3191 = vld [vmem:[%s2449 + $0x85] sm:$0xff]
        %v3192 = vld [vmem:[%s2449 + $0x95] sm:$0xff]
        %v3193 = vld [vmem:[%s2449 + $0x9d] sm:$0xff]
        %v3194 = vld [vmem:[%s2449 + $0xad] sm:$0xff]
        %v3195 = vld [vmem:[%s2449 + $0xb5] sm:$0xff]
        %v3196 = vld [vmem:[%s2449 + $0xc5] sm:$0xff]
        %v3197 = vld [vmem:[%s2449 + $0xcd] sm:$0xff]
        %v3198 = vld [vmem:[%s2449 + $0xdd] sm:$0xff]
        %v3199 = vld [vmem:[%s2449 + $0xe5] sm:$0xff]
        %v3200 = vld [vmem:[%s230 + $0x5] sm:$0x1]
        %v3201 = vperm.slane %v3200, 0
        %v3202 = vmul.f32 %v3201, %v3180
        %v3203 = vmul.f32 %v3201, %v3181
        %v3204 = vmul.f32 %v3201, %v3182
        %v3205 = vmul.f32 %v3201, %v3183
        %v3206 = vmul.f32 %v3201, %v3184
        %v3207 = vmul.f32 %v3201, %v3185
        %v3208 = vmul.f32 %v3201, %v3186
        %v3209 = vmul.f32 %v3201, %v3187
        %v3210 = vadd.f32 %v3172, %v3202
        %v3211 = vadd.f32 %v3173, %v3203
        %v3212 = vadd.f32 %v3174, %v3204
        %v3213 = vadd.f32 %v3175, %v3205
        %v3214 = vadd.f32 %v3176, %v3206
        %v3215 = vadd.f32 %v3177, %v3207
        %v3216 = vadd.f32 %v3178, %v3208
        %v3217 = vadd.f32 %v3179, %v3209
        %v3218 = vld [vmem:[%s415 + $0x5] sm:$0x1]
        %v3219 = vperm.slane %v3218, 0
        %v3220 = vmul.f32 %v3219, %v3182
        %v3221 = vmul.f32 %v3219, %v3183
        %v3222 = vmul.f32 %v3219, %v3184
        %v3223 = vmul.f32 %v3219, %v3185
        %v3224 = vmul.f32 %v3219, %v3186
        %v3225 = vmul.f32 %v3219, %v3187
        %v3226 = vmul.f32 %v3219, %v3188
        %v3227 = vmul.f32 %v3219, %v3189
        %v3228 = vadd.f32 %v3210, %v3220
        %v3229 = vadd.f32 %v3211, %v3221
        %v3230 = vadd.f32 %v3212, %v3222
        %v3231 = vadd.f32 %v3213, %v3223
        %v3232 = vadd.f32 %v3214, %v3224
        %v3233 = vadd.f32 %v3215, %v3225
        %v3234 = vadd.f32 %v3216, %v3226
        %v3235 = vadd.f32 %v3217, %v3227
        %v3236 = vld [vmem:[%s434 + $0x5] sm:$0x1]
        %v3237 = vperm.slane %v3236, 0
        %v3238 = vmul.f32 %v3237, %v3184
        %v3239 = vmul.f32 %v3237, %v3185
        %v3240 = vmul.f32 %v3237, %v3186
        %v3241 = vmul.f32 %v3237, %v3187
        %v3242 = vmul.f32 %v3237, %v3188
        %v3243 = vmul.f32 %v3237, %v3189
        %v3244 = vmul.f32 %v3237, %v3190
        %v3245 = vmul.f32 %v3237, %v3191
        %v3246 = vadd.f32 %v3228, %v3238
        %v3247 = vadd.f32 %v3229, %v3239
        %v3248 = vadd.f32 %v3230, %v3240
        %v3249 = vadd.f32 %v3231, %v3241
        %v3250 = vadd.f32 %v3232, %v3242
        %v3251 = vadd.f32 %v3233, %v3243
        %v3252 = vadd.f32 %v3234, %v3244
        %v3253 = vadd.f32 %v3235, %v3245
        %v3254 = vld [vmem:[%s453 + $0x5] sm:$0x1]
        %v3255 = vperm.slane %v3254, 0
        %v3256 = vmul.f32 %v3255, %v3186
        %v3257 = vmul.f32 %v3255, %v3187
        %v3258 = vmul.f32 %v3255, %v3188
        %v3259 = vmul.f32 %v3255, %v3189
        %v3260 = vmul.f32 %v3255, %v3190
        %v3261 = vmul.f32 %v3255, %v3191
        %v3262 = vmul.f32 %v3255, %v3192
        %v3263 = vmul.f32 %v3255, %v3193
        %v3264 = vadd.f32 %v3246, %v3256
        %v3265 = vadd.f32 %v3247, %v3257
        %v3266 = vadd.f32 %v3248, %v3258
        %v3267 = vadd.f32 %v3249, %v3259
        %v3268 = vadd.f32 %v3250, %v3260
        %v3269 = vadd.f32 %v3251, %v3261
        %v3270 = vadd.f32 %v3252, %v3262
        %v3271 = vadd.f32 %v3253, %v3263
        %v3272 = vld [vmem:[%s472 + $0x5] sm:$0x1]
        %v3273 = vperm.slane %v3272, 0
        %v3274 = vmul.f32 %v3273, %v3188
        %v3275 = vmul.f32 %v3273, %v3189
        %v3276 = vmul.f32 %v3273, %v3190
        %v3277 = vmul.f32 %v3273, %v3191
        %v3278 = vmul.f32 %v3273, %v3192
        %v3279 = vmul.f32 %v3273, %v3193
        %v3280 = vmul.f32 %v3273, %v3194
        %v3281 = vmul.f32 %v3273, %v3195
        %v3282 = vadd.f32 %v3264, %v3274
        %v3283 = vadd.f32 %v3265, %v3275
        %v3284 = vadd.f32 %v3266, %v3276
        %v3285 = vadd.f32 %v3267, %v3277
        %v3286 = vadd.f32 %v3268, %v3278
        %v3287 = vadd.f32 %v3269, %v3279
        %v3288 = vadd.f32 %v3270, %v3280
        %v3289 = vadd.f32 %v3271, %v3281
        %v3290 = vld [vmem:[%s491 + $0x5] sm:$0x1]
        %v3291 = vperm.slane %v3290, 0
        %v3292 = vmul.f32 %v3291, %v3190
        %v3293 = vmul.f32 %v3291, %v3191
        %v3294 = vmul.f32 %v3291, %v3192
        %v3295 = vmul.f32 %v3291, %v3193
        %v3296 = vmul.f32 %v3291, %v3194
        %v3297 = vmul.f32 %v3291, %v3195
        %v3298 = vmul.f32 %v3291, %v3196
        %v3299 = vmul.f32 %v3291, %v3197
        %v3300 = vadd.f32 %v3282, %v3292
        %v3301 = vadd.f32 %v3283, %v3293
        %v3302 = vadd.f32 %v3284, %v3294
        %v3303 = vadd.f32 %v3285, %v3295
        %v3304 = vadd.f32 %v3286, %v3296
        %v3305 = vadd.f32 %v3287, %v3297
        %v3306 = vadd.f32 %v3288, %v3298
        %v3307 = vadd.f32 %v3289, %v3299
        %v3308 = vld [vmem:[%s510 + $0x5] sm:$0x1]
        %v3309 = vperm.slane %v3308, 0
        %v3310 = vmul.f32 %v3309, %v3192
        %v3311 = vmul.f32 %v3309, %v3193
        %v3312 = vmul.f32 %v3309, %v3194
        %v3313 = vmul.f32 %v3309, %v3195
        %v3314 = vmul.f32 %v3309, %v3196
        %v3315 = vmul.f32 %v3309, %v3197
        %v3316 = vmul.f32 %v3309, %v3198
        %v3317 = vmul.f32 %v3309, %v3199
        %v3318 = vadd.f32 %v3300, %v3310
        %v3319 = vadd.f32 %v3301, %v3311
        %v3320 = vadd.f32 %v3302, %v3312
        %v3321 = vadd.f32 %v3303, %v3313
        %v3322 = vadd.f32 %v3304, %v3314
        %v3323 = vadd.f32 %v3305, %v3315
        %v3324 = vadd.f32 %v3306, %v3316
        %v3325 = vadd.f32 %v3307, %v3317
        %v3326 = vld [vmem:[%s2449 + $0x6] sm:$0xff]
        %v3327 = vld [vmem:[%s2449 + $0xe] sm:$0xff]
        %v3328 = vld [vmem:[%s2449 + $0x1e] sm:$0xff]
        %v3329 = vld [vmem:[%s2449 + $0x26] sm:$0xff]
        %v3330 = vld [vmem:[%s2449 + $0x36] sm:$0xff]
        %v3331 = vld [vmem:[%s2449 + $0x3e] sm:$0xff]
        %v3332 = vld [vmem:[%s2449 + $0x4e] sm:$0xff]
        %v3333 = vld [vmem:[%s2449 + $0x56] sm:$0xff]
        %v3334 = vld [vmem:[%s2449 + $0x66] sm:$0xff]
        %v3335 = vld [vmem:[%s2449 + $0x6e] sm:$0xff]
        %v3336 = vld [vmem:[%s2449 + $0x7e] sm:$0xff]
        %v3337 = vld [vmem:[%s2449 + $0x86] sm:$0xff]
        %v3338 = vld [vmem:[%s2449 + $0x96] sm:$0xff]
        %v3339 = vld [vmem:[%s2449 + $0x9e] sm:$0xff]
        %v3340 = vld [vmem:[%s2449 + $0xae] sm:$0xff]
        %v3341 = vld [vmem:[%s2449 + $0xb6] sm:$0xff]
        %v3342 = vld [vmem:[%s2449 + $0xc6] sm:$0xff]
        %v3343 = vld [vmem:[%s2449 + $0xce] sm:$0xff]
        %v3344 = vld [vmem:[%s2449 + $0xde] sm:$0xff]
        %v3345 = vld [vmem:[%s2449 + $0xe6] sm:$0xff]
        %v3346 = vld [vmem:[%s230 + $0x6] sm:$0x1]
        %v3347 = vperm.slane %v3346, 0
        %v3348 = vmul.f32 %v3347, %v3326
        %v3349 = vmul.f32 %v3347, %v3327
        %v3350 = vmul.f32 %v3347, %v3328
        %v3351 = vmul.f32 %v3347, %v3329
        %v3352 = vmul.f32 %v3347, %v3330
        %v3353 = vmul.f32 %v3347, %v3331
        %v3354 = vmul.f32 %v3347, %v3332
        %v3355 = vmul.f32 %v3347, %v3333
        %v3356 = vadd.f32 %v3318, %v3348
        %v3357 = vadd.f32 %v3319, %v3349
        %v3358 = vadd.f32 %v3320, %v3350
        %v3359 = vadd.f32 %v3321, %v3351
        %v3360 = vadd.f32 %v3322, %v3352
        %v3361 = vadd.f32 %v3323, %v3353
        %v3362 = vadd.f32 %v3324, %v3354
        %v3363 = vadd.f32 %v3325, %v3355
        %v3364 = vld [vmem:[%s415 + $0x6] sm:$0x1]
        %v3365 = vperm.slane %v3364, 0
        %v3366 = vmul.f32 %v3365, %v3328
        %v3367 = vmul.f32 %v3365, %v3329
        %v3368 = vmul.f32 %v3365, %v3330
        %v3369 = vmul.f32 %v3365, %v3331
        %v3370 = vmul.f32 %v3365, %v3332
        %v3371 = vmul.f32 %v3365, %v3333
        %v3372 = vmul.f32 %v3365, %v3334
        %v3373 = vmul.f32 %v3365, %v3335
        %v3374 = vadd.f32 %v3356, %v3366
        %v3375 = vadd.f32 %v3357, %v3367
        %v3376 = vadd.f32 %v3358, %v3368
        %v3377 = vadd.f32 %v3359, %v3369
        %v3378 = vadd.f32 %v3360, %v3370
        %v3379 = vadd.f32 %v3361, %v3371
        %v3380 = vadd.f32 %v3362, %v3372
        %v3381 = vadd.f32 %v3363, %v3373
        %v3382 = vld [vmem:[%s434 + $0x6] sm:$0x1]
        %v3383 = vperm.slane %v3382, 0
        %v3384 = vmul.f32 %v3383, %v3330
        %v3385 = vmul.f32 %v3383, %v3331
        %v3386 = vmul.f32 %v3383, %v3332
        %v3387 = vmul.f32 %v3383, %v3333
        %v3388 = vmul.f32 %v3383, %v3334
        %v3389 = vmul.f32 %v3383, %v3335
        %v3390 = vmul.f32 %v3383, %v3336
        %v3391 = vmul.f32 %v3383, %v3337
        %v3392 = vadd.f32 %v3374, %v3384
        %v3393 = vadd.f32 %v3375, %v3385
        %v3394 = vadd.f32 %v3376, %v3386
        %v3395 = vadd.f32 %v3377, %v3387
        %v3396 = vadd.f32 %v3378, %v3388
        %v3397 = vadd.f32 %v3379, %v3389
        %v3398 = vadd.f32 %v3380, %v3390
        %v3399 = vadd.f32 %v3381, %v3391
        %v3400 = vld [vmem:[%s453 + $0x6] sm:$0x1]
        %v3401 = vperm.slane %v3400, 0
        %v3402 = vmul.f32 %v3401, %v3332
        %v3403 = vmul.f32 %v3401, %v3333
        %v3404 = vmul.f32 %v3401, %v3334
        %v3405 = vmul.f32 %v3401, %v3335
        %v3406 = vmul.f32 %v3401, %v3336
        %v3407 = vmul.f32 %v3401, %v3337
        %v3408 = vmul.f32 %v3401, %v3338
        %v3409 = vmul.f32 %v3401, %v3339
        %v3410 = vadd.f32 %v3392, %v3402
        %v3411 = vadd.f32 %v3393, %v3403
        %v3412 = vadd.f32 %v3394, %v3404
        %v3413 = vadd.f32 %v3395, %v3405
        %v3414 = vadd.f32 %v3396, %v3406
        %v3415 = vadd.f32 %v3397, %v3407
        %v3416 = vadd.f32 %v3398, %v3408
        %v3417 = vadd.f32 %v3399, %v3409
        %v3418 = vld [vmem:[%s472 + $0x6] sm:$0x1]
        %v3419 = vperm.slane %v3418, 0
        %v3420 = vmul.f32 %v3419, %v3334
        %v3421 = vmul.f32 %v3419, %v3335
        %v3422 = vmul.f32 %v3419, %v3336
        %v3423 = vmul.f32 %v3419, %v3337
        %v3424 = vmul.f32 %v3419, %v3338
        %v3425 = vmul.f32 %v3419, %v3339
        %v3426 = vmul.f32 %v3419, %v3340
        %v3427 = vmul.f32 %v3419, %v3341
        %v3428 = vadd.f32 %v3410, %v3420
        %v3429 = vadd.f32 %v3411, %v3421
        %v3430 = vadd.f32 %v3412, %v3422
        %v3431 = vadd.f32 %v3413, %v3423
        %v3432 = vadd.f32 %v3414, %v3424
        %v3433 = vadd.f32 %v3415, %v3425
        %v3434 = vadd.f32 %v3416, %v3426
        %v3435 = vadd.f32 %v3417, %v3427
        %v3436 = vld [vmem:[%s491 + $0x6] sm:$0x1]
        %v3437 = vperm.slane %v3436, 0
        %v3438 = vmul.f32 %v3437, %v3336
        %v3439 = vmul.f32 %v3437, %v3337
        %v3440 = vmul.f32 %v3437, %v3338
        %v3441 = vmul.f32 %v3437, %v3339
        %v3442 = vmul.f32 %v3437, %v3340
        %v3443 = vmul.f32 %v3437, %v3341
        %v3444 = vmul.f32 %v3437, %v3342
        %v3445 = vmul.f32 %v3437, %v3343
        %v3446 = vadd.f32 %v3428, %v3438
        %v3447 = vadd.f32 %v3429, %v3439
        %v3448 = vadd.f32 %v3430, %v3440
        %v3449 = vadd.f32 %v3431, %v3441
        %v3450 = vadd.f32 %v3432, %v3442
        %v3451 = vadd.f32 %v3433, %v3443
        %v3452 = vadd.f32 %v3434, %v3444
        %v3453 = vadd.f32 %v3435, %v3445
        %v3454 = vld [vmem:[%s510 + $0x6] sm:$0x1]
        %v3455 = vperm.slane %v3454, 0
        %v3456 = vmul.f32 %v3455, %v3338
        %v3457 = vmul.f32 %v3455, %v3339
        %v3458 = vmul.f32 %v3455, %v3340
        %v3459 = vmul.f32 %v3455, %v3341
        %v3460 = vmul.f32 %v3455, %v3342
        %v3461 = vmul.f32 %v3455, %v3343
        %v3462 = vmul.f32 %v3455, %v3344
        %v3463 = vmul.f32 %v3455, %v3345
        %v3464 = vadd.f32 %v3446, %v3456
        %v3465 = vadd.f32 %v3447, %v3457
        %v3466 = vadd.f32 %v3448, %v3458
        %v3467 = vadd.f32 %v3449, %v3459
        %v3468 = vadd.f32 %v3450, %v3460
        %v3469 = vadd.f32 %v3451, %v3461
        %v3470 = vadd.f32 %v3452, %v3462
        %v3471 = vadd.f32 %v3453, %v3463
        %s3472 = scalar_lea.vmem %s218, 128 [#allocation3]
        %3473 = vst [vmem:[%s3472] sm:$0xff] %v3464
        %3474 = vst [vmem:[%s3472 + $0x8] sm:$0xff] %v3465
        %3475 = vst [vmem:[%s3472 + $0x10] sm:$0xff] %v3466
        %3476 = vst [vmem:[%s3472 + $0x18] sm:$0xff] %v3467
        %3477 = vst [vmem:[%s3472 + $0x20] sm:$0xff] %v3468
        %3478 = vst [vmem:[%s3472 + $0x28] sm:$0xff] %v3469
        %3479 = vst [vmem:[%s3472 + $0x30] sm:$0xff] %v3470
        %3480 = vst [vmem:[%s3472 + $0x38] sm:$0xff] %v3471
        %s3481 = sadd.s32 %s374, 12
        %s3482 = smul.u32 %s3481, 24
        %s3483 = scalar_lea.vmem [#allocation2], %s3482
        %v3484 = vld [vmem:[%s3483] sm:$0xff]
        %v3485 = vld [vmem:[%s3483 + $0x8] sm:$0xff]
        %v3486 = vld [vmem:[%s3483 + $0x18] sm:$0xff]
        %v3487 = vld [vmem:[%s3483 + $0x20] sm:$0xff]
        %v3488 = vld [vmem:[%s3483 + $0x30] sm:$0xff]
        %v3489 = vld [vmem:[%s3483 + $0x38] sm:$0xff]
        %v3490 = vld [vmem:[%s3483 + $0x48] sm:$0xff]
        %v3491 = vld [vmem:[%s3483 + $0x50] sm:$0xff]
        %v3492 = vld [vmem:[%s3483 + $0x60] sm:$0xff]
        %v3493 = vld [vmem:[%s3483 + $0x68] sm:$0xff]
        %v3494 = vld [vmem:[%s3483 + $0x78] sm:$0xff]
        %v3495 = vld [vmem:[%s3483 + $0x80] sm:$0xff]
        %v3496 = vld [vmem:[%s3483 + $0x90] sm:$0xff]
        %v3497 = vld [vmem:[%s3483 + $0x98] sm:$0xff]
        %v3498 = vld [vmem:[%s3483 + $0xa8] sm:$0xff]
        %v3499 = vld [vmem:[%s3483 + $0xb0] sm:$0xff]
        %v3500 = vld [vmem:[%s3483 + $0xc0] sm:$0xff]
        %v3501 = vld [vmem:[%s3483 + $0xc8] sm:$0xff]
        %v3502 = vld [vmem:[%s3483 + $0xd8] sm:$0xff]
        %v3503 = vld [vmem:[%s3483 + $0xe0] sm:$0xff]
        %v3504 = vld [vmem:[%s230] sm:$0x1]
        %v3505 = vperm.slane %v3504, 0
        %v3506 = vmul.f32 %v3505, %v3484
        %v3507 = vmul.f32 %v3505, %v3485
        %v3508 = vmul.f32 %v3505, %v3486
        %v3509 = vmul.f32 %v3505, %v3487
        %v3510 = vmul.f32 %v3505, %v3488
        %v3511 = vmul.f32 %v3505, %v3489
        %v3512 = vmul.f32 %v3505, %v3490
        %v3513 = vmul.f32 %v3505, %v3491
        %v3514 = vadd.f32 %v372, %v3506
        %v3515 = vadd.f32 %v372, %v3507
        %v3516 = vadd.f32 %v372, %v3508
        %v3517 = vadd.f32 %v372, %v3509
        %v3518 = vadd.f32 %v372, %v3510
        %v3519 = vadd.f32 %v372, %v3511
        %v3520 = vadd.f32 %v372, %v3512
        %v3521 = vadd.f32 %v372, %v3513
        %v3522 = vld [vmem:[%s415] sm:$0x1]
        %v3523 = vperm.slane %v3522, 0
        %v3524 = vmul.f32 %v3523, %v3486
        %v3525 = vmul.f32 %v3523, %v3487
        %v3526 = vmul.f32 %v3523, %v3488
        %v3527 = vmul.f32 %v3523, %v3489
        %v3528 = vmul.f32 %v3523, %v3490
        %v3529 = vmul.f32 %v3523, %v3491
        %v3530 = vmul.f32 %v3523, %v3492
        %v3531 = vmul.f32 %v3523, %v3493
        %v3532 = vadd.f32 %v3514, %v3524
        %v3533 = vadd.f32 %v3515, %v3525
        %v3534 = vadd.f32 %v3516, %v3526
        %v3535 = vadd.f32 %v3517, %v3527
        %v3536 = vadd.f32 %v3518, %v3528
        %v3537 = vadd.f32 %v3519, %v3529
        %v3538 = vadd.f32 %v3520, %v3530
        %v3539 = vadd.f32 %v3521, %v3531
        %v3540 = vld [vmem:[%s434] sm:$0x1]
        %v3541 = vperm.slane %v3540, 0
        %v3542 = vmul.f32 %v3541, %v3488
        %v3543 = vmul.f32 %v3541, %v3489
        %v3544 = vmul.f32 %v3541, %v3490
        %v3545 = vmul.f32 %v3541, %v3491
        %v3546 = vmul.f32 %v3541, %v3492
        %v3547 = vmul.f32 %v3541, %v3493
        %v3548 = vmul.f32 %v3541, %v3494
        %v3549 = vmul.f32 %v3541, %v3495
        %v3550 = vadd.f32 %v3532, %v3542
        %v3551 = vadd.f32 %v3533, %v3543
        %v3552 = vadd.f32 %v3534, %v3544
        %v3553 = vadd.f32 %v3535, %v3545
        %v3554 = vadd.f32 %v3536, %v3546
        %v3555 = vadd.f32 %v3537, %v3547
        %v3556 = vadd.f32 %v3538, %v3548
        %v3557 = vadd.f32 %v3539, %v3549
        %v3558 = vld [vmem:[%s453] sm:$0x1]
        %v3559 = vperm.slane %v3558, 0
        %v3560 = vmul.f32 %v3559, %v3490
        %v3561 = vmul.f32 %v3559, %v3491
        %v3562 = vmul.f32 %v3559, %v3492
        %v3563 = vmul.f32 %v3559, %v3493
        %v3564 = vmul.f32 %v3559, %v3494
        %v3565 = vmul.f32 %v3559, %v3495
        %v3566 = vmul.f32 %v3559, %v3496
        %v3567 = vmul.f32 %v3559, %v3497
        %v3568 = vadd.f32 %v3550, %v3560
        %v3569 = vadd.f32 %v3551, %v3561
        %v3570 = vadd.f32 %v3552, %v3562
        %v3571 = vadd.f32 %v3553, %v3563
        %v3572 = vadd.f32 %v3554, %v3564
        %v3573 = vadd.f32 %v3555, %v3565
        %v3574 = vadd.f32 %v3556, %v3566
        %v3575 = vadd.f32 %v3557, %v3567
        %v3576 = vld [vmem:[%s472] sm:$0x1]
        %v3577 = vperm.slane %v3576, 0
        %v3578 = vmul.f32 %v3577, %v3492
        %v3579 = vmul.f32 %v3577, %v3493
        %v3580 = vmul.f32 %v3577, %v3494
        %v3581 = vmul.f32 %v3577, %v3495
        %v3582 = vmul.f32 %v3577, %v3496
        %v3583 = vmul.f32 %v3577, %v3497
        %v3584 = vmul.f32 %v3577, %v3498
        %v3585 = vmul.f32 %v3577, %v3499
        %v3586 = vadd.f32 %v3568, %v3578
        %v3587 = vadd.f32 %v3569, %v3579
        %v3588 = vadd.f32 %v3570, %v3580
        %v3589 = vadd.f32 %v3571, %v3581
        %v3590 = vadd.f32 %v3572, %v3582
        %v3591 = vadd.f32 %v3573, %v3583
        %v3592 = vadd.f32 %v3574, %v3584
        %v3593 = vadd.f32 %v3575, %v3585
        %v3594 = vld [vmem:[%s491] sm:$0x1]
        %v3595 = vperm.slane %v3594, 0
        %v3596 = vmul.f32 %v3595, %v3494
        %v3597 = vmul.f32 %v3595, %v3495
        %v3598 = vmul.f32 %v3595, %v3496
        %v3599 = vmul.f32 %v3595, %v3497
        %v3600 = vmul.f32 %v3595, %v3498
        %v3601 = vmul.f32 %v3595, %v3499
        %v3602 = vmul.f32 %v3595, %v3500
        %v3603 = vmul.f32 %v3595, %v3501
        %v3604 = vadd.f32 %v3586, %v3596
        %v3605 = vadd.f32 %v3587, %v3597
        %v3606 = vadd.f32 %v3588, %v3598
        %v3607 = vadd.f32 %v3589, %v3599
        %v3608 = vadd.f32 %v3590, %v3600
        %v3609 = vadd.f32 %v3591, %v3601
        %v3610 = vadd.f32 %v3592, %v3602
        %v3611 = vadd.f32 %v3593, %v3603
        %v3612 = vld [vmem:[%s510] sm:$0x1]
        %v3613 = vperm.slane %v3612, 0
        %v3614 = vmul.f32 %v3613, %v3496
        %v3615 = vmul.f32 %v3613, %v3497
        %v3616 = vmul.f32 %v3613, %v3498
        %v3617 = vmul.f32 %v3613, %v3499
        %v3618 = vmul.f32 %v3613, %v3500
        %v3619 = vmul.f32 %v3613, %v3501
        %v3620 = vmul.f32 %v3613, %v3502
        %v3621 = vmul.f32 %v3613, %v3503
        %v3622 = vadd.f32 %v3604, %v3614
        %v3623 = vadd.f32 %v3605, %v3615
        %v3624 = vadd.f32 %v3606, %v3616
        %v3625 = vadd.f32 %v3607, %v3617
        %v3626 = vadd.f32 %v3608, %v3618
        %v3627 = vadd.f32 %v3609, %v3619
        %v3628 = vadd.f32 %v3610, %v3620
        %v3629 = vadd.f32 %v3611, %v3621
        %v3630 = vld [vmem:[%s3483 + $0x1] sm:$0xff]
        %v3631 = vld [vmem:[%s3483 + $0x9] sm:$0xff]
        %v3632 = vld [vmem:[%s3483 + $0x19] sm:$0xff]
        %v3633 = vld [vmem:[%s3483 + $0x21] sm:$0xff]
        %v3634 = vld [vmem:[%s3483 + $0x31] sm:$0xff]
        %v3635 = vld [vmem:[%s3483 + $0x39] sm:$0xff]
        %v3636 = vld [vmem:[%s3483 + $0x49] sm:$0xff]
        %v3637 = vld [vmem:[%s3483 + $0x51] sm:$0xff]
        %v3638 = vld [vmem:[%s3483 + $0x61] sm:$0xff]
        %v3639 = vld [vmem:[%s3483 + $0x69] sm:$0xff]
        %v3640 = vld [vmem:[%s3483 + $0x79] sm:$0xff]
        %v3641 = vld [vmem:[%s3483 + $0x81] sm:$0xff]
        %v3642 = vld [vmem:[%s3483 + $0x91] sm:$0xff]
        %v3643 = vld [vmem:[%s3483 + $0x99] sm:$0xff]
        %v3644 = vld [vmem:[%s3483 + $0xa9] sm:$0xff]
        %v3645 = vld [vmem:[%s3483 + $0xb1] sm:$0xff]
        %v3646 = vld [vmem:[%s3483 + $0xc1] sm:$0xff]
        %v3647 = vld [vmem:[%s3483 + $0xc9] sm:$0xff]
        %v3648 = vld [vmem:[%s3483 + $0xd9] sm:$0xff]
        %v3649 = vld [vmem:[%s3483 + $0xe1] sm:$0xff]
        %v3650 = vld [vmem:[%s230 + $0x1] sm:$0x1]
        %v3651 = vperm.slane %v3650, 0
        %v3652 = vmul.f32 %v3651, %v3630
        %v3653 = vmul.f32 %v3651, %v3631
        %v3654 = vmul.f32 %v3651, %v3632
        %v3655 = vmul.f32 %v3651, %v3633
        %v3656 = vmul.f32 %v3651, %v3634
        %v3657 = vmul.f32 %v3651, %v3635
        %v3658 = vmul.f32 %v3651, %v3636
        %v3659 = vmul.f32 %v3651, %v3637
        %v3660 = vadd.f32 %v3622, %v3652
        %v3661 = vadd.f32 %v3623, %v3653
        %v3662 = vadd.f32 %v3624, %v3654
        %v3663 = vadd.f32 %v3625, %v3655
        %v3664 = vadd.f32 %v3626, %v3656
        %v3665 = vadd.f32 %v3627, %v3657
        %v3666 = vadd.f32 %v3628, %v3658
        %v3667 = vadd.f32 %v3629, %v3659
        %v3668 = vld [vmem:[%s415 + $0x1] sm:$0x1]
        %v3669 = vperm.slane %v3668, 0
        %v3670 = vmul.f32 %v3669, %v3632
        %v3671 = vmul.f32 %v3669, %v3633
        %v3672 = vmul.f32 %v3669, %v3634
        %v3673 = vmul.f32 %v3669, %v3635
        %v3674 = vmul.f32 %v3669, %v3636
        %v3675 = vmul.f32 %v3669, %v3637
        %v3676 = vmul.f32 %v3669, %v3638
        %v3677 = vmul.f32 %v3669, %v3639
        %v3678 = vadd.f32 %v3660, %v3670
        %v3679 = vadd.f32 %v3661, %v3671
        %v3680 = vadd.f32 %v3662, %v3672
        %v3681 = vadd.f32 %v3663, %v3673
        %v3682 = vadd.f32 %v3664, %v3674
        %v3683 = vadd.f32 %v3665, %v3675
        %v3684 = vadd.f32 %v3666, %v3676
        %v3685 = vadd.f32 %v3667, %v3677
        %v3686 = vld [vmem:[%s434 + $0x1] sm:$0x1]
        %v3687 = vperm.slane %v3686, 0
        %v3688 = vmul.f32 %v3687, %v3634
        %v3689 = vmul.f32 %v3687, %v3635
        %v3690 = vmul.f32 %v3687, %v3636
        %v3691 = vmul.f32 %v3687, %v3637
        %v3692 = vmul.f32 %v3687, %v3638
        %v3693 = vmul.f32 %v3687, %v3639
        %v3694 = vmul.f32 %v3687, %v3640
        %v3695 = vmul.f32 %v3687, %v3641
        %v3696 = vadd.f32 %v3678, %v3688
        %v3697 = vadd.f32 %v3679, %v3689
        %v3698 = vadd.f32 %v3680, %v3690
        %v3699 = vadd.f32 %v3681, %v3691
        %v3700 = vadd.f32 %v3682, %v3692
        %v3701 = vadd.f32 %v3683, %v3693
        %v3702 = vadd.f32 %v3684, %v3694
        %v3703 = vadd.f32 %v3685, %v3695
        %v3704 = vld [vmem:[%s453 + $0x1] sm:$0x1]
        %v3705 = vperm.slane %v3704, 0
        %v3706 = vmul.f32 %v3705, %v3636
        %v3707 = vmul.f32 %v3705, %v3637
        %v3708 = vmul.f32 %v3705, %v3638
        %v3709 = vmul.f32 %v3705, %v3639
        %v3710 = vmul.f32 %v3705, %v3640
        %v3711 = vmul.f32 %v3705, %v3641
        %v3712 = vmul.f32 %v3705, %v3642
        %v3713 = vmul.f32 %v3705, %v3643
        %v3714 = vadd.f32 %v3696, %v3706
        %v3715 = vadd.f32 %v3697, %v3707
        %v3716 = vadd.f32 %v3698, %v3708
        %v3717 = vadd.f32 %v3699, %v3709
        %v3718 = vadd.f32 %v3700, %v3710
        %v3719 = vadd.f32 %v3701, %v3711
        %v3720 = vadd.f32 %v3702, %v3712
        %v3721 = vadd.f32 %v3703, %v3713
        %v3722 = vld [vmem:[%s472 + $0x1] sm:$0x1]
        %v3723 = vperm.slane %v3722, 0
        %v3724 = vmul.f32 %v3723, %v3638
        %v3725 = vmul.f32 %v3723, %v3639
        %v3726 = vmul.f32 %v3723, %v3640
        %v3727 = vmul.f32 %v3723, %v3641
        %v3728 = vmul.f32 %v3723, %v3642
        %v3729 = vmul.f32 %v3723, %v3643
        %v3730 = vmul.f32 %v3723, %v3644
        %v3731 = vmul.f32 %v3723, %v3645
        %v3732 = vadd.f32 %v3714, %v3724
        %v3733 = vadd.f32 %v3715, %v3725
        %v3734 = vadd.f32 %v3716, %v3726
        %v3735 = vadd.f32 %v3717, %v3727
        %v3736 = vadd.f32 %v3718, %v3728
        %v3737 = vadd.f32 %v3719, %v3729
        %v3738 = vadd.f32 %v3720, %v3730
        %v3739 = vadd.f32 %v3721, %v3731
        %v3740 = vld [vmem:[%s491 + $0x1] sm:$0x1]
        %v3741 = vperm.slane %v3740, 0
        %v3742 = vmul.f32 %v3741, %v3640
        %v3743 = vmul.f32 %v3741, %v3641
        %v3744 = vmul.f32 %v3741, %v3642
        %v3745 = vmul.f32 %v3741, %v3643
        %v3746 = vmul.f32 %v3741, %v3644
        %v3747 = vmul.f32 %v3741, %v3645
        %v3748 = vmul.f32 %v3741, %v3646
        %v3749 = vmul.f32 %v3741, %v3647
        %v3750 = vadd.f32 %v3732, %v3742
        %v3751 = vadd.f32 %v3733, %v3743
        %v3752 = vadd.f32 %v3734, %v3744
        %v3753 = vadd.f32 %v3735, %v3745
        %v3754 = vadd.f32 %v3736, %v3746
        %v3755 = vadd.f32 %v3737, %v3747
        %v3756 = vadd.f32 %v3738, %v3748
        %v3757 = vadd.f32 %v3739, %v3749
        %v3758 = vld [vmem:[%s510 + $0x1] sm:$0x1]
        %v3759 = vperm.slane %v3758, 0
        %v3760 = vmul.f32 %v3759, %v3642
        %v3761 = vmul.f32 %v3759, %v3643
        %v3762 = vmul.f32 %v3759, %v3644
        %v3763 = vmul.f32 %v3759, %v3645
        %v3764 = vmul.f32 %v3759, %v3646
        %v3765 = vmul.f32 %v3759, %v3647
        %v3766 = vmul.f32 %v3759, %v3648
        %v3767 = vmul.f32 %v3759, %v3649
        %v3768 = vadd.f32 %v3750, %v3760
        %v3769 = vadd.f32 %v3751, %v3761
        %v3770 = vadd.f32 %v3752, %v3762
        %v3771 = vadd.f32 %v3753, %v3763
        %v3772 = vadd.f32 %v3754, %v3764
        %v3773 = vadd.f32 %v3755, %v3765
        %v3774 = vadd.f32 %v3756, %v3766
        %v3775 = vadd.f32 %v3757, %v3767
        %v3776 = vld [vmem:[%s3483 + $0x2] sm:$0xff]
        %v3777 = vld [vmem:[%s3483 + $0xa] sm:$0xff]
        %v3778 = vld [vmem:[%s3483 + $0x1a] sm:$0xff]
        %v3779 = vld [vmem:[%s3483 + $0x22] sm:$0xff]
        %v3780 = vld [vmem:[%s3483 + $0x32] sm:$0xff]
        %v3781 = vld [vmem:[%s3483 + $0x3a] sm:$0xff]
        %v3782 = vld [vmem:[%s3483 + $0x4a] sm:$0xff]
        %v3783 = vld [vmem:[%s3483 + $0x52] sm:$0xff]
        %v3784 = vld [vmem:[%s3483 + $0x62] sm:$0xff]
        %v3785 = vld [vmem:[%s3483 + $0x6a] sm:$0xff]
        %v3786 = vld [vmem:[%s3483 + $0x7a] sm:$0xff]
        %v3787 = vld [vmem:[%s3483 + $0x82] sm:$0xff]
        %v3788 = vld [vmem:[%s3483 + $0x92] sm:$0xff]
        %v3789 = vld [vmem:[%s3483 + $0x9a] sm:$0xff]
        %v3790 = vld [vmem:[%s3483 + $0xaa] sm:$0xff]
        %v3791 = vld [vmem:[%s3483 + $0xb2] sm:$0xff]
        %v3792 = vld [vmem:[%s3483 + $0xc2] sm:$0xff]
        %v3793 = vld [vmem:[%s3483 + $0xca] sm:$0xff]
        %v3794 = vld [vmem:[%s3483 + $0xda] sm:$0xff]
        %v3795 = vld [vmem:[%s3483 + $0xe2] sm:$0xff]
        %v3796 = vld [vmem:[%s230 + $0x2] sm:$0x1]
        %v3797 = vperm.slane %v3796, 0
        %v3798 = vmul.f32 %v3797, %v3776
        %v3799 = vmul.f32 %v3797, %v3777
        %v3800 = vmul.f32 %v3797, %v3778
        %v3801 = vmul.f32 %v3797, %v3779
        %v3802 = vmul.f32 %v3797, %v3780
        %v3803 = vmul.f32 %v3797, %v3781
        %v3804 = vmul.f32 %v3797, %v3782
        %v3805 = vmul.f32 %v3797, %v3783
        %v3806 = vadd.f32 %v3768, %v3798
        %v3807 = vadd.f32 %v3769, %v3799
        %v3808 = vadd.f32 %v3770, %v3800
        %v3809 = vadd.f32 %v3771, %v3801
        %v3810 = vadd.f32 %v3772, %v3802
        %v3811 = vadd.f32 %v3773, %v3803
        %v3812 = vadd.f32 %v3774, %v3804
        %v3813 = vadd.f32 %v3775, %v3805
        %v3814 = vld [vmem:[%s415 + $0x2] sm:$0x1]
        %v3815 = vperm.slane %v3814, 0
        %v3816 = vmul.f32 %v3815, %v3778
        %v3817 = vmul.f32 %v3815, %v3779
        %v3818 = vmul.f32 %v3815, %v3780
        %v3819 = vmul.f32 %v3815, %v3781
        %v3820 = vmul.f32 %v3815, %v3782
        %v3821 = vmul.f32 %v3815, %v3783
        %v3822 = vmul.f32 %v3815, %v3784
        %v3823 = vmul.f32 %v3815, %v3785
        %v3824 = vadd.f32 %v3806, %v3816
        %v3825 = vadd.f32 %v3807, %v3817
        %v3826 = vadd.f32 %v3808, %v3818
        %v3827 = vadd.f32 %v3809, %v3819
        %v3828 = vadd.f32 %v3810, %v3820
        %v3829 = vadd.f32 %v3811, %v3821
        %v3830 = vadd.f32 %v3812, %v3822
        %v3831 = vadd.f32 %v3813, %v3823
        %v3832 = vld [vmem:[%s434 + $0x2] sm:$0x1]
        %v3833 = vperm.slane %v3832, 0
        %v3834 = vmul.f32 %v3833, %v3780
        %v3835 = vmul.f32 %v3833, %v3781
        %v3836 = vmul.f32 %v3833, %v3782
        %v3837 = vmul.f32 %v3833, %v3783
        %v3838 = vmul.f32 %v3833, %v3784
        %v3839 = vmul.f32 %v3833, %v3785
        %v3840 = vmul.f32 %v3833, %v3786
        %v3841 = vmul.f32 %v3833, %v3787
        %v3842 = vadd.f32 %v3824, %v3834
        %v3843 = vadd.f32 %v3825, %v3835
        %v3844 = vadd.f32 %v3826, %v3836
        %v3845 = vadd.f32 %v3827, %v3837
        %v3846 = vadd.f32 %v3828, %v3838
        %v3847 = vadd.f32 %v3829, %v3839
        %v3848 = vadd.f32 %v3830, %v3840
        %v3849 = vadd.f32 %v3831, %v3841
        %v3850 = vld [vmem:[%s453 + $0x2] sm:$0x1]
        %v3851 = vperm.slane %v3850, 0
        %v3852 = vmul.f32 %v3851, %v3782
        %v3853 = vmul.f32 %v3851, %v3783
        %v3854 = vmul.f32 %v3851, %v3784
        %v3855 = vmul.f32 %v3851, %v3785
        %v3856 = vmul.f32 %v3851, %v3786
        %v3857 = vmul.f32 %v3851, %v3787
        %v3858 = vmul.f32 %v3851, %v3788
        %v3859 = vmul.f32 %v3851, %v3789
        %v3860 = vadd.f32 %v3842, %v3852
        %v3861 = vadd.f32 %v3843, %v3853
        %v3862 = vadd.f32 %v3844, %v3854
        %v3863 = vadd.f32 %v3845, %v3855
        %v3864 = vadd.f32 %v3846, %v3856
        %v3865 = vadd.f32 %v3847, %v3857
        %v3866 = vadd.f32 %v3848, %v3858
        %v3867 = vadd.f32 %v3849, %v3859
        %v3868 = vld [vmem:[%s472 + $0x2] sm:$0x1]
        %v3869 = vperm.slane %v3868, 0
        %v3870 = vmul.f32 %v3869, %v3784
        %v3871 = vmul.f32 %v3869, %v3785
        %v3872 = vmul.f32 %v3869, %v3786
        %v3873 = vmul.f32 %v3869, %v3787
        %v3874 = vmul.f32 %v3869, %v3788
        %v3875 = vmul.f32 %v3869, %v3789
        %v3876 = vmul.f32 %v3869, %v3790
        %v3877 = vmul.f32 %v3869, %v3791
        %v3878 = vadd.f32 %v3860, %v3870
        %v3879 = vadd.f32 %v3861, %v3871
        %v3880 = vadd.f32 %v3862, %v3872
        %v3881 = vadd.f32 %v3863, %v3873
        %v3882 = vadd.f32 %v3864, %v3874
        %v3883 = vadd.f32 %v3865, %v3875
        %v3884 = vadd.f32 %v3866, %v3876
        %v3885 = vadd.f32 %v3867, %v3877
        %v3886 = vld [vmem:[%s491 + $0x2] sm:$0x1]
        %v3887 = vperm.slane %v3886, 0
        %v3888 = vmul.f32 %v3887, %v3786
        %v3889 = vmul.f32 %v3887, %v3787
        %v3890 = vmul.f32 %v3887, %v3788
        %v3891 = vmul.f32 %v3887, %v3789
        %v3892 = vmul.f32 %v3887, %v3790
        %v3893 = vmul.f32 %v3887, %v3791
        %v3894 = vmul.f32 %v3887, %v3792
        %v3895 = vmul.f32 %v3887, %v3793
        %v3896 = vadd.f32 %v3878, %v3888
        %v3897 = vadd.f32 %v3879, %v3889
        %v3898 = vadd.f32 %v3880, %v3890
        %v3899 = vadd.f32 %v3881, %v3891
        %v3900 = vadd.f32 %v3882, %v3892
        %v3901 = vadd.f32 %v3883, %v3893
        %v3902 = vadd.f32 %v3884, %v3894
        %v3903 = vadd.f32 %v3885, %v3895
        %v3904 = vld [vmem:[%s510 + $0x2] sm:$0x1]
        %v3905 = vperm.slane %v3904, 0
        %v3906 = vmul.f32 %v3905, %v3788
        %v3907 = vmul.f32 %v3905, %v3789
        %v3908 = vmul.f32 %v3905, %v3790
        %v3909 = vmul.f32 %v3905, %v3791
        %v3910 = vmul.f32 %v3905, %v3792
        %v3911 = vmul.f32 %v3905, %v3793
        %v3912 = vmul.f32 %v3905, %v3794
        %v3913 = vmul.f32 %v3905, %v3795
        %v3914 = vadd.f32 %v3896, %v3906
        %v3915 = vadd.f32 %v3897, %v3907
        %v3916 = vadd.f32 %v3898, %v3908
        %v3917 = vadd.f32 %v3899, %v3909
        %v3918 = vadd.f32 %v3900, %v3910
        %v3919 = vadd.f32 %v3901, %v3911
        %v3920 = vadd.f32 %v3902, %v3912
        %v3921 = vadd.f32 %v3903, %v3913
        %v3922 = vld [vmem:[%s3483 + $0x3] sm:$0xff]
        %v3923 = vld [vmem:[%s3483 + $0xb] sm:$0xff]
        %v3924 = vld [vmem:[%s3483 + $0x1b] sm:$0xff]
        %v3925 = vld [vmem:[%s3483 + $0x23] sm:$0xff]
        %v3926 = vld [vmem:[%s3483 + $0x33] sm:$0xff]
        %v3927 = vld [vmem:[%s3483 + $0x3b] sm:$0xff]
        %v3928 = vld [vmem:[%s3483 + $0x4b] sm:$0xff]
        %v3929 = vld [vmem:[%s3483 + $0x53] sm:$0xff]
        %v3930 = vld [vmem:[%s3483 + $0x63] sm:$0xff]
        %v3931 = vld [vmem:[%s3483 + $0x6b] sm:$0xff]
        %v3932 = vld [vmem:[%s3483 + $0x7b] sm:$0xff]
        %v3933 = vld [vmem:[%s3483 + $0x83] sm:$0xff]
        %v3934 = vld [vmem:[%s3483 + $0x93] sm:$0xff]
        %v3935 = vld [vmem:[%s3483 + $0x9b] sm:$0xff]
        %v3936 = vld [vmem:[%s3483 + $0xab] sm:$0xff]
        %v3937 = vld [vmem:[%s3483 + $0xb3] sm:$0xff]
        %v3938 = vld [vmem:[%s3483 + $0xc3] sm:$0xff]
        %v3939 = vld [vmem:[%s3483 + $0xcb] sm:$0xff]
        %v3940 = vld [vmem:[%s3483 + $0xdb] sm:$0xff]
        %v3941 = vld [vmem:[%s3483 + $0xe3] sm:$0xff]
        %v3942 = vld [vmem:[%s230 + $0x3] sm:$0x1]
        %v3943 = vperm.slane %v3942, 0
        %v3944 = vmul.f32 %v3943, %v3922
        %v3945 = vmul.f32 %v3943, %v3923
        %v3946 = vmul.f32 %v3943, %v3924
        %v3947 = vmul.f32 %v3943, %v3925
        %v3948 = vmul.f32 %v3943, %v3926
        %v3949 = vmul.f32 %v3943, %v3927
        %v3950 = vmul.f32 %v3943, %v3928
        %v3951 = vmul.f32 %v3943, %v3929
        %v3952 = vadd.f32 %v3914, %v3944
        %v3953 = vadd.f32 %v3915, %v3945
        %v3954 = vadd.f32 %v3916, %v3946
        %v3955 = vadd.f32 %v3917, %v3947
        %v3956 = vadd.f32 %v3918, %v3948
        %v3957 = vadd.f32 %v3919, %v3949
        %v3958 = vadd.f32 %v3920, %v3950
        %v3959 = vadd.f32 %v3921, %v3951
        %v3960 = vld [vmem:[%s415 + $0x3] sm:$0x1]
        %v3961 = vperm.slane %v3960, 0
        %v3962 = vmul.f32 %v3961, %v3924
        %v3963 = vmul.f32 %v3961, %v3925
        %v3964 = vmul.f32 %v3961, %v3926
        %v3965 = vmul.f32 %v3961, %v3927
        %v3966 = vmul.f32 %v3961, %v3928
        %v3967 = vmul.f32 %v3961, %v3929
        %v3968 = vmul.f32 %v3961, %v3930
        %v3969 = vmul.f32 %v3961, %v3931
        %v3970 = vadd.f32 %v3952, %v3962
        %v3971 = vadd.f32 %v3953, %v3963
        %v3972 = vadd.f32 %v3954, %v3964
        %v3973 = vadd.f32 %v3955, %v3965
        %v3974 = vadd.f32 %v3956, %v3966
        %v3975 = vadd.f32 %v3957, %v3967
        %v3976 = vadd.f32 %v3958, %v3968
        %v3977 = vadd.f32 %v3959, %v3969
        %v3978 = vld [vmem:[%s434 + $0x3] sm:$0x1]
        %v3979 = vperm.slane %v3978, 0
        %v3980 = vmul.f32 %v3979, %v3926
        %v3981 = vmul.f32 %v3979, %v3927
        %v3982 = vmul.f32 %v3979, %v3928
        %v3983 = vmul.f32 %v3979, %v3929
        %v3984 = vmul.f32 %v3979, %v3930
        %v3985 = vmul.f32 %v3979, %v3931
        %v3986 = vmul.f32 %v3979, %v3932
        %v3987 = vmul.f32 %v3979, %v3933
        %v3988 = vadd.f32 %v3970, %v3980
        %v3989 = vadd.f32 %v3971, %v3981
        %v3990 = vadd.f32 %v3972, %v3982
        %v3991 = vadd.f32 %v3973, %v3983
        %v3992 = vadd.f32 %v3974, %v3984
        %v3993 = vadd.f32 %v3975, %v3985
        %v3994 = vadd.f32 %v3976, %v3986
        %v3995 = vadd.f32 %v3977, %v3987
        %v3996 = vld [vmem:[%s453 + $0x3] sm:$0x1]
        %v3997 = vperm.slane %v3996, 0
        %v3998 = vmul.f32 %v3997, %v3928
        %v3999 = vmul.f32 %v3997, %v3929
        %v4000 = vmul.f32 %v3997, %v3930
        %v4001 = vmul.f32 %v3997, %v3931
        %v4002 = vmul.f32 %v3997, %v3932
        %v4003 = vmul.f32 %v3997, %v3933
        %v4004 = vmul.f32 %v3997, %v3934
        %v4005 = vmul.f32 %v3997, %v3935
        %v4006 = vadd.f32 %v3988, %v3998
        %v4007 = vadd.f32 %v3989, %v3999
        %v4008 = vadd.f32 %v3990, %v4000
        %v4009 = vadd.f32 %v3991, %v4001
        %v4010 = vadd.f32 %v3992, %v4002
        %v4011 = vadd.f32 %v3993, %v4003
        %v4012 = vadd.f32 %v3994, %v4004
        %v4013 = vadd.f32 %v3995, %v4005
        %v4014 = vld [vmem:[%s472 + $0x3] sm:$0x1]
        %v4015 = vperm.slane %v4014, 0
        %v4016 = vmul.f32 %v4015, %v3930
        %v4017 = vmul.f32 %v4015, %v3931
        %v4018 = vmul.f32 %v4015, %v3932
        %v4019 = vmul.f32 %v4015, %v3933
        %v4020 = vmul.f32 %v4015, %v3934
        %v4021 = vmul.f32 %v4015, %v3935
        %v4022 = vmul.f32 %v4015, %v3936
        %v4023 = vmul.f32 %v4015, %v3937
        %v4024 = vadd.f32 %v4006, %v4016
        %v4025 = vadd.f32 %v4007, %v4017
        %v4026 = vadd.f32 %v4008, %v4018
        %v4027 = vadd.f32 %v4009, %v4019
        %v4028 = vadd.f32 %v4010, %v4020
        %v4029 = vadd.f32 %v4011, %v4021
        %v4030 = vadd.f32 %v4012, %v4022
        %v4031 = vadd.f32 %v4013, %v4023
        %v4032 = vld [vmem:[%s491 + $0x3] sm:$0x1]
        %v4033 = vperm.slane %v4032, 0
        %v4034 = vmul.f32 %v4033, %v3932
        %v4035 = vmul.f32 %v4033, %v3933
        %v4036 = vmul.f32 %v4033, %v3934
        %v4037 = vmul.f32 %v4033, %v3935
        %v4038 = vmul.f32 %v4033, %v3936
        %v4039 = vmul.f32 %v4033, %v3937
        %v4040 = vmul.f32 %v4033, %v3938
        %v4041 = vmul.f32 %v4033, %v3939
        %v4042 = vadd.f32 %v4024, %v4034
        %v4043 = vadd.f32 %v4025, %v4035
        %v4044 = vadd.f32 %v4026, %v4036
        %v4045 = vadd.f32 %v4027, %v4037
        %v4046 = vadd.f32 %v4028, %v4038
        %v4047 = vadd.f32 %v4029, %v4039
        %v4048 = vadd.f32 %v4030, %v4040
        %v4049 = vadd.f32 %v4031, %v4041
        %v4050 = vld [vmem:[%s510 + $0x3] sm:$0x1]
        %v4051 = vperm.slane %v4050, 0
        %v4052 = vmul.f32 %v4051, %v3934
        %v4053 = vmul.f32 %v4051, %v3935
        %v4054 = vmul.f32 %v4051, %v3936
        %v4055 = vmul.f32 %v4051, %v3937
        %v4056 = vmul.f32 %v4051, %v3938
        %v4057 = vmul.f32 %v4051, %v3939
        %v4058 = vmul.f32 %v4051, %v3940
        %v4059 = vmul.f32 %v4051, %v3941
        %v4060 = vadd.f32 %v4042, %v4052
        %v4061 = vadd.f32 %v4043, %v4053
        %v4062 = vadd.f32 %v4044, %v4054
        %v4063 = vadd.f32 %v4045, %v4055
        %v4064 = vadd.f32 %v4046, %v4056
        %v4065 = vadd.f32 %v4047, %v4057
        %v4066 = vadd.f32 %v4048, %v4058
        %v4067 = vadd.f32 %v4049, %v4059
        %v4068 = vld [vmem:[%s3483 + $0x4] sm:$0xff]
        %v4069 = vld [vmem:[%s3483 + $0xc] sm:$0xff]
        %v4070 = vld [vmem:[%s3483 + $0x1c] sm:$0xff]
        %v4071 = vld [vmem:[%s3483 + $0x24] sm:$0xff]
        %v4072 = vld [vmem:[%s3483 + $0x34] sm:$0xff]
        %v4073 = vld [vmem:[%s3483 + $0x3c] sm:$0xff]
        %v4074 = vld [vmem:[%s3483 + $0x4c] sm:$0xff]
        %v4075 = vld [vmem:[%s3483 + $0x54] sm:$0xff]
        %v4076 = vld [vmem:[%s3483 + $0x64] sm:$0xff]
        %v4077 = vld [vmem:[%s3483 + $0x6c] sm:$0xff]
        %v4078 = vld [vmem:[%s3483 + $0x7c] sm:$0xff]
        %v4079 = vld [vmem:[%s3483 + $0x84] sm:$0xff]
        %v4080 = vld [vmem:[%s3483 + $0x94] sm:$0xff]
        %v4081 = vld [vmem:[%s3483 + $0x9c] sm:$0xff]
        %v4082 = vld [vmem:[%s3483 + $0xac] sm:$0xff]
        %v4083 = vld [vmem:[%s3483 + $0xb4] sm:$0xff]
        %v4084 = vld [vmem:[%s3483 + $0xc4] sm:$0xff]
        %v4085 = vld [vmem:[%s3483 + $0xcc] sm:$0xff]
        %v4086 = vld [vmem:[%s3483 + $0xdc] sm:$0xff]
        %v4087 = vld [vmem:[%s3483 + $0xe4] sm:$0xff]
        %v4088 = vld [vmem:[%s230 + $0x4] sm:$0x1]
        %v4089 = vperm.slane %v4088, 0
        %v4090 = vmul.f32 %v4089, %v4068
        %v4091 = vmul.f32 %v4089, %v4069
        %v4092 = vmul.f32 %v4089, %v4070
        %v4093 = vmul.f32 %v4089, %v4071
        %v4094 = vmul.f32 %v4089, %v4072
        %v4095 = vmul.f32 %v4089, %v4073
        %v4096 = vmul.f32 %v4089, %v4074
        %v4097 = vmul.f32 %v4089, %v4075
        %v4098 = vadd.f32 %v4060, %v4090
        %v4099 = vadd.f32 %v4061, %v4091
        %v4100 = vadd.f32 %v4062, %v4092
        %v4101 = vadd.f32 %v4063, %v4093
        %v4102 = vadd.f32 %v4064, %v4094
        %v4103 = vadd.f32 %v4065, %v4095
        %v4104 = vadd.f32 %v4066, %v4096
        %v4105 = vadd.f32 %v4067, %v4097
        %v4106 = vld [vmem:[%s415 + $0x4] sm:$0x1]
        %v4107 = vperm.slane %v4106, 0
        %v4108 = vmul.f32 %v4107, %v4070
        %v4109 = vmul.f32 %v4107, %v4071
        %v4110 = vmul.f32 %v4107, %v4072
        %v4111 = vmul.f32 %v4107, %v4073
        %v4112 = vmul.f32 %v4107, %v4074
        %v4113 = vmul.f32 %v4107, %v4075
        %v4114 = vmul.f32 %v4107, %v4076
        %v4115 = vmul.f32 %v4107, %v4077
        %v4116 = vadd.f32 %v4098, %v4108
        %v4117 = vadd.f32 %v4099, %v4109
        %v4118 = vadd.f32 %v4100, %v4110
        %v4119 = vadd.f32 %v4101, %v4111
        %v4120 = vadd.f32 %v4102, %v4112
        %v4121 = vadd.f32 %v4103, %v4113
        %v4122 = vadd.f32 %v4104, %v4114
        %v4123 = vadd.f32 %v4105, %v4115
        %v4124 = vld [vmem:[%s434 + $0x4] sm:$0x1]
        %v4125 = vperm.slane %v4124, 0
        %v4126 = vmul.f32 %v4125, %v4072
        %v4127 = vmul.f32 %v4125, %v4073
        %v4128 = vmul.f32 %v4125, %v4074
        %v4129 = vmul.f32 %v4125, %v4075
        %v4130 = vmul.f32 %v4125, %v4076
        %v4131 = vmul.f32 %v4125, %v4077
        %v4132 = vmul.f32 %v4125, %v4078
        %v4133 = vmul.f32 %v4125, %v4079
        %v4134 = vadd.f32 %v4116, %v4126
        %v4135 = vadd.f32 %v4117, %v4127
        %v4136 = vadd.f32 %v4118, %v4128
        %v4137 = vadd.f32 %v4119, %v4129
        %v4138 = vadd.f32 %v4120, %v4130
        %v4139 = vadd.f32 %v4121, %v4131
        %v4140 = vadd.f32 %v4122, %v4132
        %v4141 = vadd.f32 %v4123, %v4133
        %v4142 = vld [vmem:[%s453 + $0x4] sm:$0x1]
        %v4143 = vperm.slane %v4142, 0
        %v4144 = vmul.f32 %v4143, %v4074
        %v4145 = vmul.f32 %v4143, %v4075
        %v4146 = vmul.f32 %v4143, %v4076
        %v4147 = vmul.f32 %v4143, %v4077
        %v4148 = vmul.f32 %v4143, %v4078
        %v4149 = vmul.f32 %v4143, %v4079
        %v4150 = vmul.f32 %v4143, %v4080
        %v4151 = vmul.f32 %v4143, %v4081
        %v4152 = vadd.f32 %v4134, %v4144
        %v4153 = vadd.f32 %v4135, %v4145
        %v4154 = vadd.f32 %v4136, %v4146
        %v4155 = vadd.f32 %v4137, %v4147
        %v4156 = vadd.f32 %v4138, %v4148
        %v4157 = vadd.f32 %v4139, %v4149
        %v4158 = vadd.f32 %v4140, %v4150
        %v4159 = vadd.f32 %v4141, %v4151
        %v4160 = vld [vmem:[%s472 + $0x4] sm:$0x1]
        %v4161 = vperm.slane %v4160, 0
        %v4162 = vmul.f32 %v4161, %v4076
        %v4163 = vmul.f32 %v4161, %v4077
        %v4164 = vmul.f32 %v4161, %v4078
        %v4165 = vmul.f32 %v4161, %v4079
        %v4166 = vmul.f32 %v4161, %v4080
        %v4167 = vmul.f32 %v4161, %v4081
        %v4168 = vmul.f32 %v4161, %v4082
        %v4169 = vmul.f32 %v4161, %v4083
        %v4170 = vadd.f32 %v4152, %v4162
        %v4171 = vadd.f32 %v4153, %v4163
        %v4172 = vadd.f32 %v4154, %v4164
        %v4173 = vadd.f32 %v4155, %v4165
        %v4174 = vadd.f32 %v4156, %v4166
        %v4175 = vadd.f32 %v4157, %v4167
        %v4176 = vadd.f32 %v4158, %v4168
        %v4177 = vadd.f32 %v4159, %v4169
        %v4178 = vld [vmem:[%s491 + $0x4] sm:$0x1]
        %v4179 = vperm.slane %v4178, 0
        %v4180 = vmul.f32 %v4179, %v4078
        %v4181 = vmul.f32 %v4179, %v4079
        %v4182 = vmul.f32 %v4179, %v4080
        %v4183 = vmul.f32 %v4179, %v4081
        %v4184 = vmul.f32 %v4179, %v4082
        %v4185 = vmul.f32 %v4179, %v4083
        %v4186 = vmul.f32 %v4179, %v4084
        %v4187 = vmul.f32 %v4179, %v4085
        %v4188 = vadd.f32 %v4170, %v4180
        %v4189 = vadd.f32 %v4171, %v4181
        %v4190 = vadd.f32 %v4172, %v4182
        %v4191 = vadd.f32 %v4173, %v4183
        %v4192 = vadd.f32 %v4174, %v4184
        %v4193 = vadd.f32 %v4175, %v4185
        %v4194 = vadd.f32 %v4176, %v4186
        %v4195 = vadd.f32 %v4177, %v4187
        %v4196 = vld [vmem:[%s510 + $0x4] sm:$0x1]
        %v4197 = vperm.slane %v4196, 0
        %v4198 = vmul.f32 %v4197, %v4080
        %v4199 = vmul.f32 %v4197, %v4081
        %v4200 = vmul.f32 %v4197, %v4082
        %v4201 = vmul.f32 %v4197, %v4083
        %v4202 = vmul.f32 %v4197, %v4084
        %v4203 = vmul.f32 %v4197, %v4085
        %v4204 = vmul.f32 %v4197, %v4086
        %v4205 = vmul.f32 %v4197, %v4087
        %v4206 = vadd.f32 %v4188, %v4198
        %v4207 = vadd.f32 %v4189, %v4199
        %v4208 = vadd.f32 %v4190, %v4200
        %v4209 = vadd.f32 %v4191, %v4201
        %v4210 = vadd.f32 %v4192, %v4202
        %v4211 = vadd.f32 %v4193, %v4203
        %v4212 = vadd.f32 %v4194, %v4204
        %v4213 = vadd.f32 %v4195, %v4205
        %v4214 = vld [vmem:[%s3483 + $0x5] sm:$0xff]
        %v4215 = vld [vmem:[%s3483 + $0xd] sm:$0xff]
        %v4216 = vld [vmem:[%s3483 + $0x1d] sm:$0xff]
        %v4217 = vld [vmem:[%s3483 + $0x25] sm:$0xff]
        %v4218 = vld [vmem:[%s3483 + $0x35] sm:$0xff]
        %v4219 = vld [vmem:[%s3483 + $0x3d] sm:$0xff]
        %v4220 = vld [vmem:[%s3483 + $0x4d] sm:$0xff]
        %v4221 = vld [vmem:[%s3483 + $0x55] sm:$0xff]
        %v4222 = vld [vmem:[%s3483 + $0x65] sm:$0xff]
        %v4223 = vld [vmem:[%s3483 + $0x6d] sm:$0xff]
        %v4224 = vld [vmem:[%s3483 + $0x7d] sm:$0xff]
        %v4225 = vld [vmem:[%s3483 + $0x85] sm:$0xff]
        %v4226 = vld [vmem:[%s3483 + $0x95] sm:$0xff]
        %v4227 = vld [vmem:[%s3483 + $0x9d] sm:$0xff]
        %v4228 = vld [vmem:[%s3483 + $0xad] sm:$0xff]
        %v4229 = vld [vmem:[%s3483 + $0xb5] sm:$0xff]
        %v4230 = vld [vmem:[%s3483 + $0xc5] sm:$0xff]
        %v4231 = vld [vmem:[%s3483 + $0xcd] sm:$0xff]
        %v4232 = vld [vmem:[%s3483 + $0xdd] sm:$0xff]
        %v4233 = vld [vmem:[%s3483 + $0xe5] sm:$0xff]
        %v4234 = vld [vmem:[%s230 + $0x5] sm:$0x1]
        %v4235 = vperm.slane %v4234, 0
        %v4236 = vmul.f32 %v4235, %v4214
        %v4237 = vmul.f32 %v4235, %v4215
        %v4238 = vmul.f32 %v4235, %v4216
        %v4239 = vmul.f32 %v4235, %v4217
        %v4240 = vmul.f32 %v4235, %v4218
        %v4241 = vmul.f32 %v4235, %v4219
        %v4242 = vmul.f32 %v4235, %v4220
        %v4243 = vmul.f32 %v4235, %v4221
        %v4244 = vadd.f32 %v4206, %v4236
        %v4245 = vadd.f32 %v4207, %v4237
        %v4246 = vadd.f32 %v4208, %v4238
        %v4247 = vadd.f32 %v4209, %v4239
        %v4248 = vadd.f32 %v4210, %v4240
        %v4249 = vadd.f32 %v4211, %v4241
        %v4250 = vadd.f32 %v4212, %v4242
        %v4251 = vadd.f32 %v4213, %v4243
        %v4252 = vld [vmem:[%s415 + $0x5] sm:$0x1]
        %v4253 = vperm.slane %v4252, 0
        %v4254 = vmul.f32 %v4253, %v4216
        %v4255 = vmul.f32 %v4253, %v4217
        %v4256 = vmul.f32 %v4253, %v4218
        %v4257 = vmul.f32 %v4253, %v4219
        %v4258 = vmul.f32 %v4253, %v4220
        %v4259 = vmul.f32 %v4253, %v4221
        %v4260 = vmul.f32 %v4253, %v4222
        %v4261 = vmul.f32 %v4253, %v4223
        %v4262 = vadd.f32 %v4244, %v4254
        %v4263 = vadd.f32 %v4245, %v4255
        %v4264 = vadd.f32 %v4246, %v4256
        %v4265 = vadd.f32 %v4247, %v4257
        %v4266 = vadd.f32 %v4248, %v4258
        %v4267 = vadd.f32 %v4249, %v4259
        %v4268 = vadd.f32 %v4250, %v4260
        %v4269 = vadd.f32 %v4251, %v4261
        %v4270 = vld [vmem:[%s434 + $0x5] sm:$0x1]
        %v4271 = vperm.slane %v4270, 0
        %v4272 = vmul.f32 %v4271, %v4218
        %v4273 = vmul.f32 %v4271, %v4219
        %v4274 = vmul.f32 %v4271, %v4220
        %v4275 = vmul.f32 %v4271, %v4221
        %v4276 = vmul.f32 %v4271, %v4222
        %v4277 = vmul.f32 %v4271, %v4223
        %v4278 = vmul.f32 %v4271, %v4224
        %v4279 = vmul.f32 %v4271, %v4225
        %v4280 = vadd.f32 %v4262, %v4272
        %v4281 = vadd.f32 %v4263, %v4273
        %v4282 = vadd.f32 %v4264, %v4274
        %v4283 = vadd.f32 %v4265, %v4275
        %v4284 = vadd.f32 %v4266, %v4276
        %v4285 = vadd.f32 %v4267, %v4277
        %v4286 = vadd.f32 %v4268, %v4278
        %v4287 = vadd.f32 %v4269, %v4279
        %v4288 = vld [vmem:[%s453 + $0x5] sm:$0x1]
        %v4289 = vperm.slane %v4288, 0
        %v4290 = vmul.f32 %v4289, %v4220
        %v4291 = vmul.f32 %v4289, %v4221
        %v4292 = vmul.f32 %v4289, %v4222
        %v4293 = vmul.f32 %v4289, %v4223
        %v4294 = vmul.f32 %v4289, %v4224
        %v4295 = vmul.f32 %v4289, %v4225
        %v4296 = vmul.f32 %v4289, %v4226
        %v4297 = vmul.f32 %v4289, %v4227
        %v4298 = vadd.f32 %v4280, %v4290
        %v4299 = vadd.f32 %v4281, %v4291
        %v4300 = vadd.f32 %v4282, %v4292
        %v4301 = vadd.f32 %v4283, %v4293
        %v4302 = vadd.f32 %v4284, %v4294
        %v4303 = vadd.f32 %v4285, %v4295
        %v4304 = vadd.f32 %v4286, %v4296
        %v4305 = vadd.f32 %v4287, %v4297
        %v4306 = vld [vmem:[%s472 + $0x5] sm:$0x1]
        %v4307 = vperm.slane %v4306, 0
        %v4308 = vmul.f32 %v4307, %v4222
        %v4309 = vmul.f32 %v4307, %v4223
        %v4310 = vmul.f32 %v4307, %v4224
        %v4311 = vmul.f32 %v4307, %v4225
        %v4312 = vmul.f32 %v4307, %v4226
        %v4313 = vmul.f32 %v4307, %v4227
        %v4314 = vmul.f32 %v4307, %v4228
        %v4315 = vmul.f32 %v4307, %v4229
        %v4316 = vadd.f32 %v4298, %v4308
        %v4317 = vadd.f32 %v4299, %v4309
        %v4318 = vadd.f32 %v4300, %v4310
        %v4319 = vadd.f32 %v4301, %v4311
        %v4320 = vadd.f32 %v4302, %v4312
        %v4321 = vadd.f32 %v4303, %v4313
        %v4322 = vadd.f32 %v4304, %v4314
        %v4323 = vadd.f32 %v4305, %v4315
        %v4324 = vld [vmem:[%s491 + $0x5] sm:$0x1]
        %v4325 = vperm.slane %v4324, 0
        %v4326 = vmul.f32 %v4325, %v4224
        %v4327 = vmul.f32 %v4325, %v4225
        %v4328 = vmul.f32 %v4325, %v4226
        %v4329 = vmul.f32 %v4325, %v4227
        %v4330 = vmul.f32 %v4325, %v4228
        %v4331 = vmul.f32 %v4325, %v4229
        %v4332 = vmul.f32 %v4325, %v4230
        %v4333 = vmul.f32 %v4325, %v4231
        %v4334 = vadd.f32 %v4316, %v4326
        %v4335 = vadd.f32 %v4317, %v4327
        %v4336 = vadd.f32 %v4318, %v4328
        %v4337 = vadd.f32 %v4319, %v4329
        %v4338 = vadd.f32 %v4320, %v4330
        %v4339 = vadd.f32 %v4321, %v4331
        %v4340 = vadd.f32 %v4322, %v4332
        %v4341 = vadd.f32 %v4323, %v4333
        %v4342 = vld [vmem:[%s510 + $0x5] sm:$0x1]
        %v4343 = vperm.slane %v4342, 0
        %v4344 = vmul.f32 %v4343, %v4226
        %v4345 = vmul.f32 %v4343, %v4227
        %v4346 = vmul.f32 %v4343, %v4228
        %v4347 = vmul.f32 %v4343, %v4229
        %v4348 = vmul.f32 %v4343, %v4230
        %v4349 = vmul.f32 %v4343, %v4231
        %v4350 = vmul.f32 %v4343, %v4232
        %v4351 = vmul.f32 %v4343, %v4233
        %v4352 = vadd.f32 %v4334, %v4344
        %v4353 = vadd.f32 %v4335, %v4345
        %v4354 = vadd.f32 %v4336, %v4346
        %v4355 = vadd.f32 %v4337, %v4347
        %v4356 = vadd.f32 %v4338, %v4348
        %v4357 = vadd.f32 %v4339, %v4349
        %v4358 = vadd.f32 %v4340, %v4350
        %v4359 = vadd.f32 %v4341, %v4351
        %v4360 = vld [vmem:[%s3483 + $0x6] sm:$0xff]
        %v4361 = vld [vmem:[%s3483 + $0xe] sm:$0xff]
        %v4362 = vld [vmem:[%s3483 + $0x1e] sm:$0xff]
        %v4363 = vld [vmem:[%s3483 + $0x26] sm:$0xff]
        %v4364 = vld [vmem:[%s3483 + $0x36] sm:$0xff]
        %v4365 = vld [vmem:[%s3483 + $0x3e] sm:$0xff]
        %v4366 = vld [vmem:[%s3483 + $0x4e] sm:$0xff]
        %v4367 = vld [vmem:[%s3483 + $0x56] sm:$0xff]
        %v4368 = vld [vmem:[%s3483 + $0x66] sm:$0xff]
        %v4369 = vld [vmem:[%s3483 + $0x6e] sm:$0xff]
        %v4370 = vld [vmem:[%s3483 + $0x7e] sm:$0xff]
        %v4371 = vld [vmem:[%s3483 + $0x86] sm:$0xff]
        %v4372 = vld [vmem:[%s3483 + $0x96] sm:$0xff]
        %v4373 = vld [vmem:[%s3483 + $0x9e] sm:$0xff]
        %v4374 = vld [vmem:[%s3483 + $0xae] sm:$0xff]
        %v4375 = vld [vmem:[%s3483 + $0xb6] sm:$0xff]
        %v4376 = vld [vmem:[%s3483 + $0xc6] sm:$0xff]
        %v4377 = vld [vmem:[%s3483 + $0xce] sm:$0xff]
        %v4378 = vld [vmem:[%s3483 + $0xde] sm:$0xff]
        %v4379 = vld [vmem:[%s3483 + $0xe6] sm:$0xff]
        %v4380 = vld [vmem:[%s230 + $0x6] sm:$0x1]
        %v4381 = vperm.slane %v4380, 0
        %v4382 = vmul.f32 %v4381, %v4360
        %v4383 = vmul.f32 %v4381, %v4361
        %v4384 = vmul.f32 %v4381, %v4362
        %v4385 = vmul.f32 %v4381, %v4363
        %v4386 = vmul.f32 %v4381, %v4364
        %v4387 = vmul.f32 %v4381, %v4365
        %v4388 = vmul.f32 %v4381, %v4366
        %v4389 = vmul.f32 %v4381, %v4367
        %v4390 = vadd.f32 %v4352, %v4382
        %v4391 = vadd.f32 %v4353, %v4383
        %v4392 = vadd.f32 %v4354, %v4384
        %v4393 = vadd.f32 %v4355, %v4385
        %v4394 = vadd.f32 %v4356, %v4386
        %v4395 = vadd.f32 %v4357, %v4387
        %v4396 = vadd.f32 %v4358, %v4388
        %v4397 = vadd.f32 %v4359, %v4389
        %v4398 = vld [vmem:[%s415 + $0x6] sm:$0x1]
        %v4399 = vperm.slane %v4398, 0
        %v4400 = vmul.f32 %v4399, %v4362
        %v4401 = vmul.f32 %v4399, %v4363
        %v4402 = vmul.f32 %v4399, %v4364
        %v4403 = vmul.f32 %v4399, %v4365
        %v4404 = vmul.f32 %v4399, %v4366
        %v4405 = vmul.f32 %v4399, %v4367
        %v4406 = vmul.f32 %v4399, %v4368
        %v4407 = vmul.f32 %v4399, %v4369
        %v4408 = vadd.f32 %v4390, %v4400
        %v4409 = vadd.f32 %v4391, %v4401
        %v4410 = vadd.f32 %v4392, %v4402
        %v4411 = vadd.f32 %v4393, %v4403
        %v4412 = vadd.f32 %v4394, %v4404
        %v4413 = vadd.f32 %v4395, %v4405
        %v4414 = vadd.f32 %v4396, %v4406
        %v4415 = vadd.f32 %v4397, %v4407
        %v4416 = vld [vmem:[%s434 + $0x6] sm:$0x1]
        %v4417 = vperm.slane %v4416, 0
        %v4418 = vmul.f32 %v4417, %v4364
        %v4419 = vmul.f32 %v4417, %v4365
        %v4420 = vmul.f32 %v4417, %v4366
        %v4421 = vmul.f32 %v4417, %v4367
        %v4422 = vmul.f32 %v4417, %v4368
        %v4423 = vmul.f32 %v4417, %v4369
        %v4424 = vmul.f32 %v4417, %v4370
        %v4425 = vmul.f32 %v4417, %v4371
        %v4426 = vadd.f32 %v4408, %v4418
        %v4427 = vadd.f32 %v4409, %v4419
        %v4428 = vadd.f32 %v4410, %v4420
        %v4429 = vadd.f32 %v4411, %v4421
        %v4430 = vadd.f32 %v4412, %v4422
        %v4431 = vadd.f32 %v4413, %v4423
        %v4432 = vadd.f32 %v4414, %v4424
        %v4433 = vadd.f32 %v4415, %v4425
        %v4434 = vld [vmem:[%s453 + $0x6] sm:$0x1]
        %v4435 = vperm.slane %v4434, 0
        %v4436 = vmul.f32 %v4435, %v4366
        %v4437 = vmul.f32 %v4435, %v4367
        %v4438 = vmul.f32 %v4435, %v4368
        %v4439 = vmul.f32 %v4435, %v4369
        %v4440 = vmul.f32 %v4435, %v4370
        %v4441 = vmul.f32 %v4435, %v4371
        %v4442 = vmul.f32 %v4435, %v4372
        %v4443 = vmul.f32 %v4435, %v4373
        %v4444 = vadd.f32 %v4426, %v4436
        %v4445 = vadd.f32 %v4427, %v4437
        %v4446 = vadd.f32 %v4428, %v4438
        %v4447 = vadd.f32 %v4429, %v4439
        %v4448 = vadd.f32 %v4430, %v4440
        %v4449 = vadd.f32 %v4431, %v4441
        %v4450 = vadd.f32 %v4432, %v4442
        %v4451 = vadd.f32 %v4433, %v4443
        %v4452 = vld [vmem:[%s472 + $0x6] sm:$0x1]
        %v4453 = vperm.slane %v4452, 0
        %v4454 = vmul.f32 %v4453, %v4368
        %v4455 = vmul.f32 %v4453, %v4369
        %v4456 = vmul.f32 %v4453, %v4370
        %v4457 = vmul.f32 %v4453, %v4371
        %v4458 = vmul.f32 %v4453, %v4372
        %v4459 = vmul.f32 %v4453, %v4373
        %v4460 = vmul.f32 %v4453, %v4374
        %v4461 = vmul.f32 %v4453, %v4375
        %v4462 = vadd.f32 %v4444, %v4454
        %v4463 = vadd.f32 %v4445, %v4455
        %v4464 = vadd.f32 %v4446, %v4456
        %v4465 = vadd.f32 %v4447, %v4457
        %v4466 = vadd.f32 %v4448, %v4458
        %v4467 = vadd.f32 %v4449, %v4459
        %v4468 = vadd.f32 %v4450, %v4460
        %v4469 = vadd.f32 %v4451, %v4461
        %v4470 = vld [vmem:[%s491 + $0x6] sm:$0x1]
        %v4471 = vperm.slane %v4470, 0
        %v4472 = vmul.f32 %v4471, %v4370
        %v4473 = vmul.f32 %v4471, %v4371
        %v4474 = vmul.f32 %v4471, %v4372
        %v4475 = vmul.f32 %v4471, %v4373
        %v4476 = vmul.f32 %v4471, %v4374
        %v4477 = vmul.f32 %v4471, %v4375
        %v4478 = vmul.f32 %v4471, %v4376
        %v4479 = vmul.f32 %v4471, %v4377
        %v4480 = vadd.f32 %v4462, %v4472
        %v4481 = vadd.f32 %v4463, %v4473
        %v4482 = vadd.f32 %v4464, %v4474
        %v4483 = vadd.f32 %v4465, %v4475
        %v4484 = vadd.f32 %v4466, %v4476
        %v4485 = vadd.f32 %v4467, %v4477
        %v4486 = vadd.f32 %v4468, %v4478
        %v4487 = vadd.f32 %v4469, %v4479
        %v4488 = vld [vmem:[%s510 + $0x6] sm:$0x1]
        %v4489 = vperm.slane %v4488, 0
        %v4490 = vmul.f32 %v4489, %v4372
        %v4491 = vmul.f32 %v4489, %v4373
        %v4492 = vmul.f32 %v4489, %v4374
        %v4493 = vmul.f32 %v4489, %v4375
        %v4494 = vmul.f32 %v4489, %v4376
        %v4495 = vmul.f32 %v4489, %v4377
        %v4496 = vmul.f32 %v4489, %v4378
        %v4497 = vmul.f32 %v4489, %v4379
        %v4498 = vadd.f32 %v4480, %v4490
        %v4499 = vadd.f32 %v4481, %v4491
        %v4500 = vadd.f32 %v4482, %v4492
        %v4501 = vadd.f32 %v4483, %v4493
        %v4502 = vadd.f32 %v4484, %v4494
        %v4503 = vadd.f32 %v4485, %v4495
        %v4504 = vadd.f32 %v4486, %v4496
        %v4505 = vadd.f32 %v4487, %v4497
        %s4506 = scalar_lea.vmem %s218, 192 [#allocation3]
        %4507 = vst [vmem:[%s4506] sm:$0xff] %v4498
        %4508 = vst [vmem:[%s4506 + $0x8] sm:$0xff] %v4499
        %4509 = vst [vmem:[%s4506 + $0x10] sm:$0xff] %v4500
        %4510 = vst [vmem:[%s4506 + $0x18] sm:$0xff] %v4501
        %4511 = vst [vmem:[%s4506 + $0x20] sm:$0xff] %v4502
        %4512 = vst [vmem:[%s4506 + $0x28] sm:$0xff] %v4503
        %4513 = vst [vmem:[%s4506 + $0x30] sm:$0xff] %v4504
        %4514 = vst [vmem:[%s4506 + $0x38] sm:$0xff] %v4505
        %s4515 = sand.u32 %s128, 1
        %s4516 = scalar_lea.sflag [#allocation4], %s4515
        %s4517 = sand.u32 %s128, 1
        %s4518 = smul.addr %s4517, 256
        %s4519 = scalar_lea.vmem [#allocation3], %s4518
        // Predicated region
        $region37: #{dilated_reparam_conv.1} parent=31 // pred_check
          %p4520 = pneg %p138
        $region38: #{dilated_reparam_conv.1} parent=31 // pred_check_branch
          %4522 = sbr.rel (%p4520) target = $region40
        $region39: #{dilated_reparam_conv.1} parent=31 // pred_region
          %s4523 = smul.u32 16, %s24
          %4525 = vsyncadd %s4516, 0
          %s4526 = smul.addr %s4523, 2
          %s4527 = sadd.s32 %s23, %s4526
          %s4528 = smul.addr %s22, 32
          %s4529 = sadd.s32 %s4527, %s4528
          %s4530 = smul.addr %s4529, 8
          %s4531 = scalar_lea.hbm %s3, %s4530
          %s4532 = sshll.u32 %s4519, 4
          %s4533 = int_to_ptr.vmem [resolvable:$true] %s4532
          %s4534 = sshll.u32 %s4531, 4
          %s4535 = int_to_ptr.hbm [resolvable:$true] %s4534
          %4540 = dma.vmem_to_hbm [thread:$0]  %s4533, 4096, %s4535, %s4516, 128, 128, 8
        $region40: #{dilated_reparam_conv.1} parent=31 // pred_fallthru
          _
      $region32: #{dilated_reparam_conv.1} parent=5 // pred_fallthru
        _
      %p4541 = scmp.le.s32.totalorder 2, %s12
      // Predicated region
      $region41: #{dilated_reparam_conv.1} parent=5 // pred_check
        %p4542 = pneg %p4541
      $region42: #{dilated_reparam_conv.1} parent=5 // pred_check_branch
        %4544 = sbr.rel (%p4542) target = $region44
      $region43: #{dilated_reparam_conv.1} parent=5 // pred_region
        %s4545 = ssub.s32 %s12, 2
        // Predicated region
        $region45: #{dilated_reparam_conv.1} parent=43 // pred_check
          %p4546 = pneg %p144
        $region46: #{dilated_reparam_conv.1} parent=43 // pred_check_branch
          %4548 = sbr.rel (%p4546) target = $region48
        $region47: #{dilated_reparam_conv.1} parent=43 // pred_region
          %s4549 = sand.u32 %s129, 1
          %s4550 = scalar_lea.sflag [#allocation4], %s4549
          %s4551 = sand.u32 %s129, 1
          %s4552 = smul.addr %s4551, 256
          %s4553 = scalar_lea.vmem [#allocation3], %s4552
          %4555 = dma.done %s4550, 4096
        $region48: #{dilated_reparam_conv.1} parent=43 // pred_fallthru
          _
      $region44: #{dilated_reparam_conv.1} parent=5 // pred_fallthru
        _
    $region6: #{dilated_reparam_conv.1} parent=1 // loop_footer
      %s16 = sadd.s32 1, %s12
    $region7: #{dilated_reparam_conv.1} parent=1 // loop_footer_branch
      %11 = sbr.rel target = $region3
    $region8: #{dilated_reparam_conv.1} parent=1 // loop_exit
      _
    %4556 = vsyncpa [#allocation4], 1
    %s4557 = scalar_lea.sflag [#allocation4], 1
    %4558 = vsyncpa %s4557, 1

</llo_original>
